<compile_context>
chip_gen: v6e
topology: v6e:2x2x1
jax: 0.10.0
libtpu: 0.0.40
codegen_flags: <defaults>
</compile_context>

<pallas_src>
import math
import functools

import jax
import jax.numpy as jnp
from jax import lax
from jax.experimental import pallas as pl
from jax.experimental.pallas import tpu as pltpu

_EPS = 1e-5      # PyTorch BatchNorm2d default eps
_LANES = 128     # lane-padded channel width of every activation / output
_TM = 256        # max conv output-row tile (single packed dot per tile)


def _ceil_to(x, m):
    return ((x + m - 1) // m) * m


def fold_bn(bn, conv_bias, cout):
    """Fold eval-mode BatchNorm (+ optional conv bias) into scale/bias."""
    if bn is None:
        scale = jnp.ones((cout,), jnp.float32)
        bias = conv_bias if conv_bias is not None else jnp.zeros((cout,), jnp.float32)
        return scale, bias
    gamma, beta, mean, var = bn
    scale = gamma / jnp.sqrt(var + _EPS)
    bias = beta - mean * scale
    if conv_bias is not None:
        bias = bias + conv_bias * scale
    return scale, bias


# ---------------------------------------------------------------------------
# Kernels
# ---------------------------------------------------------------------------
def _conv_kernel(x_ref, w_ref, b_ref, o_ref):
    # x_ref: (1, tm, Kp) bf16 packed slab tile; w_ref: (Kp, 128) bf16
    acc = jnp.dot(x_ref[0], w_ref[...], preferred_element_type=jnp.float32)
    o_ref[0] = jnp.maximum(acc + b_ref[...], 0.0).astype(o_ref.dtype)


def _conv_pool_kernel(x_ref, w_ref, b_ref, o_ref, pool_ref, *, tm, rows):
    # Same as _conv_kernel, plus per-batch channel sums of the (relu'd) output
    # accumulated across the row-tile grid axis (SE global-average-pool).
    i = pl.program_id(1)
    acc = jnp.dot(x_ref[0], w_ref[...], preferred_element_type=jnp.float32)
    out = jnp.maximum(acc + b_ref[...], 0.0)
    ridx = i * tm + lax.broadcasted_iota(jnp.int32, (tm, 1), 0)
    out = jnp.where(ridx < rows, out, 0.0)          # zero padded rows (exact pool)
    o_ref[0] = out.astype(o_ref.dtype)
    tile_sum = jnp.broadcast_to(jnp.sum(out, axis=0, keepdims=True), (8, _LANES))

    @pl.when(i == 0)
    def _():
        pool_ref[0] = jnp.zeros((8, _LANES), jnp.float32)

    pool_ref[0] = pool_ref[0] + tile_sum


def _conv_se_kernel(x_ref, p_ref, w1_ref, b1_ref, w2_ref, b2_ref,
                    w_ref, b_ref, o_ref):
    # SE gate of the PREVIOUS block computed from its pooled sums, applied to
    # this conv's packed input slab (w2 pre-tiled across taps), then conv+ReLU.
    pooled = p_ref[0][0:1, :]                                        # (1, 128) f32
    h = jnp.maximum(jnp.dot(pooled, w1_ref[...],
                            preferred_element_type=jnp.float32) + b1_ref[...], 0.0)
    gate = jnp.dot(h, w2_ref[...],
                   preferred_element_type=jnp.float32) + b2_ref[...]  # (1, Kp)
    xg = x_ref[0] * gate.astype(jnp.bfloat16)                         # (tm, Kp)
    acc = jnp.dot(xg, w_ref[...], preferred_element_type=jnp.float32)
    o_ref[0] = jnp.maximum(acc + b_ref[...], 0.0).astype(o_ref.dtype)


def _fc_kernel(x_ref, p_ref, w1_ref, b1_ref, w2_ref, b2_ref,
               wf1_ref, bf1_ref, wf2_ref, bf2_ref, o_ref):
    # SE2 gate (from down2's pooled sums) applied to the flattened features,
    # then fc1 -> ReLU -> fc2 -> ReLU (dropout = eval identity).
    pooled = p_ref[...][:, 0, :]                                      # (N, 128) f32
    h = jnp.maximum(jnp.dot(pooled, w1_ref[...],
                            preferred_element_type=jnp.float32) + b1_ref[...], 0.0)
    gate = jnp.dot(h, w2_ref[...],
                   preferred_element_type=jnp.float32) + b2_ref[...]  # (N, K1)
    xg = x_ref[...] * gate.astype(jnp.bfloat16)
    h1 = jnp.maximum(jnp.dot(xg, wf1_ref[...],
                             preferred_element_type=jnp.float32) + bf1_ref[...], 0.0)
    o = jnp.dot(h1.astype(jnp.bfloat16), wf2_ref[...],
                preferred_element_type=jnp.float32) + bf2_ref[...]
    o_ref[...] = jnp.maximum(o, 0.0)


# ---------------------------------------------------------------------------
# Conv + folded-BN + ReLU layer (one pallas_call), optional pool-out / SE-in
# ---------------------------------------------------------------------------
def conv_layer(x, w, b, bn, *, stride, pad, pool_out=False, se=None):
    """x: (N,H,W,C>=Cin) activation (lanes beyond Cin ignored); w: (Cout,Cin,KH,KW)."""
    assert not (pool_out and se is not None)
    N, H, W, _ = x.shape
    Cout, Cin, KH, KW = w.shape

    # Fold BN into the weights/bias; pack taps along the contraction rows.
    scale, bias = fold_bn(bn, b, Cout)
    wf = w * scale[:, None, None, None]
    K = KH * KW * Cin
    Kp = _ceil_to(K, _LANES)
    wk = jnp.transpose(wf, (2, 3, 1, 0)).reshape(K, Cout)
    wk = jnp.pad(wk, ((0, Kp - K), (0, _LANES - Cout))).astype(jnp.bfloat16)
    bp = jnp.pad(bias, (0, _LANES - Cout)).reshape(1, _LANES).astype(jnp.float32)

    # Narrow (real-channel) im2col slab built once in XLA: lanes = [tap, cin].
    xr = x[..., :Cin].astype(jnp.bfloat16)
    xp = jnp.pad(xr, ((0, 0), (pad, pad), (pad, pad), (0, 0)))
    Hp, Wp = H + 2 * pad, W + 2 * pad
    OH = (Hp - KH) // stride + 1
    OW = (Wp - KW) // stride + 1
    cols = []
    for kh in range(KH):
        for kw in range(KW):
            cols.append(xp[:, kh:kh + (OH - 1) * stride + 1:stride,
                           kw:kw + (OW - 1) * stride + 1:stride, :])
    slab = jnp.concatenate(cols, axis=-1).reshape(N, OH * OW, K)

    M = OH * OW
    tm = min(_TM, _ceil_to(M, 8))
    Mp = _ceil_to(M, tm)
    slab = jnp.pad(slab, ((0, 0), (0, Mp - M), (0, Kp - K)))
    grid = (N, Mp // tm)
    cparams = pltpu.CompilerParams(dimension_semantics=("parallel", "arbitrary"))

    common_in = [
        pl.BlockSpec((1, tm, Kp), lambda n, i: (n, i, 0)),       # slab tile
        pl.BlockSpec((Kp, _LANES), lambda n, i: (0, 0)),         # packed weights
        pl.BlockSpec((1, _LANES), lambda n, i: (0, 0)),          # folded bias
    ]
    out_spec = pl.BlockSpec((1, tm, _LANES), lambda n, i: (n, i, 0))

    if pool_out:
        out, pooled = pl.pallas_call(
            functools.partial(_conv_pool_kernel, tm=tm, rows=M),
            out_shape=(jax.ShapeDtypeStruct((N, Mp, _LANES), jnp.bfloat16),
                       jax.ShapeDtypeStruct((N, 8, _LANES), jnp.float32)),
            grid=grid,
            in_specs=common_in,
            out_specs=(out_spec,
                       pl.BlockSpec((1, 8, _LANES), lambda n, i: (n, 0, 0))),
            compiler_params=cparams,
        )(slab, wk, bp)
        out = out[:, :M, :].reshape(N, OH, OW, _LANES)
        return out, pooled

    if se is not None:
        prev_pooled, p_se, inv_hw = se
        c_red = p_se["w1"].shape[0]
        s1, b1_ = fold_bn(p_se["bn1"], None, c_red)
        s2, b2_ = fold_bn(p_se["bn2"], None, Cin)
        # Fold BN1 and the 1/HW pooling mean into w1; BN2 into w2.
        w1e = (p_se["w1"].reshape(c_red, Cin) * s1[:, None]) * inv_hw   # (red, Cin)
        w1m = jnp.pad(w1e.T, ((0, _LANES - Cin), (0, _LANES - c_red))).astype(jnp.float32)
        b1m = jnp.pad(b1_, (0, _LANES - c_red)).reshape(1, _LANES).astype(jnp.float32)
        w2e = (p_se["w2"].reshape(Cin, c_red) * s2[:, None]).T          # (red, Cin)
        w2t = jnp.tile(w2e, (1, KH * KW))                               # tile across taps
        w2t = jnp.pad(w2t, ((0, _LANES - c_red), (0, Kp - K))).astype(jnp.float32)
        b2t = jnp.pad(jnp.tile(b2_, KH * KW), (0, Kp - K)).reshape(1, Kp).astype(jnp.float32)

        out = pl.pallas_call(
            _conv_se_kernel,
            out_shape=jax.ShapeDtypeStruct((N, Mp, _LANES), jnp.bfloat16),
            grid=grid,
            in_specs=[
                common_in[0],
                pl.BlockSpec((1, 8, _LANES), lambda n, i: (n, 0, 0)),   # pooled sums
                pl.BlockSpec((_LANES, _LANES), lambda n, i: (0, 0)),    # SE w1
                pl.BlockSpec((1, _LANES), lambda n, i: (0, 0)),         # SE b1
                pl.BlockSpec((_LANES, Kp), lambda n, i: (0, 0)),        # SE w2 (tap-tiled)
                pl.BlockSpec((1, Kp), lambda n, i: (0, 0)),             # SE b2 (tap-tiled)
                common_in[1],
                common_in[2],
            ],
            out_specs=out_spec,
            compiler_params=cparams,
        )(slab, prev_pooled, w1m, b1m, w2t, b2t, wk, bp)
        return out[:, :M, :].reshape(N, OH, OW, _LANES)

    out = pl.pallas_call(
        _conv_kernel,
        out_shape=jax.ShapeDtypeStruct((N, Mp, _LANES), jnp.bfloat16),
        grid=grid,
        in_specs=common_in,
        out_specs=out_spec,
        compiler_params=cparams,
    )(slab, wk, bp)
    return out[:, :M, :].reshape(N, OH, OW, _LANES)


# ---------------------------------------------------------------------------
# Fused classifier head: SE2 gate -> flatten -> fc1 -> ReLU -> fc2 -> ReLU
# ---------------------------------------------------------------------------
def fc_head(x, pooled, p_se, inv_hw, fc1_w, fc1_b, fc2_w, fc2_b):
    # TODO(synk): nn.Dropout implemented in eval/inference mode (identity); training RNG mask omitted.
    N, H, W, _ = x.shape
    HWp = H * W
    K1 = HWp * _LANES
    C = p_se["w2"].shape[0]
    c_red = p_se["w1"].shape[0]

    s1, b1_ = fold_bn(p_se["bn1"], None, c_red)
    s2, b2_ = fold_bn(p_se["bn2"], None, C)
    w1e = (p_se["w1"].reshape(c_red, C) * s1[:, None]) * inv_hw
    w1m = jnp.pad(w1e.T, ((0, _LANES - C), (0, _LANES - c_red))).astype(jnp.float32)
    b1m = jnp.pad(b1_, (0, _LANES - c_red)).reshape(1, _LANES).astype(jnp.float32)
    w2e = jnp.pad((p_se["w2"].reshape(C, c_red) * s2[:, None]).T,
                  ((0, _LANES - c_red), (0, _LANES - C)))               # (128, 128)
    w2s = jnp.tile(w2e, (1, HWp)).astype(jnp.float32)                   # (128, K1)
    b2s = jnp.tile(jnp.pad(b2_, (0, _LANES - C)), HWp).reshape(1, K1).astype(jnp.float32)

    # fc1 columns rearranged from torch NCHW-flatten order to our (h, w, c_pad).
    NFC1 = fc1_w.shape[0]
    wf1 = fc1_w.reshape(NFC1, C, H, W).transpose(2, 3, 1, 0)            # (H, W, C, 128)
    wf1 = jnp.pad(wf1, ((0, 0), (0, 0), (0, _LANES - C), (0, 0))).reshape(K1, NFC1)
    wf1 = wf1.astype(jnp.bfloat16)
    bf1 = fc1_b.reshape(1, NFC1).astype(jnp.float32)
    NCLS = fc2_w.shape[0]
    wf2 = jnp.pad(fc2_w.T, ((0, 0), (0, _LANES - NCLS))).astype(jnp.bfloat16)
    bf2 = jnp.pad(fc2_b, (0, _LANES - NCLS)).reshape(1, _LANES).astype(jnp.float32)

    xf = x.reshape(N, K1)
    out = pl.pallas_call(
        _fc_kernel,
        out_shape=jax.ShapeDtypeStruct((N, _LANES), jnp.float32),
        grid=(1,),
        in_specs=[
            pl.BlockSpec((N, K1), lambda i: (0, 0)),
            pl.BlockSpec((N, 8, _LANES), lambda i: (0, 0, 0)),
            pl.BlockSpec((_LANES, _LANES), lambda i: (0, 0)),
            pl.BlockSpec((1, _LANES), lambda i: (0, 0)),
            pl.BlockSpec((_LANES, K1), lambda i: (0, 0)),
            pl.BlockSpec((1, K1), lambda i: (0, 0)),
            pl.BlockSpec((K1, NFC1), lambda i: (0, 0)),
            pl.BlockSpec((1, NFC1), lambda i: (0, 0)),
            pl.BlockSpec((NFC1, _LANES), lambda i: (0, 0)),
            pl.BlockSpec((1, _LANES), lambda i: (0, 0)),
        ],
        out_specs=pl.BlockSpec((N, _LANES), lambda i: (0, 0)),
        compiler_params=pltpu.CompilerParams(dimension_semantics=("arbitrary",)),
    )(xf, pooled, w1m, b1m, w2s, b2s, wf1, bf1, wf2, bf2)
    return out[:, :NCLS]


# ---------------------------------------------------------------------------
# Net forward (use_bn=True, use_dropout=True; eval semantics)
# ---------------------------------------------------------------------------
def net_forward(params, x):
    p = params
    x = jnp.transpose(x, (0, 2, 3, 1))                                 # NCHW -> NHWC

    x = conv_layer(x, p["conv0_w"], p["conv0_b"], p["bn0"], stride=1, pad=1)
    x = conv_layer(x, p["dw1_w"], p["dw1_b"], p["bn1_0"], stride=1, pad=0)
    x, pool1 = conv_layer(x, p["down1_w"], p["down1_b"], p["bn1_1"],
                          stride=2, pad=0, pool_out=True)
    hw1 = x.shape[1] * x.shape[2]
    # se1 is fused: gate computed + applied inside the dw2 conv kernel.
    x = conv_layer(x, p["dw2_w"], p["dw2_b"], p["bn2_0"], stride=1, pad=0,
                   se=(pool1, p["se1"], 1.0 / hw1))
    x, pool2 = conv_layer(x, p["down2_w"], p["down2_b"], p["bn2_1"],
                          stride=3, pad=2, pool_out=True)
    hw2 = x.shape[1] * x.shape[2]
    # se2 is fused into the classifier-head kernel.
    return fc_head(x, pool2, p["se2"], 1.0 / hw2,
                   p["fc1_w"], p["fc1_b"], p["fc2_w"], p["fc2_b"])


# ---------------------------------------------------------------------------
# Deterministic parameter initialization (mirrors the module's __init__ shapes)
# ---------------------------------------------------------------------------
def init_params(key):
    keys = jax.random.split(key, 16)

    def conv_w(k, cout, cin, kh, kw):
        n = kh * kw * cout
        return (jax.random.normal(k, (cout, cin, kh, kw)) * math.sqrt(2.0 / n)).astype(jnp.float32)

    def conv_b(k, cout, cin, kh, kw):
        bound = 1.0 / math.sqrt(cin * kh * kw)
        return jax.random.uniform(k, (cout,), jnp.float32, -bound, bound)

    def bn(c):
        return (jnp.ones((c,), jnp.float32), jnp.zeros((c,), jnp.float32),
                jnp.zeros((c,), jnp.float32), jnp.ones((c,), jnp.float32))

    def lin(k, cout, cin):
        k1, k2 = jax.random.split(k)
        bound = 1.0 / math.sqrt(cin)
        w = jax.random.uniform(k1, (cout, cin), jnp.float32, -bound, bound)
        b = jax.random.uniform(k2, (cout,), jnp.float32, -bound, bound)
        return w, b

    fc1_w, fc1_b = lin(keys[10], 128, 64 * 5 * 5)
    fc2_w, fc2_b = lin(keys[11], 10, 128)

    return {
        "conv0_w": conv_w(keys[0], 8, 3, 3, 3), "conv0_b": conv_b(keys[1], 8, 3, 3, 3), "bn0": bn(8),
        "dw1_w": conv_w(keys[2], 16, 8, 3, 3), "dw1_b": conv_b(keys[3], 16, 8, 3, 3), "bn1_0": bn(16),
        "down1_w": conv_w(keys[4], 32, 16, 3, 3), "down1_b": conv_b(keys[5], 32, 16, 3, 3), "bn1_1": bn(32),
        "se1": {"w1": conv_w(keys[6], 8, 32, 1, 1), "bn1": bn(8),
                "w2": conv_w(keys[7], 32, 8, 1, 1), "bn2": bn(32)},
        "dw2_w": conv_w(keys[8], 32, 32, 3, 3), "dw2_b": conv_b(keys[9], 32, 32, 3, 3), "bn2_0": bn(32),
        "down2_w": conv_w(keys[12], 64, 32, 2, 2), "down2_b": conv_b(keys[13], 64, 32, 2, 2), "bn2_1": bn(64),
        "se2": {"w1": conv_w(keys[14], 16, 64, 1, 1), "bn1": bn(16),
                "w2": conv_w(keys[15], 64, 16, 1, 1), "bn2": bn(64)},
        "fc1_w": fc1_w, "fc1_b": fc1_b, "fc2_w": fc2_w, "fc2_b": fc2_b,
    }


if __name__ == "__main__":
    key = jax.random.PRNGKey(0)
    pkey, xkey = jax.random.split(key)
    params = init_params(pkey)
    # Input must be 32x32 so the flattened feature size is 64*5*5 = 1600 (fc1 in_features).
    x = jax.random.normal(xkey, (2, 3, 32, 32), jnp.float32)
    out = jax.jit(net_forward)(params, x)
    out = jax.block_until_ready(out)
    assert out.shape == (2, 10) and out.dtype == jnp.float32
    print("KERNEL_OK")
</pallas_src>

<mosaic_0001>
module attributes {stable_mosaic.version = 11 : i64} {
  func.func @_conv_kernel(%arg0: i32, %arg1: i32, %arg2: memref<1x256x128xbf16, #tpu.memory_space<vmem>>, %arg3: memref<128x128xbf16, #tpu.memory_space<vmem>>, %arg4: memref<1x128xf32, #tpu.memory_space<vmem>>, %arg5: memref<1x256x128xbf16, #tpu.memory_space<vmem>>) attributes {dimension_semantics = [#tpu.dimension_semantics<parallel>, #tpu.dimension_semantics<arbitrary>], iteration_bounds = array<i64: 2, 4>, scalar_prefetch = 0 : i64, scratch_operands = 0 : i64, tpu.core_type = #tpu.core_type<tc>, window_params = [{transform_indices = @transform_0, window_bounds = array<i64: 1, 256, 128>}, {pipeline_mode = #tpu.pipeline_mode<synchronous>, transform_indices = @transform_1, window_bounds = array<i64: 128, 128>}, {pipeline_mode = #tpu.pipeline_mode<synchronous>, transform_indices = @transform_2, window_bounds = array<i64: 1, 128>}, {transform_indices = @transform_3, window_bounds = array<i64: 1, 256, 128>}]} {
    %c0 = arith.constant 0 : index
    %c0_0 = arith.constant 0 : index
    %c0_1 = arith.constant 0 : index
    %0 = vector.load %arg2[%c0, %c0_0, %c0_1] : memref<1x256x128xbf16, #tpu.memory_space<vmem>>, vector<1x256x128xbf16>
    %1 = vector.shape_cast %0 : vector<1x256x128xbf16> to vector<256x128xbf16>
    %c0_2 = arith.constant 0 : index
    %c0_3 = arith.constant 0 : index
    %2 = vector.load %arg3[%c0_2, %c0_3] : memref<128x128xbf16, #tpu.memory_space<vmem>>, vector<128x128xbf16>
    %cst = arith.constant dense<0.000000e+00> : vector<256x128xf32>
    %3 = tpu.matmul %1, %2, %cst {dimension_numbers = #tpu.dot_dimension_numbers<[1], [0], [0], [1], [0, 0, 1, 1], [], []>} : vector<256x128xbf16>, vector<128x128xbf16>, vector<256x128xf32> -> vector<256x128xf32>
    %c0_4 = arith.constant 0 : index
    %c0_5 = arith.constant 0 : index
    %4 = vector.load %arg4[%c0_4, %c0_5] : memref<1x128xf32, #tpu.memory_space<vmem>>, vector<1x128xf32>
    %5 = vector.broadcast %4 : vector<1x128xf32> to vector<256x128xf32>
    %6 = arith.addf %3, %5 : vector<256x128xf32>
    %cst_6 = arith.constant 0.000000e+00 : f32
    %7 = vector.broadcast %cst_6 : f32 to vector<256x128xf32>
    %8 = arith.maximumf %6, %7 : vector<256x128xf32>
    %9 = arith.truncf %8 : vector<256x128xf32> to vector<256x128xbf16>
    %c0_7 = arith.constant 0 : index
    %c0_8 = arith.constant 0 : index
    %c0_9 = arith.constant 0 : index
    %10 = vector.load %arg5[%c0_7, %c0_8, %c0_9] : memref<1x256x128xbf16, #tpu.memory_space<vmem>>, vector<1x256x128xbf16>
    %11 = vector.shape_cast %10 : vector<1x256x128xbf16> to vector<256x128xbf16>
    %12 = vector.shape_cast %9 : vector<256x128xbf16> to vector<1x256x128xbf16>
    tpu.vector_store %arg5[%c0_7, %c0_8, %c0_9], %12 {strides = array<i32>} : memref<1x256x128xbf16, #tpu.memory_space<vmem>>, vector<1x256x128xbf16>,
    return
  }
  func.func @transform_0(%arg0: i32, %arg1: i32) -> (i32, i32, i32) {
    %c0_i32 = arith.constant 0 : i32
    %c0_i32_0 = arith.constant 0 : i32
    return %arg0, %arg1, %c0_i32 : i32, i32, i32
  }
  func.func @transform_1(%arg0: i32, %arg1: i32) -> (i32, i32) {
    %c0_i32 = arith.constant 0 : i32
    %c0_i32_0 = arith.constant 0 : i32
    %c0_i32_1 = arith.constant 0 : i32
    return %c0_i32, %c0_i32_0 : i32, i32
  }
  func.func @transform_2(%arg0: i32, %arg1: i32) -> (i32, i32) {
    %c0_i32 = arith.constant 0 : i32
    %c0_i32_0 = arith.constant 0 : i32
    %c0_i32_1 = arith.constant 0 : i32
    return %c0_i32, %c0_i32_0 : i32, i32
  }
  func.func @transform_3(%arg0: i32, %arg1: i32) -> (i32, i32, i32) {
    %c0_i32 = arith.constant 0 : i32
    %c0_i32_0 = arith.constant 0 : i32
    return %arg0, %arg1, %c0_i32 : i32, i32, i32
  }
}

module attributes {stable_mosaic.version = 11 : i64} {
  func.func @_conv_pool_kernel(%arg0: i32, %arg1: i32, %arg2: memref<1x200x256xbf16, #tpu.memory_space<vmem>>, %arg3: memref<256x128xbf16, #tpu.memory_space<vmem>>, %arg4: memref<1x128xf32, #tpu.memory_space<vmem>>, %arg5: memref<1x200x128xbf16, #tpu.memory_space<vmem>>, %arg6: memref<1x8x128xf32, #tpu.memory_space<vmem>>) attributes {dimension_semantics = [#tpu.dimension_semantics<parallel>, #tpu.dimension_semantics<arbitrary>], iteration_bounds = array<i64: 2, 1>, scalar_prefetch = 0 : i64, scratch_operands = 0 : i64, tpu.core_type = #tpu.core_type<tc>, window_params = [{transform_indices = @transform_0, window_bounds = array<i64: 1, 200, 256>}, {pipeline_mode = #tpu.pipeline_mode<synchronous>, transform_indices = @transform_1, window_bounds = array<i64: 256, 128>}, {pipeline_mode = #tpu.pipeline_mode<synchronous>, transform_indices = @transform_2, window_bounds = array<i64: 1, 128>}, {transform_indices = @transform_3, window_bounds = array<i64: 1, 200, 128>}, {transform_indices = @transform_4, window_bounds = array<i64: 1, 8, 128>}]} {
    %c0 = arith.constant 0 : index
    %c0_0 = arith.constant 0 : index
    %c0_1 = arith.constant 0 : index
    %0 = vector.load %arg2[%c0, %c0_0, %c0_1] : memref<1x200x256xbf16, #tpu.memory_space<vmem>>, vector<1x200x256xbf16>
    %1 = vector.shape_cast %0 : vector<1x200x256xbf16> to vector<200x256xbf16>
    %c0_2 = arith.constant 0 : index
    %c0_3 = arith.constant 0 : index
    %2 = vector.load %arg3[%c0_2, %c0_3] : memref<256x128xbf16, #tpu.memory_space<vmem>>, vector<256x128xbf16>
    %cst = arith.constant dense<0.000000e+00> : vector<200x128xf32>
    %3 = tpu.matmul %1, %2, %cst {dimension_numbers = #tpu.dot_dimension_numbers<[1], [0], [0], [1], [0, 0, 1, 1], [], []>} : vector<200x256xbf16>, vector<256x128xbf16>, vector<200x128xf32> -> vector<200x128xf32>
    %c0_4 = arith.constant 0 : index
    %c0_5 = arith.constant 0 : index
    %4 = vector.load %arg4[%c0_4, %c0_5] : memref<1x128xf32, #tpu.memory_space<vmem>>, vector<1x128xf32>
    %5 = vector.broadcast %4 : vector<1x128xf32> to vector<200x128xf32>
    %6 = arith.addf %3, %5 : vector<200x128xf32>
    %cst_6 = arith.constant 0.000000e+00 : f32
    %7 = vector.broadcast %cst_6 : f32 to vector<200x128xf32>
    %8 = arith.maximumf %6, %7 : vector<200x128xf32>
    %c200_i32 = arith.constant 200 : i32
    %9 = arith.muli %arg1, %c200_i32 : i32
    %10 = tpu.iota {dimensions = array<i32: 0>} : vector<200x1xi32>
    %11 = vector.broadcast %9 : i32 to vector<200x1xi32>
    %12 = arith.addi %11, %10 : vector<200x1xi32>
    %c196_i32 = arith.constant 196 : i32
    %13 = vector.broadcast %c196_i32 : i32 to vector<200x1xi32>
    %14 = arith.cmpi slt, %12, %13 : vector<200x1xi32>
    %cst_7 = arith.constant 0.000000e+00 : f32
    %15 = vector.shape_cast %14 : vector<200x1xi1> to vector<200x1xi1>
    %16 = vector.broadcast %15 : vector<200x1xi1> to vector<200x128xi1>
    %17 = vector.broadcast %cst_7 : f32 to vector<200x128xf32>
    %18 = arith.select %16, %8, %17 : vector<200x128xi1>, vector<200x128xf32>
    %19 = arith.truncf %18 : vector<200x128xf32> to vector<200x128xbf16>
    %c0_8 = arith.constant 0 : index
    %c0_9 = arith.constant 0 : index
    %c0_10 = arith.constant 0 : index
    %20 = vector.load %arg5[%c0_8, %c0_9, %c0_10] : memref<1x200x128xbf16, #tpu.memory_space<vmem>>, vector<1x200x128xbf16>
    %21 = vector.shape_cast %20 : vector<1x200x128xbf16> to vector<200x128xbf16>
    %22 = vector.shape_cast %19 : vector<200x128xbf16> to vector<1x200x128xbf16>
    tpu.vector_store %arg5[%c0_8, %c0_9, %c0_10], %22 {strides = array<i32>} : memref<1x200x128xbf16, #tpu.memory_space<vmem>>, vector<1x200x128xbf16>,
    %cst_11 = arith.constant dense<0.000000e+00> : vector<128xf32>
    %23 = vector.multi_reduction <add>, %18, %cst_11 [0] : vector<200x128xf32> to vector<128xf32>
    %24 = vector.shape_cast %23 : vector<128xf32> to vector<1x128xf32>
    %25 = vector.shape_cast %24 : vector<1x128xf32> to vector<1x128xf32>
    %26 = vector.broadcast %25 : vector<1x128xf32> to vector<8x128xf32>
    %c0_i32 = arith.constant 0 : i32
    %27 = arith.cmpi eq, %arg1, %c0_i32 : i32
    %28 = arith.extui %27 : i1 to i32
    %c0_i32_12 = arith.constant 0 : i32
    %29 = arith.cmpi ne, %28, %c0_i32_12 : i32
    scf.if %29 {
      %cst_19 = arith.constant 0.000000e+00 : f32
      %36 = vector.broadcast %cst_19 : f32 to vector<8x128xf32>
      %c0_20 = arith.constant 0 : index
      %c0_21 = arith.constant 0 : index
      %c0_22 = arith.constant 0 : index
      %37 = vector.load %arg6[%c0_20, %c0_21, %c0_22] : memref<1x8x128xf32, #tpu.memory_space<vmem>>, vector<1x8x128xf32>
      %38 = vector.shape_cast %37 : vector<1x8x128xf32> to vector<8x128xf32>
      %39 = vector.shape_cast %36 : vector<8x128xf32> to vector<1x8x128xf32>
      tpu.vector_store %arg6[%c0_20, %c0_21, %c0_22], %39 {strides = array<i32>} : memref<1x8x128xf32, #tpu.memory_space<vmem>>, vector<1x8x128xf32>,
    } else {
    }
    %c0_13 = arith.constant 0 : index
    %c0_14 = arith.constant 0 : index
    %c0_15 = arith.constant 0 : index
    %30 = vector.load %arg6[%c0_13, %c0_14, %c0_15] : memref<1x8x128xf32, #tpu.memory_space<vmem>>, vector<1x8x128xf32>
    %31 = vector.shape_cast %30 : vector<1x8x128xf32> to vector<8x128xf32>
    %32 = arith.addf %31, %26 : vector<8x128xf32>
    %c0_16 = arith.constant 0 : index
    %c0_17 = arith.constant 0 : index
    %c0_18 = arith.constant 0 : index
    %33 = vector.load %arg6[%c0_16, %c0_17, %c0_18] : memref<1x8x128xf32, #tpu.memory_space<vmem>>, vector<1x8x128xf32>
    %34 = vector.shape_cast %33 : vector<1x8x128xf32> to vector<8x128xf32>
    %35 = vector.shape_cast %32 : vector<8x128xf32> to vector<1x8x128xf32>
    tpu.vector_store %arg6[%c0_16, %c0_17, %c0_18], %35 {strides = array<i32>} : memref<1x8x128xf32, #tpu.memory_space<vmem>>, vector<1x8x128xf32>,
    return
  }
  func.func @transform_0(%arg0: i32, %arg1: i32) -> (i32, i32, i32) {
    %c0_i32 = arith.constant 0 : i32
    %c0_i32_0 = arith.constant 0 : i32
    return %arg0, %arg1, %c0_i32 : i32, i32, i32
  }
  func.func @transform_1(%arg0: i32, %arg1: i32) -> (i32, i32) {
    %c0_i32 = arith.constant 0 : i32
    %c0_i32_0 = arith.constant 0 : i32
    %c0_i32_1 = arith.constant 0 : i32
    return %c0_i32, %c0_i32_0 : i32, i32
  }
  func.func @transform_2(%arg0: i32, %arg1: i32) -> (i32, i32) {
    %c0_i32 = arith.constant 0 : i32
    %c0_i32_0 = arith.constant 0 : i32
    %c0_i32_1 = arith.constant 0 : i32
    return %c0_i32, %c0_i32_0 : i32, i32
  }
  func.func @transform_3(%arg0: i32, %arg1: i32) -> (i32, i32, i32) {
    %c0_i32 = arith.constant 0 : i32
    %c0_i32_0 = arith.constant 0 : i32
    return %arg0, %arg1, %c0_i32 : i32, i32, i32
  }
  func.func @transform_4(%arg0: i32, %arg1: i32) -> (i32, i32, i32) {
    %c0_i32 = arith.constant 0 : i32
    %c0_i32_0 = arith.constant 0 : i32
    %c0_i32_1 = arith.constant 0 : i32
    return %arg0, %c0_i32, %c0_i32_0 : i32, i32, i32
  }
}

module attributes {stable_mosaic.version = 11 : i64} {
  func.func @_conv_se_kernel(%arg0: i32, %arg1: i32, %arg2: memref<1x144x384xbf16, #tpu.memory_space<vmem>>, %arg3: memref<1x8x128xf32, #tpu.memory_space<vmem>>, %arg4: memref<128x128xf32, #tpu.memory_space<vmem>>, %arg5: memref<1x128xf32, #tpu.memory_space<vmem>>, %arg6: memref<128x384xf32, #tpu.memory_space<vmem>>, %arg7: memref<1x384xf32, #tpu.memory_space<vmem>>, %arg8: memref<384x128xbf16, #tpu.memory_space<vmem>>, %arg9: memref<1x128xf32, #tpu.memory_space<vmem>>, %arg10: memref<1x144x128xbf16, #tpu.memory_space<vmem>>) attributes {dimension_semantics = [#tpu.dimension_semantics<parallel>, #tpu.dimension_semantics<arbitrary>], iteration_bounds = array<i64: 2, 1>, scalar_prefetch = 0 : i64, scratch_operands = 0 : i64, tpu.core_type = #tpu.core_type<tc>, window_params = [{transform_indices = @transform_0, window_bounds = array<i64: 1, 144, 384>}, {transform_indices = @transform_1, window_bounds = array<i64: 1, 8, 128>}, {pipeline_mode = #tpu.pipeline_mode<synchronous>, transform_indices = @transform_2, window_bounds = array<i64: 128, 128>}, {pipeline_mode = #tpu.pipeline_mode<synchronous>, transform_indices = @transform_3, window_bounds = array<i64: 1, 128>}, {pipeline_mode = #tpu.pipeline_mode<synchronous>, transform_indices = @transform_4, window_bounds = array<i64: 128, 384>}, {pipeline_mode = #tpu.pipeline_mode<synchronous>, transform_indices = @transform_5, window_bounds = array<i64: 1, 384>}, {pipeline_mode = #tpu.pipeline_mode<synchronous>, transform_indices = @transform_6, window_bounds = array<i64: 384, 128>}, {pipeline_mode = #tpu.pipeline_mode<synchronous>, transform_indices = @transform_7, window_bounds = array<i64: 1, 128>}, {transform_indices = @transform_8, window_bounds = array<i64: 1, 144, 128>}]} {
    %c0 = arith.constant 0 : index
    %c0_0 = arith.constant 0 : index
    %c0_1 = arith.constant 0 : index
    %0 = vector.load %arg3[%c0, %c0_0, %c0_1] : memref<1x8x128xf32, #tpu.memory_space<vmem>>, vector<1x8x128xf32>
    %1 = vector.shape_cast %0 : vector<1x8x128xf32> to vector<8x128xf32>
    %2 = vector.extract_strided_slice %1 {offsets = [0, 0], sizes = [1, 128], strides = [1, 1]} : vector<8x128xf32> to vector<1x128xf32>
    %c0_2 = arith.constant 0 : index
    %c0_3 = arith.constant 0 : index
    %3 = vector.load %arg4[%c0_2, %c0_3] : memref<128x128xf32, #tpu.memory_space<vmem>>, vector<128x128xf32>
    %cst = arith.constant dense<0.000000e+00> : vector<1x128xf32>
    %4 = tpu.matmul %2, %3, %cst {dimension_numbers = #tpu.dot_dimension_numbers<[1], [0], [0], [1], [0, 0, 1, 1], [], []>} : vector<1x128xf32>, vector<128x128xf32>, vector<1x128xf32> -> vector<1x128xf32>
    %c0_4 = arith.constant 0 : index
    %c0_5 = arith.constant 0 : index
    %5 = vector.load %arg5[%c0_4, %c0_5] : memref<1x128xf32, #tpu.memory_space<vmem>>, vector<1x128xf32>
    %6 = arith.addf %4, %5 : vector<1x128xf32>
    %cst_6 = arith.constant 0.000000e+00 : f32
    %7 = vector.broadcast %cst_6 : f32 to vector<1x128xf32>
    %8 = arith.maximumf %6, %7 : vector<1x128xf32>
    %c0_7 = arith.constant 0 : index
    %c0_8 = arith.constant 0 : index
    %9 = vector.load %arg6[%c0_7, %c0_8] : memref<128x384xf32, #tpu.memory_space<vmem>>, vector<128x384xf32>
    %cst_9 = arith.constant dense<0.000000e+00> : vector<1x384xf32>
    %10 = tpu.matmul %8, %9, %cst_9 {dimension_numbers = #tpu.dot_dimension_numbers<[1], [0], [0], [1], [0, 0, 1, 1], [], []>} : vector<1x128xf32>, vector<128x384xf32>, vector<1x384xf32> -> vector<1x384xf32>
    %c0_10 = arith.constant 0 : index
    %c0_11 = arith.constant 0 : index
    %11 = vector.load %arg7[%c0_10, %c0_11] : memref<1x384xf32, #tpu.memory_space<vmem>>, vector<1x384xf32>
    %12 = arith.addf %10, %11 : vector<1x384xf32>
    %c0_12 = arith.constant 0 : index
    %c0_13 = arith.constant 0 : index
    %c0_14 = arith.constant 0 : index
    %13 = vector.load %arg2[%c0_12, %c0_13, %c0_14] : memref<1x144x384xbf16, #tpu.memory_space<vmem>>, vector<1x144x384xbf16>
    %14 = vector.shape_cast %13 : vector<1x144x384xbf16> to vector<144x384xbf16>
    %15 = arith.truncf %12 : vector<1x384xf32> to vector<1x384xbf16>
    %16 = vector.broadcast %15 : vector<1x384xbf16> to vector<144x384xbf16>
    %17 = arith.mulf %14, %16 : vector<144x384xbf16>
    %c0_15 = arith.constant 0 : index
    %c0_16 = arith.constant 0 : index
    %18 = vector.load %arg8[%c0_15, %c0_16] : memref<384x128xbf16, #tpu.memory_space<vmem>>, vector<384x128xbf16>
    %cst_17 = arith.constant dense<0.000000e+00> : vector<144x128xf32>
    %19 = tpu.matmul %17, %18, %cst_17 {dimension_numbers = #tpu.dot_dimension_numbers<[1], [0], [0], [1], [0, 0, 1, 1], [], []>} : vector<144x384xbf16>, vector<384x128xbf16>, vector<144x128xf32> -> vector<144x128xf32>
    %c0_18 = arith.constant 0 : index
    %c0_19 = arith.constant 0 : index
    %20 = vector.load %arg9[%c0_18, %c0_19] : memref<1x128xf32, #tpu.memory_space<vmem>>, vector<1x128xf32>
    %21 = vector.broadcast %20 : vector<1x128xf32> to vector<144x128xf32>
    %22 = arith.addf %19, %21 : vector<144x128xf32>
    %cst_20 = arith.constant 0.000000e+00 : f32
    %23 = vector.broadcast %cst_20 : f32 to vector<144x128xf32>
    %24 = arith.maximumf %22, %23 : vector<144x128xf32>
    %25 = arith.truncf %24 : vector<144x128xf32> to vector<144x128xbf16>
    %c0_21 = arith.constant 0 : index
    %c0_22 = arith.constant 0 : index
    %c0_23 = arith.constant 0 : index
    %26 = vector.load %arg10[%c0_21, %c0_22, %c0_23] : memref<1x144x128xbf16, #tpu.memory_space<vmem>>, vector<1x144x128xbf16>
    %27 = vector.shape_cast %26 : vector<1x144x128xbf16> to vector<144x128xbf16>
    %28 = vector.shape_cast %25 : vector<144x128xbf16> to vector<1x144x128xbf16>
    tpu.vector_store %arg10[%c0_21, %c0_22, %c0_23], %28 {strides = array<i32>} : memref<1x144x128xbf16, #tpu.memory_space<vmem>>, vector<1x144x128xbf16>,
    return
  }
  func.func @transform_0(%arg0: i32, %arg1: i32) -> (i32, i32, i32) {
    %c0_i32 = arith.constant 0 : i32
    %c0_i32_0 = arith.constant 0 : i32
    return %arg0, %arg1, %c0_i32 : i32, i32, i32
  }
  func.func @transform_1(%arg0: i32, %arg1: i32) -> (i32, i32, i32) {
    %c0_i32 = arith.constant 0 : i32
    %c0_i32_0 = arith.constant 0 : i32
    %c0_i32_1 = arith.constant 0 : i32
    return %arg0, %c0_i32, %c0_i32_0 : i32, i32, i32
  }
  func.func @transform_2(%arg0: i32, %arg1: i32) -> (i32, i32) {
    %c0_i32 = arith.constant 0 : i32
    %c0_i32_0 = arith.constant 0 : i32
    %c0_i32_1 = arith.constant 0 : i32
    return %c0_i32, %c0_i32_0 : i32, i32
  }
  func.func @transform_3(%arg0: i32, %arg1: i32) -> (i32, i32) {
    %c0_i32 = arith.constant 0 : i32
    %c0_i32_0 = arith.constant 0 : i32
    %c0_i32_1 = arith.constant 0 : i32
    return %c0_i32, %c0_i32_0 : i32, i32
  }
  func.func @transform_4(%arg0: i32, %arg1: i32) -> (i32, i32) {
    %c0_i32 = arith.constant 0 : i32
    %c0_i32_0 = arith.constant 0 : i32
    %c0_i32_1 = arith.constant 0 : i32
    return %c0_i32, %c0_i32_0 : i32, i32
  }
  func.func @transform_5(%arg0: i32, %arg1: i32) -> (i32, i32) {
    %c0_i32 = arith.constant 0 : i32
    %c0_i32_0 = arith.constant 0 : i32
    %c0_i32_1 = arith.constant 0 : i32
    return %c0_i32, %c0_i32_0 : i32, i32
  }
  func.func @transform_6(%arg0: i32, %arg1: i32) -> (i32, i32) {
    %c0_i32 = arith.constant 0 : i32
    %c0_i32_0 = arith.constant 0 : i32
    %c0_i32_1 = arith.constant 0 : i32
    return %c0_i32, %c0_i32_0 : i32, i32
  }
  func.func @transform_7(%arg0: i32, %arg1: i32) -> (i32, i32) {
    %c0_i32 = arith.constant 0 : i32
    %c0_i32_0 = arith.constant 0 : i32
    %c0_i32_1 = arith.constant 0 : i32
    return %c0_i32, %c0_i32_0 : i32, i32
  }
  func.func @transform_8(%arg0: i32, %arg1: i32) -> (i32, i32, i32) {
    %c0_i32 = arith.constant 0 : i32
    %c0_i32_0 = arith.constant 0 : i32
    return %arg0, %arg1, %c0_i32 : i32, i32, i32
  }
}

module attributes {stable_mosaic.version = 11 : i64} {
  func.func @_conv_pool_kernel(%arg0: i32, %arg1: i32, %arg2: memref<1x32x128xbf16, #tpu.memory_space<vmem>>, %arg3: memref<128x128xbf16, #tpu.memory_space<vmem>>, %arg4: memref<1x128xf32, #tpu.memory_space<vmem>>, %arg5: memref<1x32x128xbf16, #tpu.memory_space<vmem>>, %arg6: memref<1x8x128xf32, #tpu.memory_space<vmem>>) attributes {dimension_semantics = [#tpu.dimension_semantics<parallel>, #tpu.dimension_semantics<arbitrary>], iteration_bounds = array<i64: 2, 1>, scalar_prefetch = 0 : i64, scratch_operands = 0 : i64, tpu.core_type = #tpu.core_type<tc>, window_params = [{transform_indices = @transform_0, window_bounds = array<i64: 1, 32, 128>}, {pipeline_mode = #tpu.pipeline_mode<synchronous>, transform_indices = @transform_1, window_bounds = array<i64: 128, 128>}, {pipeline_mode = #tpu.pipeline_mode<synchronous>, transform_indices = @transform_2, window_bounds = array<i64: 1, 128>}, {transform_indices = @transform_3, window_bounds = array<i64: 1, 32, 128>}, {transform_indices = @transform_4, window_bounds = array<i64: 1, 8, 128>}]} {
    %c0 = arith.constant 0 : index
    %c0_0 = arith.constant 0 : index
    %c0_1 = arith.constant 0 : index
    %0 = vector.load %arg2[%c0, %c0_0, %c0_1] : memref<1x32x128xbf16, #tpu.memory_space<vmem>>, vector<1x32x128xbf16>
    %1 = vector.shape_cast %0 : vector<1x32x128xbf16> to vector<32x128xbf16>
    %c0_2 = arith.constant 0 : index
    %c0_3 = arith.constant 0 : index
    %2 = vector.load %arg3[%c0_2, %c0_3] : memref<128x128xbf16, #tpu.memory_space<vmem>>, vector<128x128xbf16>
    %cst = arith.constant dense<0.000000e+00> : vector<32x128xf32>
    %3 = tpu.matmul %1, %2, %cst {dimension_numbers = #tpu.dot_dimension_numbers<[1], [0], [0], [1], [0, 0, 1, 1], [], []>} : vector<32x128xbf16>, vector<128x128xbf16>, vector<32x128xf32> -> vector<32x128xf32>
    %c0_4 = arith.constant 0 : index
    %c0_5 = arith.constant 0 : index
    %4 = vector.load %arg4[%c0_4, %c0_5] : memref<1x128xf32, #tpu.memory_space<vmem>>, vector<1x128xf32>
    %5 = vector.broadcast %4 : vector<1x128xf32> to vector<32x128xf32>
    %6 = arith.addf %3, %5 : vector<32x128xf32>
    %cst_6 = arith.constant 0.000000e+00 : f32
    %7 = vector.broadcast %cst_6 : f32 to vector<32x128xf32>
    %8 = arith.maximumf %6, %7 : vector<32x128xf32>
    %c32_i32 = arith.constant 32 : i32
    %9 = arith.muli %arg1, %c32_i32 : i32
    %10 = tpu.iota {dimensions = array<i32: 0>} : vector<32x1xi32>
    %11 = vector.broadcast %9 : i32 to vector<32x1xi32>
    %12 = arith.addi %11, %10 : vector<32x1xi32>
    %c25_i32 = arith.constant 25 : i32
    %13 = vector.broadcast %c25_i32 : i32 to vector<32x1xi32>
    %14 = arith.cmpi slt, %12, %13 : vector<32x1xi32>
    %cst_7 = arith.constant 0.000000e+00 : f32
    %15 = vector.shape_cast %14 : vector<32x1xi1> to vector<32x1xi1>
    %16 = vector.broadcast %15 : vector<32x1xi1> to vector<32x128xi1>
    %17 = vector.broadcast %cst_7 : f32 to vector<32x128xf32>
    %18 = arith.select %16, %8, %17 : vector<32x128xi1>, vector<32x128xf32>
    %19 = arith.truncf %18 : vector<32x128xf32> to vector<32x128xbf16>
    %c0_8 = arith.constant 0 : index
    %c0_9 = arith.constant 0 : index
    %c0_10 = arith.constant 0 : index
    %20 = vector.load %arg5[%c0_8, %c0_9, %c0_10] : memref<1x32x128xbf16, #tpu.memory_space<vmem>>, vector<1x32x128xbf16>
    %21 = vector.shape_cast %20 : vector<1x32x128xbf16> to vector<32x128xbf16>
    %22 = vector.shape_cast %19 : vector<32x128xbf16> to vector<1x32x128xbf16>
    tpu.vector_store %arg5[%c0_8, %c0_9, %c0_10], %22 {strides = array<i32>} : memref<1x32x128xbf16, #tpu.memory_space<vmem>>, vector<1x32x128xbf16>,
    %cst_11 = arith.constant dense<0.000000e+00> : vector<128xf32>
    %23 = vector.multi_reduction <add>, %18, %cst_11 [0] : vector<32x128xf32> to vector<128xf32>
    %24 = vector.shape_cast %23 : vector<128xf32> to vector<1x128xf32>
    %25 = vector.shape_cast %24 : vector<1x128xf32> to vector<1x128xf32>
    %26 = vector.broadcast %25 : vector<1x128xf32> to vector<8x128xf32>
    %c0_i32 = arith.constant 0 : i32
    %27 = arith.cmpi eq, %arg1, %c0_i32 : i32
    %28 = arith.extui %27 : i1 to i32
    %c0_i32_12 = arith.constant 0 : i32
    %29 = arith.cmpi ne, %28, %c0_i32_12 : i32
    scf.if %29 {
      %cst_19 = arith.constant 0.000000e+00 : f32
      %36 = vector.broadcast %cst_19 : f32 to vector<8x128xf32>
      %c0_20 = arith.constant 0 : index
      %c0_21 = arith.constant 0 : index
      %c0_22 = arith.constant 0 : index
      %37 = vector.load %arg6[%c0_20, %c0_21, %c0_22] : memref<1x8x128xf32, #tpu.memory_space<vmem>>, vector<1x8x128xf32>
      %38 = vector.shape_cast %37 : vector<1x8x128xf32> to vector<8x128xf32>
      %39 = vector.shape_cast %36 : vector<8x128xf32> to vector<1x8x128xf32>
      tpu.vector_store %arg6[%c0_20, %c0_21, %c0_22], %39 {strides = array<i32>} : memref<1x8x128xf32, #tpu.memory_space<vmem>>, vector<1x8x128xf32>,
    } else {
    }
    %c0_13 = arith.constant 0 : index
    %c0_14 = arith.constant 0 : index
    %c0_15 = arith.constant 0 : index
    %30 = vector.load %arg6[%c0_13, %c0_14, %c0_15] : memref<1x8x128xf32, #tpu.memory_space<vmem>>, vector<1x8x128xf32>
    %31 = vector.shape_cast %30 : vector<1x8x128xf32> to vector<8x128xf32>
    %32 = arith.addf %31, %26 : vector<8x128xf32>
    %c0_16 = arith.constant 0 : index
    %c0_17 = arith.constant 0 : index
    %c0_18 = arith.constant 0 : index
    %33 = vector.load %arg6[%c0_16, %c0_17, %c0_18] : memref<1x8x128xf32, #tpu.memory_space<vmem>>, vector<1x8x128xf32>
    %34 = vector.shape_cast %33 : vector<1x8x128xf32> to vector<8x128xf32>
    %35 = vector.shape_cast %32 : vector<8x128xf32> to vector<1x8x128xf32>
    tpu.vector_store %arg6[%c0_16, %c0_17, %c0_18], %35 {strides = array<i32>} : memref<1x8x128xf32, #tpu.memory_space<vmem>>, vector<1x8x128xf32>,
    return
  }
  func.func @transform_0(%arg0: i32, %arg1: i32) -> (i32, i32, i32) {
    %c0_i32 = arith.constant 0 : i32
    %c0_i32_0 = arith.constant 0 : i32
    return %arg0, %arg1, %c0_i32 : i32, i32, i32
  }
  func.func @transform_1(%arg0: i32, %arg1: i32) -> (i32, i32) {
    %c0_i32 = arith.constant 0 : i32
    %c0_i32_0 = arith.constant 0 : i32
    %c0_i32_1 = arith.constant 0 : i32
    return %c0_i32, %c0_i32_0 : i32, i32
  }
  func.func @transform_2(%arg0: i32, %arg1: i32) -> (i32, i32) {
    %c0_i32 = arith.constant 0 : i32
    %c0_i32_0 = arith.constant 0 : i32
    %c0_i32_1 = arith.constant 0 : i32
    return %c0_i32, %c0_i32_0 : i32, i32
  }
  func.func @transform_3(%arg0: i32, %arg1: i32) -> (i32, i32, i32) {
    %c0_i32 = arith.constant 0 : i32
    %c0_i32_0 = arith.constant 0 : i32
    return %arg0, %arg1, %c0_i32 : i32, i32, i32
  }
  func.func @transform_4(%arg0: i32, %arg1: i32) -> (i32, i32, i32) {
    %c0_i32 = arith.constant 0 : i32
    %c0_i32_0 = arith.constant 0 : i32
    %c0_i32_1 = arith.constant 0 : i32
    return %arg0, %c0_i32, %c0_i32_0 : i32, i32, i32
  }
}

module attributes {stable_mosaic.version = 11 : i64} {
  func.func @_fc_kernel(%arg0: i32, %arg1: memref<2x3200xbf16, #tpu.memory_space<vmem>>, %arg2: memref<2x8x128xf32, #tpu.memory_space<vmem>>, %arg3: memref<128x128xf32, #tpu.memory_space<vmem>>, %arg4: memref<1x128xf32, #tpu.memory_space<vmem>>, %arg5: memref<128x3200xf32, #tpu.memory_space<vmem>>, %arg6: memref<1x3200xf32, #tpu.memory_space<vmem>>, %arg7: memref<3200x128xbf16, #tpu.memory_space<vmem>>, %arg8: memref<1x128xf32, #tpu.memory_space<vmem>>, %arg9: memref<128x128xbf16, #tpu.memory_space<vmem>>, %arg10: memref<1x128xf32, #tpu.memory_space<vmem>>, %arg11: memref<2x128xf32, #tpu.memory_space<vmem>>) attributes {dimension_semantics = [#tpu.dimension_semantics<arbitrary>], iteration_bounds = array<i64: 1>, scalar_prefetch = 0 : i64, scratch_operands = 0 : i64, tpu.core_type = #tpu.core_type<tc>, window_params = [{pipeline_mode = #tpu.pipeline_mode<synchronous>, transform_indices = @transform_0, window_bounds = array<i64: 2, 3200>}, {pipeline_mode = #tpu.pipeline_mode<synchronous>, transform_indices = @transform_1, window_bounds = array<i64: 2, 8, 128>}, {pipeline_mode = #tpu.pipeline_mode<synchronous>, transform_indices = @transform_2, window_bounds = array<i64: 128, 128>}, {pipeline_mode = #tpu.pipeline_mode<synchronous>, transform_indices = @transform_3, window_bounds = array<i64: 1, 128>}, {pipeline_mode = #tpu.pipeline_mode<synchronous>, transform_indices = @transform_4, window_bounds = array<i64: 128, 3200>}, {pipeline_mode = #tpu.pipeline_mode<synchronous>, transform_indices = @transform_5, window_bounds = array<i64: 1, 3200>}, {pipeline_mode = #tpu.pipeline_mode<synchronous>, transform_indices = @transform_6, window_bounds = array<i64: 3200, 128>}, {pipeline_mode = #tpu.pipeline_mode<synchronous>, transform_indices = @transform_7, window_bounds = array<i64: 1, 128>}, {pipeline_mode = #tpu.pipeline_mode<synchronous>, transform_indices = @transform_8, window_bounds = array<i64: 128, 128>}, {pipeline_mode = #tpu.pipeline_mode<synchronous>, transform_indices = @transform_9, window_bounds = array<i64: 1, 128>}, {pipeline_mode = #tpu.pipeline_mode<synchronous>, transform_indices = @transform_10, window_bounds = array<i64: 2, 128>}]} {
    %c0 = arith.constant 0 : index
    %c0_0 = arith.constant 0 : index
    %c0_1 = arith.constant 0 : index
    %0 = vector.load %arg2[%c0, %c0_0, %c0_1] : memref<2x8x128xf32, #tpu.memory_space<vmem>>, vector<2x8x128xf32>
    %1 = vector.extract_strided_slice %0 {offsets = [0, 0, 0], sizes = [2, 1, 128], strides = [1, 1, 1]} : vector<2x8x128xf32> to vector<2x1x128xf32>
    %2 = vector.shape_cast %1 : vector<2x1x128xf32> to vector<2x128xf32>
    %c0_2 = arith.constant 0 : index
    %c0_3 = arith.constant 0 : index
    %3 = vector.load %arg3[%c0_2, %c0_3] : memref<128x128xf32, #tpu.memory_space<vmem>>, vector<128x128xf32>
    %cst = arith.constant dense<0.000000e+00> : vector<2x128xf32>
    %4 = tpu.matmul %2, %3, %cst {dimension_numbers = #tpu.dot_dimension_numbers<[1], [0], [0], [1], [0, 0, 1, 1], [], []>} : vector<2x128xf32>, vector<128x128xf32>, vector<2x128xf32> -> vector<2x128xf32>
    %c0_4 = arith.constant 0 : index
    %c0_5 = arith.constant 0 : index
    %5 = vector.load %arg4[%c0_4, %c0_5] : memref<1x128xf32, #tpu.memory_space<vmem>>, vector<1x128xf32>
    %6 = vector.broadcast %5 : vector<1x128xf32> to vector<2x128xf32>
    %7 = arith.addf %4, %6 : vector<2x128xf32>
    %cst_6 = arith.constant 0.000000e+00 : f32
    %8 = vector.broadcast %cst_6 : f32 to vector<2x128xf32>
    %9 = arith.maximumf %7, %8 : vector<2x128xf32>
    %c0_7 = arith.constant 0 : index
    %c0_8 = arith.constant 0 : index
    %10 = vector.load %arg5[%c0_7, %c0_8] : memref<128x3200xf32, #tpu.memory_space<vmem>>, vector<128x3200xf32>
    %cst_9 = arith.constant dense<0.000000e+00> : vector<2x3200xf32>
    %11 = tpu.matmul %9, %10, %cst_9 {dimension_numbers = #tpu.dot_dimension_numbers<[1], [0], [0], [1], [0, 0, 1, 1], [], []>} : vector<2x128xf32>, vector<128x3200xf32>, vector<2x3200xf32> -> vector<2x3200xf32>
    %c0_10 = arith.constant 0 : index
    %c0_11 = arith.constant 0 : index
    %12 = vector.load %arg6[%c0_10, %c0_11] : memref<1x3200xf32, #tpu.memory_space<vmem>>, vector<1x3200xf32>
    %13 = vector.broadcast %12 : vector<1x3200xf32> to vector<2x3200xf32>
    %14 = arith.addf %11, %13 : vector<2x3200xf32>
    %c0_12 = arith.constant 0 : index
    %c0_13 = arith.constant 0 : index
    %15 = vector.load %arg1[%c0_12, %c0_13] : memref<2x3200xbf16, #tpu.memory_space<vmem>>, vector<2x3200xbf16>
    %16 = arith.truncf %14 : vector<2x3200xf32> to vector<2x3200xbf16>
    %17 = arith.mulf %15, %16 : vector<2x3200xbf16>
    %c0_14 = arith.constant 0 : index
    %c0_15 = arith.constant 0 : index
    %18 = vector.load %arg7[%c0_14, %c0_15] : memref<3200x128xbf16, #tpu.memory_space<vmem>>, vector<3200x128xbf16>
    %cst_16 = arith.constant dense<0.000000e+00> : vector<2x128xf32>
    %19 = tpu.matmul %17, %18, %cst_16 {dimension_numbers = #tpu.dot_dimension_numbers<[1], [0], [0], [1], [0, 0, 1, 1], [], []>} : vector<2x3200xbf16>, vector<3200x128xbf16>, vector<2x128xf32> -> vector<2x128xf32>
    %c0_17 = arith.constant 0 : index
    %c0_18 = arith.constant 0 : index
    %20 = vector.load %arg8[%c0_17, %c0_18] : memref<1x128xf32, #tpu.memory_space<vmem>>, vector<1x128xf32>
    %21 = vector.broadcast %20 : vector<1x128xf32> to vector<2x128xf32>
    %22 = arith.addf %19, %21 : vector<2x128xf32>
    %cst_19 = arith.constant 0.000000e+00 : f32
    %23 = vector.broadcast %cst_19 : f32 to vector<2x128xf32>
    %24 = arith.maximumf %22, %23 : vector<2x128xf32>
    %25 = arith.truncf %24 : vector<2x128xf32> to vector<2x128xbf16>
    %c0_20 = arith.constant 0 : index
    %c0_21 = arith.constant 0 : index
    %26 = vector.load %arg9[%c0_20, %c0_21] : memref<128x128xbf16, #tpu.memory_space<vmem>>, vector<128x128xbf16>
    %cst_22 = arith.constant dense<0.000000e+00> : vector<2x128xf32>
    %27 = tpu.matmul %25, %26, %cst_22 {dimension_numbers = #tpu.dot_dimension_numbers<[1], [0], [0], [1], [0, 0, 1, 1], [], []>} : vector<2x128xbf16>, vector<128x128xbf16>, vector<2x128xf32> -> vector<2x128xf32>
    %c0_23 = arith.constant 0 : index
    %c0_24 = arith.constant 0 : index
    %28 = vector.load %arg10[%c0_23, %c0_24] : memref<1x128xf32, #tpu.memory_space<vmem>>, vector<1x128xf32>
    %29 = vector.broadcast %28 : vector<1x128xf32> to vector<2x128xf32>
    %30 = arith.addf %27, %29 : vector<2x128xf32>
    %cst_25 = arith.constant 0.000000e+00 : f32
    %31 = vector.broadcast %cst_25 : f32 to vector<2x128xf32>
    %32 = arith.maximumf %30, %31 : vector<2x128xf32>
    %c0_26 = arith.constant 0 : index
    %c0_27 = arith.constant 0 : index
    %33 = vector.load %arg11[%c0_26, %c0_27] : memref<2x128xf32, #tpu.memory_space<vmem>>, vector<2x128xf32>
    tpu.vector_store %arg11[%c0_26, %c0_27], %32 {strides = array<i32>} : memref<2x128xf32, #tpu.memory_space<vmem>>, vector<2x128xf32>,
    return
  }
  func.func @transform_0(%arg0: i32) -> (i32, i32) {
    %c0_i32 = arith.constant 0 : i32
    %c0_i32_0 = arith.constant 0 : i32
    %c0_i32_1 = arith.constant 0 : i32
    return %c0_i32, %c0_i32_0 : i32, i32
  }
  func.func @transform_1(%arg0: i32) -> (i32, i32, i32) {
    %c0_i32 = arith.constant 0 : i32
    %c0_i32_0 = arith.constant 0 : i32
    %c0_i32_1 = arith.constant 0 : i32
    %c0_i32_2 = arith.constant 0 : i32
    return %c0_i32, %c0_i32_0, %c0_i32_1 : i32, i32, i32
  }
  func.func @transform_2(%arg0: i32) -> (i32, i32) {
    %c0_i32 = arith.constant 0 : i32
    %c0_i32_0 = arith.constant 0 : i32
    %c0_i32_1 = arith.constant 0 : i32
    return %c0_i32, %c0_i32_0 : i32, i32
  }
  func.func @transform_3(%arg0: i32) -> (i32, i32) {
    %c0_i32 = arith.constant 0 : i32
    %c0_i32_0 = arith.constant 0 : i32
    %c0_i32_1 = arith.constant 0 : i32
    return %c0_i32, %c0_i32_0 : i32, i32
  }
  func.func @transform_4(%arg0: i32) -> (i32, i32) {
    %c0_i32 = arith.constant 0 : i32
    %c0_i32_0 = arith.constant 0 : i32
    %c0_i32_1 = arith.constant 0 : i32
    return %c0_i32, %c0_i32_0 : i32, i32
  }
  func.func @transform_5(%arg0: i32) -> (i32, i32) {
    %c0_i32 = arith.constant 0 : i32
    %c0_i32_0 = arith.constant 0 : i32
    %c0_i32_1 = arith.constant 0 : i32
    return %c0_i32, %c0_i32_0 : i32, i32
  }
  func.func @transform_6(%arg0: i32) -> (i32, i32) {
    %c0_i32 = arith.constant 0 : i32
    %c0_i32_0 = arith.constant 0 : i32
    %c0_i32_1 = arith.constant 0 : i32
    return %c0_i32, %c0_i32_0 : i32, i32
  }
  func.func @transform_7(%arg0: i32) -> (i32, i32) {
    %c0_i32 = arith.constant 0 : i32
    %c0_i32_0 = arith.constant 0 : i32
    %c0_i32_1 = arith.constant 0 : i32
    return %c0_i32, %c0_i32_0 : i32, i32
  }
  func.func @transform_8(%arg0: i32) -> (i32, i32) {
    %c0_i32 = arith.constant 0 : i32
    %c0_i32_0 = arith.constant 0 : i32
    %c0_i32_1 = arith.constant 0 : i32
    return %c0_i32, %c0_i32_0 : i32, i32
  }
  func.func @transform_9(%arg0: i32) -> (i32, i32) {
    %c0_i32 = arith.constant 0 : i32
    %c0_i32_0 = arith.constant 0 : i32
    %c0_i32_1 = arith.constant 0 : i32
    return %c0_i32, %c0_i32_0 : i32, i32
  }
  func.func @transform_10(%arg0: i32) -> (i32, i32) {
    %c0_i32 = arith.constant 0 : i32
    %c0_i32_0 = arith.constant 0 : i32
    %c0_i32_1 = arith.constant 0 : i32
    return %c0_i32, %c0_i32_0 : i32, i32
  }
}

</mosaic_0001>

<llo_original>
// kernel: net_forward.6
$region0: #{net_forward.6}
  #allocation0 [shape = 'u32[]', space=smem, size = 0x4, offset = 0x4, fixed_abs, tag = 'smem constant byte address 0x4 - core index']
  #allocation1 [shape = 'u32[144,128]{1,0:T(1,128)}', space=vmem, size = 0x12000, scoped, tag = 'internal scratch']
  %s0 = inlined_call_operand.vmem [shape: bf16[2,1024,128], index: 0, kind: input, shape index: {}]
  %s1 = inlined_call_operand.vmem [shape: bf16[128,128], index: 1, kind: input, shape index: {}]
  %s2 = inlined_call_operand.vmem [shape: f32[1,128], index: 2, kind: input, shape index: {}]
  %s3 = inlined_call_operand.vmem [shape: bf16[2,1024,128], index: 3, kind: output, shape index: {}]
  %s4 = sld [smem:[#allocation0]]
  $region45: #{net_forward.6} parent=0
    _
  %s6 = ssub.s32 1, %s4
  %s7 = scalar_select 0, %s6, %s4
  loop: start=0, step=1, limit=10
  $region2: #{net_forward.6} parent=0 // loop_pre_header
    _
  $region3: #{net_forward.6} parent=0 // loop_header
    %s9 = sphi 0, %s13
    %p10 = scmp.ge.s32.totalorder %s9, 10
    %s16 = sphi 0, %s28
    %s17 = sphi 0, %s24
    %s18 = sphi 0, %s16
    %s19 = sphi 0, %s17
    %s20 = sphi 0, %s18
    %s21 = sphi 0, %s19
    %s33 = sphi 0, %s35
    %s36 = sphi 0, %s33
    %s37 = sphi 0, %s36
    %s53 = sphi 0, %s37
    %s57 = sphi 0, %s57
    %s59 = sphi 0, %s57
    %s60 = sphi 0, %s59
    %s74 = sphi 0, %s60
    %s78 = sphi 0, %s78
    %s80 = sphi 0, %s78
    %s81 = sphi 0, %s80
    %s95 = sphi 0, %s81
    %s103 = sphi 0, %s105
    %s106 = sphi 0, %s103
    %s107 = sphi 0, %s106
    %s123 = sphi 0, %s107
  $region4: #{net_forward.6} parent=0 // loop_header_branch
    %12 = sbr.rel (%p10) target = $region8
  $region5: #{net_forward.6} parent=0 // loop_body
    %s14 = ssub.s32 %s9, 1
    %s15 = ssub.s32 %s9, 2
    %s22 = sadd.s32 1, %s17
    %p23 = scmp.ge.s32.totalorder %s22, 4
    %s24 = scalar_select %p23, 0, %s22
    %s25 = sadd.s32 1, %s16
    %s26 = scalar_select %p23, %s25, %s16
    %p27 = scmp.ge.s32.totalorder %s26, 2
    %s28 = scalar_select %p27, 0, %s26
    %s29 = ssub.s32 %s16, %s28
    %s30 = ssub.s32 %s17, %s24
    %s31 = sor.u32 %s29, %s30
    %p32 = scmp.eq.s32.totalorder %s31, 0
    %s34 = sadd.s32 %s33, 1
    %s35 = scalar_select %p32, %s33, %s34
    %p38 = pneg %p32
    %p39 = scmp.eq.s32.totalorder %s9, 7
    %p40 = por %p38, %p39
    %p41 = scmp.ne.s32.totalorder %s33, %s36
    %p42 = scmp.eq.s32.totalorder %s9, 0
    %p43 = por %p41, %p42
    %p44 = scmp.ne.s32.totalorder %s33, %s36
    %p45 = scmp.eq.s32.totalorder %s14, 7
    %p46 = por %p44, %p45
    %p47 = scmp.ne.s32.totalorder %s36, %s37
    %p48 = scmp.eq.s32.totalorder %s14, 0
    %p49 = por %p47, %p48
    %p50 = scmp.ne.s32.totalorder %s36, %s37
    %p51 = scmp.eq.s32.totalorder %s15, 7
    %p52 = por %p50, %p51
    %p54 = scmp.ne.s32.totalorder %s37, %s53
    %p55 = scmp.eq.s32.totalorder %s15, 0
    %p56 = por %p54, %p55
    %s58 = sadd.s32 %s57, 1
    %p61 = scmp.eq.s32.totalorder %s9, 7
    %p62 = scmp.ne.s32.totalorder %s57, %s59
    %p63 = scmp.eq.s32.totalorder %s9, 0
    %p64 = por %p62, %p63
    %p65 = scmp.ne.s32.totalorder %s57, %s59
    %p66 = scmp.eq.s32.totalorder %s14, 7
    %p67 = por %p65, %p66
    %p68 = scmp.ne.s32.totalorder %s59, %s60
    %p69 = scmp.eq.s32.totalorder %s14, 0
    %p70 = por %p68, %p69
    %p71 = scmp.ne.s32.totalorder %s59, %s60
    %p72 = scmp.eq.s32.totalorder %s15, 7
    %p73 = por %p71, %p72
    %p75 = scmp.ne.s32.totalorder %s60, %s74
    %p76 = scmp.eq.s32.totalorder %s15, 0
    %p77 = por %p75, %p76
    %s79 = sadd.s32 %s78, 1
    %p82 = scmp.eq.s32.totalorder %s9, 7
    %p83 = scmp.ne.s32.totalorder %s78, %s80
    %p84 = scmp.eq.s32.totalorder %s9, 0
    %p85 = por %p83, %p84
    %p86 = scmp.ne.s32.totalorder %s78, %s80
    %p87 = scmp.eq.s32.totalorder %s14, 7
    %p88 = por %p86, %p87
    %p89 = scmp.ne.s32.totalorder %s80, %s81
    %p90 = scmp.eq.s32.totalorder %s14, 0
    %p91 = por %p89, %p90
    %p92 = scmp.ne.s32.totalorder %s80, %s81
    %p93 = scmp.eq.s32.totalorder %s15, 7
    %p94 = por %p92, %p93
    %p96 = scmp.ne.s32.totalorder %s81, %s95
    %p97 = scmp.eq.s32.totalorder %s15, 0
    %p98 = por %p96, %p97
    %s99 = ssub.s32 %s16, %s28
    %s100 = ssub.s32 %s17, %s24
    %s101 = sor.u32 %s99, %s100
    %p102 = scmp.eq.s32.totalorder %s101, 0
    %s104 = sadd.s32 %s103, 1
    %s105 = scalar_select %p102, %s103, %s104
    %p108 = pneg %p102
    %p109 = scmp.eq.s32.totalorder %s9, 7
    %p110 = por %p108, %p109
    %p111 = scmp.ne.s32.totalorder %s103, %s106
    %p112 = scmp.eq.s32.totalorder %s9, 0
    %p113 = por %p111, %p112
    %p114 = scmp.ne.s32.totalorder %s103, %s106
    %p115 = scmp.eq.s32.totalorder %s14, 7
    %p116 = por %p114, %p115
    %p117 = scmp.ne.s32.totalorder %s106, %s107
    %p118 = scmp.eq.s32.totalorder %s14, 0
    %p119 = por %p117, %p118
    %p120 = scmp.ne.s32.totalorder %s106, %s107
    %p121 = scmp.eq.s32.totalorder %s15, 7
    %p122 = por %p120, %p121
    %p124 = scmp.ne.s32.totalorder %s107, %s123
    %p125 = scmp.eq.s32.totalorder %s15, 0
    %p126 = por %p124, %p125
    %p127 = scmp.le.s32.totalorder 1, %s9
    %p128 = scmp.lt.s32.totalorder %s9, 9
    %p129 = pnand %p127, %p128
    %p130 = pneg %p129
    // Predicated region
    $region9: #{net_forward.6} parent=5 // pred_check
      _
    $region10: #{net_forward.6} parent=5 // pred_check_branch
      %132 = sbr.rel (%p129) target = $region12
    $region11: #{net_forward.6} parent=5 // pred_region
      %s133 = ssub.s32 %s9, 1
      // Predicated region
      $region13: #{net_forward.6} parent=11 // pred_check
        %p134 = pneg %p70
      $region14: #{net_forward.6} parent=11 // pred_check_branch
        %136 = sbr.rel (%p134) target = $region16
      $region15: #{net_forward.6} parent=11 // pred_region
        _
      $region16: #{net_forward.6} parent=11 // pred_fallthru
        _
      // Predicated region
      $region17: #{net_forward.6} parent=11 // pred_check
        %p137 = pneg %p91
      $region18: #{net_forward.6} parent=11 // pred_check_branch
        %139 = sbr.rel (%p137) target = $region20
      $region19: #{net_forward.6} parent=11 // pred_region
        _
      $region20: #{net_forward.6} parent=11 // pred_fallthru
        _
    $region12: #{net_forward.6} parent=5 // pred_fallthru
      _
    %p140 = scmp.lt.s32.totalorder %s9, 8
    // Predicated region
    $region21: #{net_forward.6} parent=5 // pred_check
      %p141 = pneg %p140
    $region22: #{net_forward.6} parent=5 // pred_check_branch
      %143 = sbr.rel (%p141) target = $region24
    $region23: #{net_forward.6} parent=5 // pred_region
      // Predicated region
      $region25: #{net_forward.6} parent=23 // pred_check
        %p144 = pneg %p43
      $region26: #{net_forward.6} parent=23 // pred_check_branch
        %146 = sbr.rel (%p144) target = $region28
      $region27: #{net_forward.6} parent=23 // pred_region
        %s147 = smul.u32 32, %s17
        %p148 = scmp.lt.s32.totalorder %s16, 1
        %s149 = scalar_select %p148, %s16, 1
        %p150 = scmp.lt.s32.totalorder %s147, 127
        %s151 = scalar_select %p150, %s147, 127
        %s152 = smul.addr %s149, 128
        %s153 = sadd.s32 %s151, %s152
        %s154 = smul.addr %s153, 4
        %s155 = scalar_lea.vmem %s0, %s154
        %s156 = smul.u32 32, %s17
      $region28: #{net_forward.6} parent=23 // pred_fallthru
        _
    $region24: #{net_forward.6} parent=5 // pred_fallthru
      _
    %p157 = scmp.le.s32.totalorder 1, %s9
    %p158 = scmp.lt.s32.totalorder %s9, 9
    %p159 = pnand %p157, %p158
    %p160 = pneg %p159
    // Predicated region
    $region29: #{net_forward.6} parent=5 // pred_check
      _
    $region30: #{net_forward.6} parent=5 // pred_check_branch
      %162 = sbr.rel (%p159) target = $region32
    $region31: #{net_forward.6} parent=5 // pred_region
      %s163 = ssub.s32 %s9, 1
      %s164 = smul.u32 32, %s19
      %p165 = scmp.lt.s32.totalorder %s18, 1
      %s166 = scalar_select %p165, %s18, 1
      %p167 = scmp.lt.s32.totalorder %s164, 127
      %s168 = scalar_select %p167, %s164, 127
      %s169 = smul.addr %s166, 128
      %s170 = sadd.s32 %s168, %s169
      %s171 = smul.addr %s170, 4
      %s172 = scalar_lea.vmem %s0, %s171
      %p173 = pneg %p49
      %p174 = pneg %p46
      %p175 = pneg %p70
      %p176 = pneg %p67
      %p177 = pneg %p91
      %p178 = pneg %p88
      %p179 = pneg %p119
      %p180 = pneg %p116
      %s181 = smul.u32 32, %s19
      %p182 = scmp.lt.s32.totalorder %s18, 1
      %s183 = scalar_select %p182, %s18, 1
      %p184 = scmp.lt.s32.totalorder %s181, 127
      %s185 = scalar_select %p184, %s181, 127
      %s186 = smul.addr %s183, 128
      %s187 = sadd.s32 %s185, %s186
      %s188 = smul.addr %s187, 4
      %s189 = scalar_lea.vmem %s3, %s188
      %s190 = smul.u32 32, %s19
      %p191 = scmp.lt.s32.totalorder %s18, 1
      %s192 = scalar_select %p191, %s18, 1
      %p193 = scmp.lt.s32.totalorder %s190, 127
      %s194 = scalar_select %p193, %s190, 127
      %s195 = smul.addr %s192, 128
      %s196 = sadd.s32 %s194, %s195
      %s197 = smul.addr %s196, 4
      %s198 = scalar_lea.vmem %s0, %s197
      %s199 = smul.u32 32, %s19
      %s200 = smul.u32 32, %s19
      %p201 = scmp.lt.s32.totalorder %s18, 1
      %s202 = scalar_select %p201, %s18, 1
      %p203 = scmp.lt.s32.totalorder %s200, 127
      %s204 = scalar_select %p203, %s200, 127
      %s205 = smul.addr %s202, 128
      %s206 = sadd.s32 %s204, %s205
      %s207 = smul.addr %s206, 4
      %s208 = scalar_lea.vmem %s3, %s207
      %s209 = smul.u32 32, %s19
      %v211 = vld [vmem:[%s198] sm:$0xf]
      %v212 = vld [vmem:[%s198 + $0x4] sm:$0xf]
      %v213 = vld [vmem:[%s198 + $0x8] sm:$0xf]
      %v214 = vld [vmem:[%s198 + $0xc] sm:$0xf]
      %v215 = vld [vmem:[%s198 + $0x10] sm:$0xf]
      %v216 = vld [vmem:[%s198 + $0x14] sm:$0xf]
      %v217 = vld [vmem:[%s198 + $0x18] sm:$0xf]
      %v218 = vld [vmem:[%s198 + $0x1c] sm:$0xf]
      %v219 = vld [vmem:[%s198 + $0x20] sm:$0xf]
      %v220 = vld [vmem:[%s198 + $0x24] sm:$0xf]
      %v221 = vld [vmem:[%s198 + $0x28] sm:$0xf]
      %v222 = vld [vmem:[%s198 + $0x2c] sm:$0xf]
      %v223 = vld [vmem:[%s198 + $0x30] sm:$0xf]
      %v224 = vld [vmem:[%s198 + $0x34] sm:$0xf]
      %v225 = vld [vmem:[%s198 + $0x38] sm:$0xf]
      %v226 = vld [vmem:[%s198 + $0x3c] sm:$0xf]
      %v227 = vld [vmem:[%s198 + $0x40] sm:$0xf]
      %v228 = vld [vmem:[%s198 + $0x44] sm:$0xf]
      %v229 = vld [vmem:[%s198 + $0x48] sm:$0xf]
      %v230 = vld [vmem:[%s198 + $0x4c] sm:$0xf]
      %v231 = vld [vmem:[%s198 + $0x50] sm:$0xf]
      %v232 = vld [vmem:[%s198 + $0x54] sm:$0xf]
      %v233 = vld [vmem:[%s198 + $0x58] sm:$0xf]
      %v234 = vld [vmem:[%s198 + $0x5c] sm:$0xf]
      %v235 = vld [vmem:[%s198 + $0x60] sm:$0xf]
      %v236 = vld [vmem:[%s198 + $0x64] sm:$0xf]
      %v237 = vld [vmem:[%s198 + $0x68] sm:$0xf]
      %v238 = vld [vmem:[%s198 + $0x6c] sm:$0xf]
      %v239 = vld [vmem:[%s198 + $0x70] sm:$0xf]
      %v240 = vld [vmem:[%s198 + $0x74] sm:$0xf]
      %v241 = vld [vmem:[%s198 + $0x78] sm:$0xf]
      %v242 = vld [vmem:[%s198 + $0x7c] sm:$0xf]
      %v243 = vld [vmem:[%s1] sm:$0xf]
      %v244 = vld [vmem:[%s1 + $0x4] sm:$0xf]
      %v245 = vld [vmem:[%s1 + $0x8] sm:$0xf]
      %v246 = vld [vmem:[%s1 + $0xc] sm:$0xf]
      %v247 = vld [vmem:[%s1 + $0x10] sm:$0xf]
      %v248 = vld [vmem:[%s1 + $0x14] sm:$0xf]
      %v249 = vld [vmem:[%s1 + $0x18] sm:$0xf]
      %v250 = vld [vmem:[%s1 + $0x1c] sm:$0xf]
      %v251 = vld [vmem:[%s1 + $0x20] sm:$0xf]
      %v252 = vld [vmem:[%s1 + $0x24] sm:$0xf]
      %v253 = vld [vmem:[%s1 + $0x28] sm:$0xf]
      %v254 = vld [vmem:[%s1 + $0x2c] sm:$0xf]
      %v255 = vld [vmem:[%s1 + $0x30] sm:$0xf]
      %v256 = vld [vmem:[%s1 + $0x34] sm:$0xf]
      %v257 = vld [vmem:[%s1 + $0x38] sm:$0xf]
      %v258 = vld [vmem:[%s1 + $0x3c] sm:$0xf]
      %v259 = vld [vmem:[%s2] sm:$0x1]
      %v261 = vlaneseq
      %v262 = vshrl.u32 %v261, 7
      %v263 = vsub.s32 0, %v262
      %v264 = vrot.slane %v259, %v263
      %v298 = vunpack.c.l.b16 %v211
      %v299 = vunpack.c.l.b16 %v212
      %v300 = vunpack.c.l.b16 %v213
      %v301 = vunpack.c.l.b16 %v214
      %v302 = vunpack.c.l.b16 %v215
      %v303 = vunpack.c.l.b16 %v216
      %v304 = vunpack.c.l.b16 %v217
      %v305 = vunpack.c.l.b16 %v218
      %v306 = vunpack.c.l.b16 %v219
      %v307 = vunpack.c.l.b16 %v220
      %v308 = vunpack.c.l.b16 %v221
      %v309 = vunpack.c.l.b16 %v222
      %v310 = vunpack.c.l.b16 %v223
      %v311 = vunpack.c.l.b16 %v224
      %v312 = vunpack.c.l.b16 %v225
      %v313 = vunpack.c.l.b16 %v226
      %v314 = vunpack.c.l.b16 %v227
      %v315 = vunpack.c.l.b16 %v228
      %v316 = vunpack.c.l.b16 %v229
      %v317 = vunpack.c.l.b16 %v230
      %v318 = vunpack.c.l.b16 %v231
      %v319 = vunpack.c.l.b16 %v232
      %v320 = vunpack.c.l.b16 %v233
      %v321 = vunpack.c.l.b16 %v234
      %v322 = vunpack.c.l.b16 %v235
      %v323 = vunpack.c.l.b16 %v236
      %v324 = vunpack.c.l.b16 %v237
      %v325 = vunpack.c.l.b16 %v238
      %v326 = vunpack.c.l.b16 %v239
      %v327 = vunpack.c.l.b16 %v240
      %v328 = vunpack.c.l.b16 %v241
      %v329 = vunpack.c.l.b16 %v242
      %v330 = vpack.c.b16 %v299, %v298
      %v331 = vpack.c.b16 %v301, %v300
      %v332 = vpack.c.b16 %v303, %v302
      %v333 = vpack.c.b16 %v305, %v304
      %v334 = vpack.c.b16 %v307, %v306
      %v335 = vpack.c.b16 %v309, %v308
      %v336 = vpack.c.b16 %v311, %v310
      %v337 = vpack.c.b16 %v313, %v312
      %v338 = vpack.c.b16 %v315, %v314
      %v339 = vpack.c.b16 %v317, %v316
      %v340 = vpack.c.b16 %v319, %v318
      %v341 = vpack.c.b16 %v321, %v320
      %v342 = vpack.c.b16 %v323, %v322
      %v343 = vpack.c.b16 %v325, %v324
      %v344 = vpack.c.b16 %v327, %v326
      %v345 = vpack.c.b16 %v329, %v328
      %v378 = vunpack.c.l.b16 %v243
      %v379 = vunpack.c.l.b16 %v244
      %v380 = vunpack.c.l.b16 %v245
      %v381 = vunpack.c.l.b16 %v246
      %v382 = vunpack.c.l.b16 %v247
      %v383 = vunpack.c.l.b16 %v248
      %v384 = vunpack.c.l.b16 %v249
      %v385 = vunpack.c.l.b16 %v250
      %v386 = vunpack.c.l.b16 %v251
      %v387 = vunpack.c.l.b16 %v252
      %v388 = vunpack.c.l.b16 %v253
      %v389 = vunpack.c.l.b16 %v254
      %v390 = vunpack.c.l.b16 %v255
      %v391 = vunpack.c.l.b16 %v256
      %v392 = vunpack.c.l.b16 %v257
      %v393 = vunpack.c.l.b16 %v258
      %v394 = vpack.c.b16 %v379, %v378
      %v395 = vpack.c.b16 %v381, %v380
      %v396 = vpack.c.b16 %v383, %v382
      %v397 = vpack.c.b16 %v385, %v384
      %v398 = vpack.c.b16 %v387, %v386
      %v399 = vpack.c.b16 %v389, %v388
      %v400 = vpack.c.b16 %v391, %v390
      %v401 = vpack.c.b16 %v393, %v392
      %410 = vmatprep.subr.bf16.mxu0 0
      %411 = vmatpush1.bf16.msra.mxu0 %v401
      %412 = vmatprep.subr.bf16.mxu0 0
      %413 = vmatpush1.bf16.msra.mxu0 %v400
      %414 = vmatprep.subr.bf16.mxu0 0
      %415 = vmatpush1.bf16.msra.mxu0 %v399
      %416 = vmatprep.subr.bf16.mxu0 0
      %417 = vmatpush1.bf16.msra.mxu0 %v398
      %418 = vmatprep.subr.bf16.mxu0 0
      %419 = vmatpush1.bf16.msra.mxu0 %v397
      %420 = vmatprep.subr.bf16.mxu0 0
      %421 = vmatpush1.bf16.msra.mxu0 %v396
      %422 = vmatprep.subr.bf16.mxu0 0
      %423 = vmatpush1.bf16.msra.mxu0 %v395
      %424 = vmatprep.subr.bf16.mxu0 0
      %425 = vmatpush1.bf16.msra.mxu0 %v394
      %426 = vmatprep.subr.bf16.mxu0 0
      %427 = vmatpush2.bf16.msra.mxu0 0
      %428 = vmatprep.subr.bf16.mxu0 0
      %429 = vmatpush2.bf16.msra.mxu0 0
      %430 = vmatprep.subr.bf16.mxu0 0
      %431 = vmatpush2.bf16.msra.mxu0 0
      %432 = vmatprep.subr.bf16.mxu0 0
      %433 = vmatpush2.bf16.msra.mxu0 0
      %434 = vmatprep.subr.bf16.mxu0 0
      %435 = vmatpush2.bf16.msra.mxu0 0
      %436 = vmatprep.subr.bf16.mxu0 0
      %437 = vmatpush2.bf16.msra.mxu0 0
      %438 = vmatprep.subr.bf16.mxu0 0
      %439 = vmatpush2.bf16.msra.mxu0 0
      %440 = vmatprep.subr.bf16.mxu0 0
      %441 = vmatpush2.bf16.msra.mxu0 0
      %442 = vmatprep.mubr.bf16.mxu0 0
      %443 = vmatmul.mubr.bf16.gmra.mxu0 %v330
      %v444 = vpop.f32.mrf.mxu0
      %v445 = vadd.f32 %v264, %v444
      %v446 = vpop.f32.mrf.mxu0
      %v447 = vpop.f32.mrf.mxu0
      %v448 = vadd.f32 %v264, %v447
      %v449 = vpop.f32.mrf.mxu0
      %450 = vmatprep.mubr.bf16.mxu0 0
      %451 = vmatmul.mubr.bf16.gmra.mxu0 %v331
      %v452 = vpop.f32.mrf.mxu0
      %v453 = vadd.f32 %v264, %v452
      %v454 = vpop.f32.mrf.mxu0
      %v455 = vpop.f32.mrf.mxu0
      %v456 = vadd.f32 %v264, %v455
      %v457 = vpop.f32.mrf.mxu0
      %458 = vmatprep.mubr.bf16.mxu0 0
      %459 = vmatmul.mubr.bf16.gmra.mxu0 %v332
      %v460 = vpop.f32.mrf.mxu0
      %v461 = vadd.f32 %v264, %v460
      %v462 = vpop.f32.mrf.mxu0
      %v463 = vpop.f32.mrf.mxu0
      %v464 = vadd.f32 %v264, %v463
      %v465 = vpop.f32.mrf.mxu0
      %466 = vmatprep.mubr.bf16.mxu0 0
      %467 = vmatmul.mubr.bf16.gmra.mxu0 %v333
      %v468 = vpop.f32.mrf.mxu0
      %v469 = vadd.f32 %v264, %v468
      %v470 = vpop.f32.mrf.mxu0
      %v471 = vpop.f32.mrf.mxu0
      %v472 = vadd.f32 %v264, %v471
      %v473 = vpop.f32.mrf.mxu0
      %474 = vmatprep.mubr.bf16.mxu0 0
      %475 = vmatmul.mubr.bf16.gmra.mxu0 %v334
      %v476 = vpop.f32.mrf.mxu0
      %v477 = vadd.f32 %v264, %v476
      %v478 = vpop.f32.mrf.mxu0
      %v479 = vpop.f32.mrf.mxu0
      %v480 = vadd.f32 %v264, %v479
      %v481 = vpop.f32.mrf.mxu0
      %482 = vmatprep.mubr.bf16.mxu0 0
      %483 = vmatmul.mubr.bf16.gmra.mxu0 %v335
      %v484 = vpop.f32.mrf.mxu0
      %v485 = vadd.f32 %v264, %v484
      %v486 = vpop.f32.mrf.mxu0
      %v487 = vpop.f32.mrf.mxu0
      %v488 = vadd.f32 %v264, %v487
      %v489 = vpop.f32.mrf.mxu0
      %490 = vmatprep.mubr.bf16.mxu0 0
      %491 = vmatmul.mubr.bf16.gmra.mxu0 %v336
      %v492 = vpop.f32.mrf.mxu0
      %v493 = vadd.f32 %v264, %v492
      %v494 = vpop.f32.mrf.mxu0
      %v495 = vpop.f32.mrf.mxu0
      %v496 = vadd.f32 %v264, %v495
      %v497 = vpop.f32.mrf.mxu0
      %498 = vmatprep.mubr.bf16.mxu0 0
      %499 = vmatmul.mubr.bf16.gmra.mxu0 %v337
      %v500 = vpop.f32.mrf.mxu0
      %v501 = vadd.f32 %v264, %v500
      %v502 = vpop.f32.mrf.mxu0
      %v503 = vpop.f32.mrf.mxu0
      %v504 = vadd.f32 %v264, %v503
      %v505 = vpop.f32.mrf.mxu0
      %506 = vmatprep.mubr.bf16.mxu0 0
      %507 = vmatmul.mubr.bf16.gmra.mxu0 %v338
      %v508 = vpop.f32.mrf.mxu0
      %v509 = vadd.f32 %v264, %v508
      %v510 = vpop.f32.mrf.mxu0
      %v511 = vpop.f32.mrf.mxu0
      %v512 = vadd.f32 %v264, %v511
      %v513 = vpop.f32.mrf.mxu0
      %514 = vmatprep.mubr.bf16.mxu0 0
      %515 = vmatmul.mubr.bf16.gmra.mxu0 %v339
      %v516 = vpop.f32.mrf.mxu0
      %v517 = vadd.f32 %v264, %v516
      %v518 = vpop.f32.mrf.mxu0
      %v519 = vpop.f32.mrf.mxu0
      %v520 = vadd.f32 %v264, %v519
      %v521 = vpop.f32.mrf.mxu0
      %522 = vmatprep.mubr.bf16.mxu0 0
      %523 = vmatmul.mubr.bf16.gmra.mxu0 %v340
      %v524 = vpop.f32.mrf.mxu0
      %v525 = vadd.f32 %v264, %v524
      %v526 = vpop.f32.mrf.mxu0
      %v527 = vpop.f32.mrf.mxu0
      %v528 = vadd.f32 %v264, %v527
      %v529 = vpop.f32.mrf.mxu0
      %530 = vmatprep.mubr.bf16.mxu0 0
      %531 = vmatmul.mubr.bf16.gmra.mxu0 %v341
      %v532 = vpop.f32.mrf.mxu0
      %v533 = vadd.f32 %v264, %v532
      %v534 = vpop.f32.mrf.mxu0
      %v535 = vpop.f32.mrf.mxu0
      %v536 = vadd.f32 %v264, %v535
      %v537 = vpop.f32.mrf.mxu0
      %538 = vmatprep.mubr.bf16.mxu0 0
      %539 = vmatmul.mubr.bf16.gmra.mxu0 %v342
      %v540 = vpop.f32.mrf.mxu0
      %v541 = vadd.f32 %v264, %v540
      %v542 = vpop.f32.mrf.mxu0
      %v543 = vpop.f32.mrf.mxu0
      %v544 = vadd.f32 %v264, %v543
      %v545 = vpop.f32.mrf.mxu0
      %546 = vmatprep.mubr.bf16.mxu0 0
      %547 = vmatmul.mubr.bf16.gmra.mxu0 %v343
      %v548 = vpop.f32.mrf.mxu0
      %v549 = vadd.f32 %v264, %v548
      %v550 = vpop.f32.mrf.mxu0
      %v551 = vpop.f32.mrf.mxu0
      %v552 = vadd.f32 %v264, %v551
      %v553 = vpop.f32.mrf.mxu0
      %554 = vmatprep.mubr.bf16.mxu0 0
      %555 = vmatmul.mubr.bf16.gmra.mxu0 %v344
      %v556 = vpop.f32.mrf.mxu0
      %v557 = vadd.f32 %v264, %v556
      %v558 = vpop.f32.mrf.mxu0
      %v559 = vpop.f32.mrf.mxu0
      %v560 = vadd.f32 %v264, %v559
      %v561 = vpop.f32.mrf.mxu0
      %562 = vmatprep.mubr.bf16.mxu0 0
      %563 = vmatmul.mubr.bf16.gmra.mxu0 %v345
      %v564 = vpop.f32.mrf.mxu0
      %v565 = vadd.f32 %v264, %v564
      %v566 = vpop.f32.mrf.mxu0
      %v567 = vpop.f32.mrf.mxu0
      %v568 = vadd.f32 %v264, %v567
      %v569 = vpop.f32.mrf.mxu0
      %570 = vdwg.mxu0
      %v571 = vmax.f32 %v445, 0.0
      %v572 = vmax.f32 %v448, 0.0
      %v573 = vmax.f32 %v453, 0.0
      %v574 = vmax.f32 %v456, 0.0
      %v575 = vmax.f32 %v461, 0.0
      %v576 = vmax.f32 %v464, 0.0
      %v577 = vmax.f32 %v469, 0.0
      %v578 = vmax.f32 %v472, 0.0
      %v579 = vmax.f32 %v477, 0.0
      %v580 = vmax.f32 %v480, 0.0
      %v581 = vmax.f32 %v485, 0.0
      %v582 = vmax.f32 %v488, 0.0
      %v583 = vmax.f32 %v493, 0.0
      %v584 = vmax.f32 %v496, 0.0
      %v585 = vmax.f32 %v501, 0.0
      %v586 = vmax.f32 %v504, 0.0
      %v587 = vmax.f32 %v509, 0.0
      %v588 = vmax.f32 %v512, 0.0
      %v589 = vmax.f32 %v517, 0.0
      %v590 = vmax.f32 %v520, 0.0
      %v591 = vmax.f32 %v525, 0.0
      %v592 = vmax.f32 %v528, 0.0
      %v593 = vmax.f32 %v533, 0.0
      %v594 = vmax.f32 %v536, 0.0
      %v595 = vmax.f32 %v541, 0.0
      %v596 = vmax.f32 %v544, 0.0
      %v597 = vmax.f32 %v549, 0.0
      %v598 = vmax.f32 %v552, 0.0
      %v599 = vmax.f32 %v557, 0.0
      %v600 = vmax.f32 %v560, 0.0
      %v601 = vmax.f32 %v565, 0.0
      %v602 = vmax.f32 %v568, 0.0
      %v603 = vpack.c.bf16 %v572, %v571
      %v604 = vpack.c.bf16 %v574, %v573
      %v605 = vpack.c.bf16 %v576, %v575
      %v606 = vpack.c.bf16 %v578, %v577
      %v607 = vpack.c.bf16 %v580, %v579
      %v608 = vpack.c.bf16 %v582, %v581
      %v609 = vpack.c.bf16 %v584, %v583
      %v610 = vpack.c.bf16 %v586, %v585
      %v611 = vpack.c.bf16 %v588, %v587
      %v612 = vpack.c.bf16 %v590, %v589
      %v613 = vpack.c.bf16 %v592, %v591
      %v614 = vpack.c.bf16 %v594, %v593
      %v615 = vpack.c.bf16 %v596, %v595
      %v616 = vpack.c.bf16 %v598, %v597
      %v617 = vpack.c.bf16 %v600, %v599
      %v618 = vpack.c.bf16 %v602, %v601
      %v635 = vunpack.c.l.b16 %v603
      %v636 = vunpack.c.h.b16 %v603
      %v637 = vunpack.c.l.b16 %v604
      %v638 = vunpack.c.h.b16 %v604
      %v639 = vunpack.c.l.b16 %v605
      %v640 = vunpack.c.h.b16 %v605
      %v641 = vunpack.c.l.b16 %v606
      %v642 = vunpack.c.h.b16 %v606
      %v643 = vunpack.c.l.b16 %v607
      %v644 = vunpack.c.h.b16 %v607
      %v645 = vunpack.c.l.b16 %v608
      %v646 = vunpack.c.h.b16 %v608
      %v647 = vunpack.c.l.b16 %v609
      %v648 = vunpack.c.h.b16 %v609
      %v649 = vunpack.c.l.b16 %v610
      %v650 = vunpack.c.h.b16 %v610
      %v651 = vunpack.c.l.b16 %v611
      %v652 = vunpack.c.h.b16 %v611
      %v653 = vunpack.c.l.b16 %v612
      %v654 = vunpack.c.h.b16 %v612
      %v655 = vunpack.c.l.b16 %v613
      %v656 = vunpack.c.h.b16 %v613
      %v657 = vunpack.c.l.b16 %v614
      %v658 = vunpack.c.h.b16 %v614
      %v659 = vunpack.c.l.b16 %v615
      %v660 = vunpack.c.h.b16 %v615
      %v661 = vunpack.c.l.b16 %v616
      %v662 = vunpack.c.h.b16 %v616
      %v663 = vunpack.c.l.b16 %v617
      %v664 = vunpack.c.h.b16 %v617
      %v665 = vunpack.c.l.b16 %v618
      %v666 = vunpack.c.h.b16 %v618
      %v667 = vpack.c.b16 %v635, %v635
      %v668 = vpack.c.b16 %v636, %v636
      %v669 = vpack.c.b16 %v637, %v637
      %v670 = vpack.c.b16 %v638, %v638
      %v671 = vpack.c.b16 %v639, %v639
      %v672 = vpack.c.b16 %v640, %v640
      %v673 = vpack.c.b16 %v641, %v641
      %v674 = vpack.c.b16 %v642, %v642
      %v675 = vpack.c.b16 %v643, %v643
      %v676 = vpack.c.b16 %v644, %v644
      %v677 = vpack.c.b16 %v645, %v645
      %v678 = vpack.c.b16 %v646, %v646
      %v679 = vpack.c.b16 %v647, %v647
      %v680 = vpack.c.b16 %v648, %v648
      %v681 = vpack.c.b16 %v649, %v649
      %v682 = vpack.c.b16 %v650, %v650
      %v683 = vpack.c.b16 %v651, %v651
      %v684 = vpack.c.b16 %v652, %v652
      %v685 = vpack.c.b16 %v653, %v653
      %v686 = vpack.c.b16 %v654, %v654
      %v687 = vpack.c.b16 %v655, %v655
      %v688 = vpack.c.b16 %v656, %v656
      %v689 = vpack.c.b16 %v657, %v657
      %v690 = vpack.c.b16 %v658, %v658
      %v691 = vpack.c.b16 %v659, %v659
      %v692 = vpack.c.b16 %v660, %v660
      %v693 = vpack.c.b16 %v661, %v661
      %v694 = vpack.c.b16 %v662, %v662
      %v695 = vpack.c.b16 %v663, %v663
      %v696 = vpack.c.b16 %v664, %v664
      %v697 = vpack.c.b16 %v665, %v665
      %v698 = vpack.c.b16 %v666, %v666
      %731 = vst [vmem:[%s208] sm:$0xf] %v667
      %732 = vst [vmem:[%s208 + $0x4] sm:$0xf] %v668
      %733 = vst [vmem:[%s208 + $0x8] sm:$0xf] %v669
      %734 = vst [vmem:[%s208 + $0xc] sm:$0xf] %v670
      %735 = vst [vmem:[%s208 + $0x10] sm:$0xf] %v671
      %736 = vst [vmem:[%s208 + $0x14] sm:$0xf] %v672
      %737 = vst [vmem:[%s208 + $0x18] sm:$0xf] %v673
      %738 = vst [vmem:[%s208 + $0x1c] sm:$0xf] %v674
      %739 = vst [vmem:[%s208 + $0x20] sm:$0xf] %v675
      %740 = vst [vmem:[%s208 + $0x24] sm:$0xf] %v676
      %741 = vst [vmem:[%s208 + $0x28] sm:$0xf] %v677
      %742 = vst [vmem:[%s208 + $0x2c] sm:$0xf] %v678
      %743 = vst [vmem:[%s208 + $0x30] sm:$0xf] %v679
      %744 = vst [vmem:[%s208 + $0x34] sm:$0xf] %v680
      %745 = vst [vmem:[%s208 + $0x38] sm:$0xf] %v681
      %746 = vst [vmem:[%s208 + $0x3c] sm:$0xf] %v682
      %747 = vst [vmem:[%s208 + $0x40] sm:$0xf] %v683
      %748 = vst [vmem:[%s208 + $0x44] sm:$0xf] %v684
      %749 = vst [vmem:[%s208 + $0x48] sm:$0xf] %v685
      %750 = vst [vmem:[%s208 + $0x4c] sm:$0xf] %v686
      %751 = vst [vmem:[%s208 + $0x50] sm:$0xf] %v687
      %752 = vst [vmem:[%s208 + $0x54] sm:$0xf] %v688
      %753 = vst [vmem:[%s208 + $0x58] sm:$0xf] %v689
      %754 = vst [vmem:[%s208 + $0x5c] sm:$0xf] %v690
      %755 = vst [vmem:[%s208 + $0x60] sm:$0xf] %v691
      %756 = vst [vmem:[%s208 + $0x64] sm:$0xf] %v692
      %757 = vst [vmem:[%s208 + $0x68] sm:$0xf] %v693
      %758 = vst [vmem:[%s208 + $0x6c] sm:$0xf] %v694
      %759 = vst [vmem:[%s208 + $0x70] sm:$0xf] %v695
      %760 = vst [vmem:[%s208 + $0x74] sm:$0xf] %v696
      %761 = vst [vmem:[%s208 + $0x78] sm:$0xf] %v697
      %762 = vst [vmem:[%s208 + $0x7c] sm:$0xf] %v698
      %s763 = smul.u32 32, %s19
      %p764 = scmp.lt.s32.totalorder %s18, 1
      %s765 = scalar_select %p764, %s18, 1
      %p766 = scmp.lt.s32.totalorder %s763, 127
      %s767 = scalar_select %p766, %s763, 127
      %s768 = smul.addr %s765, 128
      %s769 = sadd.s32 %s767, %s768
      %s770 = smul.addr %s769, 4
      %s771 = scalar_lea.vmem %s3, %s770
      // Predicated region
      $region33: #{net_forward.6} parent=31 // pred_check
        %p772 = pneg %p116
      $region34: #{net_forward.6} parent=31 // pred_check_branch
        %774 = sbr.rel (%p772) target = $region36
      $region35: #{net_forward.6} parent=31 // pred_region
        %s775 = smul.u32 32, %s19
      $region36: #{net_forward.6} parent=31 // pred_fallthru
        _
    $region32: #{net_forward.6} parent=5 // pred_fallthru
      _
    %p776 = scmp.le.s32.totalorder 2, %s9
    // Predicated region
    $region37: #{net_forward.6} parent=5 // pred_check
      %p777 = pneg %p776
    $region38: #{net_forward.6} parent=5 // pred_check_branch
      %779 = sbr.rel (%p777) target = $region40
    $region39: #{net_forward.6} parent=5 // pred_region
      %s780 = ssub.s32 %s9, 2
      // Predicated region
      $region41: #{net_forward.6} parent=39 // pred_check
        %p781 = pneg %p122
      $region42: #{net_forward.6} parent=39 // pred_check_branch
        %783 = sbr.rel (%p781) target = $region44
      $region43: #{net_forward.6} parent=39 // pred_region
        %s784 = smul.u32 32, %s21
        %p785 = scmp.lt.s32.totalorder %s20, 1
        %s786 = scalar_select %p785, %s20, 1
        %p787 = scmp.lt.s32.totalorder %s784, 127
        %s788 = scalar_select %p787, %s784, 127
        %s789 = smul.addr %s786, 128
        %s790 = sadd.s32 %s788, %s789
        %s791 = smul.addr %s790, 4
        %s792 = scalar_lea.vmem %s3, %s791
      $region44: #{net_forward.6} parent=39 // pred_fallthru
        _
    $region40: #{net_forward.6} parent=5 // pred_fallthru
      _
  $region6: #{net_forward.6} parent=0 // loop_footer
    %s13 = sadd.s32 1, %s9
  $region7: #{net_forward.6} parent=0 // loop_footer_branch
    %8 = sbr.rel target = $region3
  $region8: #{net_forward.6} parent=0 // loop_exit
    _

// kernel: net_forward.8
$region0: #{net_forward.8}
  #allocation0 [shape = 'u32[]', space=smem, size = 0x4, offset = 0x4, fixed_abs, tag = 'smem constant byte address 0x4 - core index']
  #allocation1 [shape = 'u32[144,128]{1,0:T(1,128)}', space=vmem, size = 0x12000, scoped, tag = 'internal scratch']
  %s0 = inlined_call_operand.vmem [shape: bf16[2,200,256], index: 0, kind: input, shape index: {}]
  %s1 = inlined_call_operand.vmem [shape: bf16[256,128], index: 1, kind: input, shape index: {}]
  %s2 = inlined_call_operand.vmem [shape: f32[1,128], index: 2, kind: input, shape index: {}]
  %s3 = inlined_call_operand.vmem [shape: bf16[2,200,128], index: 3, kind: output, shape index: {0}]
  %s4 = inlined_call_operand.vmem [shape: f32[2,8,128], index: 4, kind: output, shape index: {1}]
  %5 = xla_tuple %s3, %s4
  %s6 = sld [smem:[#allocation0]]
  $region57: #{net_forward.8} parent=0
    _
  %s8 = ssub.s32 1, %s6
  %s9 = scalar_select 0, %s8, %s6
  loop: start=0, step=1, limit=4
  $region2: #{net_forward.8} parent=0 // loop_pre_header
    _
  $region3: #{net_forward.8} parent=0 // loop_header
    %s11 = sphi 0, %s15
    %p12 = scmp.ge.s32.totalorder %s11, 4
    %s18 = sphi 0, %s30
    %s19 = sphi 0, %s26
    %s20 = sphi 0, %s18
    %s21 = sphi 0, %s19
    %s22 = sphi 0, %s20
    %s23 = sphi 0, %s21
    %s35 = sphi 0, %s37
    %s38 = sphi 0, %s35
    %s39 = sphi 0, %s38
    %s55 = sphi 0, %s39
    %s59 = sphi 0, %s59
    %s61 = sphi 0, %s59
    %s62 = sphi 0, %s61
    %s76 = sphi 0, %s62
    %s80 = sphi 0, %s80
    %s82 = sphi 0, %s80
    %s83 = sphi 0, %s82
    %s97 = sphi 0, %s83
    %s105 = sphi 0, %s107
    %s108 = sphi 0, %s105
    %s109 = sphi 0, %s108
    %s125 = sphi 0, %s109
    %s131 = sphi 0, %s133
    %s134 = sphi 0, %s131
    %s135 = sphi 0, %s134
    %s151 = sphi 0, %s135
  $region4: #{net_forward.8} parent=0 // loop_header_branch
    %14 = sbr.rel (%p12) target = $region8
  $region5: #{net_forward.8} parent=0 // loop_body
    %s16 = ssub.s32 %s11, 1
    %s17 = ssub.s32 %s11, 2
    %s24 = sadd.s32 1, %s19
    %p25 = scmp.ge.s32.totalorder %s24, 1
    %s26 = scalar_select %p25, 0, %s24
    %s27 = sadd.s32 1, %s18
    %s28 = scalar_select %p25, %s27, %s18
    %p29 = scmp.ge.s32.totalorder %s28, 2
    %s30 = scalar_select %p29, 0, %s28
    %s31 = ssub.s32 %s18, %s30
    %s32 = ssub.s32 %s19, %s26
    %s33 = sor.u32 %s31, %s32
    %p34 = scmp.eq.s32.totalorder %s33, 0
    %s36 = sadd.s32 %s35, 1
    %s37 = scalar_select %p34, %s35, %s36
    %p40 = pneg %p34
    %p41 = scmp.eq.s32.totalorder %s11, 1
    %p42 = por %p40, %p41
    %p43 = scmp.ne.s32.totalorder %s35, %s38
    %p44 = scmp.eq.s32.totalorder %s11, 0
    %p45 = por %p43, %p44
    %p46 = scmp.ne.s32.totalorder %s35, %s38
    %p47 = scmp.eq.s32.totalorder %s16, 1
    %p48 = por %p46, %p47
    %p49 = scmp.ne.s32.totalorder %s38, %s39
    %p50 = scmp.eq.s32.totalorder %s16, 0
    %p51 = por %p49, %p50
    %p52 = scmp.ne.s32.totalorder %s38, %s39
    %p53 = scmp.eq.s32.totalorder %s17, 1
    %p54 = por %p52, %p53
    %p56 = scmp.ne.s32.totalorder %s39, %s55
    %p57 = scmp.eq.s32.totalorder %s17, 0
    %p58 = por %p56, %p57
    %s60 = sadd.s32 %s59, 1
    %p63 = scmp.eq.s32.totalorder %s11, 1
    %p64 = scmp.ne.s32.totalorder %s59, %s61
    %p65 = scmp.eq.s32.totalorder %s11, 0
    %p66 = por %p64, %p65
    %p67 = scmp.ne.s32.totalorder %s59, %s61
    %p68 = scmp.eq.s32.totalorder %s16, 1
    %p69 = por %p67, %p68
    %p70 = scmp.ne.s32.totalorder %s61, %s62
    %p71 = scmp.eq.s32.totalorder %s16, 0
    %p72 = por %p70, %p71
    %p73 = scmp.ne.s32.totalorder %s61, %s62
    %p74 = scmp.eq.s32.totalorder %s17, 1
    %p75 = por %p73, %p74
    %p77 = scmp.ne.s32.totalorder %s62, %s76
    %p78 = scmp.eq.s32.totalorder %s17, 0
    %p79 = por %p77, %p78
    %s81 = sadd.s32 %s80, 1
    %p84 = scmp.eq.s32.totalorder %s11, 1
    %p85 = scmp.ne.s32.totalorder %s80, %s82
    %p86 = scmp.eq.s32.totalorder %s11, 0
    %p87 = por %p85, %p86
    %p88 = scmp.ne.s32.totalorder %s80, %s82
    %p89 = scmp.eq.s32.totalorder %s16, 1
    %p90 = por %p88, %p89
    %p91 = scmp.ne.s32.totalorder %s82, %s83
    %p92 = scmp.eq.s32.totalorder %s16, 0
    %p93 = por %p91, %p92
    %p94 = scmp.ne.s32.totalorder %s82, %s83
    %p95 = scmp.eq.s32.totalorder %s17, 1
    %p96 = por %p94, %p95
    %p98 = scmp.ne.s32.totalorder %s83, %s97
    %p99 = scmp.eq.s32.totalorder %s17, 0
    %p100 = por %p98, %p99
    %s101 = ssub.s32 %s18, %s30
    %s102 = ssub.s32 %s19, %s26
    %s103 = sor.u32 %s101, %s102
    %p104 = scmp.eq.s32.totalorder %s103, 0
    %s106 = sadd.s32 %s105, 1
    %s107 = scalar_select %p104, %s105, %s106
    %p110 = pneg %p104
    %p111 = scmp.eq.s32.totalorder %s11, 1
    %p112 = por %p110, %p111
    %p113 = scmp.ne.s32.totalorder %s105, %s108
    %p114 = scmp.eq.s32.totalorder %s11, 0
    %p115 = por %p113, %p114
    %p116 = scmp.ne.s32.totalorder %s105, %s108
    %p117 = scmp.eq.s32.totalorder %s16, 1
    %p118 = por %p116, %p117
    %p119 = scmp.ne.s32.totalorder %s108, %s109
    %p120 = scmp.eq.s32.totalorder %s16, 0
    %p121 = por %p119, %p120
    %p122 = scmp.ne.s32.totalorder %s108, %s109
    %p123 = scmp.eq.s32.totalorder %s17, 1
    %p124 = por %p122, %p123
    %p126 = scmp.ne.s32.totalorder %s109, %s125
    %p127 = scmp.eq.s32.totalorder %s17, 0
    %p128 = por %p126, %p127
    %s129 = ssub.s32 %s18, %s30
    %p130 = scmp.eq.s32.totalorder %s129, 0
    %s132 = sadd.s32 %s131, 1
    %s133 = scalar_select %p130, %s131, %s132
    %p136 = pneg %p130
    %p137 = scmp.eq.s32.totalorder %s11, 1
    %p138 = por %p136, %p137
    %p139 = scmp.ne.s32.totalorder %s131, %s134
    %p140 = scmp.eq.s32.totalorder %s11, 0
    %p141 = por %p139, %p140
    %p142 = scmp.ne.s32.totalorder %s131, %s134
    %p143 = scmp.eq.s32.totalorder %s16, 1
    %p144 = por %p142, %p143
    %p145 = scmp.ne.s32.totalorder %s134, %s135
    %p146 = scmp.eq.s32.totalorder %s16, 0
    %p147 = por %p145, %p146
    %p148 = scmp.ne.s32.totalorder %s134, %s135
    %p149 = scmp.eq.s32.totalorder %s17, 1
    %p150 = por %p148, %p149
    %p152 = scmp.ne.s32.totalorder %s135, %s151
    %p153 = scmp.eq.s32.totalorder %s17, 0
    %p154 = por %p152, %p153
    %p155 = scmp.le.s32.totalorder 1, %s11
    %p156 = scmp.lt.s32.totalorder %s11, 3
    %p157 = pnand %p155, %p156
    %p158 = pneg %p157
    // Predicated region
    $region9: #{net_forward.8} parent=5 // pred_check
      _
    $region10: #{net_forward.8} parent=5 // pred_check_branch
      %160 = sbr.rel (%p157) target = $region12
    $region11: #{net_forward.8} parent=5 // pred_region
      %s161 = ssub.s32 %s11, 1
      // Predicated region
      $region13: #{net_forward.8} parent=11 // pred_check
        %p162 = pneg %p72
      $region14: #{net_forward.8} parent=11 // pred_check_branch
        %164 = sbr.rel (%p162) target = $region16
      $region15: #{net_forward.8} parent=11 // pred_region
        _
      $region16: #{net_forward.8} parent=11 // pred_fallthru
        _
      // Predicated region
      $region17: #{net_forward.8} parent=11 // pred_check
        %p165 = pneg %p93
      $region18: #{net_forward.8} parent=11 // pred_check_branch
        %167 = sbr.rel (%p165) target = $region20
      $region19: #{net_forward.8} parent=11 // pred_region
        _
      $region20: #{net_forward.8} parent=11 // pred_fallthru
        _
    $region12: #{net_forward.8} parent=5 // pred_fallthru
      _
    %p168 = scmp.lt.s32.totalorder %s11, 2
    // Predicated region
    $region21: #{net_forward.8} parent=5 // pred_check
      %p169 = pneg %p168
    $region22: #{net_forward.8} parent=5 // pred_check_branch
      %171 = sbr.rel (%p169) target = $region24
    $region23: #{net_forward.8} parent=5 // pred_region
      // Predicated region
      $region25: #{net_forward.8} parent=23 // pred_check
        %p172 = pneg %p45
      $region26: #{net_forward.8} parent=23 // pred_check_branch
        %174 = sbr.rel (%p172) target = $region28
      $region27: #{net_forward.8} parent=23 // pred_region
        %s175 = smul.u32 25, %s19
        %p176 = scmp.lt.s32.totalorder %s18, 1
        %s177 = scalar_select %p176, %s18, 1
        %p178 = scmp.lt.s32.totalorder %s175, 24
        %s179 = scalar_select %p178, %s175, 24
        %s180 = smul.addr %s179, 2
        %s181 = smul.addr %s177, 50
        %s182 = sadd.s32 %s180, %s181
        %s183 = smul.addr %s182, 4
        %s184 = scalar_lea.vmem %s0, %s183
        %s185 = smul.u32 25, %s19
      $region28: #{net_forward.8} parent=23 // pred_fallthru
        _
    $region24: #{net_forward.8} parent=5 // pred_fallthru
      _
    %p186 = scmp.le.s32.totalorder 1, %s11
    %p187 = scmp.lt.s32.totalorder %s11, 3
    %p188 = pnand %p186, %p187
    %p189 = pneg %p188
    // Predicated region
    $region29: #{net_forward.8} parent=5 // pred_check
      _
    $region30: #{net_forward.8} parent=5 // pred_check_branch
      %191 = sbr.rel (%p188) target = $region32
    $region31: #{net_forward.8} parent=5 // pred_region
      %s192 = ssub.s32 %s11, 1
      %s193 = smul.u32 25, %s21
      %p194 = scmp.lt.s32.totalorder %s20, 1
      %s195 = scalar_select %p194, %s20, 1
      %p196 = scmp.lt.s32.totalorder %s193, 24
      %s197 = scalar_select %p196, %s193, 24
      %s198 = smul.addr %s197, 2
      %s199 = smul.addr %s195, 50
      %s200 = sadd.s32 %s198, %s199
      %s201 = smul.addr %s200, 4
      %s202 = scalar_lea.vmem %s0, %s201
      %p203 = pneg %p51
      %p204 = pneg %p48
      %p205 = pneg %p72
      %p206 = pneg %p69
      %p207 = pneg %p93
      %p208 = pneg %p90
      %p209 = pneg %p121
      %p210 = pneg %p118
      %s211 = smul.u32 25, %s21
      %p212 = scmp.lt.s32.totalorder %s20, 1
      %s213 = scalar_select %p212, %s20, 1
      %p214 = scmp.lt.s32.totalorder %s211, 24
      %s215 = scalar_select %p214, %s211, 24
      %s216 = smul.addr %s213, 25
      %s217 = sadd.s32 %s215, %s216
      %s218 = smul.addr %s217, 4
      %s219 = scalar_lea.vmem %s3, %s218
      %p220 = pneg %p147
      %p221 = pneg %p144
      %p222 = scmp.lt.s32.totalorder %s20, 1
      %s223 = scalar_select %p222, %s20, 1
      %s224 = smul.addr %s223, 8
      %s225 = scalar_lea.vmem %s4, %s224
      %s226 = smul.u32 25, %s21
      %p227 = scmp.lt.s32.totalorder %s20, 1
      %s228 = scalar_select %p227, %s20, 1
      %p229 = scmp.lt.s32.totalorder %s226, 24
      %s230 = scalar_select %p229, %s226, 24
      %s231 = smul.addr %s230, 2
      %s232 = smul.addr %s228, 50
      %s233 = sadd.s32 %s231, %s232
      %s234 = smul.addr %s233, 4
      %s235 = scalar_lea.vmem %s0, %s234
      %s236 = smul.u32 25, %s21
      %s237 = smul.u32 25, %s21
      %p238 = scmp.lt.s32.totalorder %s20, 1
      %s239 = scalar_select %p238, %s20, 1
      %p240 = scmp.lt.s32.totalorder %s237, 24
      %s241 = scalar_select %p240, %s237, 24
      %s242 = smul.addr %s239, 25
      %s243 = sadd.s32 %s241, %s242
      %s244 = smul.addr %s243, 4
      %s245 = scalar_lea.vmem %s3, %s244
      %s246 = smul.u32 25, %s21
      %p247 = scmp.lt.s32.totalorder %s20, 1
      %s248 = scalar_select %p247, %s20, 1
      %s249 = smul.addr %s248, 8
      %s250 = scalar_lea.vmem %s4, %s249
      %v252 = vld [vmem:[%s235] sm:$0xff]
      %v253 = vld [vmem:[%s235 + $0x8] sm:$0xff]
      %v254 = vld [vmem:[%s235 + $0x10] sm:$0xff]
      %v255 = vld [vmem:[%s235 + $0x18] sm:$0xff]
      %v256 = vld [vmem:[%s235 + $0x20] sm:$0xff]
      %v257 = vld [vmem:[%s235 + $0x28] sm:$0xff]
      %v258 = vld [vmem:[%s235 + $0x30] sm:$0xff]
      %v259 = vld [vmem:[%s235 + $0x38] sm:$0xff]
      %v260 = vld [vmem:[%s235 + $0x40] sm:$0xff]
      %v261 = vld [vmem:[%s235 + $0x48] sm:$0xff]
      %v262 = vld [vmem:[%s235 + $0x50] sm:$0xff]
      %v263 = vld [vmem:[%s235 + $0x58] sm:$0xff]
      %v264 = vld [vmem:[%s235 + $0x60] sm:$0xff]
      %v265 = vld [vmem:[%s235 + $0x68] sm:$0xff]
      %v266 = vld [vmem:[%s235 + $0x70] sm:$0xff]
      %v267 = vld [vmem:[%s235 + $0x78] sm:$0xff]
      %v268 = vld [vmem:[%s235 + $0x80] sm:$0xff]
      %v269 = vld [vmem:[%s235 + $0x88] sm:$0xff]
      %v270 = vld [vmem:[%s235 + $0x90] sm:$0xff]
      %v271 = vld [vmem:[%s235 + $0x98] sm:$0xff]
      %v272 = vld [vmem:[%s235 + $0xa0] sm:$0xff]
      %v273 = vld [vmem:[%s235 + $0xa8] sm:$0xff]
      %v274 = vld [vmem:[%s235 + $0xb0] sm:$0xff]
      %v275 = vld [vmem:[%s235 + $0xb8] sm:$0xff]
      %v276 = vld [vmem:[%s235 + $0xc0] sm:$0xff]
      %v277 = vld [vmem:[%s1] sm:$0xf]
      %v278 = vld [vmem:[%s1 + $0x4] sm:$0xf]
      %v279 = vld [vmem:[%s1 + $0x8] sm:$0xf]
      %v280 = vld [vmem:[%s1 + $0xc] sm:$0xf]
      %v281 = vld [vmem:[%s1 + $0x10] sm:$0xf]
      %v282 = vld [vmem:[%s1 + $0x14] sm:$0xf]
      %v283 = vld [vmem:[%s1 + $0x18] sm:$0xf]
      %v284 = vld [vmem:[%s1 + $0x1c] sm:$0xf]
      %v285 = vld [vmem:[%s1 + $0x20] sm:$0xf]
      %v286 = vld [vmem:[%s1 + $0x24] sm:$0xf]
      %v287 = vld [vmem:[%s1 + $0x28] sm:$0xf]
      %v288 = vld [vmem:[%s1 + $0x2c] sm:$0xf]
      %v289 = vld [vmem:[%s1 + $0x30] sm:$0xf]
      %v290 = vld [vmem:[%s1 + $0x34] sm:$0xf]
      %v291 = vld [vmem:[%s1 + $0x38] sm:$0xf]
      %v292 = vld [vmem:[%s1 + $0x3c] sm:$0xf]
      %v293 = vld [vmem:[%s1 + $0x40] sm:$0xf]
      %v294 = vld [vmem:[%s1 + $0x44] sm:$0xf]
      %v295 = vld [vmem:[%s1 + $0x48] sm:$0xf]
      %v296 = vld [vmem:[%s1 + $0x4c] sm:$0xf]
      %v297 = vld [vmem:[%s1 + $0x50] sm:$0xf]
      %v298 = vld [vmem:[%s1 + $0x54] sm:$0xf]
      %v299 = vld [vmem:[%s1 + $0x58] sm:$0xf]
      %v300 = vld [vmem:[%s1 + $0x5c] sm:$0xf]
      %v301 = vld [vmem:[%s1 + $0x60] sm:$0xf]
      %v302 = vld [vmem:[%s1 + $0x64] sm:$0xf]
      %v303 = vld [vmem:[%s1 + $0x68] sm:$0xf]
      %v304 = vld [vmem:[%s1 + $0x6c] sm:$0xf]
      %v305 = vld [vmem:[%s1 + $0x70] sm:$0xf]
      %v306 = vld [vmem:[%s1 + $0x74] sm:$0xf]
      %v307 = vld [vmem:[%s1 + $0x78] sm:$0xf]
      %v308 = vld [vmem:[%s1 + $0x7c] sm:$0xf]
      %v309 = vld [vmem:[%s2] sm:$0x1]
      %v311 = vlaneseq
      %v312 = vshrl.u32 %v311, 7
      %v313 = vsub.s32 0, %v312
      %v314 = vrot.slane %v309, %v313
      %v341 = vunpack.c.l.b16 %v252
      %v342 = vunpack.c.h.b16 %v252
      %v343 = vunpack.c.l.b16 %v253
      %v344 = vunpack.c.h.b16 %v253
      %v345 = vunpack.c.l.b16 %v254
      %v346 = vunpack.c.h.b16 %v254
      %v347 = vunpack.c.l.b16 %v255
      %v348 = vunpack.c.h.b16 %v255
      %v349 = vunpack.c.l.b16 %v256
      %v350 = vunpack.c.h.b16 %v256
      %v351 = vunpack.c.l.b16 %v257
      %v352 = vunpack.c.h.b16 %v257
      %v353 = vunpack.c.l.b16 %v258
      %v354 = vunpack.c.h.b16 %v258
      %v355 = vunpack.c.l.b16 %v259
      %v356 = vunpack.c.h.b16 %v259
      %v357 = vunpack.c.l.b16 %v260
      %v358 = vunpack.c.h.b16 %v260
      %v359 = vunpack.c.l.b16 %v261
      %v360 = vunpack.c.h.b16 %v261
      %v361 = vunpack.c.l.b16 %v262
      %v362 = vunpack.c.h.b16 %v262
      %v363 = vunpack.c.l.b16 %v263
      %v364 = vunpack.c.h.b16 %v263
      %v365 = vunpack.c.l.b16 %v264
      %v366 = vunpack.c.h.b16 %v264
      %v367 = vunpack.c.l.b16 %v265
      %v368 = vunpack.c.h.b16 %v265
      %v369 = vunpack.c.l.b16 %v266
      %v370 = vunpack.c.h.b16 %v266
      %v371 = vunpack.c.l.b16 %v267
      %v372 = vunpack.c.h.b16 %v267
      %v373 = vunpack.c.l.b16 %v268
      %v374 = vunpack.c.h.b16 %v268
      %v375 = vunpack.c.l.b16 %v269
      %v376 = vunpack.c.h.b16 %v269
      %v377 = vunpack.c.l.b16 %v270
      %v378 = vunpack.c.h.b16 %v270
      %v379 = vunpack.c.l.b16 %v271
      %v380 = vunpack.c.h.b16 %v271
      %v381 = vunpack.c.l.b16 %v272
      %v382 = vunpack.c.h.b16 %v272
      %v383 = vunpack.c.l.b16 %v273
      %v384 = vunpack.c.h.b16 %v273
      %v385 = vunpack.c.l.b16 %v274
      %v386 = vunpack.c.h.b16 %v274
      %v387 = vunpack.c.l.b16 %v275
      %v388 = vunpack.c.h.b16 %v275
      %v389 = vunpack.c.l.b16 %v276
      %v390 = vunpack.c.h.b16 %v276
      %v391 = vpack.c.b16 %v343, %v341
      %v392 = vpack.c.b16 %v344, %v342
      %v393 = vpack.c.b16 %v347, %v345
      %v394 = vpack.c.b16 %v348, %v346
      %v395 = vpack.c.b16 %v351, %v349
      %v396 = vpack.c.b16 %v352, %v350
      %v397 = vpack.c.b16 %v355, %v353
      %v398 = vpack.c.b16 %v356, %v354
      %v399 = vpack.c.b16 %v359, %v357
      %v400 = vpack.c.b16 %v360, %v358
      %v401 = vpack.c.b16 %v363, %v361
      %v402 = vpack.c.b16 %v364, %v362
      %v403 = vpack.c.b16 %v367, %v365
      %v404 = vpack.c.b16 %v368, %v366
      %v405 = vpack.c.b16 %v371, %v369
      %v406 = vpack.c.b16 %v372, %v370
      %v407 = vpack.c.b16 %v375, %v373
      %v408 = vpack.c.b16 %v376, %v374
      %v409 = vpack.c.b16 %v379, %v377
      %v410 = vpack.c.b16 %v380, %v378
      %v411 = vpack.c.b16 %v383, %v381
      %v412 = vpack.c.b16 %v384, %v382
      %v413 = vpack.c.b16 %v387, %v385
      %v414 = vpack.c.b16 %v388, %v386
      %v415 = vpack.c.b16 %v389, %v389
      %v416 = vpack.c.b16 %v390, %v390
      %v475 = vunpack.c.l.b16 %v277
      %v476 = vunpack.c.l.b16 %v278
      %v477 = vunpack.c.l.b16 %v279
      %v478 = vunpack.c.l.b16 %v280
      %v479 = vunpack.c.l.b16 %v281
      %v480 = vunpack.c.l.b16 %v282
      %v481 = vunpack.c.l.b16 %v283
      %v482 = vunpack.c.l.b16 %v284
      %v483 = vunpack.c.l.b16 %v285
      %v484 = vunpack.c.l.b16 %v286
      %v485 = vunpack.c.l.b16 %v287
      %v486 = vunpack.c.l.b16 %v288
      %v487 = vunpack.c.l.b16 %v289
      %v488 = vunpack.c.l.b16 %v290
      %v489 = vunpack.c.l.b16 %v291
      %v490 = vunpack.c.l.b16 %v292
      %v491 = vunpack.c.l.b16 %v293
      %v492 = vunpack.c.l.b16 %v294
      %v493 = vunpack.c.l.b16 %v295
      %v494 = vunpack.c.l.b16 %v296
      %v495 = vunpack.c.l.b16 %v297
      %v496 = vunpack.c.l.b16 %v298
      %v497 = vunpack.c.l.b16 %v299
      %v498 = vunpack.c.l.b16 %v300
      %v499 = vunpack.c.l.b16 %v301
      %v500 = vunpack.c.l.b16 %v302
      %v501 = vunpack.c.l.b16 %v303
      %v502 = vunpack.c.l.b16 %v304
      %v503 = vunpack.c.l.b16 %v305
      %v504 = vunpack.c.l.b16 %v306
      %v505 = vunpack.c.l.b16 %v307
      %v506 = vunpack.c.l.b16 %v308
      %v507 = vpack.c.b16 %v476, %v475
      %v508 = vpack.c.b16 %v478, %v477
      %v509 = vpack.c.b16 %v480, %v479
      %v510 = vpack.c.b16 %v482, %v481
      %v511 = vpack.c.b16 %v484, %v483
      %v512 = vpack.c.b16 %v486, %v485
      %v513 = vpack.c.b16 %v488, %v487
      %v514 = vpack.c.b16 %v490, %v489
      %v515 = vpack.c.b16 %v492, %v491
      %v516 = vpack.c.b16 %v494, %v493
      %v517 = vpack.c.b16 %v496, %v495
      %v518 = vpack.c.b16 %v498, %v497
      %v519 = vpack.c.b16 %v500, %v499
      %v520 = vpack.c.b16 %v502, %v501
      %v521 = vpack.c.b16 %v504, %v503
      %v522 = vpack.c.b16 %v506, %v505
      %539 = vmatprep.subr.bf16.mxu0 0
      %540 = vmatpush1.bf16.msra.mxu0 %v514
      %541 = vmatprep.subr.bf16.mxu0 0
      %542 = vmatpush1.bf16.msra.mxu0 %v513
      %543 = vmatprep.subr.bf16.mxu0 0
      %544 = vmatpush1.bf16.msra.mxu0 %v512
      %545 = vmatprep.subr.bf16.mxu0 0
      %546 = vmatpush1.bf16.msra.mxu0 %v511
      %547 = vmatprep.subr.bf16.mxu0 0
      %548 = vmatpush1.bf16.msra.mxu0 %v510
      %549 = vmatprep.subr.bf16.mxu0 0
      %550 = vmatpush1.bf16.msra.mxu0 %v509
      %551 = vmatprep.subr.bf16.mxu0 0
      %552 = vmatpush1.bf16.msra.mxu0 %v508
      %553 = vmatprep.subr.bf16.mxu0 0
      %554 = vmatpush1.bf16.msra.mxu0 %v507
      %555 = vmatprep.subr.bf16.mxu0 0
      %556 = vmatpush2.bf16.msra.mxu0 %v522
      %557 = vmatprep.subr.bf16.mxu0 0
      %558 = vmatpush2.bf16.msra.mxu0 %v521
      %559 = vmatprep.subr.bf16.mxu0 0
      %560 = vmatpush2.bf16.msra.mxu0 %v520
      %561 = vmatprep.subr.bf16.mxu0 0
      %562 = vmatpush2.bf16.msra.mxu0 %v519
      %563 = vmatprep.subr.bf16.mxu0 0
      %564 = vmatpush2.bf16.msra.mxu0 %v518
      %565 = vmatprep.subr.bf16.mxu0 0
      %566 = vmatpush2.bf16.msra.mxu0 %v517
      %567 = vmatprep.subr.bf16.mxu0 0
      %568 = vmatpush2.bf16.msra.mxu0 %v516
      %569 = vmatprep.subr.bf16.mxu0 0
      %570 = vmatpush2.bf16.msra.mxu0 %v515
      %571 = vmatprep.mubr.bf16.mxu0 %v392
      %572 = vmatmul.mubr.bf16.gmra.mxu0 %v391
      %v573 = vpop.f32.mrf.mxu0
      %v574 = vadd.f32 %v314, %v573
      %v575 = vpop.f32.mrf.mxu0
      %v576 = vpop.f32.mrf.mxu0
      %v577 = vadd.f32 %v314, %v576
      %v578 = vpop.f32.mrf.mxu0
      %579 = vmatprep.mubr.bf16.mxu0 %v394
      %580 = vmatmul.mubr.bf16.gmra.mxu0 %v393
      %v581 = vpop.f32.mrf.mxu0
      %v582 = vadd.f32 %v314, %v581
      %v583 = vpop.f32.mrf.mxu0
      %v584 = vpop.f32.mrf.mxu0
      %v585 = vadd.f32 %v314, %v584
      %v586 = vpop.f32.mrf.mxu0
      %587 = vmatprep.mubr.bf16.mxu0 %v396
      %588 = vmatmul.mubr.bf16.gmra.mxu0 %v395
      %v589 = vpop.f32.mrf.mxu0
      %v590 = vadd.f32 %v314, %v589
      %v591 = vpop.f32.mrf.mxu0
      %v592 = vpop.f32.mrf.mxu0
      %v593 = vadd.f32 %v314, %v592
      %v594 = vpop.f32.mrf.mxu0
      %595 = vmatprep.mubr.bf16.mxu0 %v398
      %596 = vmatmul.mubr.bf16.gmra.mxu0 %v397
      %v597 = vpop.f32.mrf.mxu0
      %v598 = vadd.f32 %v314, %v597
      %v599 = vpop.f32.mrf.mxu0
      %v600 = vpop.f32.mrf.mxu0
      %v601 = vadd.f32 %v314, %v600
      %v602 = vpop.f32.mrf.mxu0
      %603 = vmatprep.mubr.bf16.mxu0 %v400
      %604 = vmatmul.mubr.bf16.gmra.mxu0 %v399
      %v605 = vpop.f32.mrf.mxu0
      %v606 = vadd.f32 %v314, %v605
      %v607 = vpop.f32.mrf.mxu0
      %v608 = vpop.f32.mrf.mxu0
      %v609 = vadd.f32 %v314, %v608
      %v610 = vpop.f32.mrf.mxu0
      %611 = vmatprep.mubr.bf16.mxu0 %v402
      %612 = vmatmul.mubr.bf16.gmra.mxu0 %v401
      %v613 = vpop.f32.mrf.mxu0
      %v614 = vadd.f32 %v314, %v613
      %v615 = vpop.f32.mrf.mxu0
      %v616 = vpop.f32.mrf.mxu0
      %v617 = vadd.f32 %v314, %v616
      %v618 = vpop.f32.mrf.mxu0
      %619 = vmatprep.mubr.bf16.mxu0 %v404
      %620 = vmatmul.mubr.bf16.gmra.mxu0 %v403
      %v621 = vpop.f32.mrf.mxu0
      %v622 = vadd.f32 %v314, %v621
      %v623 = vpop.f32.mrf.mxu0
      %v624 = vpop.f32.mrf.mxu0
      %v625 = vadd.f32 %v314, %v624
      %v626 = vpop.f32.mrf.mxu0
      %627 = vmatprep.mubr.bf16.mxu0 %v406
      %628 = vmatmul.mubr.bf16.gmra.mxu0 %v405
      %v629 = vpop.f32.mrf.mxu0
      %v630 = vadd.f32 %v314, %v629
      %v631 = vpop.f32.mrf.mxu0
      %v632 = vpop.f32.mrf.mxu0
      %v633 = vadd.f32 %v314, %v632
      %v634 = vpop.f32.mrf.mxu0
      %635 = vmatprep.mubr.bf16.mxu0 %v408
      %636 = vmatmul.mubr.bf16.gmra.mxu0 %v407
      %v637 = vpop.f32.mrf.mxu0
      %v638 = vadd.f32 %v314, %v637
      %v639 = vpop.f32.mrf.mxu0
      %v640 = vpop.f32.mrf.mxu0
      %v641 = vadd.f32 %v314, %v640
      %v642 = vpop.f32.mrf.mxu0
      %643 = vmatprep.mubr.bf16.mxu0 %v410
      %644 = vmatmul.mubr.bf16.gmra.mxu0 %v409
      %v645 = vpop.f32.mrf.mxu0
      %v646 = vadd.f32 %v314, %v645
      %v647 = vpop.f32.mrf.mxu0
      %v648 = vpop.f32.mrf.mxu0
      %v649 = vadd.f32 %v314, %v648
      %v650 = vpop.f32.mrf.mxu0
      %651 = vmatprep.mubr.bf16.mxu0 %v412
      %652 = vmatmul.mubr.bf16.gmra.mxu0 %v411
      %v653 = vpop.f32.mrf.mxu0
      %v654 = vadd.f32 %v314, %v653
      %v655 = vpop.f32.mrf.mxu0
      %v656 = vpop.f32.mrf.mxu0
      %v657 = vadd.f32 %v314, %v656
      %v658 = vpop.f32.mrf.mxu0
      %659 = vmatprep.mubr.bf16.mxu0 %v414
      %660 = vmatmul.mubr.bf16.gmra.mxu0 %v413
      %v661 = vpop.f32.mrf.mxu0
      %v662 = vadd.f32 %v314, %v661
      %v663 = vpop.f32.mrf.mxu0
      %v664 = vpop.f32.mrf.mxu0
      %v665 = vadd.f32 %v314, %v664
      %v666 = vpop.f32.mrf.mxu0
      %667 = vmatprep.mubr.bf16.mxu0 %v416
      %668 = vmatmul.mubr.bf16.gmra.mxu0 %v415
      %v669 = vpop.f32.mrf.mxu0
      %v670 = vadd.f32 %v314, %v669
      %v671 = vpop.f32.mrf.mxu0
      %v672 = vpop.f32.mrf.mxu0
      %v673 = vpop.f32.mrf.mxu0
      %674 = vdwg.mxu0
      %v675 = vmax.f32 %v574, 0.0
      %v676 = vmax.f32 %v577, 0.0
      %v677 = vmax.f32 %v582, 0.0
      %v678 = vmax.f32 %v585, 0.0
      %v679 = vmax.f32 %v590, 0.0
      %v680 = vmax.f32 %v593, 0.0
      %v681 = vmax.f32 %v598, 0.0
      %v682 = vmax.f32 %v601, 0.0
      %v683 = vmax.f32 %v606, 0.0
      %v684 = vmax.f32 %v609, 0.0
      %v685 = vmax.f32 %v614, 0.0
      %v686 = vmax.f32 %v617, 0.0
      %v687 = vmax.f32 %v622, 0.0
      %v688 = vmax.f32 %v625, 0.0
      %v689 = vmax.f32 %v630, 0.0
      %v690 = vmax.f32 %v633, 0.0
      %v691 = vmax.f32 %v638, 0.0
      %v692 = vmax.f32 %v641, 0.0
      %v693 = vmax.f32 %v646, 0.0
      %v694 = vmax.f32 %v649, 0.0
      %v695 = vmax.f32 %v654, 0.0
      %v696 = vmax.f32 %v657, 0.0
      %v697 = vmax.f32 %v662, 0.0
      %v698 = vmax.f32 %v665, 0.0
      %v699 = vmax.f32 %v670, 0.0
      %s700 = smul.u32 %s21, 200
      %v701 = vlaneseq
      %v702 = vshrl.u32 %v701, 7
      %v703 = vadd.s32 %v702, 8
      %v704 = vadd.s32 %v702, 16
      %v705 = vadd.s32 %v702, 24
      %v706 = vadd.s32 %v702, 32
      %v707 = vadd.s32 %v702, 40
      %v708 = vadd.s32 %v702, 48
      %v709 = vadd.s32 %v702, 56
      %v710 = vadd.s32 %v702, 64
      %v711 = vadd.s32 %v702, 72
      %v712 = vadd.s32 %v702, 80
      %v713 = vadd.s32 %v702, 88
      %v714 = vadd.s32 %v702, 96
      %v715 = vadd.s32 %v702, 104
      %v716 = vadd.s32 %v702, 112
      %v717 = vadd.s32 %v702, 120
      %v718 = vadd.s32 %v702, 128
      %v719 = vadd.s32 %v702, 136
      %v720 = vadd.s32 %v702, 144
      %v721 = vadd.s32 %v702, 152
      %v722 = vadd.s32 %v702, 160
      %v723 = vadd.s32 %v702, 168
      %v724 = vadd.s32 %v702, 176
      %v725 = vadd.s32 %v702, 184
      %v726 = vadd.s32 %v702, 192
      %v727 = vstv %s700
      %v728 = vadd.s32 %v727, %v702
      %v729 = vadd.s32 %v727, %v703
      %v730 = vadd.s32 %v727, %v704
      %v731 = vadd.s32 %v727, %v705
      %v732 = vadd.s32 %v727, %v706
      %v733 = vadd.s32 %v727, %v707
      %v734 = vadd.s32 %v727, %v708
      %v735 = vadd.s32 %v727, %v709
      %v736 = vadd.s32 %v727, %v710
      %v737 = vadd.s32 %v727, %v711
      %v738 = vadd.s32 %v727, %v712
      %v739 = vadd.s32 %v727, %v713
      %v740 = vadd.s32 %v727, %v714
      %v741 = vadd.s32 %v727, %v715
      %v742 = vadd.s32 %v727, %v716
      %v743 = vadd.s32 %v727, %v717
      %v744 = vadd.s32 %v727, %v718
      %v745 = vadd.s32 %v727, %v719
      %v746 = vadd.s32 %v727, %v720
      %v747 = vadd.s32 %v727, %v721
      %v748 = vadd.s32 %v727, %v722
      %v749 = vadd.s32 %v727, %v723
      %v750 = vadd.s32 %v727, %v724
      %v751 = vadd.s32 %v727, %v725
      %v752 = vadd.s32 %v727, %v726
      %vm753 = vcmp.lt.s32.totalorder %v728, 196
      %vm754 = vcmp.lt.s32.totalorder %v729, 196
      %vm755 = vcmp.lt.s32.totalorder %v730, 196
      %vm756 = vcmp.lt.s32.totalorder %v731, 196
      %vm757 = vcmp.lt.s32.totalorder %v732, 196
      %vm758 = vcmp.lt.s32.totalorder %v733, 196
      %vm759 = vcmp.lt.s32.totalorder %v734, 196
      %vm760 = vcmp.lt.s32.totalorder %v735, 196
      %vm761 = vcmp.lt.s32.totalorder %v736, 196
      %vm762 = vcmp.lt.s32.totalorder %v737, 196
      %vm763 = vcmp.lt.s32.totalorder %v738, 196
      %vm764 = vcmp.lt.s32.totalorder %v739, 196
      %vm765 = vcmp.lt.s32.totalorder %v740, 196
      %vm766 = vcmp.lt.s32.totalorder %v741, 196
      %vm767 = vcmp.lt.s32.totalorder %v742, 196
      %vm768 = vcmp.lt.s32.totalorder %v743, 196
      %vm769 = vcmp.lt.s32.totalorder %v744, 196
      %vm770 = vcmp.lt.s32.totalorder %v745, 196
      %vm771 = vcmp.lt.s32.totalorder %v746, 196
      %vm772 = vcmp.lt.s32.totalorder %v747, 196
      %vm773 = vcmp.lt.s32.totalorder %v748, 196
      %vm774 = vcmp.lt.s32.totalorder %v749, 196
      %vm775 = vcmp.lt.s32.totalorder %v750, 196
      %vm776 = vcmp.lt.s32.totalorder %v751, 196
      %vm777 = vcmp.lt.s32.totalorder %v752, 196
      %v778 = vsel %vm753, 1, 0
      %v779 = vsel %vm754, 1, 0
      %v780 = vsel %vm755, 1, 0
      %v781 = vsel %vm756, 1, 0
      %v782 = vsel %vm757, 1, 0
      %v783 = vsel %vm758, 1, 0
      %v784 = vsel %vm759, 1, 0
      %v785 = vsel %vm760, 1, 0
      %v786 = vsel %vm761, 1, 0
      %v787 = vsel %vm762, 1, 0
      %v788 = vsel %vm763, 1, 0
      %v789 = vsel %vm764, 1, 0
      %v790 = vsel %vm765, 1, 0
      %v791 = vsel %vm766, 1, 0
      %v792 = vsel %vm767, 1, 0
      %v793 = vsel %vm768, 1, 0
      %v794 = vsel %vm769, 1, 0
      %v795 = vsel %vm770, 1, 0
      %v796 = vsel %vm771, 1, 0
      %v797 = vsel %vm772, 1, 0
      %v798 = vsel %vm773, 1, 0
      %v799 = vsel %vm774, 1, 0
      %v800 = vsel %vm775, 1, 0
      %v801 = vsel %vm776, 1, 0
      %v802 = vsel %vm777, 1, 0
      %vm803 = vcmp.eq.s32.totalorder %v778, 1
      %vm804 = vcmp.eq.s32.totalorder %v779, 1
      %vm805 = vcmp.eq.s32.totalorder %v780, 1
      %vm806 = vcmp.eq.s32.totalorder %v781, 1
      %vm807 = vcmp.eq.s32.totalorder %v782, 1
      %vm808 = vcmp.eq.s32.totalorder %v783, 1
      %vm809 = vcmp.eq.s32.totalorder %v784, 1
      %vm810 = vcmp.eq.s32.totalorder %v785, 1
      %vm811 = vcmp.eq.s32.totalorder %v786, 1
      %vm812 = vcmp.eq.s32.totalorder %v787, 1
      %vm813 = vcmp.eq.s32.totalorder %v788, 1
      %vm814 = vcmp.eq.s32.totalorder %v789, 1
      %vm815 = vcmp.eq.s32.totalorder %v790, 1
      %vm816 = vcmp.eq.s32.totalorder %v791, 1
      %vm817 = vcmp.eq.s32.totalorder %v792, 1
      %vm818 = vcmp.eq.s32.totalorder %v793, 1
      %vm819 = vcmp.eq.s32.totalorder %v794, 1
      %vm820 = vcmp.eq.s32.totalorder %v795, 1
      %vm821 = vcmp.eq.s32.totalorder %v796, 1
      %vm822 = vcmp.eq.s32.totalorder %v797, 1
      %vm823 = vcmp.eq.s32.totalorder %v798, 1
      %vm824 = vcmp.eq.s32.totalorder %v799, 1
      %vm825 = vcmp.eq.s32.totalorder %v800, 1
      %vm826 = vcmp.eq.s32.totalorder %v801, 1
      %vm827 = vcmp.eq.s32.totalorder %v802, 1
      %v828 = vsel %vm803, %v675, 0.0
      %v829 = vsel %vm804, %v676, 0.0
      %v830 = vsel %vm805, %v677, 0.0
      %v831 = vsel %vm806, %v678, 0.0
      %v832 = vsel %vm807, %v679, 0.0
      %v833 = vsel %vm808, %v680, 0.0
      %v834 = vsel %vm809, %v681, 0.0
      %v835 = vsel %vm810, %v682, 0.0
      %v836 = vsel %vm811, %v683, 0.0
      %v837 = vsel %vm812, %v684, 0.0
      %v838 = vsel %vm813, %v685, 0.0
      %v839 = vsel %vm814, %v686, 0.0
      %v840 = vsel %vm815, %v687, 0.0
      %v841 = vsel %vm816, %v688, 0.0
      %v842 = vsel %vm817, %v689, 0.0
      %v843 = vsel %vm818, %v690, 0.0
      %v844 = vsel %vm819, %v691, 0.0
      %v845 = vsel %vm820, %v692, 0.0
      %v846 = vsel %vm821, %v693, 0.0
      %v847 = vsel %vm822, %v694, 0.0
      %v848 = vsel %vm823, %v695, 0.0
      %v849 = vsel %vm824, %v696, 0.0
      %v850 = vsel %vm825, %v697, 0.0
      %v851 = vsel %vm826, %v698, 0.0
      %v852 = vsel %vm827, %v699, 0.0
      %v853 = vpack.c.bf16 %v829, %v828
      %v854 = vpack.c.bf16 %v831, %v830
      %v855 = vpack.c.bf16 %v833, %v832
      %v856 = vpack.c.bf16 %v835, %v834
      %v857 = vpack.c.bf16 %v837, %v836
      %v858 = vpack.c.bf16 %v839, %v838
      %v859 = vpack.c.bf16 %v841, %v840
      %v860 = vpack.c.bf16 %v843, %v842
      %v861 = vpack.c.bf16 %v845, %v844
      %v862 = vpack.c.bf16 %v847, %v846
      %v863 = vpack.c.bf16 %v849, %v848
      %v864 = vpack.c.bf16 %v851, %v850
      %v865 = vpack.c.bf16 %v852, %v852
      %v879 = vunpack.c.l.b16 %v853
      %v880 = vunpack.c.h.b16 %v853
      %v881 = vunpack.c.l.b16 %v854
      %v882 = vunpack.c.h.b16 %v854
      %v883 = vunpack.c.l.b16 %v855
      %v884 = vunpack.c.h.b16 %v855
      %v885 = vunpack.c.l.b16 %v856
      %v886 = vunpack.c.h.b16 %v856
      %v887 = vunpack.c.l.b16 %v857
      %v888 = vunpack.c.h.b16 %v857
      %v889 = vunpack.c.l.b16 %v858
      %v890 = vunpack.c.h.b16 %v858
      %v891 = vunpack.c.l.b16 %v859
      %v892 = vunpack.c.h.b16 %v859
      %v893 = vunpack.c.l.b16 %v860
      %v894 = vunpack.c.h.b16 %v860
      %v895 = vunpack.c.l.b16 %v861
      %v896 = vunpack.c.h.b16 %v861
      %v897 = vunpack.c.l.b16 %v862
      %v898 = vunpack.c.h.b16 %v862
      %v899 = vunpack.c.l.b16 %v863
      %v900 = vunpack.c.h.b16 %v863
      %v901 = vunpack.c.l.b16 %v864
      %v902 = vunpack.c.h.b16 %v864
      %v903 = vunpack.c.l.b16 %v865
      %v904 = vpack.c.b16 %v879, %v879
      %v905 = vpack.c.b16 %v880, %v880
      %v906 = vpack.c.b16 %v881, %v881
      %v907 = vpack.c.b16 %v882, %v882
      %v908 = vpack.c.b16 %v883, %v883
      %v909 = vpack.c.b16 %v884, %v884
      %v910 = vpack.c.b16 %v885, %v885
      %v911 = vpack.c.b16 %v886, %v886
      %v912 = vpack.c.b16 %v887, %v887
      %v913 = vpack.c.b16 %v888, %v888
      %v914 = vpack.c.b16 %v889, %v889
      %v915 = vpack.c.b16 %v890, %v890
      %v916 = vpack.c.b16 %v891, %v891
      %v917 = vpack.c.b16 %v892, %v892
      %v918 = vpack.c.b16 %v893, %v893
      %v919 = vpack.c.b16 %v894, %v894
      %v920 = vpack.c.b16 %v895, %v895
      %v921 = vpack.c.b16 %v896, %v896
      %v922 = vpack.c.b16 %v897, %v897
      %v923 = vpack.c.b16 %v898, %v898
      %v924 = vpack.c.b16 %v899, %v899
      %v925 = vpack.c.b16 %v900, %v900
      %v926 = vpack.c.b16 %v901, %v901
      %v927 = vpack.c.b16 %v902, %v902
      %v928 = vpack.c.b16 %v903, %v903
      %954 = vst [vmem:[%s245] sm:$0xf] %v904
      %955 = vst [vmem:[%s245 + $0x4] sm:$0xf] %v905
      %956 = vst [vmem:[%s245 + $0x8] sm:$0xf] %v906
      %957 = vst [vmem:[%s245 + $0xc] sm:$0xf] %v907
      %958 = vst [vmem:[%s245 + $0x10] sm:$0xf] %v908
      %959 = vst [vmem:[%s245 + $0x14] sm:$0xf] %v909
      %960 = vst [vmem:[%s245 + $0x18] sm:$0xf] %v910
      %961 = vst [vmem:[%s245 + $0x1c] sm:$0xf] %v911
      %962 = vst [vmem:[%s245 + $0x20] sm:$0xf] %v912
      %963 = vst [vmem:[%s245 + $0x24] sm:$0xf] %v913
      %964 = vst [vmem:[%s245 + $0x28] sm:$0xf] %v914
      %965 = vst [vmem:[%s245 + $0x2c] sm:$0xf] %v915
      %966 = vst [vmem:[%s245 + $0x30] sm:$0xf] %v916
      %967 = vst [vmem:[%s245 + $0x34] sm:$0xf] %v917
      %968 = vst [vmem:[%s245 + $0x38] sm:$0xf] %v918
      %969 = vst [vmem:[%s245 + $0x3c] sm:$0xf] %v919
      %970 = vst [vmem:[%s245 + $0x40] sm:$0xf] %v920
      %971 = vst [vmem:[%s245 + $0x44] sm:$0xf] %v921
      %972 = vst [vmem:[%s245 + $0x48] sm:$0xf] %v922
      %973 = vst [vmem:[%s245 + $0x4c] sm:$0xf] %v923
      %974 = vst [vmem:[%s245 + $0x50] sm:$0xf] %v924
      %975 = vst [vmem:[%s245 + $0x54] sm:$0xf] %v925
      %976 = vst [vmem:[%s245 + $0x58] sm:$0xf] %v926
      %977 = vst [vmem:[%s245 + $0x5c] sm:$0xf] %v927
      %978 = vst [vmem:[%s245 + $0x60] sm:$0xf] %v928
      %v979 = vadd.f32 %v828, %v829
      %v980 = vadd.f32 %v979, %v830
      %v981 = vadd.f32 %v980, %v831
      %v982 = vadd.f32 %v981, %v832
      %v983 = vadd.f32 %v982, %v833
      %v984 = vadd.f32 %v983, %v834
      %v985 = vadd.f32 %v984, %v835
      %v986 = vadd.f32 %v985, %v836
      %v987 = vadd.f32 %v986, %v837
      %v988 = vadd.f32 %v987, %v838
      %v989 = vadd.f32 %v988, %v839
      %v990 = vadd.f32 %v989, %v840
      %v991 = vadd.f32 %v990, %v841
      %v992 = vadd.f32 %v991, %v842
      %v993 = vadd.f32 %v992, %v843
      %v994 = vadd.f32 %v993, %v844
      %v995 = vadd.f32 %v994, %v845
      %v996 = vadd.f32 %v995, %v846
      %v997 = vadd.f32 %v996, %v847
      %v998 = vadd.f32 %v997, %v848
      %v999 = vadd.f32 %v998, %v849
      %v1000 = vadd.f32 %v999, %v850
      %v1001 = vadd.f32 %v1000, %v851
      %v1002 = vadd.f32 %v1001, %v852
      %v1003 = vrot.slane %v1002, 4
      %v1004 = vadd.f32 %v1002, %v1003
      %v1005 = vrot.slane %v1004, 2
      %v1006 = vadd.f32 %v1004, %v1005
      %v1007 = vrot.slane %v1006, 1
      %v1008 = vadd.f32 %v1006, %v1007
      %p1009 = scmp.eq.s32.totalorder %s21, 0
      // Predicated region
      $region33: #{net_forward.8} parent=31 // pred_check
        %p1010 = pneg %p1009
      $region34: #{net_forward.8} parent=31 // pred_check_branch
        %1012 = sbr.rel (%p1010) target = $region36
      $region35: #{net_forward.8} parent=31 // pred_region
        %1013 = vst [vmem:[%s250] sm:$0xff] 0.0
      $region36: #{net_forward.8} parent=31 // pred_fallthru
        _
      %v1014 = vld [vmem:[%s250] sm:$0xff]
      %v1015 = vadd.f32 %v1014, %v1008
      %1016 = vst [vmem:[%s250] sm:$0xff] %v1015
      %s1017 = smul.u32 25, %s21
      %p1018 = scmp.lt.s32.totalorder %s20, 1
      %s1019 = scalar_select %p1018, %s20, 1
      %p1020 = scmp.lt.s32.totalorder %s1017, 24
      %s1021 = scalar_select %p1020, %s1017, 24
      %s1022 = smul.addr %s1019, 25
      %s1023 = sadd.s32 %s1021, %s1022
      %s1024 = smul.addr %s1023, 4
      %s1025 = scalar_lea.vmem %s3, %s1024
      %p1026 = scmp.lt.s32.totalorder %s20, 1
      %s1027 = scalar_select %p1026, %s20, 1
      %s1028 = smul.addr %s1027, 8
      %s1029 = scalar_lea.vmem %s4, %s1028
      // Predicated region
      $region37: #{net_forward.8} parent=31 // pred_check
        %p1030 = pneg %p118
      $region38: #{net_forward.8} parent=31 // pred_check_branch
        %1032 = sbr.rel (%p1030) target = $region40
      $region39: #{net_forward.8} parent=31 // pred_region
        %s1033 = smul.u32 25, %s21
      $region40: #{net_forward.8} parent=31 // pred_fallthru
        _
      // Predicated region
      $region41: #{net_forward.8} parent=31 // pred_check
        %p1034 = pneg %p144
      $region42: #{net_forward.8} parent=31 // pred_check_branch
        %1036 = sbr.rel (%p1034) target = $region44
      $region43: #{net_forward.8} parent=31 // pred_region
        _
      $region44: #{net_forward.8} parent=31 // pred_fallthru
        _
    $region32: #{net_forward.8} parent=5 // pred_fallthru
      _
    %p1037 = scmp.le.s32.totalorder 2, %s11
    // Predicated region
    $region45: #{net_forward.8} parent=5 // pred_check
      %p1038 = pneg %p1037
    $region46: #{net_forward.8} parent=5 // pred_check_branch
      %1040 = sbr.rel (%p1038) target = $region48
    $region47: #{net_forward.8} parent=5 // pred_region
      %s1041 = ssub.s32 %s11, 2
      // Predicated region
      $region49: #{net_forward.8} parent=47 // pred_check
        %p1042 = pneg %p124
      $region50: #{net_forward.8} parent=47 // pred_check_branch
        %1044 = sbr.rel (%p1042) target = $region52
      $region51: #{net_forward.8} parent=47 // pred_region
        %s1045 = smul.u32 25, %s23
        %p1046 = scmp.lt.s32.totalorder %s22, 1
        %s1047 = scalar_select %p1046, %s22, 1
        %p1048 = scmp.lt.s32.totalorder %s1045, 24
        %s1049 = scalar_select %p1048, %s1045, 24
        %s1050 = smul.addr %s1047, 25
        %s1051 = sadd.s32 %s1049, %s1050
        %s1052 = smul.addr %s1051, 4
        %s1053 = scalar_lea.vmem %s3, %s1052
      $region52: #{net_forward.8} parent=47 // pred_fallthru
        _
      // Predicated region
      $region53: #{net_forward.8} parent=47 // pred_check
        %p1054 = pneg %p150
      $region54: #{net_forward.8} parent=47 // pred_check_branch
        %1056 = sbr.rel (%p1054) target = $region56
      $region55: #{net_forward.8} parent=47 // pred_region
        %p1057 = scmp.lt.s32.totalorder %s22, 1
        %s1058 = scalar_select %p1057, %s22, 1
        %s1059 = smul.addr %s1058, 8
        %s1060 = scalar_lea.vmem %s4, %s1059
      $region56: #{net_forward.8} parent=47 // pred_fallthru
        _
    $region48: #{net_forward.8} parent=5 // pred_fallthru
      _
  $region6: #{net_forward.8} parent=0 // loop_footer
    %s15 = sadd.s32 1, %s11
  $region7: #{net_forward.8} parent=0 // loop_footer_branch
    %10 = sbr.rel target = $region3
  $region8: #{net_forward.8} parent=0 // loop_exit
    _

// kernel: tile.24
$region0: #{tile.24}
  %s0 = inlined_call_operand.vmem [shape: f32[8,9,32], index: 0, kind: input, shape index: {}]
  %s1 = inlined_call_operand.vmem [shape: f32[8,288], index: 1, kind: output, shape index: {}]
  %v2 = vld [vmem:[%s0] ss:$4 sm:$0x7]
  %vm3 = vcmask 261120
  %4 = vst.msk [vmem:[%s1] ss:$8 sm:$0x7] %vm3, %v2
  %s5 = scalar_lea.vmem %s0, 16
  %v6 = vld [vmem:[%s5] ss:$4 sm:$0x7]
  %vm7 = vcmask 261120
  %s8 = scalar_lea.vmem %s1, 1
  %9 = vst.msk [vmem:[%s8] ss:$8 sm:$0x7] %vm7, %v6
  %s10 = scalar_lea.vmem %s0, 32
  %v11 = vld [vmem:[%s10] ss:$4 sm:$0x7]
  %vm12 = vcmask 261120
  %s13 = scalar_lea.vmem %s1, 2
  %14 = vst.msk [vmem:[%s13] ss:$8 sm:$0x7] %vm12, %v11
  %s15 = scalar_lea.vmem %s0, 48
  %v16 = vld [vmem:[%s15] ss:$4 sm:$0x7]
  %vm17 = vcmask 261120
  %s18 = scalar_lea.vmem %s1, 3
  %19 = vst.msk [vmem:[%s18] ss:$8 sm:$0x7] %vm17, %v16
  %s20 = scalar_lea.vmem %s0, 64
  %v21 = vld [vmem:[%s20] ss:$4 sm:$0x7]
  %vm22 = vcmask 261120
  %s23 = scalar_lea.vmem %s1, 4
  %24 = vst.msk [vmem:[%s23] ss:$8 sm:$0x7] %vm22, %v21
  %s25 = scalar_lea.vmem %s0, 80
  %v26 = vld [vmem:[%s25] ss:$4 sm:$0x7]
  %vm27 = vcmask 261120
  %s28 = scalar_lea.vmem %s1, 5
  %29 = vst.msk [vmem:[%s28] ss:$8 sm:$0x7] %vm27, %v26
  %s30 = scalar_lea.vmem %s0, 96
  %v31 = vld [vmem:[%s30] ss:$4 sm:$0x7]
  %vm32 = vcmask 261120
  %s33 = scalar_lea.vmem %s1, 6
  %34 = vst.msk [vmem:[%s33] ss:$8 sm:$0x7] %vm32, %v31
  %s35 = scalar_lea.vmem %s0, 112
  %v36 = vld [vmem:[%s35] ss:$4 sm:$0x7]
  %vm37 = vcmask 261120
  %s38 = scalar_lea.vmem %s1, 7
  %39 = vst.msk [vmem:[%s38] ss:$8 sm:$0x7] %vm37, %v36
  %s40 = scalar_lea.vmem %s0, 3
  %s41 = smov 3
  %v42 = vld [vmem:[%s40] ss:$16 sm:%s41]
  %s43 = scalar_lea.vmem %s0, 3
  %s44 = smov 12
  %v45 = vld [vmem:[%s43] ss:$16 sm:%s44]
  %vm46 = vcmask 1043458
  %v47 = vsel %vm46, %v45, %v42
  %s48 = scalar_lea.vmem %s0, 3
  %s49 = smov 48
  %v50 = vld [vmem:[%s48] ss:$16 sm:%s49]
  %vm51 = vcmask 1045508
  %v52 = vsel %vm51, %v50, %v47
  %s53 = scalar_lea.vmem %s0, 3
  %s54 = smov 192
  %v55 = vld [vmem:[%s53] ss:$16 sm:%s54]
  %vm56 = vcmask 1047558
  %v57 = vsel %vm56, %v55, %v52
  %58 = vrot.lane.b32.xlu0 %v57, 96
  %v59 = vpop.permute.xlu0 %58
  %vm60 = vcmask 1048320
  %61 = vst.msk [vmem:[%s1] sm:$0xff] %vm60, %v59
  %s62 = scalar_lea.vmem %s0, 7
  %s63 = smov 3
  %v64 = vld [vmem:[%s62] ss:$16 sm:%s63]
  %s65 = scalar_lea.vmem %s0, 7
  %s66 = smov 12
  %v67 = vld [vmem:[%s65] ss:$16 sm:%s66]
  %vm68 = vcmask 1043458
  %v69 = vsel %vm68, %v67, %v64
  %s70 = scalar_lea.vmem %s0, 7
  %s71 = smov 48
  %v72 = vld [vmem:[%s70] ss:$16 sm:%s71]
  %vm73 = vcmask 1045508
  %v74 = vsel %vm73, %v72, %v69
  %s75 = scalar_lea.vmem %s0, 7
  %s76 = smov 192
  %v77 = vld [vmem:[%s75] ss:$16 sm:%s76]
  %vm78 = vcmask 1047558
  %v79 = vsel %vm78, %v77, %v74
  %80 = vrot.lane.b32.xlu0 %v79, 96
  %v81 = vpop.permute.xlu0 %80
  %vm82 = vcmask 1048320
  %s83 = scalar_lea.vmem %s1, 8
  %84 = vst.msk [vmem:[%s83] sm:$0xff] %vm82, %v81
  %s85 = scalar_lea.vmem %s0, 2
  %s86 = smov 3
  %v87 = vld [vmem:[%s85] ss:$16 sm:%s86]
  %s88 = scalar_lea.vmem %s0, 2
  %s89 = smov 12
  %v90 = vld [vmem:[%s88] ss:$16 sm:%s89]
  %vm91 = vcmask 1043458
  %v92 = vsel %vm91, %v90, %v87
  %s93 = scalar_lea.vmem %s0, 2
  %s94 = smov 48
  %v95 = vld [vmem:[%s93] ss:$16 sm:%s94]
  %vm96 = vcmask 1045508
  %v97 = vsel %vm96, %v95, %v92
  %s98 = scalar_lea.vmem %s0, 2
  %s99 = smov 192
  %v100 = vld [vmem:[%s98] ss:$16 sm:%s99]
  %vm101 = vcmask 1047558
  %v102 = vsel %vm101, %v100, %v97
  %103 = vrot.lane.b32.xlu0 %v102, 64
  %v104 = vpop.permute.xlu0 %103
  %vm105 = vcmask 785920
  %106 = vst.msk [vmem:[%s1] sm:$0xff] %vm105, %v104
  %s107 = scalar_lea.vmem %s0, 6
  %s108 = smov 3
  %v109 = vld [vmem:[%s107] ss:$16 sm:%s108]
  %s110 = scalar_lea.vmem %s0, 6
  %s111 = smov 12
  %v112 = vld [vmem:[%s110] ss:$16 sm:%s111]
  %vm113 = vcmask 1043458
  %v114 = vsel %vm113, %v112, %v109
  %s115 = scalar_lea.vmem %s0, 6
  %s116 = smov 48
  %v117 = vld [vmem:[%s115] ss:$16 sm:%s116]
  %vm118 = vcmask 1045508
  %v119 = vsel %vm118, %v117, %v114
  %s120 = scalar_lea.vmem %s0, 6
  %s121 = smov 192
  %v122 = vld [vmem:[%s120] ss:$16 sm:%s121]
  %vm123 = vcmask 1047558
  %v124 = vsel %vm123, %v122, %v119
  %125 = vrot.lane.b32.xlu0 %v124, 64
  %v126 = vpop.permute.xlu0 %125
  %vm127 = vcmask 785920
  %s128 = scalar_lea.vmem %s1, 8
  %129 = vst.msk [vmem:[%s128] sm:$0xff] %vm127, %v126
  %s130 = scalar_lea.vmem %s0, 1
  %s131 = smov 3
  %v132 = vld [vmem:[%s130] ss:$16 sm:%s131]
  %s133 = scalar_lea.vmem %s0, 1
  %s134 = smov 12
  %v135 = vld [vmem:[%s133] ss:$16 sm:%s134]
  %vm136 = vcmask 1043458
  %v137 = vsel %vm136, %v135, %v132
  %s138 = scalar_lea.vmem %s0, 1
  %s139 = smov 48
  %v140 = vld [vmem:[%s138] ss:$16 sm:%s139]
  %vm141 = vcmask 1045508
  %v142 = vsel %vm141, %v140, %v137
  %s143 = scalar_lea.vmem %s0, 1
  %s144 = smov 192
  %v145 = vld [vmem:[%s143] ss:$16 sm:%s144]
  %vm146 = vcmask 1047558
  %v147 = vsel %vm146, %v145, %v142
  %148 = vrot.lane.b32.xlu0 %v147, 32
  %v149 = vpop.permute.xlu0 %148
  %vm150 = vcmask 523520
  %151 = vst.msk [vmem:[%s1] sm:$0xff] %vm150, %v149
  %s152 = scalar_lea.vmem %s0, 5
  %s153 = smov 3
  %v154 = vld [vmem:[%s152] ss:$16 sm:%s153]
  %s155 = scalar_lea.vmem %s0, 5
  %s156 = smov 12
  %v157 = vld [vmem:[%s155] ss:$16 sm:%s156]
  %vm158 = vcmask 1043458
  %v159 = vsel %vm158, %v157, %v154
  %s160 = scalar_lea.vmem %s0, 5
  %s161 = smov 48
  %v162 = vld [vmem:[%s160] ss:$16 sm:%s161]
  %vm163 = vcmask 1045508
  %v164 = vsel %vm163, %v162, %v159
  %s165 = scalar_lea.vmem %s0, 5
  %s166 = smov 192
  %v167 = vld [vmem:[%s165] ss:$16 sm:%s166]
  %vm168 = vcmask 1047558
  %v169 = vsel %vm168, %v167, %v164
  %170 = vrot.lane.b32.xlu0 %v169, 32
  %v171 = vpop.permute.xlu0 %170
  %vm172 = vcmask 523520
  %s173 = scalar_lea.vmem %s1, 8
  %174 = vst.msk [vmem:[%s173] sm:$0xff] %vm172, %v171

// kernel: tile.28
$region0: #{tile.28}
  #allocation0 [shape = 's32[1]{0}', space=sflag, size = 0x4, scoped, tag = 'scoped memory for tile.28']
  %s0 = inlined_call_operand.vmem [shape: f32[32], index: 0, kind: input, shape index: {}]
  %s1 = inlined_call_operand.vmem [shape: f32[9,32], index: 1, kind: output, shape index: {}]
  // Predicated region
  $region2: #{tile.28} parent=0 // pred_check
    _
  $region3: #{tile.28} parent=0 // pred_check_branch
    %3 = sbr.rel (0) target = $region5
  $region4: #{tile.28} parent=0 // pred_region
    _
  $region5: #{tile.28} parent=0 // pred_fallthru
    _
  %v4 = vld [vmem:[%s0] ss:$0 sm:$0xff]
  %5 = vst [vmem:[%s1] sm:$0xff] %v4
  %s6 = scalar_lea.vmem %s1, 8
  %7 = vst [vmem:[%s6] sm:$0xff] %v4

// kernel: tile.29
$region0: #{tile.29}
  %s0 = inlined_call_operand.vmem [shape: f32[9,32], index: 0, kind: input, shape index: {}]
  %s1 = inlined_call_operand.vmem [shape: f32[288], index: 1, kind: output, shape index: {}]
  $region1: #{tile.29} parent=0
    #allocation0 [shape = 'u8[4096]{0}', space=vmem, size = 0x1000, scoped, tag = 'scoped mem for output reshape']
    %v2 = vld [vmem:[%s0] ss:$4 sm:$0x7]
    %vm3 = vcmask 261120
    %4 = vst.msk [vmem:[#allocation0] sm:$0x7] %vm3, %v2
    %s5 = scalar_lea.vmem %s0, 3
    %s6 = smov 3
    %v7 = vld [vmem:[%s5] ss:$4 sm:%s6]
    %8 = vrot.lane.b32.xlu0 %v7, 96
    %v9 = vpop.permute.xlu0 %8
    %vm10 = vcmask 1048320
    %11 = vst.msk [vmem:[#allocation0] sm:$0x3] %vm10, %v9
    %s12 = scalar_lea.vmem %s0, 2
    %s13 = smov 3
    %v14 = vld [vmem:[%s12] ss:$4 sm:%s13]
    %15 = vrot.lane.b32.xlu0 %v14, 64
    %v16 = vpop.permute.xlu0 %15
    %vm17 = vcmask 785920
    %18 = vst.msk [vmem:[#allocation0] sm:$0x3] %vm17, %v16
    %s19 = scalar_lea.vmem %s0, 1
    %s20 = smov 3
    %v21 = vld [vmem:[%s19] ss:$4 sm:%s20]
    %22 = vrot.lane.b32.xlu0 %v21, 32
    %v23 = vpop.permute.xlu0 %22
    %vm24 = vcmask 523520
    %25 = vst.msk [vmem:[#allocation0] sm:$0x3] %vm24, %v23
    %s27 = sshll.u32 1, 4
    %s28 = ssub.s32 %s27, 1
    %v30 = vld [vmem:[#allocation0] sm:%s28]
    %s31 = sshll.u32 1, 4
    %s32 = ssub.s32 %s31, 1
    %33 = vst [vmem:[%s1] sm:%s32] %v30

// kernel: net_forward.9
$region0: #{net_forward.9}
  #allocation0 [shape = 'u32[]', space=smem, size = 0x4, offset = 0x4, fixed_abs, tag = 'smem constant byte address 0x4 - core index']
  #allocation1 [shape = 'u32[144,128]{1,0:T(1,128)}', space=vmem, size = 0x12000, scoped, tag = 'internal scratch']
  %s0 = inlined_call_operand.vmem [shape: bf16[2,144,384], index: 0, kind: input, shape index: {}]
  %s1 = inlined_call_operand.vmem [shape: f32[2,8,128], index: 1, kind: input, shape index: {}]
  %s2 = inlined_call_operand.vmem [shape: f32[128,128], index: 2, kind: input, shape index: {}]
  %s3 = inlined_call_operand.vmem [shape: f32[1,128], index: 3, kind: input, shape index: {}]
  %s4 = inlined_call_operand.vmem [shape: f32[128,384], index: 4, kind: input, shape index: {}]
  %s5 = inlined_call_operand.vmem [shape: f32[1,384], index: 5, kind: input, shape index: {}]
  %s6 = inlined_call_operand.vmem [shape: bf16[384,128], index: 6, kind: input, shape index: {}]
  %s7 = inlined_call_operand.vmem [shape: f32[1,128], index: 7, kind: input, shape index: {}]
  %s8 = inlined_call_operand.vmem [shape: bf16[2,144,128], index: 8, kind: output, shape index: {}]
  %s9 = sld [smem:[#allocation0]]
  $region65: #{net_forward.9} parent=0
    _
  %s11 = ssub.s32 1, %s9
  %s12 = scalar_select 0, %s11, %s9
  loop: start=0, step=1, limit=4
  $region2: #{net_forward.9} parent=0 // loop_pre_header
    _
  $region3: #{net_forward.9} parent=0 // loop_header
    %s14 = sphi 0, %s18
    %p15 = scmp.ge.s32.totalorder %s14, 4
    %s21 = sphi 0, %s33
    %s22 = sphi 0, %s29
    %s23 = sphi 0, %s21
    %s24 = sphi 0, %s22
    %s25 = sphi 0, %s23
    %s26 = sphi 0, %s24
    %s38 = sphi 0, %s40
    %s41 = sphi 0, %s38
    %s42 = sphi 0, %s41
    %s58 = sphi 0, %s42
    %s64 = sphi 0, %s66
    %s67 = sphi 0, %s64
    %s68 = sphi 0, %s67
    %s84 = sphi 0, %s68
    %s88 = sphi 0, %s88
    %s90 = sphi 0, %s88
    %s91 = sphi 0, %s90
    %s105 = sphi 0, %s91
    %s109 = sphi 0, %s109
    %s111 = sphi 0, %s109
    %s112 = sphi 0, %s111
    %s126 = sphi 0, %s112
    %s130 = sphi 0, %s130
    %s132 = sphi 0, %s130
    %s133 = sphi 0, %s132
    %s147 = sphi 0, %s133
    %s151 = sphi 0, %s151
    %s153 = sphi 0, %s151
    %s154 = sphi 0, %s153
    %s168 = sphi 0, %s154
    %s172 = sphi 0, %s172
    %s174 = sphi 0, %s172
    %s175 = sphi 0, %s174
    %s189 = sphi 0, %s175
    %s193 = sphi 0, %s193
    %s195 = sphi 0, %s193
    %s196 = sphi 0, %s195
    %s210 = sphi 0, %s196
    %s218 = sphi 0, %s220
    %s221 = sphi 0, %s218
    %s222 = sphi 0, %s221
    %s238 = sphi 0, %s222
  $region4: #{net_forward.9} parent=0 // loop_header_branch
    %17 = sbr.rel (%p15) target = $region8
  $region5: #{net_forward.9} parent=0 // loop_body
    %s19 = ssub.s32 %s14, 1
    %s20 = ssub.s32 %s14, 2
    %s27 = sadd.s32 1, %s22
    %p28 = scmp.ge.s32.totalorder %s27, 1
    %s29 = scalar_select %p28, 0, %s27
    %s30 = sadd.s32 1, %s21
    %s31 = scalar_select %p28, %s30, %s21
    %p32 = scmp.ge.s32.totalorder %s31, 2
    %s33 = scalar_select %p32, 0, %s31
    %s34 = ssub.s32 %s21, %s33
    %s35 = ssub.s32 %s22, %s29
    %s36 = sor.u32 %s34, %s35
    %p37 = scmp.eq.s32.totalorder %s36, 0
    %s39 = sadd.s32 %s38, 1
    %s40 = scalar_select %p37, %s38, %s39
    %p43 = pneg %p37
    %p44 = scmp.eq.s32.totalorder %s14, 1
    %p45 = por %p43, %p44
    %p46 = scmp.ne.s32.totalorder %s38, %s41
    %p47 = scmp.eq.s32.totalorder %s14, 0
    %p48 = por %p46, %p47
    %p49 = scmp.ne.s32.totalorder %s38, %s41
    %p50 = scmp.eq.s32.totalorder %s19, 1
    %p51 = por %p49, %p50
    %p52 = scmp.ne.s32.totalorder %s41, %s42
    %p53 = scmp.eq.s32.totalorder %s19, 0
    %p54 = por %p52, %p53
    %p55 = scmp.ne.s32.totalorder %s41, %s42
    %p56 = scmp.eq.s32.totalorder %s20, 1
    %p57 = por %p55, %p56
    %p59 = scmp.ne.s32.totalorder %s42, %s58
    %p60 = scmp.eq.s32.totalorder %s20, 0
    %p61 = por %p59, %p60
    %s62 = ssub.s32 %s21, %s33
    %p63 = scmp.eq.s32.totalorder %s62, 0
    %s65 = sadd.s32 %s64, 1
    %s66 = scalar_select %p63, %s64, %s65
    %p69 = pneg %p63
    %p70 = scmp.eq.s32.totalorder %s14, 1
    %p71 = por %p69, %p70
    %p72 = scmp.ne.s32.totalorder %s64, %s67
    %p73 = scmp.eq.s32.totalorder %s14, 0
    %p74 = por %p72, %p73
    %p75 = scmp.ne.s32.totalorder %s64, %s67
    %p76 = scmp.eq.s32.totalorder %s19, 1
    %p77 = por %p75, %p76
    %p78 = scmp.ne.s32.totalorder %s67, %s68
    %p79 = scmp.eq.s32.totalorder %s19, 0
    %p80 = por %p78, %p79
    %p81 = scmp.ne.s32.totalorder %s67, %s68
    %p82 = scmp.eq.s32.totalorder %s20, 1
    %p83 = por %p81, %p82
    %p85 = scmp.ne.s32.totalorder %s68, %s84
    %p86 = scmp.eq.s32.totalorder %s20, 0
    %p87 = por %p85, %p86
    %s89 = sadd.s32 %s88, 1
    %p92 = scmp.eq.s32.totalorder %s14, 1
    %p93 = scmp.ne.s32.totalorder %s88, %s90
    %p94 = scmp.eq.s32.totalorder %s14, 0
    %p95 = por %p93, %p94
    %p96 = scmp.ne.s32.totalorder %s88, %s90
    %p97 = scmp.eq.s32.totalorder %s19, 1
    %p98 = por %p96, %p97
    %p99 = scmp.ne.s32.totalorder %s90, %s91
    %p100 = scmp.eq.s32.totalorder %s19, 0
    %p101 = por %p99, %p100
    %p102 = scmp.ne.s32.totalorder %s90, %s91
    %p103 = scmp.eq.s32.totalorder %s20, 1
    %p104 = por %p102, %p103
    %p106 = scmp.ne.s32.totalorder %s91, %s105
    %p107 = scmp.eq.s32.totalorder %s20, 0
    %p108 = por %p106, %p107
    %s110 = sadd.s32 %s109, 1
    %p113 = scmp.eq.s32.totalorder %s14, 1
    %p114 = scmp.ne.s32.totalorder %s109, %s111
    %p115 = scmp.eq.s32.totalorder %s14, 0
    %p116 = por %p114, %p115
    %p117 = scmp.ne.s32.totalorder %s109, %s111
    %p118 = scmp.eq.s32.totalorder %s19, 1
    %p119 = por %p117, %p118
    %p120 = scmp.ne.s32.totalorder %s111, %s112
    %p121 = scmp.eq.s32.totalorder %s19, 0
    %p122 = por %p120, %p121
    %p123 = scmp.ne.s32.totalorder %s111, %s112
    %p124 = scmp.eq.s32.totalorder %s20, 1
    %p125 = por %p123, %p124
    %p127 = scmp.ne.s32.totalorder %s112, %s126
    %p128 = scmp.eq.s32.totalorder %s20, 0
    %p129 = por %p127, %p128
    %s131 = sadd.s32 %s130, 1
    %p134 = scmp.eq.s32.totalorder %s14, 1
    %p135 = scmp.ne.s32.totalorder %s130, %s132
    %p136 = scmp.eq.s32.totalorder %s14, 0
    %p137 = por %p135, %p136
    %p138 = scmp.ne.s32.totalorder %s130, %s132
    %p139 = scmp.eq.s32.totalorder %s19, 1
    %p140 = por %p138, %p139
    %p141 = scmp.ne.s32.totalorder %s132, %s133
    %p142 = scmp.eq.s32.totalorder %s19, 0
    %p143 = por %p141, %p142
    %p144 = scmp.ne.s32.totalorder %s132, %s133
    %p145 = scmp.eq.s32.totalorder %s20, 1
    %p146 = por %p144, %p145
    %p148 = scmp.ne.s32.totalorder %s133, %s147
    %p149 = scmp.eq.s32.totalorder %s20, 0
    %p150 = por %p148, %p149
    %s152 = sadd.s32 %s151, 1
    %p155 = scmp.eq.s32.totalorder %s14, 1
    %p156 = scmp.ne.s32.totalorder %s151, %s153
    %p157 = scmp.eq.s32.totalorder %s14, 0
    %p158 = por %p156, %p157
    %p159 = scmp.ne.s32.totalorder %s151, %s153
    %p160 = scmp.eq.s32.totalorder %s19, 1
    %p161 = por %p159, %p160
    %p162 = scmp.ne.s32.totalorder %s153, %s154
    %p163 = scmp.eq.s32.totalorder %s19, 0
    %p164 = por %p162, %p163
    %p165 = scmp.ne.s32.totalorder %s153, %s154
    %p166 = scmp.eq.s32.totalorder %s20, 1
    %p167 = por %p165, %p166
    %p169 = scmp.ne.s32.totalorder %s154, %s168
    %p170 = scmp.eq.s32.totalorder %s20, 0
    %p171 = por %p169, %p170
    %s173 = sadd.s32 %s172, 1
    %p176 = scmp.eq.s32.totalorder %s14, 1
    %p177 = scmp.ne.s32.totalorder %s172, %s174
    %p178 = scmp.eq.s32.totalorder %s14, 0
    %p179 = por %p177, %p178
    %p180 = scmp.ne.s32.totalorder %s172, %s174
    %p181 = scmp.eq.s32.totalorder %s19, 1
    %p182 = por %p180, %p181
    %p183 = scmp.ne.s32.totalorder %s174, %s175
    %p184 = scmp.eq.s32.totalorder %s19, 0
    %p185 = por %p183, %p184
    %p186 = scmp.ne.s32.totalorder %s174, %s175
    %p187 = scmp.eq.s32.totalorder %s20, 1
    %p188 = por %p186, %p187
    %p190 = scmp.ne.s32.totalorder %s175, %s189
    %p191 = scmp.eq.s32.totalorder %s20, 0
    %p192 = por %p190, %p191
    %s194 = sadd.s32 %s193, 1
    %p197 = scmp.eq.s32.totalorder %s14, 1
    %p198 = scmp.ne.s32.totalorder %s193, %s195
    %p199 = scmp.eq.s32.totalorder %s14, 0
    %p200 = por %p198, %p199
    %p201 = scmp.ne.s32.totalorder %s193, %s195
    %p202 = scmp.eq.s32.totalorder %s19, 1
    %p203 = por %p201, %p202
    %p204 = scmp.ne.s32.totalorder %s195, %s196
    %p205 = scmp.eq.s32.totalorder %s19, 0
    %p206 = por %p204, %p205
    %p207 = scmp.ne.s32.totalorder %s195, %s196
    %p208 = scmp.eq.s32.totalorder %s20, 1
    %p209 = por %p207, %p208
    %p211 = scmp.ne.s32.totalorder %s196, %s210
    %p212 = scmp.eq.s32.totalorder %s20, 0
    %p213 = por %p211, %p212
    %s214 = ssub.s32 %s21, %s33
    %s215 = ssub.s32 %s22, %s29
    %s216 = sor.u32 %s214, %s215
    %p217 = scmp.eq.s32.totalorder %s216, 0
    %s219 = sadd.s32 %s218, 1
    %s220 = scalar_select %p217, %s218, %s219
    %p223 = pneg %p217
    %p224 = scmp.eq.s32.totalorder %s14, 1
    %p225 = por %p223, %p224
    %p226 = scmp.ne.s32.totalorder %s218, %s221
    %p227 = scmp.eq.s32.totalorder %s14, 0
    %p228 = por %p226, %p227
    %p229 = scmp.ne.s32.totalorder %s218, %s221
    %p230 = scmp.eq.s32.totalorder %s19, 1
    %p231 = por %p229, %p230
    %p232 = scmp.ne.s32.totalorder %s221, %s222
    %p233 = scmp.eq.s32.totalorder %s19, 0
    %p234 = por %p232, %p233
    %p235 = scmp.ne.s32.totalorder %s221, %s222
    %p236 = scmp.eq.s32.totalorder %s20, 1
    %p237 = por %p235, %p236
    %p239 = scmp.ne.s32.totalorder %s222, %s238
    %p240 = scmp.eq.s32.totalorder %s20, 0
    %p241 = por %p239, %p240
    %p242 = scmp.le.s32.totalorder 1, %s14
    %p243 = scmp.lt.s32.totalorder %s14, 3
    %p244 = pnand %p242, %p243
    %p245 = pneg %p244
    // Predicated region
    $region9: #{net_forward.9} parent=5 // pred_check
      _
    $region10: #{net_forward.9} parent=5 // pred_check_branch
      %247 = sbr.rel (%p244) target = $region12
    $region11: #{net_forward.9} parent=5 // pred_region
      %s248 = ssub.s32 %s14, 1
      // Predicated region
      $region13: #{net_forward.9} parent=11 // pred_check
        %p249 = pneg %p101
      $region14: #{net_forward.9} parent=11 // pred_check_branch
        %251 = sbr.rel (%p249) target = $region16
      $region15: #{net_forward.9} parent=11 // pred_region
        _
      $region16: #{net_forward.9} parent=11 // pred_fallthru
        _
      // Predicated region
      $region17: #{net_forward.9} parent=11 // pred_check
        %p252 = pneg %p122
      $region18: #{net_forward.9} parent=11 // pred_check_branch
        %254 = sbr.rel (%p252) target = $region20
      $region19: #{net_forward.9} parent=11 // pred_region
        _
      $region20: #{net_forward.9} parent=11 // pred_fallthru
        _
      // Predicated region
      $region21: #{net_forward.9} parent=11 // pred_check
        %p255 = pneg %p143
      $region22: #{net_forward.9} parent=11 // pred_check_branch
        %257 = sbr.rel (%p255) target = $region24
      $region23: #{net_forward.9} parent=11 // pred_region
        _
      $region24: #{net_forward.9} parent=11 // pred_fallthru
        _
      // Predicated region
      $region25: #{net_forward.9} parent=11 // pred_check
        %p258 = pneg %p164
      $region26: #{net_forward.9} parent=11 // pred_check_branch
        %260 = sbr.rel (%p258) target = $region28
      $region27: #{net_forward.9} parent=11 // pred_region
        _
      $region28: #{net_forward.9} parent=11 // pred_fallthru
        _
      // Predicated region
      $region29: #{net_forward.9} parent=11 // pred_check
        %p261 = pneg %p185
      $region30: #{net_forward.9} parent=11 // pred_check_branch
        %263 = sbr.rel (%p261) target = $region32
      $region31: #{net_forward.9} parent=11 // pred_region
        _
      $region32: #{net_forward.9} parent=11 // pred_fallthru
        _
      // Predicated region
      $region33: #{net_forward.9} parent=11 // pred_check
        %p264 = pneg %p206
      $region34: #{net_forward.9} parent=11 // pred_check_branch
        %266 = sbr.rel (%p264) target = $region36
      $region35: #{net_forward.9} parent=11 // pred_region
        _
      $region36: #{net_forward.9} parent=11 // pred_fallthru
        _
    $region12: #{net_forward.9} parent=5 // pred_fallthru
      _
    %p267 = scmp.lt.s32.totalorder %s14, 2
    // Predicated region
    $region37: #{net_forward.9} parent=5 // pred_check
      %p268 = pneg %p267
    $region38: #{net_forward.9} parent=5 // pred_check_branch
      %270 = sbr.rel (%p268) target = $region40
    $region39: #{net_forward.9} parent=5 // pred_region
      // Predicated region
      $region41: #{net_forward.9} parent=39 // pred_check
        %p271 = pneg %p48
      $region42: #{net_forward.9} parent=39 // pred_check_branch
        %273 = sbr.rel (%p271) target = $region44
      $region43: #{net_forward.9} parent=39 // pred_region
        %s274 = smul.u32 18, %s22
        %p275 = scmp.lt.s32.totalorder %s21, 1
        %s276 = scalar_select %p275, %s21, 1
        %p277 = scmp.lt.s32.totalorder %s274, 17
        %s278 = scalar_select %p277, %s274, 17
        %s279 = smul.addr %s278, 3
        %s280 = smul.addr %s276, 54
        %s281 = sadd.s32 %s279, %s280
        %s282 = smul.addr %s281, 4
        %s283 = scalar_lea.vmem %s0, %s282
        %s284 = smul.u32 18, %s22
      $region44: #{net_forward.9} parent=39 // pred_fallthru
        _
      // Predicated region
      $region45: #{net_forward.9} parent=39 // pred_check
        %p285 = pneg %p74
      $region46: #{net_forward.9} parent=39 // pred_check_branch
        %287 = sbr.rel (%p285) target = $region48
      $region47: #{net_forward.9} parent=39 // pred_region
        %p288 = scmp.lt.s32.totalorder %s21, 1
        %s289 = scalar_select %p288, %s21, 1
        %s290 = smul.addr %s289, 8
        %s291 = scalar_lea.vmem %s1, %s290
      $region48: #{net_forward.9} parent=39 // pred_fallthru
        _
    $region40: #{net_forward.9} parent=5 // pred_fallthru
      _
    %p292 = scmp.le.s32.totalorder 1, %s14
    %p293 = scmp.lt.s32.totalorder %s14, 3
    %p294 = pnand %p292, %p293
    %p295 = pneg %p294
    // Predicated region
    $region49: #{net_forward.9} parent=5 // pred_check
      _
    $region50: #{net_forward.9} parent=5 // pred_check_branch
      %297 = sbr.rel (%p294) target = $region52
    $region51: #{net_forward.9} parent=5 // pred_region
      %s298 = ssub.s32 %s14, 1
      %s299 = smul.u32 18, %s24
      %p300 = scmp.lt.s32.totalorder %s23, 1
      %s301 = scalar_select %p300, %s23, 1
      %p302 = scmp.lt.s32.totalorder %s299, 17
      %s303 = scalar_select %p302, %s299, 17
      %s304 = smul.addr %s303, 3
      %s305 = smul.addr %s301, 54
      %s306 = sadd.s32 %s304, %s305
      %s307 = smul.addr %s306, 4
      %s308 = scalar_lea.vmem %s0, %s307
      %p309 = pneg %p54
      %p310 = pneg %p51
      %p311 = scmp.lt.s32.totalorder %s23, 1
      %s312 = scalar_select %p311, %s23, 1
      %s313 = smul.addr %s312, 8
      %s314 = scalar_lea.vmem %s1, %s313
      %p315 = pneg %p80
      %p316 = pneg %p77
      %p317 = pneg %p101
      %p318 = pneg %p98
      %p319 = pneg %p122
      %p320 = pneg %p119
      %p321 = pneg %p143
      %p322 = pneg %p140
      %p323 = pneg %p164
      %p324 = pneg %p161
      %p325 = pneg %p185
      %p326 = pneg %p182
      %p327 = pneg %p206
      %p328 = pneg %p203
      %p329 = pneg %p234
      %p330 = pneg %p231
      %s331 = smul.u32 18, %s24
      %p332 = scmp.lt.s32.totalorder %s23, 1
      %s333 = scalar_select %p332, %s23, 1
      %p334 = scmp.lt.s32.totalorder %s331, 17
      %s335 = scalar_select %p334, %s331, 17
      %s336 = smul.addr %s333, 18
      %s337 = sadd.s32 %s335, %s336
      %s338 = smul.addr %s337, 4
      %s339 = scalar_lea.vmem %s8, %s338
      %s340 = smul.u32 18, %s24
      %p341 = scmp.lt.s32.totalorder %s23, 1
      %s342 = scalar_select %p341, %s23, 1
      %p343 = scmp.lt.s32.totalorder %s340, 17
      %s344 = scalar_select %p343, %s340, 17
      %s345 = smul.addr %s344, 3
      %s346 = smul.addr %s342, 54
      %s347 = sadd.s32 %s345, %s346
      %s348 = smul.addr %s347, 4
      %s349 = scalar_lea.vmem %s0, %s348
      %s350 = smul.u32 18, %s24
      %p351 = scmp.lt.s32.totalorder %s23, 1
      %s352 = scalar_select %p351, %s23, 1
      %s353 = smul.addr %s352, 8
      %s354 = scalar_lea.vmem %s1, %s353
      %s355 = smul.u32 18, %s24
      %p356 = scmp.lt.s32.totalorder %s23, 1
      %s357 = scalar_select %p356, %s23, 1
      %p358 = scmp.lt.s32.totalorder %s355, 17
      %s359 = scalar_select %p358, %s355, 17
      %s360 = smul.addr %s357, 18
      %s361 = sadd.s32 %s359, %s360
      %s362 = smul.addr %s361, 4
      %s363 = scalar_lea.vmem %s8, %s362
      %s364 = smul.u32 18, %s24
      %v366 = vld [vmem:[%s354] sm:$0xff]
      %v367 = vld [vmem:[%s2] sm:$0xff]
      %v368 = vld [vmem:[%s2 + $0x8] sm:$0xff]
      %v369 = vld [vmem:[%s2 + $0x10] sm:$0xff]
      %v370 = vld [vmem:[%s2 + $0x18] sm:$0xff]
      %v371 = vld [vmem:[%s2 + $0x20] sm:$0xff]
      %v372 = vld [vmem:[%s2 + $0x28] sm:$0xff]
      %v373 = vld [vmem:[%s2 + $0x30] sm:$0xff]
      %v374 = vld [vmem:[%s2 + $0x38] sm:$0xff]
      %v375 = vld [vmem:[%s2 + $0x40] sm:$0xff]
      %v376 = vld [vmem:[%s2 + $0x48] sm:$0xff]
      %v377 = vld [vmem:[%s2 + $0x50] sm:$0xff]
      %v378 = vld [vmem:[%s2 + $0x58] sm:$0xff]
      %v379 = vld [vmem:[%s2 + $0x60] sm:$0xff]
      %v380 = vld [vmem:[%s2 + $0x68] sm:$0xff]
      %v381 = vld [vmem:[%s2 + $0x70] sm:$0xff]
      %v382 = vld [vmem:[%s2 + $0x78] sm:$0xff]
      %v383 = vld [vmem:[%s3] sm:$0x1]
      %384 = vmatprep.subr.mxu0 0.0
      %385 = vmatpush1.msra.mxu0 %v382
      %386 = vmatprep.subr.mxu0 0.0
      %387 = vmatpush1.msra.mxu0 %v381
      %388 = vmatprep.subr.mxu0 0.0
      %389 = vmatpush1.msra.mxu0 %v380
      %390 = vmatprep.subr.mxu0 0.0
      %391 = vmatpush1.msra.mxu0 %v379
      %392 = vmatprep.subr.mxu0 0.0
      %393 = vmatpush1.msra.mxu0 %v378
      %394 = vmatprep.subr.mxu0 0.0
      %395 = vmatpush1.msra.mxu0 %v377
      %396 = vmatprep.subr.mxu0 0.0
      %397 = vmatpush1.msra.mxu0 %v376
      %398 = vmatprep.subr.mxu0 0.0
      %399 = vmatpush1.msra.mxu0 %v375
      %400 = vmatprep.subr.mxu0 0.0
      %401 = vmatpush1.msra.mxu0 %v374
      %402 = vmatprep.subr.mxu0 0.0
      %403 = vmatpush1.msra.mxu0 %v373
      %404 = vmatprep.subr.mxu0 0.0
      %405 = vmatpush1.msra.mxu0 %v372
      %406 = vmatprep.subr.mxu0 0.0
      %407 = vmatpush1.msra.mxu0 %v371
      %408 = vmatprep.subr.mxu0 0.0
      %409 = vmatpush1.msra.mxu0 %v370
      %410 = vmatprep.subr.mxu0 0.0
      %411 = vmatpush1.msra.mxu0 %v369
      %412 = vmatprep.subr.mxu0 0.0
      %413 = vmatpush1.msra.mxu0 %v368
      %414 = vmatprep.subr.mxu0 0.0
      %415 = vmatpush1.msra.mxu0 %v367
      %416 = vmatprep.subr.mxu0 0.0
      %417 = vmatpush2.msra.mxu0 0.0
      %418 = vmatprep.subr.mxu0 0.0
      %419 = vmatpush2.msra.mxu0 0.0
      %420 = vmatprep.subr.mxu0 0.0
      %421 = vmatpush2.msra.mxu0 0.0
      %422 = vmatprep.subr.mxu0 0.0
      %423 = vmatpush2.msra.mxu0 0.0
      %424 = vmatprep.subr.mxu0 0.0
      %425 = vmatpush2.msra.mxu0 0.0
      %426 = vmatprep.subr.mxu0 0.0
      %427 = vmatpush2.msra.mxu0 0.0
      %428 = vmatprep.subr.mxu0 0.0
      %429 = vmatpush2.msra.mxu0 0.0
      %430 = vmatprep.subr.mxu0 0.0
      %431 = vmatpush2.msra.mxu0 0.0
      %432 = vmatprep.subr.mxu0 0.0
      %433 = vmatpush2.msra.mxu0 0.0
      %434 = vmatprep.subr.mxu0 0.0
      %435 = vmatpush2.msra.mxu0 0.0
      %436 = vmatprep.subr.mxu0 0.0
      %437 = vmatpush2.msra.mxu0 0.0
      %438 = vmatprep.subr.mxu0 0.0
      %439 = vmatpush2.msra.mxu0 0.0
      %440 = vmatprep.subr.mxu0 0.0
      %441 = vmatpush2.msra.mxu0 0.0
      %442 = vmatprep.subr.mxu0 0.0
      %443 = vmatpush2.msra.mxu0 0.0
      %444 = vmatprep.subr.mxu0 0.0
      %445 = vmatpush2.msra.mxu0 0.0
      %446 = vmatprep.subr.mxu0 0.0
      %447 = vmatpush2.msra.mxu0 0.0
      %448 = vmatprep.mubr.f32.mxu0 0.0
      %449 = vmatmul.mubr.f32.gmra.mxu0 %v366
      %v450 = vpop.f32.mrf.mxu0
      %v451 = vadd.f32 %v383, %v450
      %v452 = vpop.f32.mrf.mxu0
      %453 = vdwg.mxu0
      %v454 = vmax.f32 %v451, 0.0
      %v455 = vld [vmem:[%s4] sm:$0xff]
      %v456 = vld [vmem:[%s4 + $0x8] sm:$0xff]
      %v457 = vld [vmem:[%s4 + $0x10] sm:$0xff]
      %v458 = vld [vmem:[%s4 + $0x18] sm:$0xff]
      %v459 = vld [vmem:[%s4 + $0x20] sm:$0xff]
      %v460 = vld [vmem:[%s4 + $0x28] sm:$0xff]
      %v461 = vld [vmem:[%s4 + $0x30] sm:$0xff]
      %v462 = vld [vmem:[%s4 + $0x38] sm:$0xff]
      %v463 = vld [vmem:[%s4 + $0x40] sm:$0xff]
      %v464 = vld [vmem:[%s4 + $0x48] sm:$0xff]
      %v465 = vld [vmem:[%s4 + $0x50] sm:$0xff]
      %v466 = vld [vmem:[%s4 + $0x58] sm:$0xff]
      %v467 = vld [vmem:[%s4 + $0x60] sm:$0xff]
      %v468 = vld [vmem:[%s4 + $0x68] sm:$0xff]
      %v469 = vld [vmem:[%s4 + $0x70] sm:$0xff]
      %v470 = vld [vmem:[%s4 + $0x78] sm:$0xff]
      %v471 = vld [vmem:[%s4 + $0x80] sm:$0xff]
      %v472 = vld [vmem:[%s4 + $0x88] sm:$0xff]
      %v473 = vld [vmem:[%s4 + $0x90] sm:$0xff]
      %v474 = vld [vmem:[%s4 + $0x98] sm:$0xff]
      %v475 = vld [vmem:[%s4 + $0xa0] sm:$0xff]
      %v476 = vld [vmem:[%s4 + $0xa8] sm:$0xff]
      %v477 = vld [vmem:[%s4 + $0xb0] sm:$0xff]
      %v478 = vld [vmem:[%s4 + $0xb8] sm:$0xff]
      %v479 = vld [vmem:[%s4 + $0xc0] sm:$0xff]
      %v480 = vld [vmem:[%s4 + $0xc8] sm:$0xff]
      %v481 = vld [vmem:[%s4 + $0xd0] sm:$0xff]
      %v482 = vld [vmem:[%s4 + $0xd8] sm:$0xff]
      %v483 = vld [vmem:[%s4 + $0xe0] sm:$0xff]
      %v484 = vld [vmem:[%s4 + $0xe8] sm:$0xff]
      %v485 = vld [vmem:[%s4 + $0xf0] sm:$0xff]
      %v486 = vld [vmem:[%s4 + $0xf8] sm:$0xff]
      %v487 = vld [vmem:[%s4 + $0x100] sm:$0xff]
      %v488 = vld [vmem:[%s4 + $0x108] sm:$0xff]
      %v489 = vld [vmem:[%s4 + $0x110] sm:$0xff]
      %v490 = vld [vmem:[%s4 + $0x118] sm:$0xff]
      %v491 = vld [vmem:[%s4 + $0x120] sm:$0xff]
      %v492 = vld [vmem:[%s4 + $0x128] sm:$0xff]
      %v493 = vld [vmem:[%s4 + $0x130] sm:$0xff]
      %v494 = vld [vmem:[%s4 + $0x138] sm:$0xff]
      %v495 = vld [vmem:[%s4 + $0x140] sm:$0xff]
      %v496 = vld [vmem:[%s4 + $0x148] sm:$0xff]
      %v497 = vld [vmem:[%s4 + $0x150] sm:$0xff]
      %v498 = vld [vmem:[%s4 + $0x158] sm:$0xff]
      %v499 = vld [vmem:[%s4 + $0x160] sm:$0xff]
      %v500 = vld [vmem:[%s4 + $0x168] sm:$0xff]
      %v501 = vld [vmem:[%s4 + $0x170] sm:$0xff]
      %v502 = vld [vmem:[%s4 + $0x178] sm:$0xff]
      %v503 = vld [vmem:[%s5] sm:$0x7]
      %v505 = vlaneseq
      %v506 = vshrl.u32 %v505, 7
      %v507 = vsub.s32 0, %v506
      %v508 = vrot.slane %v503, %v507
      %v509 = vlaneseq
      %v510 = vshrl.u32 %v509, 7
      %v511 = vsub.s32 1, %v510
      %v512 = vrot.slane %v503, %v511
      %v513 = vlaneseq
      %v514 = vshrl.u32 %v513, 7
      %v515 = vsub.s32 2, %v514
      %v516 = vrot.slane %v503, %v515
      %520 = vmatprep.subr.mxu0 %v501
      %521 = vmatpush1.msra.mxu0 %v500
      %522 = vmatprep.subr.mxu0 %v498
      %523 = vmatpush1.msra.mxu0 %v497
      %524 = vmatprep.subr.mxu0 %v495
      %525 = vmatpush1.msra.mxu0 %v494
      %526 = vmatprep.subr.mxu0 %v492
      %527 = vmatpush1.msra.mxu0 %v491
      %528 = vmatprep.subr.mxu0 %v489
      %529 = vmatpush1.msra.mxu0 %v488
      %530 = vmatprep.subr.mxu0 %v486
      %531 = vmatpush1.msra.mxu0 %v485
      %532 = vmatprep.subr.mxu0 %v483
      %533 = vmatpush1.msra.mxu0 %v482
      %534 = vmatprep.subr.mxu0 %v480
      %535 = vmatpush1.msra.mxu0 %v479
      %536 = vmatprep.subr.mxu0 %v477
      %537 = vmatpush1.msra.mxu0 %v476
      %538 = vmatprep.subr.mxu0 %v474
      %539 = vmatpush1.msra.mxu0 %v473
      %540 = vmatprep.subr.mxu0 %v471
      %541 = vmatpush1.msra.mxu0 %v470
      %542 = vmatprep.subr.mxu0 %v468
      %543 = vmatpush1.msra.mxu0 %v467
      %544 = vmatprep.subr.mxu0 %v465
      %545 = vmatpush1.msra.mxu0 %v464
      %546 = vmatprep.subr.mxu0 %v462
      %547 = vmatpush1.msra.mxu0 %v461
      %548 = vmatprep.subr.mxu0 %v459
      %549 = vmatpush1.msra.mxu0 %v458
      %550 = vmatprep.subr.mxu0 %v456
      %551 = vmatpush1.msra.mxu0 %v455
      %552 = vmatprep.subr.mxu0 0.0
      %553 = vmatpush2.msra.mxu0 0.0
      %554 = vmatprep.subr.mxu0 0.0
      %555 = vmatpush2.msra.mxu0 0.0
      %556 = vmatprep.subr.mxu0 0.0
      %557 = vmatpush2.msra.mxu0 0.0
      %558 = vmatprep.subr.mxu0 0.0
      %559 = vmatpush2.msra.mxu0 0.0
      %560 = vmatprep.subr.mxu0 0.0
      %561 = vmatpush2.msra.mxu0 0.0
      %562 = vmatprep.subr.mxu0 0.0
      %563 = vmatpush2.msra.mxu0 0.0
      %564 = vmatprep.subr.mxu0 0.0
      %565 = vmatpush2.msra.mxu0 0.0
      %566 = vmatprep.subr.mxu0 0.0
      %567 = vmatpush2.msra.mxu0 0.0
      %568 = vmatprep.subr.mxu0 0.0
      %569 = vmatpush2.msra.mxu0 0.0
      %570 = vmatprep.subr.mxu0 0.0
      %571 = vmatpush2.msra.mxu0 0.0
      %572 = vmatprep.subr.mxu0 0.0
      %573 = vmatpush2.msra.mxu0 0.0
      %574 = vmatprep.subr.mxu0 0.0
      %575 = vmatpush2.msra.mxu0 0.0
      %576 = vmatprep.subr.mxu0 0.0
      %577 = vmatpush2.msra.mxu0 0.0
      %578 = vmatprep.subr.mxu0 0.0
      %579 = vmatpush2.msra.mxu0 0.0
      %580 = vmatprep.subr.mxu0 0.0
      %581 = vmatpush2.msra.mxu0 0.0
      %582 = vmatprep.subr.mxu0 0.0
      %583 = vmatpush2.msra.mxu0 0.0
      %584 = vmatprep.mubr.f32.mxu0 0.0
      %585 = vmatmul.mubr.f32.gmra.mxu0 %v454
      %v586 = vpop.f32.mrf.mxu0
      %v587 = vadd.f32 %v508, %v586
      %v588 = vpop.f32.mrf.mxu0
      %v589 = vadd.f32 %v512, %v588
      %590 = vdwg.mxu0
      %591 = vmatprep.subr.mxu0 0.0
      %592 = vmatpush1.msra.mxu0 %v502
      %593 = vmatprep.subr.mxu0 0.0
      %594 = vmatpush1.msra.mxu0 %v499
      %595 = vmatprep.subr.mxu0 0.0
      %596 = vmatpush1.msra.mxu0 %v496
      %597 = vmatprep.subr.mxu0 0.0
      %598 = vmatpush1.msra.mxu0 %v493
      %599 = vmatprep.subr.mxu0 0.0
      %600 = vmatpush1.msra.mxu0 %v490
      %601 = vmatprep.subr.mxu0 0.0
      %602 = vmatpush1.msra.mxu0 %v487
      %603 = vmatprep.subr.mxu0 0.0
      %604 = vmatpush1.msra.mxu0 %v484
      %605 = vmatprep.subr.mxu0 0.0
      %606 = vmatpush1.msra.mxu0 %v481
      %607 = vmatprep.subr.mxu0 0.0
      %608 = vmatpush1.msra.mxu0 %v478
      %609 = vmatprep.subr.mxu0 0.0
      %610 = vmatpush1.msra.mxu0 %v475
      %611 = vmatprep.subr.mxu0 0.0
      %612 = vmatpush1.msra.mxu0 %v472
      %613 = vmatprep.subr.mxu0 0.0
      %614 = vmatpush1.msra.mxu0 %v469
      %615 = vmatprep.subr.mxu0 0.0
      %616 = vmatpush1.msra.mxu0 %v466
      %617 = vmatprep.subr.mxu0 0.0
      %618 = vmatpush1.msra.mxu0 %v463
      %619 = vmatprep.subr.mxu0 0.0
      %620 = vmatpush1.msra.mxu0 %v460
      %621 = vmatprep.subr.mxu0 0.0
      %622 = vmatpush1.msra.mxu0 %v457
      %623 = vmatprep.subr.mxu0 0.0
      %624 = vmatpush2.msra.mxu0 0.0
      %625 = vmatprep.subr.mxu0 0.0
      %626 = vmatpush2.msra.mxu0 0.0
      %627 = vmatprep.subr.mxu0 0.0
      %628 = vmatpush2.msra.mxu0 0.0
      %629 = vmatprep.subr.mxu0 0.0
      %630 = vmatpush2.msra.mxu0 0.0
      %631 = vmatprep.subr.mxu0 0.0
      %632 = vmatpush2.msra.mxu0 0.0
      %633 = vmatprep.subr.mxu0 0.0
      %634 = vmatpush2.msra.mxu0 0.0
      %635 = vmatprep.subr.mxu0 0.0
      %636 = vmatpush2.msra.mxu0 0.0
      %637 = vmatprep.subr.mxu0 0.0
      %638 = vmatpush2.msra.mxu0 0.0
      %639 = vmatprep.subr.mxu0 0.0
      %640 = vmatpush2.msra.mxu0 0.0
      %641 = vmatprep.subr.mxu0 0.0
      %642 = vmatpush2.msra.mxu0 0.0
      %643 = vmatprep.subr.mxu0 0.0
      %644 = vmatpush2.msra.mxu0 0.0
      %645 = vmatprep.subr.mxu0 0.0
      %646 = vmatpush2.msra.mxu0 0.0
      %647 = vmatprep.subr.mxu0 0.0
      %648 = vmatpush2.msra.mxu0 0.0
      %649 = vmatprep.subr.mxu0 0.0
      %650 = vmatpush2.msra.mxu0 0.0
      %651 = vmatprep.subr.mxu0 0.0
      %652 = vmatpush2.msra.mxu0 0.0
      %653 = vmatprep.subr.mxu0 0.0
      %654 = vmatpush2.msra.mxu0 0.0
      %655 = vmatprep.mubr.f32.mxu0 0.0
      %656 = vmatmul.mubr.f32.gmra.mxu0 %v454
      %v657 = vpop.f32.mrf.mxu0
      %v658 = vadd.f32 %v516, %v657
      %v659 = vpop.f32.mrf.mxu0
      %660 = vdwg.mxu0
      %v661 = vld [vmem:[%s349] sm:$0xff]
      %v662 = vld [vmem:[%s349 + $0x8] sm:$0xf]
      %v663 = vld [vmem:[%s349 + $0xc] sm:$0xff]
      %v664 = vld [vmem:[%s349 + $0x14] sm:$0xf]
      %v665 = vld [vmem:[%s349 + $0x18] sm:$0xff]
      %v666 = vld [vmem:[%s349 + $0x20] sm:$0xf]
      %v667 = vld [vmem:[%s349 + $0x24] sm:$0xff]
      %v668 = vld [vmem:[%s349 + $0x2c] sm:$0xf]
      %v669 = vld [vmem:[%s349 + $0x30] sm:$0xff]
      %v670 = vld [vmem:[%s349 + $0x38] sm:$0xf]
      %v671 = vld [vmem:[%s349 + $0x3c] sm:$0xff]
      %v672 = vld [vmem:[%s349 + $0x44] sm:$0xf]
      %v673 = vld [vmem:[%s349 + $0x48] sm:$0xff]
      %v674 = vld [vmem:[%s349 + $0x50] sm:$0xf]
      %v675 = vld [vmem:[%s349 + $0x54] sm:$0xff]
      %v676 = vld [vmem:[%s349 + $0x5c] sm:$0xf]
      %v677 = vld [vmem:[%s349 + $0x60] sm:$0xff]
      %v678 = vld [vmem:[%s349 + $0x68] sm:$0xf]
      %v679 = vld [vmem:[%s349 + $0x6c] sm:$0xff]
      %v680 = vld [vmem:[%s349 + $0x74] sm:$0xf]
      %v681 = vld [vmem:[%s349 + $0x78] sm:$0xff]
      %v682 = vld [vmem:[%s349 + $0x80] sm:$0xf]
      %v683 = vld [vmem:[%s349 + $0x84] sm:$0xff]
      %v684 = vld [vmem:[%s349 + $0x8c] sm:$0xf]
      %v685 = vld [vmem:[%s349 + $0x90] sm:$0xff]
      %v686 = vld [vmem:[%s349 + $0x98] sm:$0xf]
      %v687 = vld [vmem:[%s349 + $0x9c] sm:$0xff]
      %v688 = vld [vmem:[%s349 + $0xa4] sm:$0xf]
      %v689 = vld [vmem:[%s349 + $0xa8] sm:$0xff]
      %v690 = vld [vmem:[%s349 + $0xb0] sm:$0xf]
      %v691 = vld [vmem:[%s349 + $0xb4] sm:$0xff]
      %v692 = vld [vmem:[%s349 + $0xbc] sm:$0xf]
      %v693 = vld [vmem:[%s349 + $0xc0] sm:$0xff]
      %v694 = vld [vmem:[%s349 + $0xc8] sm:$0xf]
      %v695 = vld [vmem:[%s349 + $0xcc] sm:$0xff]
      %v696 = vld [vmem:[%s349 + $0xd4] sm:$0xf]
      %v697 = vpack.c.bf16 %v587, %v587
      %v698 = vpack.c.bf16 %v589, %v589
      %v699 = vpack.c.bf16 %v658, %v658
      %v701 = vpack.i.b16 %v697, %v697
      %v703 = vlaneseq
      %v704 = vshrl.u32 %v703, 7
      %v705 = vsub.s32 0, %v704
      %v706 = vrot.slane %v701, %v705
      %v708 = vpack.i.b16 %v698, %v698
      %v710 = vlaneseq
      %v711 = vshrl.u32 %v710, 7
      %v712 = vsub.s32 0, %v711
      %v713 = vrot.slane %v708, %v712
      %v715 = vpack.i.b16 %v699, %v699
      %v717 = vlaneseq
      %v718 = vshrl.u32 %v717, 7
      %v719 = vsub.s32 0, %v718
      %v720 = vrot.slane %v715, %v719
      %v724 = vunpack.c.l.b16 %v706
      %v725 = vunpack.c.l.b16 %v713
      %v726 = vunpack.c.l.b16 %v720
      %v727 = vpack.c.b16 %v725, %v724
      %v728 = vpack.c.b16 %v726, %v726
      %v731 = vmul.bf16 %v661, %v727
      %v732 = vmul.bf16 %v662, %v728
      %v733 = vmul.bf16 %v663, %v727
      %v734 = vmul.bf16 %v664, %v728
      %v735 = vmul.bf16 %v665, %v727
      %v736 = vmul.bf16 %v666, %v728
      %v737 = vmul.bf16 %v667, %v727
      %v738 = vmul.bf16 %v668, %v728
      %v739 = vmul.bf16 %v669, %v727
      %v740 = vmul.bf16 %v670, %v728
      %v741 = vmul.bf16 %v671, %v727
      %v742 = vmul.bf16 %v672, %v728
      %v743 = vmul.bf16 %v673, %v727
      %v744 = vmul.bf16 %v674, %v728
      %v745 = vmul.bf16 %v675, %v727
      %v746 = vmul.bf16 %v676, %v728
      %v747 = vmul.bf16 %v677, %v727
      %v748 = vmul.bf16 %v678, %v728
      %v749 = vmul.bf16 %v679, %v727
      %v750 = vmul.bf16 %v680, %v728
      %v751 = vmul.bf16 %v681, %v727
      %v752 = vmul.bf16 %v682, %v728
      %v753 = vmul.bf16 %v683, %v727
      %v754 = vmul.bf16 %v684, %v728
      %v755 = vmul.bf16 %v685, %v727
      %v756 = vmul.bf16 %v686, %v728
      %v757 = vmul.bf16 %v687, %v727
      %v758 = vmul.bf16 %v688, %v728
      %v759 = vmul.bf16 %v689, %v727
      %v760 = vmul.bf16 %v690, %v728
      %v761 = vmul.bf16 %v691, %v727
      %v762 = vmul.bf16 %v692, %v728
      %v763 = vmul.bf16 %v693, %v727
      %v764 = vmul.bf16 %v694, %v728
      %v765 = vmul.bf16 %v695, %v727
      %v766 = vmul.bf16 %v696, %v728
      %v767 = vld [vmem:[%s6] sm:$0xf]
      %v768 = vld [vmem:[%s6 + $0x4] sm:$0xf]
      %v769 = vld [vmem:[%s6 + $0x8] sm:$0xf]
      %v770 = vld [vmem:[%s6 + $0xc] sm:$0xf]
      %v771 = vld [vmem:[%s6 + $0x10] sm:$0xf]
      %v772 = vld [vmem:[%s6 + $0x14] sm:$0xf]
      %v773 = vld [vmem:[%s6 + $0x18] sm:$0xf]
      %v774 = vld [vmem:[%s6 + $0x1c] sm:$0xf]
      %v775 = vld [vmem:[%s6 + $0x20] sm:$0xf]
      %v776 = vld [vmem:[%s6 + $0x24] sm:$0xf]
      %v777 = vld [vmem:[%s6 + $0x28] sm:$0xf]
      %v778 = vld [vmem:[%s6 + $0x2c] sm:$0xf]
      %v779 = vld [vmem:[%s6 + $0x30] sm:$0xf]
      %v780 = vld [vmem:[%s6 + $0x34] sm:$0xf]
      %v781 = vld [vmem:[%s6 + $0x38] sm:$0xf]
      %v782 = vld [vmem:[%s6 + $0x3c] sm:$0xf]
      %v783 = vld [vmem:[%s6 + $0x40] sm:$0xf]
      %v784 = vld [vmem:[%s6 + $0x44] sm:$0xf]
      %v785 = vld [vmem:[%s6 + $0x48] sm:$0xf]
      %v786 = vld [vmem:[%s6 + $0x4c] sm:$0xf]
      %v787 = vld [vmem:[%s6 + $0x50] sm:$0xf]
      %v788 = vld [vmem:[%s6 + $0x54] sm:$0xf]
      %v789 = vld [vmem:[%s6 + $0x58] sm:$0xf]
      %v790 = vld [vmem:[%s6 + $0x5c] sm:$0xf]
      %v791 = vld [vmem:[%s6 + $0x60] sm:$0xf]
      %v792 = vld [vmem:[%s6 + $0x64] sm:$0xf]
      %v793 = vld [vmem:[%s6 + $0x68] sm:$0xf]
      %v794 = vld [vmem:[%s6 + $0x6c] sm:$0xf]
      %v795 = vld [vmem:[%s6 + $0x70] sm:$0xf]
      %v796 = vld [vmem:[%s6 + $0x74] sm:$0xf]
      %v797 = vld [vmem:[%s6 + $0x78] sm:$0xf]
      %v798 = vld [vmem:[%s6 + $0x7c] sm:$0xf]
      %v799 = vld [vmem:[%s6 + $0x80] sm:$0xf]
      %v800 = vld [vmem:[%s6 + $0x84] sm:$0xf]
      %v801 = vld [vmem:[%s6 + $0x88] sm:$0xf]
      %v802 = vld [vmem:[%s6 + $0x8c] sm:$0xf]
      %v803 = vld [vmem:[%s6 + $0x90] sm:$0xf]
      %v804 = vld [vmem:[%s6 + $0x94] sm:$0xf]
      %v805 = vld [vmem:[%s6 + $0x98] sm:$0xf]
      %v806 = vld [vmem:[%s6 + $0x9c] sm:$0xf]
      %v807 = vld [vmem:[%s6 + $0xa0] sm:$0xf]
      %v808 = vld [vmem:[%s6 + $0xa4] sm:$0xf]
      %v809 = vld [vmem:[%s6 + $0xa8] sm:$0xf]
      %v810 = vld [vmem:[%s6 + $0xac] sm:$0xf]
      %v811 = vld [vmem:[%s6 + $0xb0] sm:$0xf]
      %v812 = vld [vmem:[%s6 + $0xb4] sm:$0xf]
      %v813 = vld [vmem:[%s6 + $0xb8] sm:$0xf]
      %v814 = vld [vmem:[%s6 + $0xbc] sm:$0xf]
      %v815 = vld [vmem:[%s7] sm:$0x1]
      %v817 = vlaneseq
      %v818 = vshrl.u32 %v817, 7
      %v819 = vsub.s32 0, %v818
      %v820 = vrot.slane %v815, %v819
      %v858 = vunpack.c.l.b16 %v731
      %v859 = vunpack.c.h.b16 %v731
      %v860 = vunpack.c.l.b16 %v732
      %v861 = vunpack.c.l.b16 %v733
      %v862 = vunpack.c.h.b16 %v733
      %v863 = vunpack.c.l.b16 %v734
      %v864 = vunpack.c.l.b16 %v735
      %v865 = vunpack.c.h.b16 %v735
      %v866 = vunpack.c.l.b16 %v736
      %v867 = vunpack.c.l.b16 %v737
      %v868 = vunpack.c.h.b16 %v737
      %v869 = vunpack.c.l.b16 %v738
      %v870 = vunpack.c.l.b16 %v739
      %v871 = vunpack.c.h.b16 %v739
      %v872 = vunpack.c.l.b16 %v740
      %v873 = vunpack.c.l.b16 %v741
      %v874 = vunpack.c.h.b16 %v741
      %v875 = vunpack.c.l.b16 %v742
      %v876 = vunpack.c.l.b16 %v743
      %v877 = vunpack.c.h.b16 %v743
      %v878 = vunpack.c.l.b16 %v744
      %v879 = vunpack.c.l.b16 %v745
      %v880 = vunpack.c.h.b16 %v745
      %v881 = vunpack.c.l.b16 %v746
      %v882 = vunpack.c.l.b16 %v747
      %v883 = vunpack.c.h.b16 %v747
      %v884 = vunpack.c.l.b16 %v748
      %v885 = vunpack.c.l.b16 %v749
      %v886 = vunpack.c.h.b16 %v749
      %v887 = vunpack.c.l.b16 %v750
      %v888 = vunpack.c.l.b16 %v751
      %v889 = vunpack.c.h.b16 %v751
      %v890 = vunpack.c.l.b16 %v752
      %v891 = vunpack.c.l.b16 %v753
      %v892 = vunpack.c.h.b16 %v753
      %v893 = vunpack.c.l.b16 %v754
      %v894 = vunpack.c.l.b16 %v755
      %v895 = vunpack.c.h.b16 %v755
      %v896 = vunpack.c.l.b16 %v756
      %v897 = vunpack.c.l.b16 %v757
      %v898 = vunpack.c.h.b16 %v757
      %v899 = vunpack.c.l.b16 %v758
      %v900 = vunpack.c.l.b16 %v759
      %v901 = vunpack.c.h.b16 %v759
      %v902 = vunpack.c.l.b16 %v760
      %v903 = vunpack.c.l.b16 %v761
      %v904 = vunpack.c.h.b16 %v761
      %v905 = vunpack.c.l.b16 %v762
      %v906 = vunpack.c.l.b16 %v763
      %v907 = vunpack.c.h.b16 %v763
      %v908 = vunpack.c.l.b16 %v764
      %v909 = vunpack.c.l.b16 %v765
      %v910 = vunpack.c.h.b16 %v765
      %v911 = vunpack.c.l.b16 %v766
      %v912 = vpack.c.b16 %v861, %v858
      %v913 = vpack.c.b16 %v862, %v859
      %v914 = vpack.c.b16 %v863, %v860
      %v915 = vpack.c.b16 %v867, %v864
      %v916 = vpack.c.b16 %v868, %v865
      %v917 = vpack.c.b16 %v869, %v866
      %v918 = vpack.c.b16 %v873, %v870
      %v919 = vpack.c.b16 %v874, %v871
      %v920 = vpack.c.b16 %v875, %v872
      %v921 = vpack.c.b16 %v879, %v876
      %v922 = vpack.c.b16 %v880, %v877
      %v923 = vpack.c.b16 %v881, %v878
      %v924 = vpack.c.b16 %v885, %v882
      %v925 = vpack.c.b16 %v886, %v883
      %v926 = vpack.c.b16 %v887, %v884
      %v927 = vpack.c.b16 %v891, %v888
      %v928 = vpack.c.b16 %v892, %v889
      %v929 = vpack.c.b16 %v893, %v890
      %v930 = vpack.c.b16 %v897, %v894
      %v931 = vpack.c.b16 %v898, %v895
      %v932 = vpack.c.b16 %v899, %v896
      %v933 = vpack.c.b16 %v903, %v900
      %v934 = vpack.c.b16 %v904, %v901
      %v935 = vpack.c.b16 %v905, %v902
      %v936 = vpack.c.b16 %v909, %v906
      %v937 = vpack.c.b16 %v910, %v907
      %v938 = vpack.c.b16 %v911, %v908
      %v1014 = vunpack.c.l.b16 %v767
      %v1015 = vunpack.c.l.b16 %v768
      %v1016 = vunpack.c.l.b16 %v769
      %v1017 = vunpack.c.l.b16 %v770
      %v1018 = vunpack.c.l.b16 %v771
      %v1019 = vunpack.c.l.b16 %v772
      %v1020 = vunpack.c.l.b16 %v773
      %v1021 = vunpack.c.l.b16 %v774
      %v1022 = vunpack.c.l.b16 %v775
      %v1023 = vunpack.c.l.b16 %v776
      %v1024 = vunpack.c.l.b16 %v777
      %v1025 = vunpack.c.l.b16 %v778
      %v1026 = vunpack.c.l.b16 %v779
      %v1027 = vunpack.c.l.b16 %v780
      %v1028 = vunpack.c.l.b16 %v781
      %v1029 = vunpack.c.l.b16 %v782
      %v1030 = vunpack.c.l.b16 %v783
      %v1031 = vunpack.c.l.b16 %v784
      %v1032 = vunpack.c.l.b16 %v785
      %v1033 = vunpack.c.l.b16 %v786
      %v1034 = vunpack.c.l.b16 %v787
      %v1035 = vunpack.c.l.b16 %v788
      %v1036 = vunpack.c.l.b16 %v789
      %v1037 = vunpack.c.l.b16 %v790
      %v1038 = vunpack.c.l.b16 %v791
      %v1039 = vunpack.c.l.b16 %v792
      %v1040 = vunpack.c.l.b16 %v793
      %v1041 = vunpack.c.l.b16 %v794
      %v1042 = vunpack.c.l.b16 %v795
      %v1043 = vunpack.c.l.b16 %v796
      %v1044 = vunpack.c.l.b16 %v797
      %v1045 = vunpack.c.l.b16 %v798
      %v1046 = vunpack.c.l.b16 %v799
      %v1047 = vunpack.c.l.b16 %v800
      %v1048 = vunpack.c.l.b16 %v801
      %v1049 = vunpack.c.l.b16 %v802
      %v1050 = vunpack.c.l.b16 %v803
      %v1051 = vunpack.c.l.b16 %v804
      %v1052 = vunpack.c.l.b16 %v805
      %v1053 = vunpack.c.l.b16 %v806
      %v1054 = vunpack.c.l.b16 %v807
      %v1055 = vunpack.c.l.b16 %v808
      %v1056 = vunpack.c.l.b16 %v809
      %v1057 = vunpack.c.l.b16 %v810
      %v1058 = vunpack.c.l.b16 %v811
      %v1059 = vunpack.c.l.b16 %v812
      %v1060 = vunpack.c.l.b16 %v813
      %v1061 = vunpack.c.l.b16 %v814
      %v1062 = vpack.c.b16 %v1015, %v1014
      %v1063 = vpack.c.b16 %v1017, %v1016
      %v1064 = vpack.c.b16 %v1019, %v1018
      %v1065 = vpack.c.b16 %v1021, %v1020
      %v1066 = vpack.c.b16 %v1023, %v1022
      %v1067 = vpack.c.b16 %v1025, %v1024
      %v1068 = vpack.c.b16 %v1027, %v1026
      %v1069 = vpack.c.b16 %v1029, %v1028
      %v1070 = vpack.c.b16 %v1031, %v1030
      %v1071 = vpack.c.b16 %v1033, %v1032
      %v1072 = vpack.c.b16 %v1035, %v1034
      %v1073 = vpack.c.b16 %v1037, %v1036
      %v1074 = vpack.c.b16 %v1039, %v1038
      %v1075 = vpack.c.b16 %v1041, %v1040
      %v1076 = vpack.c.b16 %v1043, %v1042
      %v1077 = vpack.c.b16 %v1045, %v1044
      %v1078 = vpack.c.b16 %v1047, %v1046
      %v1079 = vpack.c.b16 %v1049, %v1048
      %v1080 = vpack.c.b16 %v1051, %v1050
      %v1081 = vpack.c.b16 %v1053, %v1052
      %v1082 = vpack.c.b16 %v1055, %v1054
      %v1083 = vpack.c.b16 %v1057, %v1056
      %v1084 = vpack.c.b16 %v1059, %v1058
      %v1085 = vpack.c.b16 %v1061, %v1060
      %1110 = vmatprep.subr.bf16.mxu0 0
      %1111 = vmatpush1.bf16.msra.mxu0 %v1069
      %1112 = vmatprep.subr.bf16.mxu0 0
      %1113 = vmatpush1.bf16.msra.mxu0 %v1068
      %1114 = vmatprep.subr.bf16.mxu0 0
      %1115 = vmatpush1.bf16.msra.mxu0 %v1067
      %1116 = vmatprep.subr.bf16.mxu0 0
      %1117 = vmatpush1.bf16.msra.mxu0 %v1066
      %1118 = vmatprep.subr.bf16.mxu0 0
      %1119 = vmatpush1.bf16.msra.mxu0 %v1065
      %1120 = vmatprep.subr.bf16.mxu0 0
      %1121 = vmatpush1.bf16.msra.mxu0 %v1064
      %1122 = vmatprep.subr.bf16.mxu0 0
      %1123 = vmatpush1.bf16.msra.mxu0 %v1063
      %1124 = vmatprep.subr.bf16.mxu0 0
      %1125 = vmatpush1.bf16.msra.mxu0 %v1062
      %1126 = vmatprep.subr.bf16.mxu0 0
      %1127 = vmatpush2.bf16.msra.mxu0 %v1077
      %1128 = vmatprep.subr.bf16.mxu0 0
      %1129 = vmatpush2.bf16.msra.mxu0 %v1076
      %1130 = vmatprep.subr.bf16.mxu0 0
      %1131 = vmatpush2.bf16.msra.mxu0 %v1075
      %1132 = vmatprep.subr.bf16.mxu0 0
      %1133 = vmatpush2.bf16.msra.mxu0 %v1074
      %1134 = vmatprep.subr.bf16.mxu0 0
      %1135 = vmatpush2.bf16.msra.mxu0 %v1073
      %1136 = vmatprep.subr.bf16.mxu0 0
      %1137 = vmatpush2.bf16.msra.mxu0 %v1072
      %1138 = vmatprep.subr.bf16.mxu0 0
      %1139 = vmatpush2.bf16.msra.mxu0 %v1071
      %1140 = vmatprep.subr.bf16.mxu0 0
      %1141 = vmatpush2.bf16.msra.mxu0 %v1070
      %1142 = vmatprep.mubr.bf16.mxu0 %v913
      %1143 = vmatmul.mubr.bf16.gmra.mxu0 %v912
      %v1144 = vpop.f32.mrf.mxu0
      %v1145 = vadd.f32 %v820, %v1144
      %v1146 = vpop.f32.mrf.mxu0
      %v1147 = vpop.f32.mrf.mxu0
      %v1148 = vadd.f32 %v820, %v1147
      %v1149 = vpop.f32.mrf.mxu0
      %1150 = vmatprep.mubr.bf16.mxu0 %v916
      %1151 = vmatmul.mubr.bf16.gmra.mxu0 %v915
      %v1152 = vpop.f32.mrf.mxu0
      %v1153 = vadd.f32 %v820, %v1152
      %v1154 = vpop.f32.mrf.mxu0
      %v1155 = vpop.f32.mrf.mxu0
      %v1156 = vadd.f32 %v820, %v1155
      %v1157 = vpop.f32.mrf.mxu0
      %1158 = vmatprep.mubr.bf16.mxu0 %v919
      %1159 = vmatmul.mubr.bf16.gmra.mxu0 %v918
      %v1160 = vpop.f32.mrf.mxu0
      %v1161 = vadd.f32 %v820, %v1160
      %v1162 = vpop.f32.mrf.mxu0
      %v1163 = vpop.f32.mrf.mxu0
      %v1164 = vadd.f32 %v820, %v1163
      %v1165 = vpop.f32.mrf.mxu0
      %1166 = vmatprep.mubr.bf16.mxu0 %v922
      %1167 = vmatmul.mubr.bf16.gmra.mxu0 %v921
      %v1168 = vpop.f32.mrf.mxu0
      %v1169 = vadd.f32 %v820, %v1168
      %v1170 = vpop.f32.mrf.mxu0
      %v1171 = vpop.f32.mrf.mxu0
      %v1172 = vadd.f32 %v820, %v1171
      %v1173 = vpop.f32.mrf.mxu0
      %1174 = vmatprep.mubr.bf16.mxu0 %v925
      %1175 = vmatmul.mubr.bf16.gmra.mxu0 %v924
      %v1176 = vpop.f32.mrf.mxu0
      %v1177 = vadd.f32 %v820, %v1176
      %v1178 = vpop.f32.mrf.mxu0
      %v1179 = vpop.f32.mrf.mxu0
      %v1180 = vadd.f32 %v820, %v1179
      %v1181 = vpop.f32.mrf.mxu0
      %1182 = vmatprep.mubr.bf16.mxu0 %v928
      %1183 = vmatmul.mubr.bf16.gmra.mxu0 %v927
      %v1184 = vpop.f32.mrf.mxu0
      %v1185 = vadd.f32 %v820, %v1184
      %v1186 = vpop.f32.mrf.mxu0
      %v1187 = vpop.f32.mrf.mxu0
      %v1188 = vadd.f32 %v820, %v1187
      %v1189 = vpop.f32.mrf.mxu0
      %1190 = vmatprep.mubr.bf16.mxu0 %v931
      %1191 = vmatmul.mubr.bf16.gmra.mxu0 %v930
      %v1192 = vpop.f32.mrf.mxu0
      %v1193 = vadd.f32 %v820, %v1192
      %v1194 = vpop.f32.mrf.mxu0
      %v1195 = vpop.f32.mrf.mxu0
      %v1196 = vadd.f32 %v820, %v1195
      %v1197 = vpop.f32.mrf.mxu0
      %1198 = vmatprep.mubr.bf16.mxu0 %v934
      %1199 = vmatmul.mubr.bf16.gmra.mxu0 %v933
      %v1200 = vpop.f32.mrf.mxu0
      %v1201 = vadd.f32 %v820, %v1200
      %v1202 = vpop.f32.mrf.mxu0
      %v1203 = vpop.f32.mrf.mxu0
      %v1204 = vadd.f32 %v820, %v1203
      %v1205 = vpop.f32.mrf.mxu0
      %1206 = vmatprep.mubr.bf16.mxu0 %v937
      %1207 = vmatmul.mubr.bf16.gmra.mxu0 %v936
      %v1208 = vpop.f32.mrf.mxu0
      %v1209 = vadd.f32 %v820, %v1208
      %v1210 = vpop.f32.mrf.mxu0
      %v1211 = vpop.f32.mrf.mxu0
      %v1212 = vadd.f32 %v820, %v1211
      %v1213 = vpop.f32.mrf.mxu0
      %1214 = vdwg.mxu0
      %1215 = vmatprep.subr.bf16.mxu0 0
      %1216 = vmatpush1.bf16.msra.mxu0 %v1085
      %1217 = vmatprep.subr.bf16.mxu0 0
      %1218 = vmatpush1.bf16.msra.mxu0 %v1084
      %1219 = vmatprep.subr.bf16.mxu0 0
      %1220 = vmatpush1.bf16.msra.mxu0 %v1083
      %1221 = vmatprep.subr.bf16.mxu0 0
      %1222 = vmatpush1.bf16.msra.mxu0 %v1082
      %1223 = vmatprep.subr.bf16.mxu0 0
      %1224 = vmatpush1.bf16.msra.mxu0 %v1081
      %1225 = vmatprep.subr.bf16.mxu0 0
      %1226 = vmatpush1.bf16.msra.mxu0 %v1080
      %1227 = vmatprep.subr.bf16.mxu0 0
      %1228 = vmatpush1.bf16.msra.mxu0 %v1079
      %1229 = vmatprep.subr.bf16.mxu0 0
      %1230 = vmatpush1.bf16.msra.mxu0 %v1078
      %1231 = vmatprep.subr.bf16.mxu0 0
      %1232 = vmatpush2.bf16.msra.mxu0 0
      %1233 = vmatprep.subr.bf16.mxu0 0
      %1234 = vmatpush2.bf16.msra.mxu0 0
      %1235 = vmatprep.subr.bf16.mxu0 0
      %1236 = vmatpush2.bf16.msra.mxu0 0
      %1237 = vmatprep.subr.bf16.mxu0 0
      %1238 = vmatpush2.bf16.msra.mxu0 0
      %1239 = vmatprep.subr.bf16.mxu0 0
      %1240 = vmatpush2.bf16.msra.mxu0 0
      %1241 = vmatprep.subr.bf16.mxu0 0
      %1242 = vmatpush2.bf16.msra.mxu0 0
      %1243 = vmatprep.subr.bf16.mxu0 0
      %1244 = vmatpush2.bf16.msra.mxu0 0
      %1245 = vmatprep.subr.bf16.mxu0 0
      %1246 = vmatpush2.bf16.msra.mxu0 0
      %1247 = vmatprep.mubr.bf16.mxu0 0
      %1248 = vmatmul.mubr.bf16.gmra.mxu0 %v914
      %v1249 = vpop.f32.mrf.mxu0
      %v1250 = vadd.f32 %v1145, %v1249
      %v1251 = vpop.f32.mrf.mxu0
      %v1252 = vpop.f32.mrf.mxu0
      %v1253 = vadd.f32 %v1148, %v1252
      %v1254 = vpop.f32.mrf.mxu0
      %1255 = vmatprep.mubr.bf16.mxu0 0
      %1256 = vmatmul.mubr.bf16.gmra.mxu0 %v917
      %v1257 = vpop.f32.mrf.mxu0
      %v1258 = vadd.f32 %v1153, %v1257
      %v1259 = vpop.f32.mrf.mxu0
      %v1260 = vpop.f32.mrf.mxu0
      %v1261 = vadd.f32 %v1156, %v1260
      %v1262 = vpop.f32.mrf.mxu0
      %1263 = vmatprep.mubr.bf16.mxu0 0
      %1264 = vmatmul.mubr.bf16.gmra.mxu0 %v920
      %v1265 = vpop.f32.mrf.mxu0
      %v1266 = vadd.f32 %v1161, %v1265
      %v1267 = vpop.f32.mrf.mxu0
      %v1268 = vpop.f32.mrf.mxu0
      %v1269 = vadd.f32 %v1164, %v1268
      %v1270 = vpop.f32.mrf.mxu0
      %1271 = vmatprep.mubr.bf16.mxu0 0
      %1272 = vmatmul.mubr.bf16.gmra.mxu0 %v923
      %v1273 = vpop.f32.mrf.mxu0
      %v1274 = vadd.f32 %v1169, %v1273
      %v1275 = vpop.f32.mrf.mxu0
      %v1276 = vpop.f32.mrf.mxu0
      %v1277 = vadd.f32 %v1172, %v1276
      %v1278 = vpop.f32.mrf.mxu0
      %1279 = vmatprep.mubr.bf16.mxu0 0
      %1280 = vmatmul.mubr.bf16.gmra.mxu0 %v926
      %v1281 = vpop.f32.mrf.mxu0
      %v1282 = vadd.f32 %v1177, %v1281
      %v1283 = vpop.f32.mrf.mxu0
      %v1284 = vpop.f32.mrf.mxu0
      %v1285 = vadd.f32 %v1180, %v1284
      %v1286 = vpop.f32.mrf.mxu0
      %1287 = vmatprep.mubr.bf16.mxu0 0
      %1288 = vmatmul.mubr.bf16.gmra.mxu0 %v929
      %v1289 = vpop.f32.mrf.mxu0
      %v1290 = vadd.f32 %v1185, %v1289
      %v1291 = vpop.f32.mrf.mxu0
      %v1292 = vpop.f32.mrf.mxu0
      %v1293 = vadd.f32 %v1188, %v1292
      %v1294 = vpop.f32.mrf.mxu0
      %1295 = vmatprep.mubr.bf16.mxu0 0
      %1296 = vmatmul.mubr.bf16.gmra.mxu0 %v932
      %v1297 = vpop.f32.mrf.mxu0
      %v1298 = vadd.f32 %v1193, %v1297
      %v1299 = vpop.f32.mrf.mxu0
      %v1300 = vpop.f32.mrf.mxu0
      %v1301 = vadd.f32 %v1196, %v1300
      %v1302 = vpop.f32.mrf.mxu0
      %1303 = vmatprep.mubr.bf16.mxu0 0
      %1304 = vmatmul.mubr.bf16.gmra.mxu0 %v935
      %v1305 = vpop.f32.mrf.mxu0
      %v1306 = vadd.f32 %v1201, %v1305
      %v1307 = vpop.f32.mrf.mxu0
      %v1308 = vpop.f32.mrf.mxu0
      %v1309 = vadd.f32 %v1204, %v1308
      %v1310 = vpop.f32.mrf.mxu0
      %1311 = vmatprep.mubr.bf16.mxu0 0
      %1312 = vmatmul.mubr.bf16.gmra.mxu0 %v938
      %v1313 = vpop.f32.mrf.mxu0
      %v1314 = vadd.f32 %v1209, %v1313
      %v1315 = vpop.f32.mrf.mxu0
      %v1316 = vpop.f32.mrf.mxu0
      %v1317 = vadd.f32 %v1212, %v1316
      %v1318 = vpop.f32.mrf.mxu0
      %1319 = vdwg.mxu0
      %v1320 = vmax.f32 %v1250, 0.0
      %v1321 = vmax.f32 %v1253, 0.0
      %v1322 = vmax.f32 %v1258, 0.0
      %v1323 = vmax.f32 %v1261, 0.0
      %v1324 = vmax.f32 %v1266, 0.0
      %v1325 = vmax.f32 %v1269, 0.0
      %v1326 = vmax.f32 %v1274, 0.0
      %v1327 = vmax.f32 %v1277, 0.0
      %v1328 = vmax.f32 %v1282, 0.0
      %v1329 = vmax.f32 %v1285, 0.0
      %v1330 = vmax.f32 %v1290, 0.0
      %v1331 = vmax.f32 %v1293, 0.0
      %v1332 = vmax.f32 %v1298, 0.0
      %v1333 = vmax.f32 %v1301, 0.0
      %v1334 = vmax.f32 %v1306, 0.0
      %v1335 = vmax.f32 %v1309, 0.0
      %v1336 = vmax.f32 %v1314, 0.0
      %v1337 = vmax.f32 %v1317, 0.0
      %v1338 = vpack.c.bf16 %v1321, %v1320
      %v1339 = vpack.c.bf16 %v1323, %v1322
      %v1340 = vpack.c.bf16 %v1325, %v1324
      %v1341 = vpack.c.bf16 %v1327, %v1326
      %v1342 = vpack.c.bf16 %v1329, %v1328
      %v1343 = vpack.c.bf16 %v1331, %v1330
      %v1344 = vpack.c.bf16 %v1333, %v1332
      %v1345 = vpack.c.bf16 %v1335, %v1334
      %v1346 = vpack.c.bf16 %v1337, %v1336
      %v1356 = vunpack.c.l.b16 %v1338
      %v1357 = vunpack.c.h.b16 %v1338
      %v1358 = vunpack.c.l.b16 %v1339
      %v1359 = vunpack.c.h.b16 %v1339
      %v1360 = vunpack.c.l.b16 %v1340
      %v1361 = vunpack.c.h.b16 %v1340
      %v1362 = vunpack.c.l.b16 %v1341
      %v1363 = vunpack.c.h.b16 %v1341
      %v1364 = vunpack.c.l.b16 %v1342
      %v1365 = vunpack.c.h.b16 %v1342
      %v1366 = vunpack.c.l.b16 %v1343
      %v1367 = vunpack.c.h.b16 %v1343
      %v1368 = vunpack.c.l.b16 %v1344
      %v1369 = vunpack.c.h.b16 %v1344
      %v1370 = vunpack.c.l.b16 %v1345
      %v1371 = vunpack.c.h.b16 %v1345
      %v1372 = vunpack.c.l.b16 %v1346
      %v1373 = vunpack.c.h.b16 %v1346
      %v1374 = vpack.c.b16 %v1356, %v1356
      %v1375 = vpack.c.b16 %v1357, %v1357
      %v1376 = vpack.c.b16 %v1358, %v1358
      %v1377 = vpack.c.b16 %v1359, %v1359
      %v1378 = vpack.c.b16 %v1360, %v1360
      %v1379 = vpack.c.b16 %v1361, %v1361
      %v1380 = vpack.c.b16 %v1362, %v1362
      %v1381 = vpack.c.b16 %v1363, %v1363
      %v1382 = vpack.c.b16 %v1364, %v1364
      %v1383 = vpack.c.b16 %v1365, %v1365
      %v1384 = vpack.c.b16 %v1366, %v1366
      %v1385 = vpack.c.b16 %v1367, %v1367
      %v1386 = vpack.c.b16 %v1368, %v1368
      %v1387 = vpack.c.b16 %v1369, %v1369
      %v1388 = vpack.c.b16 %v1370, %v1370
      %v1389 = vpack.c.b16 %v1371, %v1371
      %v1390 = vpack.c.b16 %v1372, %v1372
      %v1391 = vpack.c.b16 %v1373, %v1373
      %1410 = vst [vmem:[%s363] sm:$0xf] %v1374
      %1411 = vst [vmem:[%s363 + $0x4] sm:$0xf] %v1375
      %1412 = vst [vmem:[%s363 + $0x8] sm:$0xf] %v1376
      %1413 = vst [vmem:[%s363 + $0xc] sm:$0xf] %v1377
      %1414 = vst [vmem:[%s363 + $0x10] sm:$0xf] %v1378
      %1415 = vst [vmem:[%s363 + $0x14] sm:$0xf] %v1379
      %1416 = vst [vmem:[%s363 + $0x18] sm:$0xf] %v1380
      %1417 = vst [vmem:[%s363 + $0x1c] sm:$0xf] %v1381
      %1418 = vst [vmem:[%s363 + $0x20] sm:$0xf] %v1382
      %1419 = vst [vmem:[%s363 + $0x24] sm:$0xf] %v1383
      %1420 = vst [vmem:[%s363 + $0x28] sm:$0xf] %v1384
      %1421 = vst [vmem:[%s363 + $0x2c] sm:$0xf] %v1385
      %1422 = vst [vmem:[%s363 + $0x30] sm:$0xf] %v1386
      %1423 = vst [vmem:[%s363 + $0x34] sm:$0xf] %v1387
      %1424 = vst [vmem:[%s363 + $0x38] sm:$0xf] %v1388
      %1425 = vst [vmem:[%s363 + $0x3c] sm:$0xf] %v1389
      %1426 = vst [vmem:[%s363 + $0x40] sm:$0xf] %v1390
      %1427 = vst [vmem:[%s363 + $0x44] sm:$0xf] %v1391
      %s1428 = smul.u32 18, %s24
      %p1429 = scmp.lt.s32.totalorder %s23, 1
      %s1430 = scalar_select %p1429, %s23, 1
      %p1431 = scmp.lt.s32.totalorder %s1428, 17
      %s1432 = scalar_select %p1431, %s1428, 17
      %s1433 = smul.addr %s1430, 18
      %s1434 = sadd.s32 %s1432, %s1433
      %s1435 = smul.addr %s1434, 4
      %s1436 = scalar_lea.vmem %s8, %s1435
      // Predicated region
      $region53: #{net_forward.9} parent=51 // pred_check
        %p1437 = pneg %p231
      $region54: #{net_forward.9} parent=51 // pred_check_branch
        %1439 = sbr.rel (%p1437) target = $region56
      $region55: #{net_forward.9} parent=51 // pred_region
        %s1440 = smul.u32 18, %s24
      $region56: #{net_forward.9} parent=51 // pred_fallthru
        _
    $region52: #{net_forward.9} parent=5 // pred_fallthru
      _
    %p1441 = scmp.le.s32.totalorder 2, %s14
    // Predicated region
    $region57: #{net_forward.9} parent=5 // pred_check
      %p1442 = pneg %p1441
    $region58: #{net_forward.9} parent=5 // pred_check_branch
      %1444 = sbr.rel (%p1442) target = $region60
    $region59: #{net_forward.9} parent=5 // pred_region
      %s1445 = ssub.s32 %s14, 2
      // Predicated region
      $region61: #{net_forward.9} parent=59 // pred_check
        %p1446 = pneg %p237
      $region62: #{net_forward.9} parent=59 // pred_check_branch
        %1448 = sbr.rel (%p1446) target = $region64
      $region63: #{net_forward.9} parent=59 // pred_region
        %s1449 = smul.u32 18, %s26
        %p1450 = scmp.lt.s32.totalorder %s25, 1
        %s1451 = scalar_select %p1450, %s25, 1
        %p1452 = scmp.lt.s32.totalorder %s1449, 17
        %s1453 = scalar_select %p1452, %s1449, 17
        %s1454 = smul.addr %s1451, 18
        %s1455 = sadd.s32 %s1453, %s1454
        %s1456 = smul.addr %s1455, 4
        %s1457 = scalar_lea.vmem %s8, %s1456
      $region64: #{net_forward.9} parent=59 // pred_fallthru
        _
    $region60: #{net_forward.9} parent=5 // pred_fallthru
      _
  $region6: #{net_forward.9} parent=0 // loop_footer
    %s18 = sadd.s32 1, %s14
  $region7: #{net_forward.9} parent=0 // loop_footer_branch
    %13 = sbr.rel target = $region3
  $region8: #{net_forward.9} parent=0 // loop_exit
    _

// kernel: net_forward.10
$region0: #{net_forward.10}
  #allocation0 [shape = 'u32[]', space=smem, size = 0x4, offset = 0x4, fixed_abs, tag = 'smem constant byte address 0x4 - core index']
  #allocation1 [shape = 'u32[144,128]{1,0:T(1,128)}', space=vmem, size = 0x12000, scoped, tag = 'internal scratch']
  %s0 = inlined_call_operand.vmem [shape: bf16[2,32,128], index: 0, kind: input, shape index: {}]
  %s1 = inlined_call_operand.vmem [shape: bf16[128,128], index: 1, kind: input, shape index: {}]
  %s2 = inlined_call_operand.vmem [shape: f32[1,128], index: 2, kind: input, shape index: {}]
  %s3 = inlined_call_operand.vmem [shape: bf16[2,32,128], index: 3, kind: output, shape index: {0}]
  %s4 = inlined_call_operand.vmem [shape: f32[2,8,128], index: 4, kind: output, shape index: {1}]
  %5 = xla_tuple %s3, %s4
  %s6 = sld [smem:[#allocation0]]
  $region57: #{net_forward.10} parent=0
    _
  %s8 = ssub.s32 1, %s6
  %s9 = scalar_select 0, %s8, %s6
  loop: start=0, step=1, limit=4
  $region2: #{net_forward.10} parent=0 // loop_pre_header
    _
  $region3: #{net_forward.10} parent=0 // loop_header
    %s11 = sphi 0, %s15
    %p12 = scmp.ge.s32.totalorder %s11, 4
    %s18 = sphi 0, %s30
    %s19 = sphi 0, %s26
    %s20 = sphi 0, %s18
    %s21 = sphi 0, %s19
    %s22 = sphi 0, %s20
    %s23 = sphi 0, %s21
    %s35 = sphi 0, %s37
    %s38 = sphi 0, %s35
    %s39 = sphi 0, %s38
    %s55 = sphi 0, %s39
    %s59 = sphi 0, %s59
    %s61 = sphi 0, %s59
    %s62 = sphi 0, %s61
    %s76 = sphi 0, %s62
    %s80 = sphi 0, %s80
    %s82 = sphi 0, %s80
    %s83 = sphi 0, %s82
    %s97 = sphi 0, %s83
    %s105 = sphi 0, %s107
    %s108 = sphi 0, %s105
    %s109 = sphi 0, %s108
    %s125 = sphi 0, %s109
    %s131 = sphi 0, %s133
    %s134 = sphi 0, %s131
    %s135 = sphi 0, %s134
    %s151 = sphi 0, %s135
  $region4: #{net_forward.10} parent=0 // loop_header_branch
    %14 = sbr.rel (%p12) target = $region8
  $region5: #{net_forward.10} parent=0 // loop_body
    %s16 = ssub.s32 %s11, 1
    %s17 = ssub.s32 %s11, 2
    %s24 = sadd.s32 1, %s19
    %p25 = scmp.ge.s32.totalorder %s24, 1
    %s26 = scalar_select %p25, 0, %s24
    %s27 = sadd.s32 1, %s18
    %s28 = scalar_select %p25, %s27, %s18
    %p29 = scmp.ge.s32.totalorder %s28, 2
    %s30 = scalar_select %p29, 0, %s28
    %s31 = ssub.s32 %s18, %s30
    %s32 = ssub.s32 %s19, %s26
    %s33 = sor.u32 %s31, %s32
    %p34 = scmp.eq.s32.totalorder %s33, 0
    %s36 = sadd.s32 %s35, 1
    %s37 = scalar_select %p34, %s35, %s36
    %p40 = pneg %p34
    %p41 = scmp.eq.s32.totalorder %s11, 1
    %p42 = por %p40, %p41
    %p43 = scmp.ne.s32.totalorder %s35, %s38
    %p44 = scmp.eq.s32.totalorder %s11, 0
    %p45 = por %p43, %p44
    %p46 = scmp.ne.s32.totalorder %s35, %s38
    %p47 = scmp.eq.s32.totalorder %s16, 1
    %p48 = por %p46, %p47
    %p49 = scmp.ne.s32.totalorder %s38, %s39
    %p50 = scmp.eq.s32.totalorder %s16, 0
    %p51 = por %p49, %p50
    %p52 = scmp.ne.s32.totalorder %s38, %s39
    %p53 = scmp.eq.s32.totalorder %s17, 1
    %p54 = por %p52, %p53
    %p56 = scmp.ne.s32.totalorder %s39, %s55
    %p57 = scmp.eq.s32.totalorder %s17, 0
    %p58 = por %p56, %p57
    %s60 = sadd.s32 %s59, 1
    %p63 = scmp.eq.s32.totalorder %s11, 1
    %p64 = scmp.ne.s32.totalorder %s59, %s61
    %p65 = scmp.eq.s32.totalorder %s11, 0
    %p66 = por %p64, %p65
    %p67 = scmp.ne.s32.totalorder %s59, %s61
    %p68 = scmp.eq.s32.totalorder %s16, 1
    %p69 = por %p67, %p68
    %p70 = scmp.ne.s32.totalorder %s61, %s62
    %p71 = scmp.eq.s32.totalorder %s16, 0
    %p72 = por %p70, %p71
    %p73 = scmp.ne.s32.totalorder %s61, %s62
    %p74 = scmp.eq.s32.totalorder %s17, 1
    %p75 = por %p73, %p74
    %p77 = scmp.ne.s32.totalorder %s62, %s76
    %p78 = scmp.eq.s32.totalorder %s17, 0
    %p79 = por %p77, %p78
    %s81 = sadd.s32 %s80, 1
    %p84 = scmp.eq.s32.totalorder %s11, 1
    %p85 = scmp.ne.s32.totalorder %s80, %s82
    %p86 = scmp.eq.s32.totalorder %s11, 0
    %p87 = por %p85, %p86
    %p88 = scmp.ne.s32.totalorder %s80, %s82
    %p89 = scmp.eq.s32.totalorder %s16, 1
    %p90 = por %p88, %p89
    %p91 = scmp.ne.s32.totalorder %s82, %s83
    %p92 = scmp.eq.s32.totalorder %s16, 0
    %p93 = por %p91, %p92
    %p94 = scmp.ne.s32.totalorder %s82, %s83
    %p95 = scmp.eq.s32.totalorder %s17, 1
    %p96 = por %p94, %p95
    %p98 = scmp.ne.s32.totalorder %s83, %s97
    %p99 = scmp.eq.s32.totalorder %s17, 0
    %p100 = por %p98, %p99
    %s101 = ssub.s32 %s18, %s30
    %s102 = ssub.s32 %s19, %s26
    %s103 = sor.u32 %s101, %s102
    %p104 = scmp.eq.s32.totalorder %s103, 0
    %s106 = sadd.s32 %s105, 1
    %s107 = scalar_select %p104, %s105, %s106
    %p110 = pneg %p104
    %p111 = scmp.eq.s32.totalorder %s11, 1
    %p112 = por %p110, %p111
    %p113 = scmp.ne.s32.totalorder %s105, %s108
    %p114 = scmp.eq.s32.totalorder %s11, 0
    %p115 = por %p113, %p114
    %p116 = scmp.ne.s32.totalorder %s105, %s108
    %p117 = scmp.eq.s32.totalorder %s16, 1
    %p118 = por %p116, %p117
    %p119 = scmp.ne.s32.totalorder %s108, %s109
    %p120 = scmp.eq.s32.totalorder %s16, 0
    %p121 = por %p119, %p120
    %p122 = scmp.ne.s32.totalorder %s108, %s109
    %p123 = scmp.eq.s32.totalorder %s17, 1
    %p124 = por %p122, %p123
    %p126 = scmp.ne.s32.totalorder %s109, %s125
    %p127 = scmp.eq.s32.totalorder %s17, 0
    %p128 = por %p126, %p127
    %s129 = ssub.s32 %s18, %s30
    %p130 = scmp.eq.s32.totalorder %s129, 0
    %s132 = sadd.s32 %s131, 1
    %s133 = scalar_select %p130, %s131, %s132
    %p136 = pneg %p130
    %p137 = scmp.eq.s32.totalorder %s11, 1
    %p138 = por %p136, %p137
    %p139 = scmp.ne.s32.totalorder %s131, %s134
    %p140 = scmp.eq.s32.totalorder %s11, 0
    %p141 = por %p139, %p140
    %p142 = scmp.ne.s32.totalorder %s131, %s134
    %p143 = scmp.eq.s32.totalorder %s16, 1
    %p144 = por %p142, %p143
    %p145 = scmp.ne.s32.totalorder %s134, %s135
    %p146 = scmp.eq.s32.totalorder %s16, 0
    %p147 = por %p145, %p146
    %p148 = scmp.ne.s32.totalorder %s134, %s135
    %p149 = scmp.eq.s32.totalorder %s17, 1
    %p150 = por %p148, %p149
    %p152 = scmp.ne.s32.totalorder %s135, %s151
    %p153 = scmp.eq.s32.totalorder %s17, 0
    %p154 = por %p152, %p153
    %p155 = scmp.le.s32.totalorder 1, %s11
    %p156 = scmp.lt.s32.totalorder %s11, 3
    %p157 = pnand %p155, %p156
    %p158 = pneg %p157
    // Predicated region
    $region9: #{net_forward.10} parent=5 // pred_check
      _
    $region10: #{net_forward.10} parent=5 // pred_check_branch
      %160 = sbr.rel (%p157) target = $region12
    $region11: #{net_forward.10} parent=5 // pred_region
      %s161 = ssub.s32 %s11, 1
      // Predicated region
      $region13: #{net_forward.10} parent=11 // pred_check
        %p162 = pneg %p72
      $region14: #{net_forward.10} parent=11 // pred_check_branch
        %164 = sbr.rel (%p162) target = $region16
      $region15: #{net_forward.10} parent=11 // pred_region
        _
      $region16: #{net_forward.10} parent=11 // pred_fallthru
        _
      // Predicated region
      $region17: #{net_forward.10} parent=11 // pred_check
        %p165 = pneg %p93
      $region18: #{net_forward.10} parent=11 // pred_check_branch
        %167 = sbr.rel (%p165) target = $region20
      $region19: #{net_forward.10} parent=11 // pred_region
        _
      $region20: #{net_forward.10} parent=11 // pred_fallthru
        _
    $region12: #{net_forward.10} parent=5 // pred_fallthru
      _
    %p168 = scmp.lt.s32.totalorder %s11, 2
    // Predicated region
    $region21: #{net_forward.10} parent=5 // pred_check
      %p169 = pneg %p168
    $region22: #{net_forward.10} parent=5 // pred_check_branch
      %171 = sbr.rel (%p169) target = $region24
    $region23: #{net_forward.10} parent=5 // pred_region
      // Predicated region
      $region25: #{net_forward.10} parent=23 // pred_check
        %p172 = pneg %p45
      $region26: #{net_forward.10} parent=23 // pred_check_branch
        %174 = sbr.rel (%p172) target = $region28
      $region27: #{net_forward.10} parent=23 // pred_region
        %s175 = smul.u32 4, %s19
        %p176 = scmp.lt.s32.totalorder %s18, 1
        %s177 = scalar_select %p176, %s18, 1
        %p178 = scmp.lt.s32.totalorder %s175, 3
        %s179 = scalar_select %p178, %s175, 3
        %s180 = smul.addr %s177, 4
        %s181 = sadd.s32 %s179, %s180
        %s182 = smul.addr %s181, 4
        %s183 = scalar_lea.vmem %s0, %s182
        %s184 = smul.u32 4, %s19
      $region28: #{net_forward.10} parent=23 // pred_fallthru
        _
    $region24: #{net_forward.10} parent=5 // pred_fallthru
      _
    %p185 = scmp.le.s32.totalorder 1, %s11
    %p186 = scmp.lt.s32.totalorder %s11, 3
    %p187 = pnand %p185, %p186
    %p188 = pneg %p187
    // Predicated region
    $region29: #{net_forward.10} parent=5 // pred_check
      _
    $region30: #{net_forward.10} parent=5 // pred_check_branch
      %190 = sbr.rel (%p187) target = $region32
    $region31: #{net_forward.10} parent=5 // pred_region
      %s191 = ssub.s32 %s11, 1
      %s192 = smul.u32 4, %s21
      %p193 = scmp.lt.s32.totalorder %s20, 1
      %s194 = scalar_select %p193, %s20, 1
      %p195 = scmp.lt.s32.totalorder %s192, 3
      %s196 = scalar_select %p195, %s192, 3
      %s197 = smul.addr %s194, 4
      %s198 = sadd.s32 %s196, %s197
      %s199 = smul.addr %s198, 4
      %s200 = scalar_lea.vmem %s0, %s199
      %p201 = pneg %p51
      %p202 = pneg %p48
      %p203 = pneg %p72
      %p204 = pneg %p69
      %p205 = pneg %p93
      %p206 = pneg %p90
      %p207 = pneg %p121
      %p208 = pneg %p118
      %s209 = smul.u32 4, %s21
      %p210 = scmp.lt.s32.totalorder %s20, 1
      %s211 = scalar_select %p210, %s20, 1
      %p212 = scmp.lt.s32.totalorder %s209, 3
      %s213 = scalar_select %p212, %s209, 3
      %s214 = smul.addr %s211, 4
      %s215 = sadd.s32 %s213, %s214
      %s216 = smul.addr %s215, 4
      %s217 = scalar_lea.vmem %s3, %s216
      %p218 = pneg %p147
      %p219 = pneg %p144
      %p220 = scmp.lt.s32.totalorder %s20, 1
      %s221 = scalar_select %p220, %s20, 1
      %s222 = smul.addr %s221, 8
      %s223 = scalar_lea.vmem %s4, %s222
      %s224 = smul.u32 4, %s21
      %p225 = scmp.lt.s32.totalorder %s20, 1
      %s226 = scalar_select %p225, %s20, 1
      %p227 = scmp.lt.s32.totalorder %s224, 3
      %s228 = scalar_select %p227, %s224, 3
      %s229 = smul.addr %s226, 4
      %s230 = sadd.s32 %s228, %s229
      %s231 = smul.addr %s230, 4
      %s232 = scalar_lea.vmem %s0, %s231
      %s233 = smul.u32 4, %s21
      %s234 = smul.u32 4, %s21
      %p235 = scmp.lt.s32.totalorder %s20, 1
      %s236 = scalar_select %p235, %s20, 1
      %p237 = scmp.lt.s32.totalorder %s234, 3
      %s238 = scalar_select %p237, %s234, 3
      %s239 = smul.addr %s236, 4
      %s240 = sadd.s32 %s238, %s239
      %s241 = smul.addr %s240, 4
      %s242 = scalar_lea.vmem %s3, %s241
      %s243 = smul.u32 4, %s21
      %p244 = scmp.lt.s32.totalorder %s20, 1
      %s245 = scalar_select %p244, %s20, 1
      %s246 = smul.addr %s245, 8
      %s247 = scalar_lea.vmem %s4, %s246
      %v249 = vld [vmem:[%s232] sm:$0xf]
      %v250 = vld [vmem:[%s232 + $0x4] sm:$0xf]
      %v251 = vld [vmem:[%s232 + $0x8] sm:$0xf]
      %v252 = vld [vmem:[%s232 + $0xc] sm:$0xf]
      %v253 = vld [vmem:[%s1] sm:$0xf]
      %v254 = vld [vmem:[%s1 + $0x4] sm:$0xf]
      %v255 = vld [vmem:[%s1 + $0x8] sm:$0xf]
      %v256 = vld [vmem:[%s1 + $0xc] sm:$0xf]
      %v257 = vld [vmem:[%s1 + $0x10] sm:$0xf]
      %v258 = vld [vmem:[%s1 + $0x14] sm:$0xf]
      %v259 = vld [vmem:[%s1 + $0x18] sm:$0xf]
      %v260 = vld [vmem:[%s1 + $0x1c] sm:$0xf]
      %v261 = vld [vmem:[%s1 + $0x20] sm:$0xf]
      %v262 = vld [vmem:[%s1 + $0x24] sm:$0xf]
      %v263 = vld [vmem:[%s1 + $0x28] sm:$0xf]
      %v264 = vld [vmem:[%s1 + $0x2c] sm:$0xf]
      %v265 = vld [vmem:[%s1 + $0x30] sm:$0xf]
      %v266 = vld [vmem:[%s1 + $0x34] sm:$0xf]
      %v267 = vld [vmem:[%s1 + $0x38] sm:$0xf]
      %v268 = vld [vmem:[%s1 + $0x3c] sm:$0xf]
      %v269 = vld [vmem:[%s2] sm:$0x1]
      %v271 = vlaneseq
      %v272 = vshrl.u32 %v271, 7
      %v273 = vsub.s32 0, %v272
      %v274 = vrot.slane %v269, %v273
      %v280 = vunpack.c.l.b16 %v249
      %v281 = vunpack.c.l.b16 %v250
      %v282 = vunpack.c.l.b16 %v251
      %v283 = vunpack.c.l.b16 %v252
      %v284 = vpack.c.b16 %v281, %v280
      %v285 = vpack.c.b16 %v283, %v282
      %v304 = vunpack.c.l.b16 %v253
      %v305 = vunpack.c.l.b16 %v254
      %v306 = vunpack.c.l.b16 %v255
      %v307 = vunpack.c.l.b16 %v256
      %v308 = vunpack.c.l.b16 %v257
      %v309 = vunpack.c.l.b16 %v258
      %v310 = vunpack.c.l.b16 %v259
      %v311 = vunpack.c.l.b16 %v260
      %v312 = vunpack.c.l.b16 %v261
      %v313 = vunpack.c.l.b16 %v262
      %v314 = vunpack.c.l.b16 %v263
      %v315 = vunpack.c.l.b16 %v264
      %v316 = vunpack.c.l.b16 %v265
      %v317 = vunpack.c.l.b16 %v266
      %v318 = vunpack.c.l.b16 %v267
      %v319 = vunpack.c.l.b16 %v268
      %v320 = vpack.c.b16 %v305, %v304
      %v321 = vpack.c.b16 %v307, %v306
      %v322 = vpack.c.b16 %v309, %v308
      %v323 = vpack.c.b16 %v311, %v310
      %v324 = vpack.c.b16 %v313, %v312
      %v325 = vpack.c.b16 %v315, %v314
      %v326 = vpack.c.b16 %v317, %v316
      %v327 = vpack.c.b16 %v319, %v318
      %336 = vmatprep.subr.bf16.mxu0 0
      %337 = vmatpush1.bf16.msra.mxu0 %v327
      %338 = vmatprep.subr.bf16.mxu0 0
      %339 = vmatpush1.bf16.msra.mxu0 %v326
      %340 = vmatprep.subr.bf16.mxu0 0
      %341 = vmatpush1.bf16.msra.mxu0 %v325
      %342 = vmatprep.subr.bf16.mxu0 0
      %343 = vmatpush1.bf16.msra.mxu0 %v324
      %344 = vmatprep.subr.bf16.mxu0 0
      %345 = vmatpush1.bf16.msra.mxu0 %v323
      %346 = vmatprep.subr.bf16.mxu0 0
      %347 = vmatpush1.bf16.msra.mxu0 %v322
      %348 = vmatprep.subr.bf16.mxu0 0
      %349 = vmatpush1.bf16.msra.mxu0 %v321
      %350 = vmatprep.subr.bf16.mxu0 0
      %351 = vmatpush1.bf16.msra.mxu0 %v320
      %352 = vmatprep.subr.bf16.mxu0 0
      %353 = vmatpush2.bf16.msra.mxu0 0
      %354 = vmatprep.subr.bf16.mxu0 0
      %355 = vmatpush2.bf16.msra.mxu0 0
      %356 = vmatprep.subr.bf16.mxu0 0
      %357 = vmatpush2.bf16.msra.mxu0 0
      %358 = vmatprep.subr.bf16.mxu0 0
      %359 = vmatpush2.bf16.msra.mxu0 0
      %360 = vmatprep.subr.bf16.mxu0 0
      %361 = vmatpush2.bf16.msra.mxu0 0
      %362 = vmatprep.subr.bf16.mxu0 0
      %363 = vmatpush2.bf16.msra.mxu0 0
      %364 = vmatprep.subr.bf16.mxu0 0
      %365 = vmatpush2.bf16.msra.mxu0 0
      %366 = vmatprep.subr.bf16.mxu0 0
      %367 = vmatpush2.bf16.msra.mxu0 0
      %368 = vmatprep.mubr.bf16.mxu0 0
      %369 = vmatmul.mubr.bf16.gmra.mxu0 %v284
      %v370 = vpop.f32.mrf.mxu0
      %v371 = vadd.f32 %v274, %v370
      %v372 = vpop.f32.mrf.mxu0
      %v373 = vpop.f32.mrf.mxu0
      %v374 = vadd.f32 %v274, %v373
      %v375 = vpop.f32.mrf.mxu0
      %376 = vmatprep.mubr.bf16.mxu0 0
      %377 = vmatmul.mubr.bf16.gmra.mxu0 %v285
      %v378 = vpop.f32.mrf.mxu0
      %v379 = vadd.f32 %v274, %v378
      %v380 = vpop.f32.mrf.mxu0
      %v381 = vpop.f32.mrf.mxu0
      %v382 = vadd.f32 %v274, %v381
      %v383 = vpop.f32.mrf.mxu0
      %384 = vdwg.mxu0
      %v385 = vmax.f32 %v371, 0.0
      %v386 = vmax.f32 %v374, 0.0
      %v387 = vmax.f32 %v379, 0.0
      %v388 = vmax.f32 %v382, 0.0
      %s389 = smul.u32 %s21, 32
      %v390 = vlaneseq
      %v391 = vshrl.u32 %v390, 7
      %v392 = vadd.s32 %v391, 8
      %v393 = vadd.s32 %v391, 16
      %v394 = vadd.s32 %v391, 24
      %v395 = vstv %s389
      %v396 = vadd.s32 %v395, %v391
      %v397 = vadd.s32 %v395, %v392
      %v398 = vadd.s32 %v395, %v393
      %v399 = vadd.s32 %v395, %v394
      %vm400 = vcmp.lt.s32.totalorder %v396, 25
      %vm401 = vcmp.lt.s32.totalorder %v397, 25
      %vm402 = vcmp.lt.s32.totalorder %v398, 25
      %vm403 = vcmp.lt.s32.totalorder %v399, 25
      %v404 = vsel %vm400, 1, 0
      %v405 = vsel %vm401, 1, 0
      %v406 = vsel %vm402, 1, 0
      %v407 = vsel %vm403, 1, 0
      %vm408 = vcmp.eq.s32.totalorder %v404, 1
      %vm409 = vcmp.eq.s32.totalorder %v405, 1
      %vm410 = vcmp.eq.s32.totalorder %v406, 1
      %vm411 = vcmp.eq.s32.totalorder %v407, 1
      %v412 = vsel %vm408, %v385, 0.0
      %v413 = vsel %vm409, %v386, 0.0
      %v414 = vsel %vm410, %v387, 0.0
      %v415 = vsel %vm411, %v388, 0.0
      %v416 = vpack.c.bf16 %v413, %v412
      %v417 = vpack.c.bf16 %v415, %v414
      %v420 = vunpack.c.l.b16 %v416
      %v421 = vunpack.c.h.b16 %v416
      %v422 = vunpack.c.l.b16 %v417
      %v423 = vunpack.c.h.b16 %v417
      %v424 = vpack.c.b16 %v420, %v420
      %v425 = vpack.c.b16 %v421, %v421
      %v426 = vpack.c.b16 %v422, %v422
      %v427 = vpack.c.b16 %v423, %v423
      %432 = vst [vmem:[%s242] sm:$0xf] %v424
      %433 = vst [vmem:[%s242 + $0x4] sm:$0xf] %v425
      %434 = vst [vmem:[%s242 + $0x8] sm:$0xf] %v426
      %435 = vst [vmem:[%s242 + $0xc] sm:$0xf] %v427
      %v436 = vadd.f32 %v412, %v413
      %v437 = vadd.f32 %v436, %v414
      %v438 = vadd.f32 %v437, %v415
      %v439 = vrot.slane %v438, 4
      %v440 = vadd.f32 %v438, %v439
      %v441 = vrot.slane %v440, 2
      %v442 = vadd.f32 %v440, %v441
      %v443 = vrot.slane %v442, 1
      %v444 = vadd.f32 %v442, %v443
      %p445 = scmp.eq.s32.totalorder %s21, 0
      // Predicated region
      $region33: #{net_forward.10} parent=31 // pred_check
        %p446 = pneg %p445
      $region34: #{net_forward.10} parent=31 // pred_check_branch
        %448 = sbr.rel (%p446) target = $region36
      $region35: #{net_forward.10} parent=31 // pred_region
        %449 = vst [vmem:[%s247] sm:$0xff] 0.0
      $region36: #{net_forward.10} parent=31 // pred_fallthru
        _
      %v450 = vld [vmem:[%s247] sm:$0xff]
      %v451 = vadd.f32 %v450, %v444
      %452 = vst [vmem:[%s247] sm:$0xff] %v451
      %s453 = smul.u32 4, %s21
      %p454 = scmp.lt.s32.totalorder %s20, 1
      %s455 = scalar_select %p454, %s20, 1
      %p456 = scmp.lt.s32.totalorder %s453, 3
      %s457 = scalar_select %p456, %s453, 3
      %s458 = smul.addr %s455, 4
      %s459 = sadd.s32 %s457, %s458
      %s460 = smul.addr %s459, 4
      %s461 = scalar_lea.vmem %s3, %s460
      %p462 = scmp.lt.s32.totalorder %s20, 1
      %s463 = scalar_select %p462, %s20, 1
      %s464 = smul.addr %s463, 8
      %s465 = scalar_lea.vmem %s4, %s464
      // Predicated region
      $region37: #{net_forward.10} parent=31 // pred_check
        %p466 = pneg %p118
      $region38: #{net_forward.10} parent=31 // pred_check_branch
        %468 = sbr.rel (%p466) target = $region40
      $region39: #{net_forward.10} parent=31 // pred_region
        %s469 = smul.u32 4, %s21
      $region40: #{net_forward.10} parent=31 // pred_fallthru
        _
      // Predicated region
      $region41: #{net_forward.10} parent=31 // pred_check
        %p470 = pneg %p144
      $region42: #{net_forward.10} parent=31 // pred_check_branch
        %472 = sbr.rel (%p470) target = $region44
      $region43: #{net_forward.10} parent=31 // pred_region
        _
      $region44: #{net_forward.10} parent=31 // pred_fallthru
        _
    $region32: #{net_forward.10} parent=5 // pred_fallthru
      _
    %p473 = scmp.le.s32.totalorder 2, %s11
    // Predicated region
    $region45: #{net_forward.10} parent=5 // pred_check
      %p474 = pneg %p473
    $region46: #{net_forward.10} parent=5 // pred_check_branch
      %476 = sbr.rel (%p474) target = $region48
    $region47: #{net_forward.10} parent=5 // pred_region
      %s477 = ssub.s32 %s11, 2
      // Predicated region
      $region49: #{net_forward.10} parent=47 // pred_check
        %p478 = pneg %p124
      $region50: #{net_forward.10} parent=47 // pred_check_branch
        %480 = sbr.rel (%p478) target = $region52
      $region51: #{net_forward.10} parent=47 // pred_region
        %s481 = smul.u32 4, %s23
        %p482 = scmp.lt.s32.totalorder %s22, 1
        %s483 = scalar_select %p482, %s22, 1
        %p484 = scmp.lt.s32.totalorder %s481, 3
        %s485 = scalar_select %p484, %s481, 3
        %s486 = smul.addr %s483, 4
        %s487 = sadd.s32 %s485, %s486
        %s488 = smul.addr %s487, 4
        %s489 = scalar_lea.vmem %s3, %s488
      $region52: #{net_forward.10} parent=47 // pred_fallthru
        _
      // Predicated region
      $region53: #{net_forward.10} parent=47 // pred_check
        %p490 = pneg %p150
      $region54: #{net_forward.10} parent=47 // pred_check_branch
        %492 = sbr.rel (%p490) target = $region56
      $region55: #{net_forward.10} parent=47 // pred_region
        %p493 = scmp.lt.s32.totalorder %s22, 1
        %s494 = scalar_select %p493, %s22, 1
        %s495 = smul.addr %s494, 8
        %s496 = scalar_lea.vmem %s4, %s495
      $region56: #{net_forward.10} parent=47 // pred_fallthru
        _
    $region48: #{net_forward.10} parent=5 // pred_fallthru
      _
  $region6: #{net_forward.10} parent=0 // loop_footer
    %s15 = sadd.s32 1, %s11
  $region7: #{net_forward.10} parent=0 // loop_footer_branch
    %10 = sbr.rel target = $region3
  $region8: #{net_forward.10} parent=0 // loop_exit
    _

// kernel: net_forward.11
$region0: #{net_forward.11}
  #allocation0 [shape = 'u32[]', space=smem, size = 0x4, offset = 0x4, fixed_abs, tag = 'smem constant byte address 0x4 - core index']
  #allocation1 [shape = 'u32[144,128]{1,0:T(1,128)}', space=vmem, size = 0x12000, scoped, tag = 'internal scratch']
  %s0 = inlined_call_operand.vmem [shape: bf16[2,3200], index: 0, kind: input, shape index: {}]
  %s1 = inlined_call_operand.vmem [shape: f32[2,8,128], index: 1, kind: input, shape index: {}]
  %s2 = inlined_call_operand.vmem [shape: f32[128,128], index: 2, kind: input, shape index: {}]
  %s3 = inlined_call_operand.vmem [shape: f32[1,128], index: 3, kind: input, shape index: {}]
  %s4 = inlined_call_operand.vmem [shape: f32[128,3200], index: 4, kind: input, shape index: {}]
  %s5 = inlined_call_operand.vmem [shape: f32[1,3200], index: 5, kind: input, shape index: {}]
  %s6 = inlined_call_operand.vmem [shape: bf16[3200,128], index: 6, kind: input, shape index: {}]
  %s7 = inlined_call_operand.vmem [shape: f32[1,128], index: 7, kind: input, shape index: {}]
  %s8 = inlined_call_operand.vmem [shape: bf16[128,128], index: 8, kind: input, shape index: {}]
  %s9 = inlined_call_operand.vmem [shape: f32[1,128], index: 9, kind: input, shape index: {}]
  %s10 = inlined_call_operand.hbm [shape: f32[2,128], index: 10, kind: output, shape index: {}]
  %s11 = sld [smem:[#allocation0]]
  $region50: #{net_forward.11} parent=0
    _
  %s13 = ssub.s32 1, %s11
  %s14 = scalar_select 0, %s13, %s11
  $region1: #{net_forward.11} parent=0
    #allocation2 [shape = 'u8[1024]{0}', space=vmem, size = 0x400, scoped, tag = 'output window, operand 0, single buffered']
    #allocation3 [shape = 's32[1]{0}', space=sflag, size = 0x4, scoped, tag = 'scoped memory for net_forward.11']
    %15 = vsyncpa [#allocation3], 0
    // Predicated region
    $region2: #{net_forward.11} parent=1 // pred_check
      _
    $region3: #{net_forward.11} parent=1 // pred_check_branch
      %17 = sbr.rel (0) target = $region5
    $region4: #{net_forward.11} parent=1 // pred_region
      _
    $region5: #{net_forward.11} parent=1 // pred_fallthru
      _
    // Predicated region
    $region6: #{net_forward.11} parent=1 // pred_check
      _
    $region7: #{net_forward.11} parent=1 // pred_check_branch
      %19 = sbr.rel (0) target = $region9
    $region8: #{net_forward.11} parent=1 // pred_region
      _
    $region9: #{net_forward.11} parent=1 // pred_fallthru
      _
    // Predicated region
    $region10: #{net_forward.11} parent=1 // pred_check
      _
    $region11: #{net_forward.11} parent=1 // pred_check_branch
      %21 = sbr.rel (0) target = $region13
    $region12: #{net_forward.11} parent=1 // pred_region
      _
    $region13: #{net_forward.11} parent=1 // pred_fallthru
      _
    // Predicated region
    $region14: #{net_forward.11} parent=1 // pred_check
      _
    $region15: #{net_forward.11} parent=1 // pred_check_branch
      %23 = sbr.rel (0) target = $region17
    $region16: #{net_forward.11} parent=1 // pred_region
      _
    $region17: #{net_forward.11} parent=1 // pred_fallthru
      _
    // Predicated region
    $region18: #{net_forward.11} parent=1 // pred_check
      _
    $region19: #{net_forward.11} parent=1 // pred_check_branch
      %25 = sbr.rel (0) target = $region21
    $region20: #{net_forward.11} parent=1 // pred_region
      _
    $region21: #{net_forward.11} parent=1 // pred_fallthru
      _
    // Predicated region
    $region22: #{net_forward.11} parent=1 // pred_check
      _
    $region23: #{net_forward.11} parent=1 // pred_check_branch
      %27 = sbr.rel (0) target = $region25
    $region24: #{net_forward.11} parent=1 // pred_region
      _
    $region25: #{net_forward.11} parent=1 // pred_fallthru
      _
    // Predicated region
    $region26: #{net_forward.11} parent=1 // pred_check
      _
    $region27: #{net_forward.11} parent=1 // pred_check_branch
      %29 = sbr.rel (0) target = $region29
    $region28: #{net_forward.11} parent=1 // pred_region
      _
    $region29: #{net_forward.11} parent=1 // pred_fallthru
      _
    // Predicated region
    $region30: #{net_forward.11} parent=1 // pred_check
      _
    $region31: #{net_forward.11} parent=1 // pred_check_branch
      %31 = sbr.rel (0) target = $region33
    $region32: #{net_forward.11} parent=1 // pred_region
      _
    $region33: #{net_forward.11} parent=1 // pred_fallthru
      _
    // Predicated region
    $region34: #{net_forward.11} parent=1 // pred_check
      _
    $region35: #{net_forward.11} parent=1 // pred_check_branch
      %33 = sbr.rel (0) target = $region37
    $region36: #{net_forward.11} parent=1 // pred_region
      _
    $region37: #{net_forward.11} parent=1 // pred_fallthru
      _
    // Predicated region
    $region38: #{net_forward.11} parent=1 // pred_check
      _
    $region39: #{net_forward.11} parent=1 // pred_check_branch
      %35 = sbr.rel (0) target = $region41
    $region40: #{net_forward.11} parent=1 // pred_region
      _
    $region41: #{net_forward.11} parent=1 // pred_fallthru
      _
    %v37 = vld [vmem:[%s1] sm:$0xff]
    %v38 = vld [vmem:[%s1 + $0x8] sm:$0xff]
    %v39 = vld [vmem:[%s2] sm:$0xff]
    %v40 = vld [vmem:[%s2 + $0x8] sm:$0xff]
    %v41 = vld [vmem:[%s2 + $0x10] sm:$0xff]
    %v42 = vld [vmem:[%s2 + $0x18] sm:$0xff]
    %v43 = vld [vmem:[%s2 + $0x20] sm:$0xff]
    %v44 = vld [vmem:[%s2 + $0x28] sm:$0xff]
    %v45 = vld [vmem:[%s2 + $0x30] sm:$0xff]
    %v46 = vld [vmem:[%s2 + $0x38] sm:$0xff]
    %v47 = vld [vmem:[%s2 + $0x40] sm:$0xff]
    %v48 = vld [vmem:[%s2 + $0x48] sm:$0xff]
    %v49 = vld [vmem:[%s2 + $0x50] sm:$0xff]
    %v50 = vld [vmem:[%s2 + $0x58] sm:$0xff]
    %v51 = vld [vmem:[%s2 + $0x60] sm:$0xff]
    %v52 = vld [vmem:[%s2 + $0x68] sm:$0xff]
    %v53 = vld [vmem:[%s2 + $0x70] sm:$0xff]
    %v54 = vld [vmem:[%s2 + $0x78] sm:$0xff]
    %v55 = vld [vmem:[%s3] sm:$0x1]
    %v57 = vlaneseq
    %v58 = vshrl.u32 %v57, 7
    %v59 = vsub.s32 0, %v58
    %v60 = vrot.slane %v55, %v59
    %v64 = vrot.slane %v38, 7
    %vm65 = vcmask 1041409
    %v66 = vsel %vm65, %v64, %v37
    %68 = vmatprep.subr.mxu0 0.0
    %69 = vmatpush1.msra.mxu0 %v54
    %70 = vmatprep.subr.mxu0 0.0
    %71 = vmatpush1.msra.mxu0 %v53
    %72 = vmatprep.subr.mxu0 0.0
    %73 = vmatpush1.msra.mxu0 %v52
    %74 = vmatprep.subr.mxu0 0.0
    %75 = vmatpush1.msra.mxu0 %v51
    %76 = vmatprep.subr.mxu0 0.0
    %77 = vmatpush1.msra.mxu0 %v50
    %78 = vmatprep.subr.mxu0 0.0
    %79 = vmatpush1.msra.mxu0 %v49
    %80 = vmatprep.subr.mxu0 0.0
    %81 = vmatpush1.msra.mxu0 %v48
    %82 = vmatprep.subr.mxu0 0.0
    %83 = vmatpush1.msra.mxu0 %v47
    %84 = vmatprep.subr.mxu0 0.0
    %85 = vmatpush1.msra.mxu0 %v46
    %86 = vmatprep.subr.mxu0 0.0
    %87 = vmatpush1.msra.mxu0 %v45
    %88 = vmatprep.subr.mxu0 0.0
    %89 = vmatpush1.msra.mxu0 %v44
    %90 = vmatprep.subr.mxu0 0.0
    %91 = vmatpush1.msra.mxu0 %v43
    %92 = vmatprep.subr.mxu0 0.0
    %93 = vmatpush1.msra.mxu0 %v42
    %94 = vmatprep.subr.mxu0 0.0
    %95 = vmatpush1.msra.mxu0 %v41
    %96 = vmatprep.subr.mxu0 0.0
    %97 = vmatpush1.msra.mxu0 %v40
    %98 = vmatprep.subr.mxu0 0.0
    %99 = vmatpush1.msra.mxu0 %v39
    %100 = vmatprep.subr.mxu0 0.0
    %101 = vmatpush2.msra.mxu0 0.0
    %102 = vmatprep.subr.mxu0 0.0
    %103 = vmatpush2.msra.mxu0 0.0
    %104 = vmatprep.subr.mxu0 0.0
    %105 = vmatpush2.msra.mxu0 0.0
    %106 = vmatprep.subr.mxu0 0.0
    %107 = vmatpush2.msra.mxu0 0.0
    %108 = vmatprep.subr.mxu0 0.0
    %109 = vmatpush2.msra.mxu0 0.0
    %110 = vmatprep.subr.mxu0 0.0
    %111 = vmatpush2.msra.mxu0 0.0
    %112 = vmatprep.subr.mxu0 0.0
    %113 = vmatpush2.msra.mxu0 0.0
    %114 = vmatprep.subr.mxu0 0.0
    %115 = vmatpush2.msra.mxu0 0.0
    %116 = vmatprep.subr.mxu0 0.0
    %117 = vmatpush2.msra.mxu0 0.0
    %118 = vmatprep.subr.mxu0 0.0
    %119 = vmatpush2.msra.mxu0 0.0
    %120 = vmatprep.subr.mxu0 0.0
    %121 = vmatpush2.msra.mxu0 0.0
    %122 = vmatprep.subr.mxu0 0.0
    %123 = vmatpush2.msra.mxu0 0.0
    %124 = vmatprep.subr.mxu0 0.0
    %125 = vmatpush2.msra.mxu0 0.0
    %126 = vmatprep.subr.mxu0 0.0
    %127 = vmatpush2.msra.mxu0 0.0
    %128 = vmatprep.subr.mxu0 0.0
    %129 = vmatpush2.msra.mxu0 0.0
    %130 = vmatprep.subr.mxu0 0.0
    %131 = vmatpush2.msra.mxu0 0.0
    %132 = vmatprep.mubr.f32.mxu0 0.0
    %133 = vmatmul.mubr.f32.gmra.mxu0 %v66
    %v134 = vpop.f32.mrf.mxu0
    %v135 = vadd.f32 %v60, %v134
    %v136 = vpop.f32.mrf.mxu0
    %137 = vdwg.mxu0
    %v138 = vmax.f32 %v135, 0.0
    %v139 = vld [vmem:[%s4] sm:$0xff]
    %v140 = vld [vmem:[%s4 + $0x8] sm:$0xff]
    %v141 = vld [vmem:[%s4 + $0x10] sm:$0xff]
    %v142 = vld [vmem:[%s4 + $0x18] sm:$0xff]
    %v143 = vld [vmem:[%s4 + $0x20] sm:$0xff]
    %v144 = vld [vmem:[%s4 + $0x28] sm:$0xff]
    %v145 = vld [vmem:[%s4 + $0x30] sm:$0xff]
    %v146 = vld [vmem:[%s4 + $0x38] sm:$0xff]
    %v147 = vld [vmem:[%s4 + $0x40] sm:$0xff]
    %v148 = vld [vmem:[%s4 + $0x48] sm:$0xff]
    %v149 = vld [vmem:[%s4 + $0x50] sm:$0xff]
    %v150 = vld [vmem:[%s4 + $0x58] sm:$0xff]
    %v151 = vld [vmem:[%s4 + $0x60] sm:$0xff]
    %v152 = vld [vmem:[%s4 + $0x68] sm:$0xff]
    %v153 = vld [vmem:[%s4 + $0x70] sm:$0xff]
    %v154 = vld [vmem:[%s4 + $0x78] sm:$0xff]
    %v155 = vld [vmem:[%s4 + $0x80] sm:$0xff]
    %v156 = vld [vmem:[%s4 + $0x88] sm:$0xff]
    %v157 = vld [vmem:[%s4 + $0x90] sm:$0xff]
    %v158 = vld [vmem:[%s4 + $0x98] sm:$0xff]
    %v159 = vld [vmem:[%s4 + $0xa0] sm:$0xff]
    %v160 = vld [vmem:[%s4 + $0xa8] sm:$0xff]
    %v161 = vld [vmem:[%s4 + $0xb0] sm:$0xff]
    %v162 = vld [vmem:[%s4 + $0xb8] sm:$0xff]
    %v163 = vld [vmem:[%s4 + $0xc0] sm:$0xff]
    %v164 = vld [vmem:[%s4 + $0xc8] sm:$0xff]
    %v165 = vld [vmem:[%s4 + $0xd0] sm:$0xff]
    %v166 = vld [vmem:[%s4 + $0xd8] sm:$0xff]
    %v167 = vld [vmem:[%s4 + $0xe0] sm:$0xff]
    %v168 = vld [vmem:[%s4 + $0xe8] sm:$0xff]
    %v169 = vld [vmem:[%s4 + $0xf0] sm:$0xff]
    %v170 = vld [vmem:[%s4 + $0xf8] sm:$0xff]
    %v171 = vld [vmem:[%s4 + $0x100] sm:$0xff]
    %v172 = vld [vmem:[%s4 + $0x108] sm:$0xff]
    %v173 = vld [vmem:[%s4 + $0x110] sm:$0xff]
    %v174 = vld [vmem:[%s4 + $0x118] sm:$0xff]
    %v175 = vld [vmem:[%s4 + $0x120] sm:$0xff]
    %v176 = vld [vmem:[%s4 + $0x128] sm:$0xff]
    %v177 = vld [vmem:[%s4 + $0x130] sm:$0xff]
    %v178 = vld [vmem:[%s4 + $0x138] sm:$0xff]
    %v179 = vld [vmem:[%s4 + $0x140] sm:$0xff]
    %v180 = vld [vmem:[%s4 + $0x148] sm:$0xff]
    %v181 = vld [vmem:[%s4 + $0x150] sm:$0xff]
    %v182 = vld [vmem:[%s4 + $0x158] sm:$0xff]
    %v183 = vld [vmem:[%s4 + $0x160] sm:$0xff]
    %v184 = vld [vmem:[%s4 + $0x168] sm:$0xff]
    %v185 = vld [vmem:[%s4 + $0x170] sm:$0xff]
    %v186 = vld [vmem:[%s4 + $0x178] sm:$0xff]
    %v187 = vld [vmem:[%s4 + $0x180] sm:$0xff]
    %v188 = vld [vmem:[%s4 + $0x188] sm:$0xff]
    %v189 = vld [vmem:[%s4 + $0x190] sm:$0xff]
    %v190 = vld [vmem:[%s4 + $0x198] sm:$0xff]
    %v191 = vld [vmem:[%s4 + $0x1a0] sm:$0xff]
    %v192 = vld [vmem:[%s4 + $0x1a8] sm:$0xff]
    %v193 = vld [vmem:[%s4 + $0x1b0] sm:$0xff]
    %v194 = vld [vmem:[%s4 + $0x1b8] sm:$0xff]
    %v195 = vld [vmem:[%s4 + $0x1c0] sm:$0xff]
    %v196 = vld [vmem:[%s4 + $0x1c8] sm:$0xff]
    %v197 = vld [vmem:[%s4 + $0x1d0] sm:$0xff]
    %v198 = vld [vmem:[%s4 + $0x1d8] sm:$0xff]
    %v199 = vld [vmem:[%s4 + $0x1e0] sm:$0xff]
    %v200 = vld [vmem:[%s4 + $0x1e8] sm:$0xff]
    %v201 = vld [vmem:[%s4 + $0x1f0] sm:$0xff]
    %v202 = vld [vmem:[%s4 + $0x1f8] sm:$0xff]
    %v203 = vld [vmem:[%s4 + $0x200] sm:$0xff]
    %v204 = vld [vmem:[%s4 + $0x208] sm:$0xff]
    %v205 = vld [vmem:[%s4 + $0x210] sm:$0xff]
    %v206 = vld [vmem:[%s4 + $0x218] sm:$0xff]
    %v207 = vld [vmem:[%s4 + $0x220] sm:$0xff]
    %v208 = vld [vmem:[%s4 + $0x228] sm:$0xff]
    %v209 = vld [vmem:[%s4 + $0x230] sm:$0xff]
    %v210 = vld [vmem:[%s4 + $0x238] sm:$0xff]
    %v211 = vld [vmem:[%s4 + $0x240] sm:$0xff]
    %v212 = vld [vmem:[%s4 + $0x248] sm:$0xff]
    %v213 = vld [vmem:[%s4 + $0x250] sm:$0xff]
    %v214 = vld [vmem:[%s4 + $0x258] sm:$0xff]
    %v215 = vld [vmem:[%s4 + $0x260] sm:$0xff]
    %v216 = vld [vmem:[%s4 + $0x268] sm:$0xff]
    %v217 = vld [vmem:[%s4 + $0x270] sm:$0xff]
    %v218 = vld [vmem:[%s4 + $0x278] sm:$0xff]
    %v219 = vld [vmem:[%s4 + $0x280] sm:$0xff]
    %v220 = vld [vmem:[%s4 + $0x288] sm:$0xff]
    %v221 = vld [vmem:[%s4 + $0x290] sm:$0xff]
    %v222 = vld [vmem:[%s4 + $0x298] sm:$0xff]
    %v223 = vld [vmem:[%s4 + $0x2a0] sm:$0xff]
    %v224 = vld [vmem:[%s4 + $0x2a8] sm:$0xff]
    %v225 = vld [vmem:[%s4 + $0x2b0] sm:$0xff]
    %v226 = vld [vmem:[%s4 + $0x2b8] sm:$0xff]
    %v227 = vld [vmem:[%s4 + $0x2c0] sm:$0xff]
    %v228 = vld [vmem:[%s4 + $0x2c8] sm:$0xff]
    %v229 = vld [vmem:[%s4 + $0x2d0] sm:$0xff]
    %v230 = vld [vmem:[%s4 + $0x2d8] sm:$0xff]
    %v231 = vld [vmem:[%s4 + $0x2e0] sm:$0xff]
    %v232 = vld [vmem:[%s4 + $0x2e8] sm:$0xff]
    %v233 = vld [vmem:[%s4 + $0x2f0] sm:$0xff]
    %v234 = vld [vmem:[%s4 + $0x2f8] sm:$0xff]
    %v235 = vld [vmem:[%s4 + $0x300] sm:$0xff]
    %v236 = vld [vmem:[%s4 + $0x308] sm:$0xff]
    %v237 = vld [vmem:[%s4 + $0x310] sm:$0xff]
    %v238 = vld [vmem:[%s4 + $0x318] sm:$0xff]
    %v239 = vld [vmem:[%s4 + $0x320] sm:$0xff]
    %v240 = vld [vmem:[%s4 + $0x328] sm:$0xff]
    %v241 = vld [vmem:[%s4 + $0x330] sm:$0xff]
    %v242 = vld [vmem:[%s4 + $0x338] sm:$0xff]
    %v243 = vld [vmem:[%s4 + $0x340] sm:$0xff]
    %v244 = vld [vmem:[%s4 + $0x348] sm:$0xff]
    %v245 = vld [vmem:[%s4 + $0x350] sm:$0xff]
    %v246 = vld [vmem:[%s4 + $0x358] sm:$0xff]
    %v247 = vld [vmem:[%s4 + $0x360] sm:$0xff]
    %v248 = vld [vmem:[%s4 + $0x368] sm:$0xff]
    %v249 = vld [vmem:[%s4 + $0x370] sm:$0xff]
    %v250 = vld [vmem:[%s4 + $0x378] sm:$0xff]
    %v251 = vld [vmem:[%s4 + $0x380] sm:$0xff]
    %v252 = vld [vmem:[%s4 + $0x388] sm:$0xff]
    %v253 = vld [vmem:[%s4 + $0x390] sm:$0xff]
    %v254 = vld [vmem:[%s4 + $0x398] sm:$0xff]
    %v255 = vld [vmem:[%s4 + $0x3a0] sm:$0xff]
    %v256 = vld [vmem:[%s4 + $0x3a8] sm:$0xff]
    %v257 = vld [vmem:[%s4 + $0x3b0] sm:$0xff]
    %v258 = vld [vmem:[%s4 + $0x3b8] sm:$0xff]
    %v259 = vld [vmem:[%s4 + $0x3c0] sm:$0xff]
    %v260 = vld [vmem:[%s4 + $0x3c8] sm:$0xff]
    %v261 = vld [vmem:[%s4 + $0x3d0] sm:$0xff]
    %v262 = vld [vmem:[%s4 + $0x3d8] sm:$0xff]
    %v263 = vld [vmem:[%s4 + $0x3e0] sm:$0xff]
    %v264 = vld [vmem:[%s4 + $0x3e8] sm:$0xff]
    %v265 = vld [vmem:[%s4 + $0x3f0] sm:$0xff]
    %v266 = vld [vmem:[%s4 + $0x3f8] sm:$0xff]
    %v267 = vld [vmem:[%s4 + $0x400] sm:$0xff]
    %v268 = vld [vmem:[%s4 + $0x408] sm:$0xff]
    %v269 = vld [vmem:[%s4 + $0x410] sm:$0xff]
    %v270 = vld [vmem:[%s4 + $0x418] sm:$0xff]
    %v271 = vld [vmem:[%s4 + $0x420] sm:$0xff]
    %v272 = vld [vmem:[%s4 + $0x428] sm:$0xff]
    %v273 = vld [vmem:[%s4 + $0x430] sm:$0xff]
    %v274 = vld [vmem:[%s4 + $0x438] sm:$0xff]
    %v275 = vld [vmem:[%s4 + $0x440] sm:$0xff]
    %v276 = vld [vmem:[%s4 + $0x448] sm:$0xff]
    %v277 = vld [vmem:[%s4 + $0x450] sm:$0xff]
    %v278 = vld [vmem:[%s4 + $0x458] sm:$0xff]
    %v279 = vld [vmem:[%s4 + $0x460] sm:$0xff]
    %v280 = vld [vmem:[%s4 + $0x468] sm:$0xff]
    %v281 = vld [vmem:[%s4 + $0x470] sm:$0xff]
    %v282 = vld [vmem:[%s4 + $0x478] sm:$0xff]
    %v283 = vld [vmem:[%s4 + $0x480] sm:$0xff]
    %v284 = vld [vmem:[%s4 + $0x488] sm:$0xff]
    %v285 = vld [vmem:[%s4 + $0x490] sm:$0xff]
    %v286 = vld [vmem:[%s4 + $0x498] sm:$0xff]
    %v287 = vld [vmem:[%s4 + $0x4a0] sm:$0xff]
    %v288 = vld [vmem:[%s4 + $0x4a8] sm:$0xff]
    %v289 = vld [vmem:[%s4 + $0x4b0] sm:$0xff]
    %v290 = vld [vmem:[%s4 + $0x4b8] sm:$0xff]
    %v291 = vld [vmem:[%s4 + $0x4c0] sm:$0xff]
    %v292 = vld [vmem:[%s4 + $0x4c8] sm:$0xff]
    %v293 = vld [vmem:[%s4 + $0x4d0] sm:$0xff]
    %v294 = vld [vmem:[%s4 + $0x4d8] sm:$0xff]
    %v295 = vld [vmem:[%s4 + $0x4e0] sm:$0xff]
    %v296 = vld [vmem:[%s4 + $0x4e8] sm:$0xff]
    %v297 = vld [vmem:[%s4 + $0x4f0] sm:$0xff]
    %v298 = vld [vmem:[%s4 + $0x4f8] sm:$0xff]
    %v299 = vld [vmem:[%s4 + $0x500] sm:$0xff]
    %v300 = vld [vmem:[%s4 + $0x508] sm:$0xff]
    %v301 = vld [vmem:[%s4 + $0x510] sm:$0xff]
    %v302 = vld [vmem:[%s4 + $0x518] sm:$0xff]
    %v303 = vld [vmem:[%s4 + $0x520] sm:$0xff]
    %v304 = vld [vmem:[%s4 + $0x528] sm:$0xff]
    %v305 = vld [vmem:[%s4 + $0x530] sm:$0xff]
    %v306 = vld [vmem:[%s4 + $0x538] sm:$0xff]
    %v307 = vld [vmem:[%s4 + $0x540] sm:$0xff]
    %v308 = vld [vmem:[%s4 + $0x548] sm:$0xff]
    %v309 = vld [vmem:[%s4 + $0x550] sm:$0xff]
    %v310 = vld [vmem:[%s4 + $0x558] sm:$0xff]
    %v311 = vld [vmem:[%s4 + $0x560] sm:$0xff]
    %v312 = vld [vmem:[%s4 + $0x568] sm:$0xff]
    %v313 = vld [vmem:[%s4 + $0x570] sm:$0xff]
    %v314 = vld [vmem:[%s4 + $0x578] sm:$0xff]
    %v315 = vld [vmem:[%s4 + $0x580] sm:$0xff]
    %v316 = vld [vmem:[%s4 + $0x588] sm:$0xff]
    %v317 = vld [vmem:[%s4 + $0x590] sm:$0xff]
    %v318 = vld [vmem:[%s4 + $0x598] sm:$0xff]
    %v319 = vld [vmem:[%s4 + $0x5a0] sm:$0xff]
    %v320 = vld [vmem:[%s4 + $0x5a8] sm:$0xff]
    %v321 = vld [vmem:[%s4 + $0x5b0] sm:$0xff]
    %v322 = vld [vmem:[%s4 + $0x5b8] sm:$0xff]
    %v323 = vld [vmem:[%s4 + $0x5c0] sm:$0xff]
    %v324 = vld [vmem:[%s4 + $0x5c8] sm:$0xff]
    %v325 = vld [vmem:[%s4 + $0x5d0] sm:$0xff]
    %v326 = vld [vmem:[%s4 + $0x5d8] sm:$0xff]
    %v327 = vld [vmem:[%s4 + $0x5e0] sm:$0xff]
    %v328 = vld [vmem:[%s4 + $0x5e8] sm:$0xff]
    %v329 = vld [vmem:[%s4 + $0x5f0] sm:$0xff]
    %v330 = vld [vmem:[%s4 + $0x5f8] sm:$0xff]
    %v331 = vld [vmem:[%s4 + $0x600] sm:$0xff]
    %v332 = vld [vmem:[%s4 + $0x608] sm:$0xff]
    %v333 = vld [vmem:[%s4 + $0x610] sm:$0xff]
    %v334 = vld [vmem:[%s4 + $0x618] sm:$0xff]
    %v335 = vld [vmem:[%s4 + $0x620] sm:$0xff]
    %v336 = vld [vmem:[%s4 + $0x628] sm:$0xff]
    %v337 = vld [vmem:[%s4 + $0x630] sm:$0xff]
    %v338 = vld [vmem:[%s4 + $0x638] sm:$0xff]
    %v339 = vld [vmem:[%s4 + $0x640] sm:$0xff]
    %v340 = vld [vmem:[%s4 + $0x648] sm:$0xff]
    %v341 = vld [vmem:[%s4 + $0x650] sm:$0xff]
    %v342 = vld [vmem:[%s4 + $0x658] sm:$0xff]
    %v343 = vld [vmem:[%s4 + $0x660] sm:$0xff]
    %v344 = vld [vmem:[%s4 + $0x668] sm:$0xff]
    %v345 = vld [vmem:[%s4 + $0x670] sm:$0xff]
    %v346 = vld [vmem:[%s4 + $0x678] sm:$0xff]
    %v347 = vld [vmem:[%s4 + $0x680] sm:$0xff]
    %v348 = vld [vmem:[%s4 + $0x688] sm:$0xff]
    %v349 = vld [vmem:[%s4 + $0x690] sm:$0xff]
    %v350 = vld [vmem:[%s4 + $0x698] sm:$0xff]
    %v351 = vld [vmem:[%s4 + $0x6a0] sm:$0xff]
    %v352 = vld [vmem:[%s4 + $0x6a8] sm:$0xff]
    %v353 = vld [vmem:[%s4 + $0x6b0] sm:$0xff]
    %v354 = vld [vmem:[%s4 + $0x6b8] sm:$0xff]
    %v355 = vld [vmem:[%s4 + $0x6c0] sm:$0xff]
    %v356 = vld [vmem:[%s4 + $0x6c8] sm:$0xff]
    %v357 = vld [vmem:[%s4 + $0x6d0] sm:$0xff]
    %v358 = vld [vmem:[%s4 + $0x6d8] sm:$0xff]
    %v359 = vld [vmem:[%s4 + $0x6e0] sm:$0xff]
    %v360 = vld [vmem:[%s4 + $0x6e8] sm:$0xff]
    %v361 = vld [vmem:[%s4 + $0x6f0] sm:$0xff]
    %v362 = vld [vmem:[%s4 + $0x6f8] sm:$0xff]
    %v363 = vld [vmem:[%s4 + $0x700] sm:$0xff]
    %v364 = vld [vmem:[%s4 + $0x708] sm:$0xff]
    %v365 = vld [vmem:[%s4 + $0x710] sm:$0xff]
    %v366 = vld [vmem:[%s4 + $0x718] sm:$0xff]
    %v367 = vld [vmem:[%s4 + $0x720] sm:$0xff]
    %v368 = vld [vmem:[%s4 + $0x728] sm:$0xff]
    %v369 = vld [vmem:[%s4 + $0x730] sm:$0xff]
    %v370 = vld [vmem:[%s4 + $0x738] sm:$0xff]
    %v371 = vld [vmem:[%s4 + $0x740] sm:$0xff]
    %v372 = vld [vmem:[%s4 + $0x748] sm:$0xff]
    %v373 = vld [vmem:[%s4 + $0x750] sm:$0xff]
    %v374 = vld [vmem:[%s4 + $0x758] sm:$0xff]
    %v375 = vld [vmem:[%s4 + $0x760] sm:$0xff]
    %v376 = vld [vmem:[%s4 + $0x768] sm:$0xff]
    %v377 = vld [vmem:[%s4 + $0x770] sm:$0xff]
    %v378 = vld [vmem:[%s4 + $0x778] sm:$0xff]
    %v379 = vld [vmem:[%s4 + $0x780] sm:$0xff]
    %v380 = vld [vmem:[%s4 + $0x788] sm:$0xff]
    %v381 = vld [vmem:[%s4 + $0x790] sm:$0xff]
    %v382 = vld [vmem:[%s4 + $0x798] sm:$0xff]
    %v383 = vld [vmem:[%s4 + $0x7a0] sm:$0xff]
    %v384 = vld [vmem:[%s4 + $0x7a8] sm:$0xff]
    %v385 = vld [vmem:[%s4 + $0x7b0] sm:$0xff]
    %v386 = vld [vmem:[%s4 + $0x7b8] sm:$0xff]
    %v387 = vld [vmem:[%s4 + $0x7c0] sm:$0xff]
    %v388 = vld [vmem:[%s4 + $0x7c8] sm:$0xff]
    %v389 = vld [vmem:[%s4 + $0x7d0] sm:$0xff]
    %v390 = vld [vmem:[%s4 + $0x7d8] sm:$0xff]
    %v391 = vld [vmem:[%s4 + $0x7e0] sm:$0xff]
    %v392 = vld [vmem:[%s4 + $0x7e8] sm:$0xff]
    %v393 = vld [vmem:[%s4 + $0x7f0] sm:$0xff]
    %v394 = vld [vmem:[%s4 + $0x7f8] sm:$0xff]
    %v395 = vld [vmem:[%s4 + $0x800] sm:$0xff]
    %v396 = vld [vmem:[%s4 + $0x808] sm:$0xff]
    %v397 = vld [vmem:[%s4 + $0x810] sm:$0xff]
    %v398 = vld [vmem:[%s4 + $0x818] sm:$0xff]
    %v399 = vld [vmem:[%s4 + $0x820] sm:$0xff]
    %v400 = vld [vmem:[%s4 + $0x828] sm:$0xff]
    %v401 = vld [vmem:[%s4 + $0x830] sm:$0xff]
    %v402 = vld [vmem:[%s4 + $0x838] sm:$0xff]
    %v403 = vld [vmem:[%s4 + $0x840] sm:$0xff]
    %v404 = vld [vmem:[%s4 + $0x848] sm:$0xff]
    %v405 = vld [vmem:[%s4 + $0x850] sm:$0xff]
    %v406 = vld [vmem:[%s4 + $0x858] sm:$0xff]
    %v407 = vld [vmem:[%s4 + $0x860] sm:$0xff]
    %v408 = vld [vmem:[%s4 + $0x868] sm:$0xff]
    %v409 = vld [vmem:[%s4 + $0x870] sm:$0xff]
    %v410 = vld [vmem:[%s4 + $0x878] sm:$0xff]
    %v411 = vld [vmem:[%s4 + $0x880] sm:$0xff]
    %v412 = vld [vmem:[%s4 + $0x888] sm:$0xff]
    %v413 = vld [vmem:[%s4 + $0x890] sm:$0xff]
    %v414 = vld [vmem:[%s4 + $0x898] sm:$0xff]
    %v415 = vld [vmem:[%s4 + $0x8a0] sm:$0xff]
    %v416 = vld [vmem:[%s4 + $0x8a8] sm:$0xff]
    %v417 = vld [vmem:[%s4 + $0x8b0] sm:$0xff]
    %v418 = vld [vmem:[%s4 + $0x8b8] sm:$0xff]
    %v419 = vld [vmem:[%s4 + $0x8c0] sm:$0xff]
    %v420 = vld [vmem:[%s4 + $0x8c8] sm:$0xff]
    %v421 = vld [vmem:[%s4 + $0x8d0] sm:$0xff]
    %v422 = vld [vmem:[%s4 + $0x8d8] sm:$0xff]
    %v423 = vld [vmem:[%s4 + $0x8e0] sm:$0xff]
    %v424 = vld [vmem:[%s4 + $0x8e8] sm:$0xff]
    %v425 = vld [vmem:[%s4 + $0x8f0] sm:$0xff]
    %v426 = vld [vmem:[%s4 + $0x8f8] sm:$0xff]
    %v427 = vld [vmem:[%s4 + $0x900] sm:$0xff]
    %v428 = vld [vmem:[%s4 + $0x908] sm:$0xff]
    %v429 = vld [vmem:[%s4 + $0x910] sm:$0xff]
    %v430 = vld [vmem:[%s4 + $0x918] sm:$0xff]
    %v431 = vld [vmem:[%s4 + $0x920] sm:$0xff]
    %v432 = vld [vmem:[%s4 + $0x928] sm:$0xff]
    %v433 = vld [vmem:[%s4 + $0x930] sm:$0xff]
    %v434 = vld [vmem:[%s4 + $0x938] sm:$0xff]
    %v435 = vld [vmem:[%s4 + $0x940] sm:$0xff]
    %v436 = vld [vmem:[%s4 + $0x948] sm:$0xff]
    %v437 = vld [vmem:[%s4 + $0x950] sm:$0xff]
    %v438 = vld [vmem:[%s4 + $0x958] sm:$0xff]
    %v439 = vld [vmem:[%s4 + $0x960] sm:$0xff]
    %v440 = vld [vmem:[%s4 + $0x968] sm:$0xff]
    %v441 = vld [vmem:[%s4 + $0x970] sm:$0xff]
    %v442 = vld [vmem:[%s4 + $0x978] sm:$0xff]
    %v443 = vld [vmem:[%s4 + $0x980] sm:$0xff]
    %v444 = vld [vmem:[%s4 + $0x988] sm:$0xff]
    %v445 = vld [vmem:[%s4 + $0x990] sm:$0xff]
    %v446 = vld [vmem:[%s4 + $0x998] sm:$0xff]
    %v447 = vld [vmem:[%s4 + $0x9a0] sm:$0xff]
    %v448 = vld [vmem:[%s4 + $0x9a8] sm:$0xff]
    %v449 = vld [vmem:[%s4 + $0x9b0] sm:$0xff]
    %v450 = vld [vmem:[%s4 + $0x9b8] sm:$0xff]
    %v451 = vld [vmem:[%s4 + $0x9c0] sm:$0xff]
    %v452 = vld [vmem:[%s4 + $0x9c8] sm:$0xff]
    %v453 = vld [vmem:[%s4 + $0x9d0] sm:$0xff]
    %v454 = vld [vmem:[%s4 + $0x9d8] sm:$0xff]
    %v455 = vld [vmem:[%s4 + $0x9e0] sm:$0xff]
    %v456 = vld [vmem:[%s4 + $0x9e8] sm:$0xff]
    %v457 = vld [vmem:[%s4 + $0x9f0] sm:$0xff]
    %v458 = vld [vmem:[%s4 + $0x9f8] sm:$0xff]
    %v459 = vld [vmem:[%s4 + $0xa00] sm:$0xff]
    %v460 = vld [vmem:[%s4 + $0xa08] sm:$0xff]
    %v461 = vld [vmem:[%s4 + $0xa10] sm:$0xff]
    %v462 = vld [vmem:[%s4 + $0xa18] sm:$0xff]
    %v463 = vld [vmem:[%s4 + $0xa20] sm:$0xff]
    %v464 = vld [vmem:[%s4 + $0xa28] sm:$0xff]
    %v465 = vld [vmem:[%s4 + $0xa30] sm:$0xff]
    %v466 = vld [vmem:[%s4 + $0xa38] sm:$0xff]
    %v467 = vld [vmem:[%s4 + $0xa40] sm:$0xff]
    %v468 = vld [vmem:[%s4 + $0xa48] sm:$0xff]
    %v469 = vld [vmem:[%s4 + $0xa50] sm:$0xff]
    %v470 = vld [vmem:[%s4 + $0xa58] sm:$0xff]
    %v471 = vld [vmem:[%s4 + $0xa60] sm:$0xff]
    %v472 = vld [vmem:[%s4 + $0xa68] sm:$0xff]
    %v473 = vld [vmem:[%s4 + $0xa70] sm:$0xff]
    %v474 = vld [vmem:[%s4 + $0xa78] sm:$0xff]
    %v475 = vld [vmem:[%s4 + $0xa80] sm:$0xff]
    %v476 = vld [vmem:[%s4 + $0xa88] sm:$0xff]
    %v477 = vld [vmem:[%s4 + $0xa90] sm:$0xff]
    %v478 = vld [vmem:[%s4 + $0xa98] sm:$0xff]
    %v479 = vld [vmem:[%s4 + $0xaa0] sm:$0xff]
    %v480 = vld [vmem:[%s4 + $0xaa8] sm:$0xff]
    %v481 = vld [vmem:[%s4 + $0xab0] sm:$0xff]
    %v482 = vld [vmem:[%s4 + $0xab8] sm:$0xff]
    %v483 = vld [vmem:[%s4 + $0xac0] sm:$0xff]
    %v484 = vld [vmem:[%s4 + $0xac8] sm:$0xff]
    %v485 = vld [vmem:[%s4 + $0xad0] sm:$0xff]
    %v486 = vld [vmem:[%s4 + $0xad8] sm:$0xff]
    %v487 = vld [vmem:[%s4 + $0xae0] sm:$0xff]
    %v488 = vld [vmem:[%s4 + $0xae8] sm:$0xff]
    %v489 = vld [vmem:[%s4 + $0xaf0] sm:$0xff]
    %v490 = vld [vmem:[%s4 + $0xaf8] sm:$0xff]
    %v491 = vld [vmem:[%s4 + $0xb00] sm:$0xff]
    %v492 = vld [vmem:[%s4 + $0xb08] sm:$0xff]
    %v493 = vld [vmem:[%s4 + $0xb10] sm:$0xff]
    %v494 = vld [vmem:[%s4 + $0xb18] sm:$0xff]
    %v495 = vld [vmem:[%s4 + $0xb20] sm:$0xff]
    %v496 = vld [vmem:[%s4 + $0xb28] sm:$0xff]
    %v497 = vld [vmem:[%s4 + $0xb30] sm:$0xff]
    %v498 = vld [vmem:[%s4 + $0xb38] sm:$0xff]
    %v499 = vld [vmem:[%s4 + $0xb40] sm:$0xff]
    %v500 = vld [vmem:[%s4 + $0xb48] sm:$0xff]
    %v501 = vld [vmem:[%s4 + $0xb50] sm:$0xff]
    %v502 = vld [vmem:[%s4 + $0xb58] sm:$0xff]
    %v503 = vld [vmem:[%s4 + $0xb60] sm:$0xff]
    %v504 = vld [vmem:[%s4 + $0xb68] sm:$0xff]
    %v505 = vld [vmem:[%s4 + $0xb70] sm:$0xff]
    %v506 = vld [vmem:[%s4 + $0xb78] sm:$0xff]
    %v507 = vld [vmem:[%s4 + $0xb80] sm:$0xff]
    %v508 = vld [vmem:[%s4 + $0xb88] sm:$0xff]
    %v509 = vld [vmem:[%s4 + $0xb90] sm:$0xff]
    %v510 = vld [vmem:[%s4 + $0xb98] sm:$0xff]
    %v511 = vld [vmem:[%s4 + $0xba0] sm:$0xff]
    %v512 = vld [vmem:[%s4 + $0xba8] sm:$0xff]
    %v513 = vld [vmem:[%s4 + $0xbb0] sm:$0xff]
    %v514 = vld [vmem:[%s4 + $0xbb8] sm:$0xff]
    %v515 = vld [vmem:[%s4 + $0xbc0] sm:$0xff]
    %v516 = vld [vmem:[%s4 + $0xbc8] sm:$0xff]
    %v517 = vld [vmem:[%s4 + $0xbd0] sm:$0xff]
    %v518 = vld [vmem:[%s4 + $0xbd8] sm:$0xff]
    %v519 = vld [vmem:[%s4 + $0xbe0] sm:$0xff]
    %v520 = vld [vmem:[%s4 + $0xbe8] sm:$0xff]
    %v521 = vld [vmem:[%s4 + $0xbf0] sm:$0xff]
    %v522 = vld [vmem:[%s4 + $0xbf8] sm:$0xff]
    %v523 = vld [vmem:[%s4 + $0xc00] sm:$0xff]
    %v524 = vld [vmem:[%s4 + $0xc08] sm:$0xff]
    %v525 = vld [vmem:[%s4 + $0xc10] sm:$0xff]
    %v526 = vld [vmem:[%s4 + $0xc18] sm:$0xff]
    %v527 = vld [vmem:[%s4 + $0xc20] sm:$0xff]
    %v528 = vld [vmem:[%s4 + $0xc28] sm:$0xff]
    %v529 = vld [vmem:[%s4 + $0xc30] sm:$0xff]
    %v530 = vld [vmem:[%s4 + $0xc38] sm:$0xff]
    %v531 = vld [vmem:[%s4 + $0xc40] sm:$0xff]
    %v532 = vld [vmem:[%s4 + $0xc48] sm:$0xff]
    %v533 = vld [vmem:[%s4 + $0xc50] sm:$0xff]
    %v534 = vld [vmem:[%s4 + $0xc58] sm:$0xff]
    %v535 = vld [vmem:[%s4 + $0xc60] sm:$0xff]
    %v536 = vld [vmem:[%s4 + $0xc68] sm:$0xff]
    %v537 = vld [vmem:[%s4 + $0xc70] sm:$0xff]
    %v538 = vld [vmem:[%s4 + $0xc78] sm:$0xff]
    %v539 = vld [vmem:[%s5] sm:$0xff]
    %v540 = vld [vmem:[%s5 + $0x8] sm:$0xff]
    %v541 = vld [vmem:[%s5 + $0x10] sm:$0xff]
    %v542 = vld [vmem:[%s5 + $0x18] sm:$0x1]
    %v547 = vlaneseq
    %v548 = vshrl.u32 %v547, 7
    %v549 = vsub.s32 0, %v548
    %v550 = vrot.slane %v539, %v549
    %v551 = vlaneseq
    %v552 = vshrl.u32 %v551, 7
    %v553 = vsub.s32 1, %v552
    %v554 = vrot.slane %v539, %v553
    %v555 = vlaneseq
    %v556 = vshrl.u32 %v555, 7
    %v557 = vsub.s32 2, %v556
    %v558 = vrot.slane %v539, %v557
    %v559 = vlaneseq
    %v560 = vshrl.u32 %v559, 7
    %v561 = vsub.s32 3, %v560
    %v562 = vrot.slane %v539, %v561
    %v563 = vlaneseq
    %v564 = vshrl.u32 %v563, 7
    %v565 = vsub.s32 4, %v564
    %v566 = vrot.slane %v539, %v565
    %v567 = vlaneseq
    %v568 = vshrl.u32 %v567, 7
    %v569 = vsub.s32 5, %v568
    %v570 = vrot.slane %v539, %v569
    %v571 = vlaneseq
    %v572 = vshrl.u32 %v571, 7
    %v573 = vsub.s32 6, %v572
    %v574 = vrot.slane %v539, %v573
    %v575 = vlaneseq
    %v576 = vshrl.u32 %v575, 7
    %v577 = vsub.s32 7, %v576
    %v578 = vrot.slane %v539, %v577
    %v579 = vlaneseq
    %v580 = vshrl.u32 %v579, 7
    %v581 = vsub.s32 0, %v580
    %v582 = vrot.slane %v540, %v581
    %v583 = vlaneseq
    %v584 = vshrl.u32 %v583, 7
    %v585 = vsub.s32 1, %v584
    %v586 = vrot.slane %v540, %v585
    %v587 = vlaneseq
    %v588 = vshrl.u32 %v587, 7
    %v589 = vsub.s32 2, %v588
    %v590 = vrot.slane %v540, %v589
    %v591 = vlaneseq
    %v592 = vshrl.u32 %v591, 7
    %v593 = vsub.s32 3, %v592
    %v594 = vrot.slane %v540, %v593
    %v595 = vlaneseq
    %v596 = vshrl.u32 %v595, 7
    %v597 = vsub.s32 4, %v596
    %v598 = vrot.slane %v540, %v597
    %v599 = vlaneseq
    %v600 = vshrl.u32 %v599, 7
    %v601 = vsub.s32 5, %v600
    %v602 = vrot.slane %v540, %v601
    %v603 = vlaneseq
    %v604 = vshrl.u32 %v603, 7
    %v605 = vsub.s32 6, %v604
    %v606 = vrot.slane %v540, %v605
    %v607 = vlaneseq
    %v608 = vshrl.u32 %v607, 7
    %v609 = vsub.s32 7, %v608
    %v610 = vrot.slane %v540, %v609
    %v611 = vlaneseq
    %v612 = vshrl.u32 %v611, 7
    %v613 = vsub.s32 0, %v612
    %v614 = vrot.slane %v541, %v613
    %v615 = vlaneseq
    %v616 = vshrl.u32 %v615, 7
    %v617 = vsub.s32 1, %v616
    %v618 = vrot.slane %v541, %v617
    %v619 = vlaneseq
    %v620 = vshrl.u32 %v619, 7
    %v621 = vsub.s32 2, %v620
    %v622 = vrot.slane %v541, %v621
    %v623 = vlaneseq
    %v624 = vshrl.u32 %v623, 7
    %v625 = vsub.s32 3, %v624
    %v626 = vrot.slane %v541, %v625
    %v627 = vlaneseq
    %v628 = vshrl.u32 %v627, 7
    %v629 = vsub.s32 4, %v628
    %v630 = vrot.slane %v541, %v629
    %v631 = vlaneseq
    %v632 = vshrl.u32 %v631, 7
    %v633 = vsub.s32 5, %v632
    %v634 = vrot.slane %v541, %v633
    %v635 = vlaneseq
    %v636 = vshrl.u32 %v635, 7
    %v637 = vsub.s32 6, %v636
    %v638 = vrot.slane %v541, %v637
    %v639 = vlaneseq
    %v640 = vshrl.u32 %v639, 7
    %v641 = vsub.s32 7, %v640
    %v642 = vrot.slane %v541, %v641
    %v643 = vlaneseq
    %v644 = vshrl.u32 %v643, 7
    %v645 = vsub.s32 0, %v644
    %v646 = vrot.slane %v542, %v645
    %672 = vmatprep.subr.mxu0 %v515
    %673 = vmatpush1.msra.mxu0 %v514
    %674 = vmatprep.subr.mxu0 %v490
    %675 = vmatpush1.msra.mxu0 %v489
    %676 = vmatprep.subr.mxu0 %v465
    %677 = vmatpush1.msra.mxu0 %v464
    %678 = vmatprep.subr.mxu0 %v440
    %679 = vmatpush1.msra.mxu0 %v439
    %680 = vmatprep.subr.mxu0 %v415
    %681 = vmatpush1.msra.mxu0 %v414
    %682 = vmatprep.subr.mxu0 %v390
    %683 = vmatpush1.msra.mxu0 %v389
    %684 = vmatprep.subr.mxu0 %v365
    %685 = vmatpush1.msra.mxu0 %v364
    %686 = vmatprep.subr.mxu0 %v340
    %687 = vmatpush1.msra.mxu0 %v339
    %688 = vmatprep.subr.mxu0 %v315
    %689 = vmatpush1.msra.mxu0 %v314
    %690 = vmatprep.subr.mxu0 %v290
    %691 = vmatpush1.msra.mxu0 %v289
    %692 = vmatprep.subr.mxu0 %v265
    %693 = vmatpush1.msra.mxu0 %v264
    %694 = vmatprep.subr.mxu0 %v240
    %695 = vmatpush1.msra.mxu0 %v239
    %696 = vmatprep.subr.mxu0 %v215
    %697 = vmatpush1.msra.mxu0 %v214
    %698 = vmatprep.subr.mxu0 %v190
    %699 = vmatpush1.msra.mxu0 %v189
    %700 = vmatprep.subr.mxu0 %v165
    %701 = vmatpush1.msra.mxu0 %v164
    %702 = vmatprep.subr.mxu0 %v140
    %703 = vmatpush1.msra.mxu0 %v139
    %704 = vmatprep.subr.mxu0 0.0
    %705 = vmatpush2.msra.mxu0 0.0
    %706 = vmatprep.subr.mxu0 0.0
    %707 = vmatpush2.msra.mxu0 0.0
    %708 = vmatprep.subr.mxu0 0.0
    %709 = vmatpush2.msra.mxu0 0.0
    %710 = vmatprep.subr.mxu0 0.0
    %711 = vmatpush2.msra.mxu0 0.0
    %712 = vmatprep.subr.mxu0 0.0
    %713 = vmatpush2.msra.mxu0 0.0
    %714 = vmatprep.subr.mxu0 0.0
    %715 = vmatpush2.msra.mxu0 0.0
    %716 = vmatprep.subr.mxu0 0.0
    %717 = vmatpush2.msra.mxu0 0.0
    %718 = vmatprep.subr.mxu0 0.0
    %719 = vmatpush2.msra.mxu0 0.0
    %720 = vmatprep.subr.mxu0 0.0
    %721 = vmatpush2.msra.mxu0 0.0
    %722 = vmatprep.subr.mxu0 0.0
    %723 = vmatpush2.msra.mxu0 0.0
    %724 = vmatprep.subr.mxu0 0.0
    %725 = vmatpush2.msra.mxu0 0.0
    %726 = vmatprep.subr.mxu0 0.0
    %727 = vmatpush2.msra.mxu0 0.0
    %728 = vmatprep.subr.mxu0 0.0
    %729 = vmatpush2.msra.mxu0 0.0
    %730 = vmatprep.subr.mxu0 0.0
    %731 = vmatpush2.msra.mxu0 0.0
    %732 = vmatprep.subr.mxu0 0.0
    %733 = vmatpush2.msra.mxu0 0.0
    %734 = vmatprep.subr.mxu0 0.0
    %735 = vmatpush2.msra.mxu0 0.0
    %736 = vmatprep.mubr.f32.mxu0 0.0
    %737 = vmatmul.mubr.f32.gmra.mxu0 %v138
    %v738 = vpop.f32.mrf.mxu0
    %v739 = vadd.f32 %v550, %v738
    %v740 = vpop.f32.mrf.mxu0
    %v741 = vadd.f32 %v554, %v740
    %742 = vdwg.mxu0
    %743 = vmatprep.subr.mxu0 %v517
    %744 = vmatpush1.msra.mxu0 %v516
    %745 = vmatprep.subr.mxu0 %v492
    %746 = vmatpush1.msra.mxu0 %v491
    %747 = vmatprep.subr.mxu0 %v467
    %748 = vmatpush1.msra.mxu0 %v466
    %749 = vmatprep.subr.mxu0 %v442
    %750 = vmatpush1.msra.mxu0 %v441
    %751 = vmatprep.subr.mxu0 %v417
    %752 = vmatpush1.msra.mxu0 %v416
    %753 = vmatprep.subr.mxu0 %v392
    %754 = vmatpush1.msra.mxu0 %v391
    %755 = vmatprep.subr.mxu0 %v367
    %756 = vmatpush1.msra.mxu0 %v366
    %757 = vmatprep.subr.mxu0 %v342
    %758 = vmatpush1.msra.mxu0 %v341
    %759 = vmatprep.subr.mxu0 %v317
    %760 = vmatpush1.msra.mxu0 %v316
    %761 = vmatprep.subr.mxu0 %v292
    %762 = vmatpush1.msra.mxu0 %v291
    %763 = vmatprep.subr.mxu0 %v267
    %764 = vmatpush1.msra.mxu0 %v266
    %765 = vmatprep.subr.mxu0 %v242
    %766 = vmatpush1.msra.mxu0 %v241
    %767 = vmatprep.subr.mxu0 %v217
    %768 = vmatpush1.msra.mxu0 %v216
    %769 = vmatprep.subr.mxu0 %v192
    %770 = vmatpush1.msra.mxu0 %v191
    %771 = vmatprep.subr.mxu0 %v167
    %772 = vmatpush1.msra.mxu0 %v166
    %773 = vmatprep.subr.mxu0 %v142
    %774 = vmatpush1.msra.mxu0 %v141
    %775 = vmatprep.subr.mxu0 0.0
    %776 = vmatpush2.msra.mxu0 0.0
    %777 = vmatprep.subr.mxu0 0.0
    %778 = vmatpush2.msra.mxu0 0.0
    %779 = vmatprep.subr.mxu0 0.0
    %780 = vmatpush2.msra.mxu0 0.0
    %781 = vmatprep.subr.mxu0 0.0
    %782 = vmatpush2.msra.mxu0 0.0
    %783 = vmatprep.subr.mxu0 0.0
    %784 = vmatpush2.msra.mxu0 0.0
    %785 = vmatprep.subr.mxu0 0.0
    %786 = vmatpush2.msra.mxu0 0.0
    %787 = vmatprep.subr.mxu0 0.0
    %788 = vmatpush2.msra.mxu0 0.0
    %789 = vmatprep.subr.mxu0 0.0
    %790 = vmatpush2.msra.mxu0 0.0
    %791 = vmatprep.subr.mxu0 0.0
    %792 = vmatpush2.msra.mxu0 0.0
    %793 = vmatprep.subr.mxu0 0.0
    %794 = vmatpush2.msra.mxu0 0.0
    %795 = vmatprep.subr.mxu0 0.0
    %796 = vmatpush2.msra.mxu0 0.0
    %797 = vmatprep.subr.mxu0 0.0
    %798 = vmatpush2.msra.mxu0 0.0
    %799 = vmatprep.subr.mxu0 0.0
    %800 = vmatpush2.msra.mxu0 0.0
    %801 = vmatprep.subr.mxu0 0.0
    %802 = vmatpush2.msra.mxu0 0.0
    %803 = vmatprep.subr.mxu0 0.0
    %804 = vmatpush2.msra.mxu0 0.0
    %805 = vmatprep.subr.mxu0 0.0
    %806 = vmatpush2.msra.mxu0 0.0
    %807 = vmatprep.mubr.f32.mxu0 0.0
    %808 = vmatmul.mubr.f32.gmra.mxu0 %v138
    %v809 = vpop.f32.mrf.mxu0
    %v810 = vadd.f32 %v558, %v809
    %v811 = vpop.f32.mrf.mxu0
    %v812 = vadd.f32 %v562, %v811
    %813 = vdwg.mxu0
    %814 = vmatprep.subr.mxu0 %v519
    %815 = vmatpush1.msra.mxu0 %v518
    %816 = vmatprep.subr.mxu0 %v494
    %817 = vmatpush1.msra.mxu0 %v493
    %818 = vmatprep.subr.mxu0 %v469
    %819 = vmatpush1.msra.mxu0 %v468
    %820 = vmatprep.subr.mxu0 %v444
    %821 = vmatpush1.msra.mxu0 %v443
    %822 = vmatprep.subr.mxu0 %v419
    %823 = vmatpush1.msra.mxu0 %v418
    %824 = vmatprep.subr.mxu0 %v394
    %825 = vmatpush1.msra.mxu0 %v393
    %826 = vmatprep.subr.mxu0 %v369
    %827 = vmatpush1.msra.mxu0 %v368
    %828 = vmatprep.subr.mxu0 %v344
    %829 = vmatpush1.msra.mxu0 %v343
    %830 = vmatprep.subr.mxu0 %v319
    %831 = vmatpush1.msra.mxu0 %v318
    %832 = vmatprep.subr.mxu0 %v294
    %833 = vmatpush1.msra.mxu0 %v293
    %834 = vmatprep.subr.mxu0 %v269
    %835 = vmatpush1.msra.mxu0 %v268
    %836 = vmatprep.subr.mxu0 %v244
    %837 = vmatpush1.msra.mxu0 %v243
    %838 = vmatprep.subr.mxu0 %v219
    %839 = vmatpush1.msra.mxu0 %v218
    %840 = vmatprep.subr.mxu0 %v194
    %841 = vmatpush1.msra.mxu0 %v193
    %842 = vmatprep.subr.mxu0 %v169
    %843 = vmatpush1.msra.mxu0 %v168
    %844 = vmatprep.subr.mxu0 %v144
    %845 = vmatpush1.msra.mxu0 %v143
    %846 = vmatprep.subr.mxu0 0.0
    %847 = vmatpush2.msra.mxu0 0.0
    %848 = vmatprep.subr.mxu0 0.0
    %849 = vmatpush2.msra.mxu0 0.0
    %850 = vmatprep.subr.mxu0 0.0
    %851 = vmatpush2.msra.mxu0 0.0
    %852 = vmatprep.subr.mxu0 0.0
    %853 = vmatpush2.msra.mxu0 0.0
    %854 = vmatprep.subr.mxu0 0.0
    %855 = vmatpush2.msra.mxu0 0.0
    %856 = vmatprep.subr.mxu0 0.0
    %857 = vmatpush2.msra.mxu0 0.0
    %858 = vmatprep.subr.mxu0 0.0
    %859 = vmatpush2.msra.mxu0 0.0
    %860 = vmatprep.subr.mxu0 0.0
    %861 = vmatpush2.msra.mxu0 0.0
    %862 = vmatprep.subr.mxu0 0.0
    %863 = vmatpush2.msra.mxu0 0.0
    %864 = vmatprep.subr.mxu0 0.0
    %865 = vmatpush2.msra.mxu0 0.0
    %866 = vmatprep.subr.mxu0 0.0
    %867 = vmatpush2.msra.mxu0 0.0
    %868 = vmatprep.subr.mxu0 0.0
    %869 = vmatpush2.msra.mxu0 0.0
    %870 = vmatprep.subr.mxu0 0.0
    %871 = vmatpush2.msra.mxu0 0.0
    %872 = vmatprep.subr.mxu0 0.0
    %873 = vmatpush2.msra.mxu0 0.0
    %874 = vmatprep.subr.mxu0 0.0
    %875 = vmatpush2.msra.mxu0 0.0
    %876 = vmatprep.subr.mxu0 0.0
    %877 = vmatpush2.msra.mxu0 0.0
    %878 = vmatprep.mubr.f32.mxu0 0.0
    %879 = vmatmul.mubr.f32.gmra.mxu0 %v138
    %v880 = vpop.f32.mrf.mxu0
    %v881 = vadd.f32 %v566, %v880
    %v882 = vpop.f32.mrf.mxu0
    %v883 = vadd.f32 %v570, %v882
    %884 = vdwg.mxu0
    %885 = vmatprep.subr.mxu0 %v521
    %886 = vmatpush1.msra.mxu0 %v520
    %887 = vmatprep.subr.mxu0 %v496
    %888 = vmatpush1.msra.mxu0 %v495
    %889 = vmatprep.subr.mxu0 %v471
    %890 = vmatpush1.msra.mxu0 %v470
    %891 = vmatprep.subr.mxu0 %v446
    %892 = vmatpush1.msra.mxu0 %v445
    %893 = vmatprep.subr.mxu0 %v421
    %894 = vmatpush1.msra.mxu0 %v420
    %895 = vmatprep.subr.mxu0 %v396
    %896 = vmatpush1.msra.mxu0 %v395
    %897 = vmatprep.subr.mxu0 %v371
    %898 = vmatpush1.msra.mxu0 %v370
    %899 = vmatprep.subr.mxu0 %v346
    %900 = vmatpush1.msra.mxu0 %v345
    %901 = vmatprep.subr.mxu0 %v321
    %902 = vmatpush1.msra.mxu0 %v320
    %903 = vmatprep.subr.mxu0 %v296
    %904 = vmatpush1.msra.mxu0 %v295
    %905 = vmatprep.subr.mxu0 %v271
    %906 = vmatpush1.msra.mxu0 %v270
    %907 = vmatprep.subr.mxu0 %v246
    %908 = vmatpush1.msra.mxu0 %v245
    %909 = vmatprep.subr.mxu0 %v221
    %910 = vmatpush1.msra.mxu0 %v220
    %911 = vmatprep.subr.mxu0 %v196
    %912 = vmatpush1.msra.mxu0 %v195
    %913 = vmatprep.subr.mxu0 %v171
    %914 = vmatpush1.msra.mxu0 %v170
    %915 = vmatprep.subr.mxu0 %v146
    %916 = vmatpush1.msra.mxu0 %v145
    %917 = vmatprep.subr.mxu0 0.0
    %918 = vmatpush2.msra.mxu0 0.0
    %919 = vmatprep.subr.mxu0 0.0
    %920 = vmatpush2.msra.mxu0 0.0
    %921 = vmatprep.subr.mxu0 0.0
    %922 = vmatpush2.msra.mxu0 0.0
    %923 = vmatprep.subr.mxu0 0.0
    %924 = vmatpush2.msra.mxu0 0.0
    %925 = vmatprep.subr.mxu0 0.0
    %926 = vmatpush2.msra.mxu0 0.0
    %927 = vmatprep.subr.mxu0 0.0
    %928 = vmatpush2.msra.mxu0 0.0
    %929 = vmatprep.subr.mxu0 0.0
    %930 = vmatpush2.msra.mxu0 0.0
    %931 = vmatprep.subr.mxu0 0.0
    %932 = vmatpush2.msra.mxu0 0.0
    %933 = vmatprep.subr.mxu0 0.0
    %934 = vmatpush2.msra.mxu0 0.0
    %935 = vmatprep.subr.mxu0 0.0
    %936 = vmatpush2.msra.mxu0 0.0
    %937 = vmatprep.subr.mxu0 0.0
    %938 = vmatpush2.msra.mxu0 0.0
    %939 = vmatprep.subr.mxu0 0.0
    %940 = vmatpush2.msra.mxu0 0.0
    %941 = vmatprep.subr.mxu0 0.0
    %942 = vmatpush2.msra.mxu0 0.0
    %943 = vmatprep.subr.mxu0 0.0
    %944 = vmatpush2.msra.mxu0 0.0
    %945 = vmatprep.subr.mxu0 0.0
    %946 = vmatpush2.msra.mxu0 0.0
    %947 = vmatprep.subr.mxu0 0.0
    %948 = vmatpush2.msra.mxu0 0.0
    %949 = vmatprep.mubr.f32.mxu0 0.0
    %950 = vmatmul.mubr.f32.gmra.mxu0 %v138
    %v951 = vpop.f32.mrf.mxu0
    %v952 = vadd.f32 %v574, %v951
    %v953 = vpop.f32.mrf.mxu0
    %v954 = vadd.f32 %v578, %v953
    %955 = vdwg.mxu0
    %956 = vmatprep.subr.mxu0 %v523
    %957 = vmatpush1.msra.mxu0 %v522
    %958 = vmatprep.subr.mxu0 %v498
    %959 = vmatpush1.msra.mxu0 %v497
    %960 = vmatprep.subr.mxu0 %v473
    %961 = vmatpush1.msra.mxu0 %v472
    %962 = vmatprep.subr.mxu0 %v448
    %963 = vmatpush1.msra.mxu0 %v447
    %964 = vmatprep.subr.mxu0 %v423
    %965 = vmatpush1.msra.mxu0 %v422
    %966 = vmatprep.subr.mxu0 %v398
    %967 = vmatpush1.msra.mxu0 %v397
    %968 = vmatprep.subr.mxu0 %v373
    %969 = vmatpush1.msra.mxu0 %v372
    %970 = vmatprep.subr.mxu0 %v348
    %971 = vmatpush1.msra.mxu0 %v347
    %972 = vmatprep.subr.mxu0 %v323
    %973 = vmatpush1.msra.mxu0 %v322
    %974 = vmatprep.subr.mxu0 %v298
    %975 = vmatpush1.msra.mxu0 %v297
    %976 = vmatprep.subr.mxu0 %v273
    %977 = vmatpush1.msra.mxu0 %v272
    %978 = vmatprep.subr.mxu0 %v248
    %979 = vmatpush1.msra.mxu0 %v247
    %980 = vmatprep.subr.mxu0 %v223
    %981 = vmatpush1.msra.mxu0 %v222
    %982 = vmatprep.subr.mxu0 %v198
    %983 = vmatpush1.msra.mxu0 %v197
    %984 = vmatprep.subr.mxu0 %v173
    %985 = vmatpush1.msra.mxu0 %v172
    %986 = vmatprep.subr.mxu0 %v148
    %987 = vmatpush1.msra.mxu0 %v147
    %988 = vmatprep.subr.mxu0 0.0
    %989 = vmatpush2.msra.mxu0 0.0
    %990 = vmatprep.subr.mxu0 0.0
    %991 = vmatpush2.msra.mxu0 0.0
    %992 = vmatprep.subr.mxu0 0.0
    %993 = vmatpush2.msra.mxu0 0.0
    %994 = vmatprep.subr.mxu0 0.0
    %995 = vmatpush2.msra.mxu0 0.0
    %996 = vmatprep.subr.mxu0 0.0
    %997 = vmatpush2.msra.mxu0 0.0
    %998 = vmatprep.subr.mxu0 0.0
    %999 = vmatpush2.msra.mxu0 0.0
    %1000 = vmatprep.subr.mxu0 0.0
    %1001 = vmatpush2.msra.mxu0 0.0
    %1002 = vmatprep.subr.mxu0 0.0
    %1003 = vmatpush2.msra.mxu0 0.0
    %1004 = vmatprep.subr.mxu0 0.0
    %1005 = vmatpush2.msra.mxu0 0.0
    %1006 = vmatprep.subr.mxu0 0.0
    %1007 = vmatpush2.msra.mxu0 0.0
    %1008 = vmatprep.subr.mxu0 0.0
    %1009 = vmatpush2.msra.mxu0 0.0
    %1010 = vmatprep.subr.mxu0 0.0
    %1011 = vmatpush2.msra.mxu0 0.0
    %1012 = vmatprep.subr.mxu0 0.0
    %1013 = vmatpush2.msra.mxu0 0.0
    %1014 = vmatprep.subr.mxu0 0.0
    %1015 = vmatpush2.msra.mxu0 0.0
    %1016 = vmatprep.subr.mxu0 0.0
    %1017 = vmatpush2.msra.mxu0 0.0
    %1018 = vmatprep.subr.mxu0 0.0
    %1019 = vmatpush2.msra.mxu0 0.0
    %1020 = vmatprep.mubr.f32.mxu0 0.0
    %1021 = vmatmul.mubr.f32.gmra.mxu0 %v138
    %v1022 = vpop.f32.mrf.mxu0
    %v1023 = vadd.f32 %v582, %v1022
    %v1024 = vpop.f32.mrf.mxu0
    %v1025 = vadd.f32 %v586, %v1024
    %1026 = vdwg.mxu0
    %1027 = vmatprep.subr.mxu0 %v525
    %1028 = vmatpush1.msra.mxu0 %v524
    %1029 = vmatprep.subr.mxu0 %v500
    %1030 = vmatpush1.msra.mxu0 %v499
    %1031 = vmatprep.subr.mxu0 %v475
    %1032 = vmatpush1.msra.mxu0 %v474
    %1033 = vmatprep.subr.mxu0 %v450
    %1034 = vmatpush1.msra.mxu0 %v449
    %1035 = vmatprep.subr.mxu0 %v425
    %1036 = vmatpush1.msra.mxu0 %v424
    %1037 = vmatprep.subr.mxu0 %v400
    %1038 = vmatpush1.msra.mxu0 %v399
    %1039 = vmatprep.subr.mxu0 %v375
    %1040 = vmatpush1.msra.mxu0 %v374
    %1041 = vmatprep.subr.mxu0 %v350
    %1042 = vmatpush1.msra.mxu0 %v349
    %1043 = vmatprep.subr.mxu0 %v325
    %1044 = vmatpush1.msra.mxu0 %v324
    %1045 = vmatprep.subr.mxu0 %v300
    %1046 = vmatpush1.msra.mxu0 %v299
    %1047 = vmatprep.subr.mxu0 %v275
    %1048 = vmatpush1.msra.mxu0 %v274
    %1049 = vmatprep.subr.mxu0 %v250
    %1050 = vmatpush1.msra.mxu0 %v249
    %1051 = vmatprep.subr.mxu0 %v225
    %1052 = vmatpush1.msra.mxu0 %v224
    %1053 = vmatprep.subr.mxu0 %v200
    %1054 = vmatpush1.msra.mxu0 %v199
    %1055 = vmatprep.subr.mxu0 %v175
    %1056 = vmatpush1.msra.mxu0 %v174
    %1057 = vmatprep.subr.mxu0 %v150
    %1058 = vmatpush1.msra.mxu0 %v149
    %1059 = vmatprep.subr.mxu0 0.0
    %1060 = vmatpush2.msra.mxu0 0.0
    %1061 = vmatprep.subr.mxu0 0.0
    %1062 = vmatpush2.msra.mxu0 0.0
    %1063 = vmatprep.subr.mxu0 0.0
    %1064 = vmatpush2.msra.mxu0 0.0
    %1065 = vmatprep.subr.mxu0 0.0
    %1066 = vmatpush2.msra.mxu0 0.0
    %1067 = vmatprep.subr.mxu0 0.0
    %1068 = vmatpush2.msra.mxu0 0.0
    %1069 = vmatprep.subr.mxu0 0.0
    %1070 = vmatpush2.msra.mxu0 0.0
    %1071 = vmatprep.subr.mxu0 0.0
    %1072 = vmatpush2.msra.mxu0 0.0
    %1073 = vmatprep.subr.mxu0 0.0
    %1074 = vmatpush2.msra.mxu0 0.0
    %1075 = vmatprep.subr.mxu0 0.0
    %1076 = vmatpush2.msra.mxu0 0.0
    %1077 = vmatprep.subr.mxu0 0.0
    %1078 = vmatpush2.msra.mxu0 0.0
    %1079 = vmatprep.subr.mxu0 0.0
    %1080 = vmatpush2.msra.mxu0 0.0
    %1081 = vmatprep.subr.mxu0 0.0
    %1082 = vmatpush2.msra.mxu0 0.0
    %1083 = vmatprep.subr.mxu0 0.0
    %1084 = vmatpush2.msra.mxu0 0.0
    %1085 = vmatprep.subr.mxu0 0.0
    %1086 = vmatpush2.msra.mxu0 0.0
    %1087 = vmatprep.subr.mxu0 0.0
    %1088 = vmatpush2.msra.mxu0 0.0
    %1089 = vmatprep.subr.mxu0 0.0
    %1090 = vmatpush2.msra.mxu0 0.0
    %1091 = vmatprep.mubr.f32.mxu0 0.0
    %1092 = vmatmul.mubr.f32.gmra.mxu0 %v138
    %v1093 = vpop.f32.mrf.mxu0
    %v1094 = vadd.f32 %v590, %v1093
    %v1095 = vpop.f32.mrf.mxu0
    %v1096 = vadd.f32 %v594, %v1095
    %1097 = vdwg.mxu0
    %1098 = vmatprep.subr.mxu0 %v527
    %1099 = vmatpush1.msra.mxu0 %v526
    %1100 = vmatprep.subr.mxu0 %v502
    %1101 = vmatpush1.msra.mxu0 %v501
    %1102 = vmatprep.subr.mxu0 %v477
    %1103 = vmatpush1.msra.mxu0 %v476
    %1104 = vmatprep.subr.mxu0 %v452
    %1105 = vmatpush1.msra.mxu0 %v451
    %1106 = vmatprep.subr.mxu0 %v427
    %1107 = vmatpush1.msra.mxu0 %v426
    %1108 = vmatprep.subr.mxu0 %v402
    %1109 = vmatpush1.msra.mxu0 %v401
    %1110 = vmatprep.subr.mxu0 %v377
    %1111 = vmatpush1.msra.mxu0 %v376
    %1112 = vmatprep.subr.mxu0 %v352
    %1113 = vmatpush1.msra.mxu0 %v351
    %1114 = vmatprep.subr.mxu0 %v327
    %1115 = vmatpush1.msra.mxu0 %v326
    %1116 = vmatprep.subr.mxu0 %v302
    %1117 = vmatpush1.msra.mxu0 %v301
    %1118 = vmatprep.subr.mxu0 %v277
    %1119 = vmatpush1.msra.mxu0 %v276
    %1120 = vmatprep.subr.mxu0 %v252
    %1121 = vmatpush1.msra.mxu0 %v251
    %1122 = vmatprep.subr.mxu0 %v227
    %1123 = vmatpush1.msra.mxu0 %v226
    %1124 = vmatprep.subr.mxu0 %v202
    %1125 = vmatpush1.msra.mxu0 %v201
    %1126 = vmatprep.subr.mxu0 %v177
    %1127 = vmatpush1.msra.mxu0 %v176
    %1128 = vmatprep.subr.mxu0 %v152
    %1129 = vmatpush1.msra.mxu0 %v151
    %1130 = vmatprep.subr.mxu0 0.0
    %1131 = vmatpush2.msra.mxu0 0.0
    %1132 = vmatprep.subr.mxu0 0.0
    %1133 = vmatpush2.msra.mxu0 0.0
    %1134 = vmatprep.subr.mxu0 0.0
    %1135 = vmatpush2.msra.mxu0 0.0
    %1136 = vmatprep.subr.mxu0 0.0
    %1137 = vmatpush2.msra.mxu0 0.0
    %1138 = vmatprep.subr.mxu0 0.0
    %1139 = vmatpush2.msra.mxu0 0.0
    %1140 = vmatprep.subr.mxu0 0.0
    %1141 = vmatpush2.msra.mxu0 0.0
    %1142 = vmatprep.subr.mxu0 0.0
    %1143 = vmatpush2.msra.mxu0 0.0
    %1144 = vmatprep.subr.mxu0 0.0
    %1145 = vmatpush2.msra.mxu0 0.0
    %1146 = vmatprep.subr.mxu0 0.0
    %1147 = vmatpush2.msra.mxu0 0.0
    %1148 = vmatprep.subr.mxu0 0.0
    %1149 = vmatpush2.msra.mxu0 0.0
    %1150 = vmatprep.subr.mxu0 0.0
    %1151 = vmatpush2.msra.mxu0 0.0
    %1152 = vmatprep.subr.mxu0 0.0
    %1153 = vmatpush2.msra.mxu0 0.0
    %1154 = vmatprep.subr.mxu0 0.0
    %1155 = vmatpush2.msra.mxu0 0.0
    %1156 = vmatprep.subr.mxu0 0.0
    %1157 = vmatpush2.msra.mxu0 0.0
    %1158 = vmatprep.subr.mxu0 0.0
    %1159 = vmatpush2.msra.mxu0 0.0
    %1160 = vmatprep.subr.mxu0 0.0
    %1161 = vmatpush2.msra.mxu0 0.0
    %1162 = vmatprep.mubr.f32.mxu0 0.0
    %1163 = vmatmul.mubr.f32.gmra.mxu0 %v138
    %v1164 = vpop.f32.mrf.mxu0
    %v1165 = vadd.f32 %v598, %v1164
    %v1166 = vpop.f32.mrf.mxu0
    %v1167 = vadd.f32 %v602, %v1166
    %1168 = vdwg.mxu0
    %1169 = vmatprep.subr.mxu0 %v529
    %1170 = vmatpush1.msra.mxu0 %v528
    %1171 = vmatprep.subr.mxu0 %v504
    %1172 = vmatpush1.msra.mxu0 %v503
    %1173 = vmatprep.subr.mxu0 %v479
    %1174 = vmatpush1.msra.mxu0 %v478
    %1175 = vmatprep.subr.mxu0 %v454
    %1176 = vmatpush1.msra.mxu0 %v453
    %1177 = vmatprep.subr.mxu0 %v429
    %1178 = vmatpush1.msra.mxu0 %v428
    %1179 = vmatprep.subr.mxu0 %v404
    %1180 = vmatpush1.msra.mxu0 %v403
    %1181 = vmatprep.subr.mxu0 %v379
    %1182 = vmatpush1.msra.mxu0 %v378
    %1183 = vmatprep.subr.mxu0 %v354
    %1184 = vmatpush1.msra.mxu0 %v353
    %1185 = vmatprep.subr.mxu0 %v329
    %1186 = vmatpush1.msra.mxu0 %v328
    %1187 = vmatprep.subr.mxu0 %v304
    %1188 = vmatpush1.msra.mxu0 %v303
    %1189 = vmatprep.subr.mxu0 %v279
    %1190 = vmatpush1.msra.mxu0 %v278
    %1191 = vmatprep.subr.mxu0 %v254
    %1192 = vmatpush1.msra.mxu0 %v253
    %1193 = vmatprep.subr.mxu0 %v229
    %1194 = vmatpush1.msra.mxu0 %v228
    %1195 = vmatprep.subr.mxu0 %v204
    %1196 = vmatpush1.msra.mxu0 %v203
    %1197 = vmatprep.subr.mxu0 %v179
    %1198 = vmatpush1.msra.mxu0 %v178
    %1199 = vmatprep.subr.mxu0 %v154
    %1200 = vmatpush1.msra.mxu0 %v153
    %1201 = vmatprep.subr.mxu0 0.0
    %1202 = vmatpush2.msra.mxu0 0.0
    %1203 = vmatprep.subr.mxu0 0.0
    %1204 = vmatpush2.msra.mxu0 0.0
    %1205 = vmatprep.subr.mxu0 0.0
    %1206 = vmatpush2.msra.mxu0 0.0
    %1207 = vmatprep.subr.mxu0 0.0
    %1208 = vmatpush2.msra.mxu0 0.0
    %1209 = vmatprep.subr.mxu0 0.0
    %1210 = vmatpush2.msra.mxu0 0.0
    %1211 = vmatprep.subr.mxu0 0.0
    %1212 = vmatpush2.msra.mxu0 0.0
    %1213 = vmatprep.subr.mxu0 0.0
    %1214 = vmatpush2.msra.mxu0 0.0
    %1215 = vmatprep.subr.mxu0 0.0
    %1216 = vmatpush2.msra.mxu0 0.0
    %1217 = vmatprep.subr.mxu0 0.0
    %1218 = vmatpush2.msra.mxu0 0.0
    %1219 = vmatprep.subr.mxu0 0.0
    %1220 = vmatpush2.msra.mxu0 0.0
    %1221 = vmatprep.subr.mxu0 0.0
    %1222 = vmatpush2.msra.mxu0 0.0
    %1223 = vmatprep.subr.mxu0 0.0
    %1224 = vmatpush2.msra.mxu0 0.0
    %1225 = vmatprep.subr.mxu0 0.0
    %1226 = vmatpush2.msra.mxu0 0.0
    %1227 = vmatprep.subr.mxu0 0.0
    %1228 = vmatpush2.msra.mxu0 0.0
    %1229 = vmatprep.subr.mxu0 0.0
    %1230 = vmatpush2.msra.mxu0 0.0
    %1231 = vmatprep.subr.mxu0 0.0
    %1232 = vmatpush2.msra.mxu0 0.0
    %1233 = vmatprep.mubr.f32.mxu0 0.0
    %1234 = vmatmul.mubr.f32.gmra.mxu0 %v138
    %v1235 = vpop.f32.mrf.mxu0
    %v1236 = vadd.f32 %v606, %v1235
    %v1237 = vpop.f32.mrf.mxu0
    %v1238 = vadd.f32 %v610, %v1237
    %1239 = vdwg.mxu0
    %1240 = vmatprep.subr.mxu0 %v531
    %1241 = vmatpush1.msra.mxu0 %v530
    %1242 = vmatprep.subr.mxu0 %v506
    %1243 = vmatpush1.msra.mxu0 %v505
    %1244 = vmatprep.subr.mxu0 %v481
    %1245 = vmatpush1.msra.mxu0 %v480
    %1246 = vmatprep.subr.mxu0 %v456
    %1247 = vmatpush1.msra.mxu0 %v455
    %1248 = vmatprep.subr.mxu0 %v431
    %1249 = vmatpush1.msra.mxu0 %v430
    %1250 = vmatprep.subr.mxu0 %v406
    %1251 = vmatpush1.msra.mxu0 %v405
    %1252 = vmatprep.subr.mxu0 %v381
    %1253 = vmatpush1.msra.mxu0 %v380
    %1254 = vmatprep.subr.mxu0 %v356
    %1255 = vmatpush1.msra.mxu0 %v355
    %1256 = vmatprep.subr.mxu0 %v331
    %1257 = vmatpush1.msra.mxu0 %v330
    %1258 = vmatprep.subr.mxu0 %v306
    %1259 = vmatpush1.msra.mxu0 %v305
    %1260 = vmatprep.subr.mxu0 %v281
    %1261 = vmatpush1.msra.mxu0 %v280
    %1262 = vmatprep.subr.mxu0 %v256
    %1263 = vmatpush1.msra.mxu0 %v255
    %1264 = vmatprep.subr.mxu0 %v231
    %1265 = vmatpush1.msra.mxu0 %v230
    %1266 = vmatprep.subr.mxu0 %v206
    %1267 = vmatpush1.msra.mxu0 %v205
    %1268 = vmatprep.subr.mxu0 %v181
    %1269 = vmatpush1.msra.mxu0 %v180
    %1270 = vmatprep.subr.mxu0 %v156
    %1271 = vmatpush1.msra.mxu0 %v155
    %1272 = vmatprep.subr.mxu0 0.0
    %1273 = vmatpush2.msra.mxu0 0.0
    %1274 = vmatprep.subr.mxu0 0.0
    %1275 = vmatpush2.msra.mxu0 0.0
    %1276 = vmatprep.subr.mxu0 0.0
    %1277 = vmatpush2.msra.mxu0 0.0
    %1278 = vmatprep.subr.mxu0 0.0
    %1279 = vmatpush2.msra.mxu0 0.0
    %1280 = vmatprep.subr.mxu0 0.0
    %1281 = vmatpush2.msra.mxu0 0.0
    %1282 = vmatprep.subr.mxu0 0.0
    %1283 = vmatpush2.msra.mxu0 0.0
    %1284 = vmatprep.subr.mxu0 0.0
    %1285 = vmatpush2.msra.mxu0 0.0
    %1286 = vmatprep.subr.mxu0 0.0
    %1287 = vmatpush2.msra.mxu0 0.0
    %1288 = vmatprep.subr.mxu0 0.0
    %1289 = vmatpush2.msra.mxu0 0.0
    %1290 = vmatprep.subr.mxu0 0.0
    %1291 = vmatpush2.msra.mxu0 0.0
    %1292 = vmatprep.subr.mxu0 0.0
    %1293 = vmatpush2.msra.mxu0 0.0
    %1294 = vmatprep.subr.mxu0 0.0
    %1295 = vmatpush2.msra.mxu0 0.0
    %1296 = vmatprep.subr.mxu0 0.0
    %1297 = vmatpush2.msra.mxu0 0.0
    %1298 = vmatprep.subr.mxu0 0.0
    %1299 = vmatpush2.msra.mxu0 0.0
    %1300 = vmatprep.subr.mxu0 0.0
    %1301 = vmatpush2.msra.mxu0 0.0
    %1302 = vmatprep.subr.mxu0 0.0
    %1303 = vmatpush2.msra.mxu0 0.0
    %1304 = vmatprep.mubr.f32.mxu0 0.0
    %1305 = vmatmul.mubr.f32.gmra.mxu0 %v138
    %v1306 = vpop.f32.mrf.mxu0
    %v1307 = vadd.f32 %v614, %v1306
    %v1308 = vpop.f32.mrf.mxu0
    %v1309 = vadd.f32 %v618, %v1308
    %1310 = vdwg.mxu0
    %1311 = vmatprep.subr.mxu0 %v533
    %1312 = vmatpush1.msra.mxu0 %v532
    %1313 = vmatprep.subr.mxu0 %v508
    %1314 = vmatpush1.msra.mxu0 %v507
    %1315 = vmatprep.subr.mxu0 %v483
    %1316 = vmatpush1.msra.mxu0 %v482
    %1317 = vmatprep.subr.mxu0 %v458
    %1318 = vmatpush1.msra.mxu0 %v457
    %1319 = vmatprep.subr.mxu0 %v433
    %1320 = vmatpush1.msra.mxu0 %v432
    %1321 = vmatprep.subr.mxu0 %v408
    %1322 = vmatpush1.msra.mxu0 %v407
    %1323 = vmatprep.subr.mxu0 %v383
    %1324 = vmatpush1.msra.mxu0 %v382
    %1325 = vmatprep.subr.mxu0 %v358
    %1326 = vmatpush1.msra.mxu0 %v357
    %1327 = vmatprep.subr.mxu0 %v333
    %1328 = vmatpush1.msra.mxu0 %v332
    %1329 = vmatprep.subr.mxu0 %v308
    %1330 = vmatpush1.msra.mxu0 %v307
    %1331 = vmatprep.subr.mxu0 %v283
    %1332 = vmatpush1.msra.mxu0 %v282
    %1333 = vmatprep.subr.mxu0 %v258
    %1334 = vmatpush1.msra.mxu0 %v257
    %1335 = vmatprep.subr.mxu0 %v233
    %1336 = vmatpush1.msra.mxu0 %v232
    %1337 = vmatprep.subr.mxu0 %v208
    %1338 = vmatpush1.msra.mxu0 %v207
    %1339 = vmatprep.subr.mxu0 %v183
    %1340 = vmatpush1.msra.mxu0 %v182
    %1341 = vmatprep.subr.mxu0 %v158
    %1342 = vmatpush1.msra.mxu0 %v157
    %1343 = vmatprep.subr.mxu0 0.0
    %1344 = vmatpush2.msra.mxu0 0.0
    %1345 = vmatprep.subr.mxu0 0.0
    %1346 = vmatpush2.msra.mxu0 0.0
    %1347 = vmatprep.subr.mxu0 0.0
    %1348 = vmatpush2.msra.mxu0 0.0
    %1349 = vmatprep.subr.mxu0 0.0
    %1350 = vmatpush2.msra.mxu0 0.0
    %1351 = vmatprep.subr.mxu0 0.0
    %1352 = vmatpush2.msra.mxu0 0.0
    %1353 = vmatprep.subr.mxu0 0.0
    %1354 = vmatpush2.msra.mxu0 0.0
    %1355 = vmatprep.subr.mxu0 0.0
    %1356 = vmatpush2.msra.mxu0 0.0
    %1357 = vmatprep.subr.mxu0 0.0
    %1358 = vmatpush2.msra.mxu0 0.0
    %1359 = vmatprep.subr.mxu0 0.0
    %1360 = vmatpush2.msra.mxu0 0.0
    %1361 = vmatprep.subr.mxu0 0.0
    %1362 = vmatpush2.msra.mxu0 0.0
    %1363 = vmatprep.subr.mxu0 0.0
    %1364 = vmatpush2.msra.mxu0 0.0
    %1365 = vmatprep.subr.mxu0 0.0
    %1366 = vmatpush2.msra.mxu0 0.0
    %1367 = vmatprep.subr.mxu0 0.0
    %1368 = vmatpush2.msra.mxu0 0.0
    %1369 = vmatprep.subr.mxu0 0.0
    %1370 = vmatpush2.msra.mxu0 0.0
    %1371 = vmatprep.subr.mxu0 0.0
    %1372 = vmatpush2.msra.mxu0 0.0
    %1373 = vmatprep.subr.mxu0 0.0
    %1374 = vmatpush2.msra.mxu0 0.0
    %1375 = vmatprep.mubr.f32.mxu0 0.0
    %1376 = vmatmul.mubr.f32.gmra.mxu0 %v138
    %v1377 = vpop.f32.mrf.mxu0
    %v1378 = vadd.f32 %v622, %v1377
    %v1379 = vpop.f32.mrf.mxu0
    %v1380 = vadd.f32 %v626, %v1379
    %1381 = vdwg.mxu0
    %1382 = vmatprep.subr.mxu0 %v535
    %1383 = vmatpush1.msra.mxu0 %v534
    %1384 = vmatprep.subr.mxu0 %v510
    %1385 = vmatpush1.msra.mxu0 %v509
    %1386 = vmatprep.subr.mxu0 %v485
    %1387 = vmatpush1.msra.mxu0 %v484
    %1388 = vmatprep.subr.mxu0 %v460
    %1389 = vmatpush1.msra.mxu0 %v459
    %1390 = vmatprep.subr.mxu0 %v435
    %1391 = vmatpush1.msra.mxu0 %v434
    %1392 = vmatprep.subr.mxu0 %v410
    %1393 = vmatpush1.msra.mxu0 %v409
    %1394 = vmatprep.subr.mxu0 %v385
    %1395 = vmatpush1.msra.mxu0 %v384
    %1396 = vmatprep.subr.mxu0 %v360
    %1397 = vmatpush1.msra.mxu0 %v359
    %1398 = vmatprep.subr.mxu0 %v335
    %1399 = vmatpush1.msra.mxu0 %v334
    %1400 = vmatprep.subr.mxu0 %v310
    %1401 = vmatpush1.msra.mxu0 %v309
    %1402 = vmatprep.subr.mxu0 %v285
    %1403 = vmatpush1.msra.mxu0 %v284
    %1404 = vmatprep.subr.mxu0 %v260
    %1405 = vmatpush1.msra.mxu0 %v259
    %1406 = vmatprep.subr.mxu0 %v235
    %1407 = vmatpush1.msra.mxu0 %v234
    %1408 = vmatprep.subr.mxu0 %v210
    %1409 = vmatpush1.msra.mxu0 %v209
    %1410 = vmatprep.subr.mxu0 %v185
    %1411 = vmatpush1.msra.mxu0 %v184
    %1412 = vmatprep.subr.mxu0 %v160
    %1413 = vmatpush1.msra.mxu0 %v159
    %1414 = vmatprep.subr.mxu0 0.0
    %1415 = vmatpush2.msra.mxu0 0.0
    %1416 = vmatprep.subr.mxu0 0.0
    %1417 = vmatpush2.msra.mxu0 0.0
    %1418 = vmatprep.subr.mxu0 0.0
    %1419 = vmatpush2.msra.mxu0 0.0
    %1420 = vmatprep.subr.mxu0 0.0
    %1421 = vmatpush2.msra.mxu0 0.0
    %1422 = vmatprep.subr.mxu0 0.0
    %1423 = vmatpush2.msra.mxu0 0.0
    %1424 = vmatprep.subr.mxu0 0.0
    %1425 = vmatpush2.msra.mxu0 0.0
    %1426 = vmatprep.subr.mxu0 0.0
    %1427 = vmatpush2.msra.mxu0 0.0
    %1428 = vmatprep.subr.mxu0 0.0
    %1429 = vmatpush2.msra.mxu0 0.0
    %1430 = vmatprep.subr.mxu0 0.0
    %1431 = vmatpush2.msra.mxu0 0.0
    %1432 = vmatprep.subr.mxu0 0.0
    %1433 = vmatpush2.msra.mxu0 0.0
    %1434 = vmatprep.subr.mxu0 0.0
    %1435 = vmatpush2.msra.mxu0 0.0
    %1436 = vmatprep.subr.mxu0 0.0
    %1437 = vmatpush2.msra.mxu0 0.0
    %1438 = vmatprep.subr.mxu0 0.0
    %1439 = vmatpush2.msra.mxu0 0.0
    %1440 = vmatprep.subr.mxu0 0.0
    %1441 = vmatpush2.msra.mxu0 0.0
    %1442 = vmatprep.subr.mxu0 0.0
    %1443 = vmatpush2.msra.mxu0 0.0
    %1444 = vmatprep.subr.mxu0 0.0
    %1445 = vmatpush2.msra.mxu0 0.0
    %1446 = vmatprep.mubr.f32.mxu0 0.0
    %1447 = vmatmul.mubr.f32.gmra.mxu0 %v138
    %v1448 = vpop.f32.mrf.mxu0
    %v1449 = vadd.f32 %v630, %v1448
    %v1450 = vpop.f32.mrf.mxu0
    %v1451 = vadd.f32 %v634, %v1450
    %1452 = vdwg.mxu0
    %1453 = vmatprep.subr.mxu0 %v537
    %1454 = vmatpush1.msra.mxu0 %v536
    %1455 = vmatprep.subr.mxu0 %v512
    %1456 = vmatpush1.msra.mxu0 %v511
    %1457 = vmatprep.subr.mxu0 %v487
    %1458 = vmatpush1.msra.mxu0 %v486
    %1459 = vmatprep.subr.mxu0 %v462
    %1460 = vmatpush1.msra.mxu0 %v461
    %1461 = vmatprep.subr.mxu0 %v437
    %1462 = vmatpush1.msra.mxu0 %v436
    %1463 = vmatprep.subr.mxu0 %v412
    %1464 = vmatpush1.msra.mxu0 %v411
    %1465 = vmatprep.subr.mxu0 %v387
    %1466 = vmatpush1.msra.mxu0 %v386
    %1467 = vmatprep.subr.mxu0 %v362
    %1468 = vmatpush1.msra.mxu0 %v361
    %1469 = vmatprep.subr.mxu0 %v337
    %1470 = vmatpush1.msra.mxu0 %v336
    %1471 = vmatprep.subr.mxu0 %v312
    %1472 = vmatpush1.msra.mxu0 %v311
    %1473 = vmatprep.subr.mxu0 %v287
    %1474 = vmatpush1.msra.mxu0 %v286
    %1475 = vmatprep.subr.mxu0 %v262
    %1476 = vmatpush1.msra.mxu0 %v261
    %1477 = vmatprep.subr.mxu0 %v237
    %1478 = vmatpush1.msra.mxu0 %v236
    %1479 = vmatprep.subr.mxu0 %v212
    %1480 = vmatpush1.msra.mxu0 %v211
    %1481 = vmatprep.subr.mxu0 %v187
    %1482 = vmatpush1.msra.mxu0 %v186
    %1483 = vmatprep.subr.mxu0 %v162
    %1484 = vmatpush1.msra.mxu0 %v161
    %1485 = vmatprep.subr.mxu0 0.0
    %1486 = vmatpush2.msra.mxu0 0.0
    %1487 = vmatprep.subr.mxu0 0.0
    %1488 = vmatpush2.msra.mxu0 0.0
    %1489 = vmatprep.subr.mxu0 0.0
    %1490 = vmatpush2.msra.mxu0 0.0
    %1491 = vmatprep.subr.mxu0 0.0
    %1492 = vmatpush2.msra.mxu0 0.0
    %1493 = vmatprep.subr.mxu0 0.0
    %1494 = vmatpush2.msra.mxu0 0.0
    %1495 = vmatprep.subr.mxu0 0.0
    %1496 = vmatpush2.msra.mxu0 0.0
    %1497 = vmatprep.subr.mxu0 0.0
    %1498 = vmatpush2.msra.mxu0 0.0
    %1499 = vmatprep.subr.mxu0 0.0
    %1500 = vmatpush2.msra.mxu0 0.0
    %1501 = vmatprep.subr.mxu0 0.0
    %1502 = vmatpush2.msra.mxu0 0.0
    %1503 = vmatprep.subr.mxu0 0.0
    %1504 = vmatpush2.msra.mxu0 0.0
    %1505 = vmatprep.subr.mxu0 0.0
    %1506 = vmatpush2.msra.mxu0 0.0
    %1507 = vmatprep.subr.mxu0 0.0
    %1508 = vmatpush2.msra.mxu0 0.0
    %1509 = vmatprep.subr.mxu0 0.0
    %1510 = vmatpush2.msra.mxu0 0.0
    %1511 = vmatprep.subr.mxu0 0.0
    %1512 = vmatpush2.msra.mxu0 0.0
    %1513 = vmatprep.subr.mxu0 0.0
    %1514 = vmatpush2.msra.mxu0 0.0
    %1515 = vmatprep.subr.mxu0 0.0
    %1516 = vmatpush2.msra.mxu0 0.0
    %1517 = vmatprep.mubr.f32.mxu0 0.0
    %1518 = vmatmul.mubr.f32.gmra.mxu0 %v138
    %v1519 = vpop.f32.mrf.mxu0
    %v1520 = vadd.f32 %v638, %v1519
    %v1521 = vpop.f32.mrf.mxu0
    %v1522 = vadd.f32 %v642, %v1521
    %1523 = vdwg.mxu0
    %1524 = vmatprep.subr.mxu0 0.0
    %1525 = vmatpush1.msra.mxu0 %v538
    %1526 = vmatprep.subr.mxu0 0.0
    %1527 = vmatpush1.msra.mxu0 %v513
    %1528 = vmatprep.subr.mxu0 0.0
    %1529 = vmatpush1.msra.mxu0 %v488
    %1530 = vmatprep.subr.mxu0 0.0
    %1531 = vmatpush1.msra.mxu0 %v463
    %1532 = vmatprep.subr.mxu0 0.0
    %1533 = vmatpush1.msra.mxu0 %v438
    %1534 = vmatprep.subr.mxu0 0.0
    %1535 = vmatpush1.msra.mxu0 %v413
    %1536 = vmatprep.subr.mxu0 0.0
    %1537 = vmatpush1.msra.mxu0 %v388
    %1538 = vmatprep.subr.mxu0 0.0
    %1539 = vmatpush1.msra.mxu0 %v363
    %1540 = vmatprep.subr.mxu0 0.0
    %1541 = vmatpush1.msra.mxu0 %v338
    %1542 = vmatprep.subr.mxu0 0.0
    %1543 = vmatpush1.msra.mxu0 %v313
    %1544 = vmatprep.subr.mxu0 0.0
    %1545 = vmatpush1.msra.mxu0 %v288
    %1546 = vmatprep.subr.mxu0 0.0
    %1547 = vmatpush1.msra.mxu0 %v263
    %1548 = vmatprep.subr.mxu0 0.0
    %1549 = vmatpush1.msra.mxu0 %v238
    %1550 = vmatprep.subr.mxu0 0.0
    %1551 = vmatpush1.msra.mxu0 %v213
    %1552 = vmatprep.subr.mxu0 0.0
    %1553 = vmatpush1.msra.mxu0 %v188
    %1554 = vmatprep.subr.mxu0 0.0
    %1555 = vmatpush1.msra.mxu0 %v163
    %1556 = vmatprep.subr.mxu0 0.0
    %1557 = vmatpush2.msra.mxu0 0.0
    %1558 = vmatprep.subr.mxu0 0.0
    %1559 = vmatpush2.msra.mxu0 0.0
    %1560 = vmatprep.subr.mxu0 0.0
    %1561 = vmatpush2.msra.mxu0 0.0
    %1562 = vmatprep.subr.mxu0 0.0
    %1563 = vmatpush2.msra.mxu0 0.0
    %1564 = vmatprep.subr.mxu0 0.0
    %1565 = vmatpush2.msra.mxu0 0.0
    %1566 = vmatprep.subr.mxu0 0.0
    %1567 = vmatpush2.msra.mxu0 0.0
    %1568 = vmatprep.subr.mxu0 0.0
    %1569 = vmatpush2.msra.mxu0 0.0
    %1570 = vmatprep.subr.mxu0 0.0
    %1571 = vmatpush2.msra.mxu0 0.0
    %1572 = vmatprep.subr.mxu0 0.0
    %1573 = vmatpush2.msra.mxu0 0.0
    %1574 = vmatprep.subr.mxu0 0.0
    %1575 = vmatpush2.msra.mxu0 0.0
    %1576 = vmatprep.subr.mxu0 0.0
    %1577 = vmatpush2.msra.mxu0 0.0
    %1578 = vmatprep.subr.mxu0 0.0
    %1579 = vmatpush2.msra.mxu0 0.0
    %1580 = vmatprep.subr.mxu0 0.0
    %1581 = vmatpush2.msra.mxu0 0.0
    %1582 = vmatprep.subr.mxu0 0.0
    %1583 = vmatpush2.msra.mxu0 0.0
    %1584 = vmatprep.subr.mxu0 0.0
    %1585 = vmatpush2.msra.mxu0 0.0
    %1586 = vmatprep.subr.mxu0 0.0
    %1587 = vmatpush2.msra.mxu0 0.0
    %1588 = vmatprep.mubr.f32.mxu0 0.0
    %1589 = vmatmul.mubr.f32.gmra.mxu0 %v138
    %v1590 = vpop.f32.mrf.mxu0
    %v1591 = vadd.f32 %v646, %v1590
    %v1592 = vpop.f32.mrf.mxu0
    %1593 = vdwg.mxu0
    %v1594 = vld [vmem:[%s0] sm:$0xff]
    %v1595 = vld [vmem:[%s0 + $0x8] sm:$0xff]
    %v1596 = vld [vmem:[%s0 + $0x10] sm:$0xff]
    %v1597 = vld [vmem:[%s0 + $0x18] sm:$0x1]
    %v1598 = vpack.c.bf16 %v739, %v739
    %v1599 = vpack.c.bf16 %v741, %v741
    %v1600 = vpack.c.bf16 %v810, %v810
    %v1601 = vpack.c.bf16 %v812, %v812
    %v1602 = vpack.c.bf16 %v881, %v881
    %v1603 = vpack.c.bf16 %v883, %v883
    %v1604 = vpack.c.bf16 %v952, %v952
    %v1605 = vpack.c.bf16 %v954, %v954
    %v1606 = vpack.c.bf16 %v1023, %v1023
    %v1607 = vpack.c.bf16 %v1025, %v1025
    %v1608 = vpack.c.bf16 %v1094, %v1094
    %v1609 = vpack.c.bf16 %v1096, %v1096
    %v1610 = vpack.c.bf16 %v1165, %v1165
    %v1611 = vpack.c.bf16 %v1167, %v1167
    %v1612 = vpack.c.bf16 %v1236, %v1236
    %v1613 = vpack.c.bf16 %v1238, %v1238
    %v1614 = vpack.c.bf16 %v1307, %v1307
    %v1615 = vpack.c.bf16 %v1309, %v1309
    %v1616 = vpack.c.bf16 %v1378, %v1378
    %v1617 = vpack.c.bf16 %v1380, %v1380
    %v1618 = vpack.c.bf16 %v1449, %v1449
    %v1619 = vpack.c.bf16 %v1451, %v1451
    %v1620 = vpack.c.bf16 %v1520, %v1520
    %v1621 = vpack.c.bf16 %v1522, %v1522
    %v1622 = vpack.c.bf16 %v1591, %v1591
    %v1648 = vcombine.low %v1598, %v1599
    %v1649 = vcombine.low %v1600, %v1601
    %v1650 = vcombine.low %v1602, %v1603
    %v1651 = vcombine.low %v1604, %v1605
    %v1653 = vunpack.c.l.s4 1966171168
    %v1654 = vunpack.c.0.s8 %v1653
    %v1655 = vlaneseq
    %v1656 = vshrl.u32 %v1655, 7
    %v1657 = vsub.s32 %v1654, %v1656
    %v1658 = vrot.slane %v1648, %v1657
    %v1660 = vunpack.c.l.s4 1966171168
    %v1661 = vunpack.c.0.s8 %v1660
    %v1662 = vlaneseq
    %v1663 = vshrl.u32 %v1662, 7
    %v1664 = vsub.s32 %v1661, %v1663
    %v1665 = vrot.slane %v1649, %v1664
    %v1667 = vunpack.c.l.s4 1966171168
    %v1668 = vunpack.c.0.s8 %v1667
    %v1669 = vlaneseq
    %v1670 = vshrl.u32 %v1669, 7
    %v1671 = vsub.s32 %v1668, %v1670
    %v1672 = vrot.slane %v1650, %v1671
    %v1674 = vunpack.c.l.s4 1966171168
    %v1675 = vunpack.c.0.s8 %v1674
    %v1676 = vlaneseq
    %v1677 = vshrl.u32 %v1676, 7
    %v1678 = vsub.s32 %v1675, %v1677
    %v1679 = vrot.slane %v1651, %v1678
    %v1680 = vcombine.low %v1658, %v1665
    %v1681 = vcombine.low %v1672, %v1679
    %v1683 = vunpack.c.l.s4 1966171168
    %v1684 = vunpack.c.0.s8 %v1683
    %v1685 = vlaneseq
    %v1686 = vshrl.u32 %v1685, 7
    %v1687 = vsub.s32 %v1684, %v1686
    %v1688 = vrot.slane %v1680, %v1687
    %v1690 = vunpack.c.l.s4 1966171168
    %v1691 = vunpack.c.0.s8 %v1690
    %v1692 = vlaneseq
    %v1693 = vshrl.u32 %v1692, 7
    %v1694 = vsub.s32 %v1691, %v1693
    %v1695 = vrot.slane %v1681, %v1694
    %v1696 = vcombine.low %v1688, %v1695
    %v1697 = vcombine.low %v1606, %v1607
    %v1698 = vcombine.low %v1608, %v1609
    %v1699 = vcombine.low %v1610, %v1611
    %v1700 = vcombine.low %v1612, %v1613
    %v1702 = vunpack.c.l.s4 1966171168
    %v1703 = vunpack.c.0.s8 %v1702
    %v1704 = vlaneseq
    %v1705 = vshrl.u32 %v1704, 7
    %v1706 = vsub.s32 %v1703, %v1705
    %v1707 = vrot.slane %v1697, %v1706
    %v1709 = vunpack.c.l.s4 1966171168
    %v1710 = vunpack.c.0.s8 %v1709
    %v1711 = vlaneseq
    %v1712 = vshrl.u32 %v1711, 7
    %v1713 = vsub.s32 %v1710, %v1712
    %v1714 = vrot.slane %v1698, %v1713
    %v1716 = vunpack.c.l.s4 1966171168
    %v1717 = vunpack.c.0.s8 %v1716
    %v1718 = vlaneseq
    %v1719 = vshrl.u32 %v1718, 7
    %v1720 = vsub.s32 %v1717, %v1719
    %v1721 = vrot.slane %v1699, %v1720
    %v1723 = vunpack.c.l.s4 1966171168
    %v1724 = vunpack.c.0.s8 %v1723
    %v1725 = vlaneseq
    %v1726 = vshrl.u32 %v1725, 7
    %v1727 = vsub.s32 %v1724, %v1726
    %v1728 = vrot.slane %v1700, %v1727
    %v1729 = vcombine.low %v1707, %v1714
    %v1730 = vcombine.low %v1721, %v1728
    %v1732 = vunpack.c.l.s4 1966171168
    %v1733 = vunpack.c.0.s8 %v1732
    %v1734 = vlaneseq
    %v1735 = vshrl.u32 %v1734, 7
    %v1736 = vsub.s32 %v1733, %v1735
    %v1737 = vrot.slane %v1729, %v1736
    %v1739 = vunpack.c.l.s4 1966171168
    %v1740 = vunpack.c.0.s8 %v1739
    %v1741 = vlaneseq
    %v1742 = vshrl.u32 %v1741, 7
    %v1743 = vsub.s32 %v1740, %v1742
    %v1744 = vrot.slane %v1730, %v1743
    %v1745 = vcombine.low %v1737, %v1744
    %v1746 = vcombine.low %v1614, %v1615
    %v1747 = vcombine.low %v1616, %v1617
    %v1748 = vcombine.low %v1618, %v1619
    %v1749 = vcombine.low %v1620, %v1621
    %v1751 = vunpack.c.l.s4 1966171168
    %v1752 = vunpack.c.0.s8 %v1751
    %v1753 = vlaneseq
    %v1754 = vshrl.u32 %v1753, 7
    %v1755 = vsub.s32 %v1752, %v1754
    %v1756 = vrot.slane %v1746, %v1755
    %v1758 = vunpack.c.l.s4 1966171168
    %v1759 = vunpack.c.0.s8 %v1758
    %v1760 = vlaneseq
    %v1761 = vshrl.u32 %v1760, 7
    %v1762 = vsub.s32 %v1759, %v1761
    %v1763 = vrot.slane %v1747, %v1762
    %v1765 = vunpack.c.l.s4 1966171168
    %v1766 = vunpack.c.0.s8 %v1765
    %v1767 = vlaneseq
    %v1768 = vshrl.u32 %v1767, 7
    %v1769 = vsub.s32 %v1766, %v1768
    %v1770 = vrot.slane %v1748, %v1769
    %v1772 = vunpack.c.l.s4 1966171168
    %v1773 = vunpack.c.0.s8 %v1772
    %v1774 = vlaneseq
    %v1775 = vshrl.u32 %v1774, 7
    %v1776 = vsub.s32 %v1773, %v1775
    %v1777 = vrot.slane %v1749, %v1776
    %v1778 = vcombine.low %v1756, %v1763
    %v1779 = vcombine.low %v1770, %v1777
    %v1781 = vunpack.c.l.s4 1966171168
    %v1782 = vunpack.c.0.s8 %v1781
    %v1783 = vlaneseq
    %v1784 = vshrl.u32 %v1783, 7
    %v1785 = vsub.s32 %v1782, %v1784
    %v1786 = vrot.slane %v1778, %v1785
    %v1788 = vunpack.c.l.s4 1966171168
    %v1789 = vunpack.c.0.s8 %v1788
    %v1790 = vlaneseq
    %v1791 = vshrl.u32 %v1790, 7
    %v1792 = vsub.s32 %v1789, %v1791
    %v1793 = vrot.slane %v1779, %v1792
    %v1794 = vcombine.low %v1786, %v1793
    %v1796 = vunpack.c.l.s4 1966171168
    %v1797 = vunpack.c.0.s8 %v1796
    %v1798 = vlaneseq
    %v1799 = vshrl.u32 %v1798, 7
    %v1800 = vsub.s32 %v1797, %v1799
    %v1801 = vrot.slane %v1622, %v1800
    %v1803 = vunpack.c.l.s4 1966171168
    %v1804 = vunpack.c.0.s8 %v1803
    %v1805 = vlaneseq
    %v1806 = vshrl.u32 %v1805, 7
    %v1807 = vsub.s32 %v1804, %v1806
    %v1808 = vrot.slane %v1801, %v1807
    %v1813 = vmul.bf16 %v1594, %v1696
    %v1814 = vmul.bf16 %v1595, %v1745
    %v1815 = vmul.bf16 %v1596, %v1794
    %v1816 = vmul.bf16 %v1597, %v1808
    %v1817 = vld [vmem:[%s6] sm:$0xf]
    %v1818 = vld [vmem:[%s6 + $0x4] sm:$0xf]
    %v1819 = vld [vmem:[%s6 + $0x8] sm:$0xf]
    %v1820 = vld [vmem:[%s6 + $0xc] sm:$0xf]
    %v1821 = vld [vmem:[%s6 + $0x10] sm:$0xf]
    %v1822 = vld [vmem:[%s6 + $0x14] sm:$0xf]
    %v1823 = vld [vmem:[%s6 + $0x18] sm:$0xf]
    %v1824 = vld [vmem:[%s6 + $0x1c] sm:$0xf]
    %v1825 = vld [vmem:[%s6 + $0x20] sm:$0xf]
    %v1826 = vld [vmem:[%s6 + $0x24] sm:$0xf]
    %v1827 = vld [vmem:[%s6 + $0x28] sm:$0xf]
    %v1828 = vld [vmem:[%s6 + $0x2c] sm:$0xf]
    %v1829 = vld [vmem:[%s6 + $0x30] sm:$0xf]
    %v1830 = vld [vmem:[%s6 + $0x34] sm:$0xf]
    %v1831 = vld [vmem:[%s6 + $0x38] sm:$0xf]
    %v1832 = vld [vmem:[%s6 + $0x3c] sm:$0xf]
    %v1833 = vld [vmem:[%s6 + $0x40] sm:$0xf]
    %v1834 = vld [vmem:[%s6 + $0x44] sm:$0xf]
    %v1835 = vld [vmem:[%s6 + $0x48] sm:$0xf]
    %v1836 = vld [vmem:[%s6 + $0x4c] sm:$0xf]
    %v1837 = vld [vmem:[%s6 + $0x50] sm:$0xf]
    %v1838 = vld [vmem:[%s6 + $0x54] sm:$0xf]
    %v1839 = vld [vmem:[%s6 + $0x58] sm:$0xf]
    %v1840 = vld [vmem:[%s6 + $0x5c] sm:$0xf]
    %v1841 = vld [vmem:[%s6 + $0x60] sm:$0xf]
    %v1842 = vld [vmem:[%s6 + $0x64] sm:$0xf]
    %v1843 = vld [vmem:[%s6 + $0x68] sm:$0xf]
    %v1844 = vld [vmem:[%s6 + $0x6c] sm:$0xf]
    %v1845 = vld [vmem:[%s6 + $0x70] sm:$0xf]
    %v1846 = vld [vmem:[%s6 + $0x74] sm:$0xf]
    %v1847 = vld [vmem:[%s6 + $0x78] sm:$0xf]
    %v1848 = vld [vmem:[%s6 + $0x7c] sm:$0xf]
    %v1849 = vld [vmem:[%s6 + $0x80] sm:$0xf]
    %v1850 = vld [vmem:[%s6 + $0x84] sm:$0xf]
    %v1851 = vld [vmem:[%s6 + $0x88] sm:$0xf]
    %v1852 = vld [vmem:[%s6 + $0x8c] sm:$0xf]
    %v1853 = vld [vmem:[%s6 + $0x90] sm:$0xf]
    %v1854 = vld [vmem:[%s6 + $0x94] sm:$0xf]
    %v1855 = vld [vmem:[%s6 + $0x98] sm:$0xf]
    %v1856 = vld [vmem:[%s6 + $0x9c] sm:$0xf]
    %v1857 = vld [vmem:[%s6 + $0xa0] sm:$0xf]
    %v1858 = vld [vmem:[%s6 + $0xa4] sm:$0xf]
    %v1859 = vld [vmem:[%s6 + $0xa8] sm:$0xf]
    %v1860 = vld [vmem:[%s6 + $0xac] sm:$0xf]
    %v1861 = vld [vmem:[%s6 + $0xb0] sm:$0xf]
    %v1862 = vld [vmem:[%s6 + $0xb4] sm:$0xf]
    %v1863 = vld [vmem:[%s6 + $0xb8] sm:$0xf]
    %v1864 = vld [vmem:[%s6 + $0xbc] sm:$0xf]
    %v1865 = vld [vmem:[%s6 + $0xc0] sm:$0xf]
    %v1866 = vld [vmem:[%s6 + $0xc4] sm:$0xf]
    %v1867 = vld [vmem:[%s6 + $0xc8] sm:$0xf]
    %v1868 = vld [vmem:[%s6 + $0xcc] sm:$0xf]
    %v1869 = vld [vmem:[%s6 + $0xd0] sm:$0xf]
    %v1870 = vld [vmem:[%s6 + $0xd4] sm:$0xf]
    %v1871 = vld [vmem:[%s6 + $0xd8] sm:$0xf]
    %v1872 = vld [vmem:[%s6 + $0xdc] sm:$0xf]
    %v1873 = vld [vmem:[%s6 + $0xe0] sm:$0xf]
    %v1874 = vld [vmem:[%s6 + $0xe4] sm:$0xf]
    %v1875 = vld [vmem:[%s6 + $0xe8] sm:$0xf]
    %v1876 = vld [vmem:[%s6 + $0xec] sm:$0xf]
    %v1877 = vld [vmem:[%s6 + $0xf0] sm:$0xf]
    %v1878 = vld [vmem:[%s6 + $0xf4] sm:$0xf]
    %v1879 = vld [vmem:[%s6 + $0xf8] sm:$0xf]
    %v1880 = vld [vmem:[%s6 + $0xfc] sm:$0xf]
    %v1881 = vld [vmem:[%s6 + $0x100] sm:$0xf]
    %v1882 = vld [vmem:[%s6 + $0x104] sm:$0xf]
    %v1883 = vld [vmem:[%s6 + $0x108] sm:$0xf]
    %v1884 = vld [vmem:[%s6 + $0x10c] sm:$0xf]
    %v1885 = vld [vmem:[%s6 + $0x110] sm:$0xf]
    %v1886 = vld [vmem:[%s6 + $0x114] sm:$0xf]
    %v1887 = vld [vmem:[%s6 + $0x118] sm:$0xf]
    %v1888 = vld [vmem:[%s6 + $0x11c] sm:$0xf]
    %v1889 = vld [vmem:[%s6 + $0x120] sm:$0xf]
    %v1890 = vld [vmem:[%s6 + $0x124] sm:$0xf]
    %v1891 = vld [vmem:[%s6 + $0x128] sm:$0xf]
    %v1892 = vld [vmem:[%s6 + $0x12c] sm:$0xf]
    %v1893 = vld [vmem:[%s6 + $0x130] sm:$0xf]
    %v1894 = vld [vmem:[%s6 + $0x134] sm:$0xf]
    %v1895 = vld [vmem:[%s6 + $0x138] sm:$0xf]
    %v1896 = vld [vmem:[%s6 + $0x13c] sm:$0xf]
    %v1897 = vld [vmem:[%s6 + $0x140] sm:$0xf]
    %v1898 = vld [vmem:[%s6 + $0x144] sm:$0xf]
    %v1899 = vld [vmem:[%s6 + $0x148] sm:$0xf]
    %v1900 = vld [vmem:[%s6 + $0x14c] sm:$0xf]
    %v1901 = vld [vmem:[%s6 + $0x150] sm:$0xf]
    %v1902 = vld [vmem:[%s6 + $0x154] sm:$0xf]
    %v1903 = vld [vmem:[%s6 + $0x158] sm:$0xf]
    %v1904 = vld [vmem:[%s6 + $0x15c] sm:$0xf]
    %v1905 = vld [vmem:[%s6 + $0x160] sm:$0xf]
    %v1906 = vld [vmem:[%s6 + $0x164] sm:$0xf]
    %v1907 = vld [vmem:[%s6 + $0x168] sm:$0xf]
    %v1908 = vld [vmem:[%s6 + $0x16c] sm:$0xf]
    %v1909 = vld [vmem:[%s6 + $0x170] sm:$0xf]
    %v1910 = vld [vmem:[%s6 + $0x174] sm:$0xf]
    %v1911 = vld [vmem:[%s6 + $0x178] sm:$0xf]
    %v1912 = vld [vmem:[%s6 + $0x17c] sm:$0xf]
    %v1913 = vld [vmem:[%s6 + $0x180] sm:$0xf]
    %v1914 = vld [vmem:[%s6 + $0x184] sm:$0xf]
    %v1915 = vld [vmem:[%s6 + $0x188] sm:$0xf]
    %v1916 = vld [vmem:[%s6 + $0x18c] sm:$0xf]
    %v1917 = vld [vmem:[%s6 + $0x190] sm:$0xf]
    %v1918 = vld [vmem:[%s6 + $0x194] sm:$0xf]
    %v1919 = vld [vmem:[%s6 + $0x198] sm:$0xf]
    %v1920 = vld [vmem:[%s6 + $0x19c] sm:$0xf]
    %v1921 = vld [vmem:[%s6 + $0x1a0] sm:$0xf]
    %v1922 = vld [vmem:[%s6 + $0x1a4] sm:$0xf]
    %v1923 = vld [vmem:[%s6 + $0x1a8] sm:$0xf]
    %v1924 = vld [vmem:[%s6 + $0x1ac] sm:$0xf]
    %v1925 = vld [vmem:[%s6 + $0x1b0] sm:$0xf]
    %v1926 = vld [vmem:[%s6 + $0x1b4] sm:$0xf]
    %v1927 = vld [vmem:[%s6 + $0x1b8] sm:$0xf]
    %v1928 = vld [vmem:[%s6 + $0x1bc] sm:$0xf]
    %v1929 = vld [vmem:[%s6 + $0x1c0] sm:$0xf]
    %v1930 = vld [vmem:[%s6 + $0x1c4] sm:$0xf]
    %v1931 = vld [vmem:[%s6 + $0x1c8] sm:$0xf]
    %v1932 = vld [vmem:[%s6 + $0x1cc] sm:$0xf]
    %v1933 = vld [vmem:[%s6 + $0x1d0] sm:$0xf]
    %v1934 = vld [vmem:[%s6 + $0x1d4] sm:$0xf]
    %v1935 = vld [vmem:[%s6 + $0x1d8] sm:$0xf]
    %v1936 = vld [vmem:[%s6 + $0x1dc] sm:$0xf]
    %v1937 = vld [vmem:[%s6 + $0x1e0] sm:$0xf]
    %v1938 = vld [vmem:[%s6 + $0x1e4] sm:$0xf]
    %v1939 = vld [vmem:[%s6 + $0x1e8] sm:$0xf]
    %v1940 = vld [vmem:[%s6 + $0x1ec] sm:$0xf]
    %v1941 = vld [vmem:[%s6 + $0x1f0] sm:$0xf]
    %v1942 = vld [vmem:[%s6 + $0x1f4] sm:$0xf]
    %v1943 = vld [vmem:[%s6 + $0x1f8] sm:$0xf]
    %v1944 = vld [vmem:[%s6 + $0x1fc] sm:$0xf]
    %v1945 = vld [vmem:[%s6 + $0x200] sm:$0xf]
    %v1946 = vld [vmem:[%s6 + $0x204] sm:$0xf]
    %v1947 = vld [vmem:[%s6 + $0x208] sm:$0xf]
    %v1948 = vld [vmem:[%s6 + $0x20c] sm:$0xf]
    %v1949 = vld [vmem:[%s6 + $0x210] sm:$0xf]
    %v1950 = vld [vmem:[%s6 + $0x214] sm:$0xf]
    %v1951 = vld [vmem:[%s6 + $0x218] sm:$0xf]
    %v1952 = vld [vmem:[%s6 + $0x21c] sm:$0xf]
    %v1953 = vld [vmem:[%s6 + $0x220] sm:$0xf]
    %v1954 = vld [vmem:[%s6 + $0x224] sm:$0xf]
    %v1955 = vld [vmem:[%s6 + $0x228] sm:$0xf]
    %v1956 = vld [vmem:[%s6 + $0x22c] sm:$0xf]
    %v1957 = vld [vmem:[%s6 + $0x230] sm:$0xf]
    %v1958 = vld [vmem:[%s6 + $0x234] sm:$0xf]
    %v1959 = vld [vmem:[%s6 + $0x238] sm:$0xf]
    %v1960 = vld [vmem:[%s6 + $0x23c] sm:$0xf]
    %v1961 = vld [vmem:[%s6 + $0x240] sm:$0xf]
    %v1962 = vld [vmem:[%s6 + $0x244] sm:$0xf]
    %v1963 = vld [vmem:[%s6 + $0x248] sm:$0xf]
    %v1964 = vld [vmem:[%s6 + $0x24c] sm:$0xf]
    %v1965 = vld [vmem:[%s6 + $0x250] sm:$0xf]
    %v1966 = vld [vmem:[%s6 + $0x254] sm:$0xf]
    %v1967 = vld [vmem:[%s6 + $0x258] sm:$0xf]
    %v1968 = vld [vmem:[%s6 + $0x25c] sm:$0xf]
    %v1969 = vld [vmem:[%s6 + $0x260] sm:$0xf]
    %v1970 = vld [vmem:[%s6 + $0x264] sm:$0xf]
    %v1971 = vld [vmem:[%s6 + $0x268] sm:$0xf]
    %v1972 = vld [vmem:[%s6 + $0x26c] sm:$0xf]
    %v1973 = vld [vmem:[%s6 + $0x270] sm:$0xf]
    %v1974 = vld [vmem:[%s6 + $0x274] sm:$0xf]
    %v1975 = vld [vmem:[%s6 + $0x278] sm:$0xf]
    %v1976 = vld [vmem:[%s6 + $0x27c] sm:$0xf]
    %v1977 = vld [vmem:[%s6 + $0x280] sm:$0xf]
    %v1978 = vld [vmem:[%s6 + $0x284] sm:$0xf]
    %v1979 = vld [vmem:[%s6 + $0x288] sm:$0xf]
    %v1980 = vld [vmem:[%s6 + $0x28c] sm:$0xf]
    %v1981 = vld [vmem:[%s6 + $0x290] sm:$0xf]
    %v1982 = vld [vmem:[%s6 + $0x294] sm:$0xf]
    %v1983 = vld [vmem:[%s6 + $0x298] sm:$0xf]
    %v1984 = vld [vmem:[%s6 + $0x29c] sm:$0xf]
    %v1985 = vld [vmem:[%s6 + $0x2a0] sm:$0xf]
    %v1986 = vld [vmem:[%s6 + $0x2a4] sm:$0xf]
    %v1987 = vld [vmem:[%s6 + $0x2a8] sm:$0xf]
    %v1988 = vld [vmem:[%s6 + $0x2ac] sm:$0xf]
    %v1989 = vld [vmem:[%s6 + $0x2b0] sm:$0xf]
    %v1990 = vld [vmem:[%s6 + $0x2b4] sm:$0xf]
    %v1991 = vld [vmem:[%s6 + $0x2b8] sm:$0xf]
    %v1992 = vld [vmem:[%s6 + $0x2bc] sm:$0xf]
    %v1993 = vld [vmem:[%s6 + $0x2c0] sm:$0xf]
    %v1994 = vld [vmem:[%s6 + $0x2c4] sm:$0xf]
    %v1995 = vld [vmem:[%s6 + $0x2c8] sm:$0xf]
    %v1996 = vld [vmem:[%s6 + $0x2cc] sm:$0xf]
    %v1997 = vld [vmem:[%s6 + $0x2d0] sm:$0xf]
    %v1998 = vld [vmem:[%s6 + $0x2d4] sm:$0xf]
    %v1999 = vld [vmem:[%s6 + $0x2d8] sm:$0xf]
    %v2000 = vld [vmem:[%s6 + $0x2dc] sm:$0xf]
    %v2001 = vld [vmem:[%s6 + $0x2e0] sm:$0xf]
    %v2002 = vld [vmem:[%s6 + $0x2e4] sm:$0xf]
    %v2003 = vld [vmem:[%s6 + $0x2e8] sm:$0xf]
    %v2004 = vld [vmem:[%s6 + $0x2ec] sm:$0xf]
    %v2005 = vld [vmem:[%s6 + $0x2f0] sm:$0xf]
    %v2006 = vld [vmem:[%s6 + $0x2f4] sm:$0xf]
    %v2007 = vld [vmem:[%s6 + $0x2f8] sm:$0xf]
    %v2008 = vld [vmem:[%s6 + $0x2fc] sm:$0xf]
    %v2009 = vld [vmem:[%s6 + $0x300] sm:$0xf]
    %v2010 = vld [vmem:[%s6 + $0x304] sm:$0xf]
    %v2011 = vld [vmem:[%s6 + $0x308] sm:$0xf]
    %v2012 = vld [vmem:[%s6 + $0x30c] sm:$0xf]
    %v2013 = vld [vmem:[%s6 + $0x310] sm:$0xf]
    %v2014 = vld [vmem:[%s6 + $0x314] sm:$0xf]
    %v2015 = vld [vmem:[%s6 + $0x318] sm:$0xf]
    %v2016 = vld [vmem:[%s6 + $0x31c] sm:$0xf]
    %v2017 = vld [vmem:[%s6 + $0x320] sm:$0xf]
    %v2018 = vld [vmem:[%s6 + $0x324] sm:$0xf]
    %v2019 = vld [vmem:[%s6 + $0x328] sm:$0xf]
    %v2020 = vld [vmem:[%s6 + $0x32c] sm:$0xf]
    %v2021 = vld [vmem:[%s6 + $0x330] sm:$0xf]
    %v2022 = vld [vmem:[%s6 + $0x334] sm:$0xf]
    %v2023 = vld [vmem:[%s6 + $0x338] sm:$0xf]
    %v2024 = vld [vmem:[%s6 + $0x33c] sm:$0xf]
    %v2025 = vld [vmem:[%s6 + $0x340] sm:$0xf]
    %v2026 = vld [vmem:[%s6 + $0x344] sm:$0xf]
    %v2027 = vld [vmem:[%s6 + $0x348] sm:$0xf]
    %v2028 = vld [vmem:[%s6 + $0x34c] sm:$0xf]
    %v2029 = vld [vmem:[%s6 + $0x350] sm:$0xf]
    %v2030 = vld [vmem:[%s6 + $0x354] sm:$0xf]
    %v2031 = vld [vmem:[%s6 + $0x358] sm:$0xf]
    %v2032 = vld [vmem:[%s6 + $0x35c] sm:$0xf]
    %v2033 = vld [vmem:[%s6 + $0x360] sm:$0xf]
    %v2034 = vld [vmem:[%s6 + $0x364] sm:$0xf]
    %v2035 = vld [vmem:[%s6 + $0x368] sm:$0xf]
    %v2036 = vld [vmem:[%s6 + $0x36c] sm:$0xf]
    %v2037 = vld [vmem:[%s6 + $0x370] sm:$0xf]
    %v2038 = vld [vmem:[%s6 + $0x374] sm:$0xf]
    %v2039 = vld [vmem:[%s6 + $0x378] sm:$0xf]
    %v2040 = vld [vmem:[%s6 + $0x37c] sm:$0xf]
    %v2041 = vld [vmem:[%s6 + $0x380] sm:$0xf]
    %v2042 = vld [vmem:[%s6 + $0x384] sm:$0xf]
    %v2043 = vld [vmem:[%s6 + $0x388] sm:$0xf]
    %v2044 = vld [vmem:[%s6 + $0x38c] sm:$0xf]
    %v2045 = vld [vmem:[%s6 + $0x390] sm:$0xf]
    %v2046 = vld [vmem:[%s6 + $0x394] sm:$0xf]
    %v2047 = vld [vmem:[%s6 + $0x398] sm:$0xf]
    %v2048 = vld [vmem:[%s6 + $0x39c] sm:$0xf]
    %v2049 = vld [vmem:[%s6 + $0x3a0] sm:$0xf]
    %v2050 = vld [vmem:[%s6 + $0x3a4] sm:$0xf]
    %v2051 = vld [vmem:[%s6 + $0x3a8] sm:$0xf]
    %v2052 = vld [vmem:[%s6 + $0x3ac] sm:$0xf]
    %v2053 = vld [vmem:[%s6 + $0x3b0] sm:$0xf]
    %v2054 = vld [vmem:[%s6 + $0x3b4] sm:$0xf]
    %v2055 = vld [vmem:[%s6 + $0x3b8] sm:$0xf]
    %v2056 = vld [vmem:[%s6 + $0x3bc] sm:$0xf]
    %v2057 = vld [vmem:[%s6 + $0x3c0] sm:$0xf]
    %v2058 = vld [vmem:[%s6 + $0x3c4] sm:$0xf]
    %v2059 = vld [vmem:[%s6 + $0x3c8] sm:$0xf]
    %v2060 = vld [vmem:[%s6 + $0x3cc] sm:$0xf]
    %v2061 = vld [vmem:[%s6 + $0x3d0] sm:$0xf]
    %v2062 = vld [vmem:[%s6 + $0x3d4] sm:$0xf]
    %v2063 = vld [vmem:[%s6 + $0x3d8] sm:$0xf]
    %v2064 = vld [vmem:[%s6 + $0x3dc] sm:$0xf]
    %v2065 = vld [vmem:[%s6 + $0x3e0] sm:$0xf]
    %v2066 = vld [vmem:[%s6 + $0x3e4] sm:$0xf]
    %v2067 = vld [vmem:[%s6 + $0x3e8] sm:$0xf]
    %v2068 = vld [vmem:[%s6 + $0x3ec] sm:$0xf]
    %v2069 = vld [vmem:[%s6 + $0x3f0] sm:$0xf]
    %v2070 = vld [vmem:[%s6 + $0x3f4] sm:$0xf]
    %v2071 = vld [vmem:[%s6 + $0x3f8] sm:$0xf]
    %v2072 = vld [vmem:[%s6 + $0x3fc] sm:$0xf]
    %v2073 = vld [vmem:[%s6 + $0x400] sm:$0xf]
    %v2074 = vld [vmem:[%s6 + $0x404] sm:$0xf]
    %v2075 = vld [vmem:[%s6 + $0x408] sm:$0xf]
    %v2076 = vld [vmem:[%s6 + $0x40c] sm:$0xf]
    %v2077 = vld [vmem:[%s6 + $0x410] sm:$0xf]
    %v2078 = vld [vmem:[%s6 + $0x414] sm:$0xf]
    %v2079 = vld [vmem:[%s6 + $0x418] sm:$0xf]
    %v2080 = vld [vmem:[%s6 + $0x41c] sm:$0xf]
    %v2081 = vld [vmem:[%s6 + $0x420] sm:$0xf]
    %v2082 = vld [vmem:[%s6 + $0x424] sm:$0xf]
    %v2083 = vld [vmem:[%s6 + $0x428] sm:$0xf]
    %v2084 = vld [vmem:[%s6 + $0x42c] sm:$0xf]
    %v2085 = vld [vmem:[%s6 + $0x430] sm:$0xf]
    %v2086 = vld [vmem:[%s6 + $0x434] sm:$0xf]
    %v2087 = vld [vmem:[%s6 + $0x438] sm:$0xf]
    %v2088 = vld [vmem:[%s6 + $0x43c] sm:$0xf]
    %v2089 = vld [vmem:[%s6 + $0x440] sm:$0xf]
    %v2090 = vld [vmem:[%s6 + $0x444] sm:$0xf]
    %v2091 = vld [vmem:[%s6 + $0x448] sm:$0xf]
    %v2092 = vld [vmem:[%s6 + $0x44c] sm:$0xf]
    %v2093 = vld [vmem:[%s6 + $0x450] sm:$0xf]
    %v2094 = vld [vmem:[%s6 + $0x454] sm:$0xf]
    %v2095 = vld [vmem:[%s6 + $0x458] sm:$0xf]
    %v2096 = vld [vmem:[%s6 + $0x45c] sm:$0xf]
    %v2097 = vld [vmem:[%s6 + $0x460] sm:$0xf]
    %v2098 = vld [vmem:[%s6 + $0x464] sm:$0xf]
    %v2099 = vld [vmem:[%s6 + $0x468] sm:$0xf]
    %v2100 = vld [vmem:[%s6 + $0x46c] sm:$0xf]
    %v2101 = vld [vmem:[%s6 + $0x470] sm:$0xf]
    %v2102 = vld [vmem:[%s6 + $0x474] sm:$0xf]
    %v2103 = vld [vmem:[%s6 + $0x478] sm:$0xf]
    %v2104 = vld [vmem:[%s6 + $0x47c] sm:$0xf]
    %v2105 = vld [vmem:[%s6 + $0x480] sm:$0xf]
    %v2106 = vld [vmem:[%s6 + $0x484] sm:$0xf]
    %v2107 = vld [vmem:[%s6 + $0x488] sm:$0xf]
    %v2108 = vld [vmem:[%s6 + $0x48c] sm:$0xf]
    %v2109 = vld [vmem:[%s6 + $0x490] sm:$0xf]
    %v2110 = vld [vmem:[%s6 + $0x494] sm:$0xf]
    %v2111 = vld [vmem:[%s6 + $0x498] sm:$0xf]
    %v2112 = vld [vmem:[%s6 + $0x49c] sm:$0xf]
    %v2113 = vld [vmem:[%s6 + $0x4a0] sm:$0xf]
    %v2114 = vld [vmem:[%s6 + $0x4a4] sm:$0xf]
    %v2115 = vld [vmem:[%s6 + $0x4a8] sm:$0xf]
    %v2116 = vld [vmem:[%s6 + $0x4ac] sm:$0xf]
    %v2117 = vld [vmem:[%s6 + $0x4b0] sm:$0xf]
    %v2118 = vld [vmem:[%s6 + $0x4b4] sm:$0xf]
    %v2119 = vld [vmem:[%s6 + $0x4b8] sm:$0xf]
    %v2120 = vld [vmem:[%s6 + $0x4bc] sm:$0xf]
    %v2121 = vld [vmem:[%s6 + $0x4c0] sm:$0xf]
    %v2122 = vld [vmem:[%s6 + $0x4c4] sm:$0xf]
    %v2123 = vld [vmem:[%s6 + $0x4c8] sm:$0xf]
    %v2124 = vld [vmem:[%s6 + $0x4cc] sm:$0xf]
    %v2125 = vld [vmem:[%s6 + $0x4d0] sm:$0xf]
    %v2126 = vld [vmem:[%s6 + $0x4d4] sm:$0xf]
    %v2127 = vld [vmem:[%s6 + $0x4d8] sm:$0xf]
    %v2128 = vld [vmem:[%s6 + $0x4dc] sm:$0xf]
    %v2129 = vld [vmem:[%s6 + $0x4e0] sm:$0xf]
    %v2130 = vld [vmem:[%s6 + $0x4e4] sm:$0xf]
    %v2131 = vld [vmem:[%s6 + $0x4e8] sm:$0xf]
    %v2132 = vld [vmem:[%s6 + $0x4ec] sm:$0xf]
    %v2133 = vld [vmem:[%s6 + $0x4f0] sm:$0xf]
    %v2134 = vld [vmem:[%s6 + $0x4f4] sm:$0xf]
    %v2135 = vld [vmem:[%s6 + $0x4f8] sm:$0xf]
    %v2136 = vld [vmem:[%s6 + $0x4fc] sm:$0xf]
    %v2137 = vld [vmem:[%s6 + $0x500] sm:$0xf]
    %v2138 = vld [vmem:[%s6 + $0x504] sm:$0xf]
    %v2139 = vld [vmem:[%s6 + $0x508] sm:$0xf]
    %v2140 = vld [vmem:[%s6 + $0x50c] sm:$0xf]
    %v2141 = vld [vmem:[%s6 + $0x510] sm:$0xf]
    %v2142 = vld [vmem:[%s6 + $0x514] sm:$0xf]
    %v2143 = vld [vmem:[%s6 + $0x518] sm:$0xf]
    %v2144 = vld [vmem:[%s6 + $0x51c] sm:$0xf]
    %v2145 = vld [vmem:[%s6 + $0x520] sm:$0xf]
    %v2146 = vld [vmem:[%s6 + $0x524] sm:$0xf]
    %v2147 = vld [vmem:[%s6 + $0x528] sm:$0xf]
    %v2148 = vld [vmem:[%s6 + $0x52c] sm:$0xf]
    %v2149 = vld [vmem:[%s6 + $0x530] sm:$0xf]
    %v2150 = vld [vmem:[%s6 + $0x534] sm:$0xf]
    %v2151 = vld [vmem:[%s6 + $0x538] sm:$0xf]
    %v2152 = vld [vmem:[%s6 + $0x53c] sm:$0xf]
    %v2153 = vld [vmem:[%s6 + $0x540] sm:$0xf]
    %v2154 = vld [vmem:[%s6 + $0x544] sm:$0xf]
    %v2155 = vld [vmem:[%s6 + $0x548] sm:$0xf]
    %v2156 = vld [vmem:[%s6 + $0x54c] sm:$0xf]
    %v2157 = vld [vmem:[%s6 + $0x550] sm:$0xf]
    %v2158 = vld [vmem:[%s6 + $0x554] sm:$0xf]
    %v2159 = vld [vmem:[%s6 + $0x558] sm:$0xf]
    %v2160 = vld [vmem:[%s6 + $0x55c] sm:$0xf]
    %v2161 = vld [vmem:[%s6 + $0x560] sm:$0xf]
    %v2162 = vld [vmem:[%s6 + $0x564] sm:$0xf]
    %v2163 = vld [vmem:[%s6 + $0x568] sm:$0xf]
    %v2164 = vld [vmem:[%s6 + $0x56c] sm:$0xf]
    %v2165 = vld [vmem:[%s6 + $0x570] sm:$0xf]
    %v2166 = vld [vmem:[%s6 + $0x574] sm:$0xf]
    %v2167 = vld [vmem:[%s6 + $0x578] sm:$0xf]
    %v2168 = vld [vmem:[%s6 + $0x57c] sm:$0xf]
    %v2169 = vld [vmem:[%s6 + $0x580] sm:$0xf]
    %v2170 = vld [vmem:[%s6 + $0x584] sm:$0xf]
    %v2171 = vld [vmem:[%s6 + $0x588] sm:$0xf]
    %v2172 = vld [vmem:[%s6 + $0x58c] sm:$0xf]
    %v2173 = vld [vmem:[%s6 + $0x590] sm:$0xf]
    %v2174 = vld [vmem:[%s6 + $0x594] sm:$0xf]
    %v2175 = vld [vmem:[%s6 + $0x598] sm:$0xf]
    %v2176 = vld [vmem:[%s6 + $0x59c] sm:$0xf]
    %v2177 = vld [vmem:[%s6 + $0x5a0] sm:$0xf]
    %v2178 = vld [vmem:[%s6 + $0x5a4] sm:$0xf]
    %v2179 = vld [vmem:[%s6 + $0x5a8] sm:$0xf]
    %v2180 = vld [vmem:[%s6 + $0x5ac] sm:$0xf]
    %v2181 = vld [vmem:[%s6 + $0x5b0] sm:$0xf]
    %v2182 = vld [vmem:[%s6 + $0x5b4] sm:$0xf]
    %v2183 = vld [vmem:[%s6 + $0x5b8] sm:$0xf]
    %v2184 = vld [vmem:[%s6 + $0x5bc] sm:$0xf]
    %v2185 = vld [vmem:[%s6 + $0x5c0] sm:$0xf]
    %v2186 = vld [vmem:[%s6 + $0x5c4] sm:$0xf]
    %v2187 = vld [vmem:[%s6 + $0x5c8] sm:$0xf]
    %v2188 = vld [vmem:[%s6 + $0x5cc] sm:$0xf]
    %v2189 = vld [vmem:[%s6 + $0x5d0] sm:$0xf]
    %v2190 = vld [vmem:[%s6 + $0x5d4] sm:$0xf]
    %v2191 = vld [vmem:[%s6 + $0x5d8] sm:$0xf]
    %v2192 = vld [vmem:[%s6 + $0x5dc] sm:$0xf]
    %v2193 = vld [vmem:[%s6 + $0x5e0] sm:$0xf]
    %v2194 = vld [vmem:[%s6 + $0x5e4] sm:$0xf]
    %v2195 = vld [vmem:[%s6 + $0x5e8] sm:$0xf]
    %v2196 = vld [vmem:[%s6 + $0x5ec] sm:$0xf]
    %v2197 = vld [vmem:[%s6 + $0x5f0] sm:$0xf]
    %v2198 = vld [vmem:[%s6 + $0x5f4] sm:$0xf]
    %v2199 = vld [vmem:[%s6 + $0x5f8] sm:$0xf]
    %v2200 = vld [vmem:[%s6 + $0x5fc] sm:$0xf]
    %v2201 = vld [vmem:[%s6 + $0x600] sm:$0xf]
    %v2202 = vld [vmem:[%s6 + $0x604] sm:$0xf]
    %v2203 = vld [vmem:[%s6 + $0x608] sm:$0xf]
    %v2204 = vld [vmem:[%s6 + $0x60c] sm:$0xf]
    %v2205 = vld [vmem:[%s6 + $0x610] sm:$0xf]
    %v2206 = vld [vmem:[%s6 + $0x614] sm:$0xf]
    %v2207 = vld [vmem:[%s6 + $0x618] sm:$0xf]
    %v2208 = vld [vmem:[%s6 + $0x61c] sm:$0xf]
    %v2209 = vld [vmem:[%s6 + $0x620] sm:$0xf]
    %v2210 = vld [vmem:[%s6 + $0x624] sm:$0xf]
    %v2211 = vld [vmem:[%s6 + $0x628] sm:$0xf]
    %v2212 = vld [vmem:[%s6 + $0x62c] sm:$0xf]
    %v2213 = vld [vmem:[%s6 + $0x630] sm:$0xf]
    %v2214 = vld [vmem:[%s6 + $0x634] sm:$0xf]
    %v2215 = vld [vmem:[%s6 + $0x638] sm:$0xf]
    %v2216 = vld [vmem:[%s6 + $0x63c] sm:$0xf]
    %v2217 = vld [vmem:[%s7] sm:$0x1]
    %v2219 = vlaneseq
    %v2220 = vshrl.u32 %v2219, 7
    %v2221 = vsub.s32 0, %v2220
    %v2222 = vrot.slane %v2217, %v2221
    %v2228 = vcombine.high %v1813, %v1813
    %v2230 = vunpack.c.l.s4 1966171168
    %v2231 = vunpack.c.0.s8 %v2230
    %v2232 = vlaneseq
    %v2233 = vshrl.u32 %v2232, 7
    %v2234 = vsub.s32 %v2231, %v2233
    %v2235 = vrot.slane %v1813, %v2234
    %v2237 = vunpack.c.l.s4 1966171168
    %v2238 = vunpack.c.0.s8 %v2237
    %v2239 = vlaneseq
    %v2240 = vshrl.u32 %v2239, 7
    %v2241 = vsub.s32 %v2238, %v2240
    %v2242 = vrot.slane %v2228, %v2241
    %v2243 = vcombine.high %v2235, %v2235
    %v2244 = vcombine.high %v2242, %v2242
    %v2246 = vunpack.c.l.s4 1966171168
    %v2247 = vunpack.c.0.s8 %v2246
    %v2248 = vlaneseq
    %v2249 = vshrl.u32 %v2248, 7
    %v2250 = vsub.s32 %v2247, %v2249
    %v2251 = vrot.slane %v2235, %v2250
    %v2253 = vunpack.c.l.s4 1966171168
    %v2254 = vunpack.c.0.s8 %v2253
    %v2255 = vlaneseq
    %v2256 = vshrl.u32 %v2255, 7
    %v2257 = vsub.s32 %v2254, %v2256
    %v2258 = vrot.slane %v2242, %v2257
    %v2260 = vunpack.c.l.s4 1966171168
    %v2261 = vunpack.c.0.s8 %v2260
    %v2262 = vlaneseq
    %v2263 = vshrl.u32 %v2262, 7
    %v2264 = vsub.s32 %v2261, %v2263
    %v2265 = vrot.slane %v2243, %v2264
    %v2267 = vunpack.c.l.s4 1966171168
    %v2268 = vunpack.c.0.s8 %v2267
    %v2269 = vlaneseq
    %v2270 = vshrl.u32 %v2269, 7
    %v2271 = vsub.s32 %v2268, %v2270
    %v2272 = vrot.slane %v2244, %v2271
    %v2273 = vcombine.high %v2251, %v2251
    %v2274 = vcombine.high %v2258, %v2258
    %v2275 = vcombine.high %v2265, %v2265
    %v2276 = vcombine.high %v2272, %v2272
    %v2277 = vcombine.high %v1814, %v1814
    %v2279 = vunpack.c.l.s4 1966171168
    %v2280 = vunpack.c.0.s8 %v2279
    %v2281 = vlaneseq
    %v2282 = vshrl.u32 %v2281, 7
    %v2283 = vsub.s32 %v2280, %v2282
    %v2284 = vrot.slane %v1814, %v2283
    %v2286 = vunpack.c.l.s4 1966171168
    %v2287 = vunpack.c.0.s8 %v2286
    %v2288 = vlaneseq
    %v2289 = vshrl.u32 %v2288, 7
    %v2290 = vsub.s32 %v2287, %v2289
    %v2291 = vrot.slane %v2277, %v2290
    %v2292 = vcombine.high %v2284, %v2284
    %v2293 = vcombine.high %v2291, %v2291
    %v2295 = vunpack.c.l.s4 1966171168
    %v2296 = vunpack.c.0.s8 %v2295
    %v2297 = vlaneseq
    %v2298 = vshrl.u32 %v2297, 7
    %v2299 = vsub.s32 %v2296, %v2298
    %v2300 = vrot.slane %v2284, %v2299
    %v2302 = vunpack.c.l.s4 1966171168
    %v2303 = vunpack.c.0.s8 %v2302
    %v2304 = vlaneseq
    %v2305 = vshrl.u32 %v2304, 7
    %v2306 = vsub.s32 %v2303, %v2305
    %v2307 = vrot.slane %v2291, %v2306
    %v2309 = vunpack.c.l.s4 1966171168
    %v2310 = vunpack.c.0.s8 %v2309
    %v2311 = vlaneseq
    %v2312 = vshrl.u32 %v2311, 7
    %v2313 = vsub.s32 %v2310, %v2312
    %v2314 = vrot.slane %v2292, %v2313
    %v2316 = vunpack.c.l.s4 1966171168
    %v2317 = vunpack.c.0.s8 %v2316
    %v2318 = vlaneseq
    %v2319 = vshrl.u32 %v2318, 7
    %v2320 = vsub.s32 %v2317, %v2319
    %v2321 = vrot.slane %v2293, %v2320
    %v2322 = vcombine.high %v2300, %v2300
    %v2323 = vcombine.high %v2307, %v2307
    %v2324 = vcombine.high %v2314, %v2314
    %v2325 = vcombine.high %v2321, %v2321
    %v2326 = vcombine.high %v1815, %v1815
    %v2328 = vunpack.c.l.s4 1966171168
    %v2329 = vunpack.c.0.s8 %v2328
    %v2330 = vlaneseq
    %v2331 = vshrl.u32 %v2330, 7
    %v2332 = vsub.s32 %v2329, %v2331
    %v2333 = vrot.slane %v1815, %v2332
    %v2335 = vunpack.c.l.s4 1966171168
    %v2336 = vunpack.c.0.s8 %v2335
    %v2337 = vlaneseq
    %v2338 = vshrl.u32 %v2337, 7
    %v2339 = vsub.s32 %v2336, %v2338
    %v2340 = vrot.slane %v2326, %v2339
    %v2341 = vcombine.high %v2333, %v2333
    %v2342 = vcombine.high %v2340, %v2340
    %v2344 = vunpack.c.l.s4 1966171168
    %v2345 = vunpack.c.0.s8 %v2344
    %v2346 = vlaneseq
    %v2347 = vshrl.u32 %v2346, 7
    %v2348 = vsub.s32 %v2345, %v2347
    %v2349 = vrot.slane %v2333, %v2348
    %v2351 = vunpack.c.l.s4 1966171168
    %v2352 = vunpack.c.0.s8 %v2351
    %v2353 = vlaneseq
    %v2354 = vshrl.u32 %v2353, 7
    %v2355 = vsub.s32 %v2352, %v2354
    %v2356 = vrot.slane %v2340, %v2355
    %v2358 = vunpack.c.l.s4 1966171168
    %v2359 = vunpack.c.0.s8 %v2358
    %v2360 = vlaneseq
    %v2361 = vshrl.u32 %v2360, 7
    %v2362 = vsub.s32 %v2359, %v2361
    %v2363 = vrot.slane %v2341, %v2362
    %v2365 = vunpack.c.l.s4 1966171168
    %v2366 = vunpack.c.0.s8 %v2365
    %v2367 = vlaneseq
    %v2368 = vshrl.u32 %v2367, 7
    %v2369 = vsub.s32 %v2366, %v2368
    %v2370 = vrot.slane %v2342, %v2369
    %v2371 = vcombine.high %v2349, %v2349
    %v2372 = vcombine.high %v2356, %v2356
    %v2373 = vcombine.high %v2363, %v2363
    %v2374 = vcombine.high %v2370, %v2370
    %v2376 = vunpack.c.l.s4 1966171168
    %v2377 = vunpack.c.0.s8 %v2376
    %v2378 = vlaneseq
    %v2379 = vshrl.u32 %v2378, 7
    %v2380 = vsub.s32 %v2377, %v2379
    %v2381 = vrot.slane %v1816, %v2380
    %v2383 = vunpack.c.l.s4 1966171168
    %v2384 = vunpack.c.0.s8 %v2383
    %v2385 = vlaneseq
    %v2386 = vshrl.u32 %v2385, 7
    %v2387 = vsub.s32 %v2384, %v2386
    %v2388 = vrot.slane %v2381, %v2387
    %v2814 = vunpack.c.l.b16 %v1817
    %v2815 = vunpack.c.l.b16 %v1818
    %v2816 = vunpack.c.l.b16 %v1819
    %v2817 = vunpack.c.l.b16 %v1820
    %v2818 = vunpack.c.l.b16 %v1821
    %v2819 = vunpack.c.l.b16 %v1822
    %v2820 = vunpack.c.l.b16 %v1823
    %v2821 = vunpack.c.l.b16 %v1824
    %v2822 = vunpack.c.l.b16 %v1825
    %v2823 = vunpack.c.l.b16 %v1826
    %v2824 = vunpack.c.l.b16 %v1827
    %v2825 = vunpack.c.l.b16 %v1828
    %v2826 = vunpack.c.l.b16 %v1829
    %v2827 = vunpack.c.l.b16 %v1830
    %v2828 = vunpack.c.l.b16 %v1831
    %v2829 = vunpack.c.l.b16 %v1832
    %v2830 = vunpack.c.l.b16 %v1833
    %v2831 = vunpack.c.l.b16 %v1834
    %v2832 = vunpack.c.l.b16 %v1835
    %v2833 = vunpack.c.l.b16 %v1836
    %v2834 = vunpack.c.l.b16 %v1837
    %v2835 = vunpack.c.l.b16 %v1838
    %v2836 = vunpack.c.l.b16 %v1839
    %v2837 = vunpack.c.l.b16 %v1840
    %v2838 = vunpack.c.l.b16 %v1841
    %v2839 = vunpack.c.l.b16 %v1842
    %v2840 = vunpack.c.l.b16 %v1843
    %v2841 = vunpack.c.l.b16 %v1844
    %v2842 = vunpack.c.l.b16 %v1845
    %v2843 = vunpack.c.l.b16 %v1846
    %v2844 = vunpack.c.l.b16 %v1847
    %v2845 = vunpack.c.l.b16 %v1848
    %v2846 = vunpack.c.l.b16 %v1849
    %v2847 = vunpack.c.l.b16 %v1850
    %v2848 = vunpack.c.l.b16 %v1851
    %v2849 = vunpack.c.l.b16 %v1852
    %v2850 = vunpack.c.l.b16 %v1853
    %v2851 = vunpack.c.l.b16 %v1854
    %v2852 = vunpack.c.l.b16 %v1855
    %v2853 = vunpack.c.l.b16 %v1856
    %v2854 = vunpack.c.l.b16 %v1857
    %v2855 = vunpack.c.l.b16 %v1858
    %v2856 = vunpack.c.l.b16 %v1859
    %v2857 = vunpack.c.l.b16 %v1860
    %v2858 = vunpack.c.l.b16 %v1861
    %v2859 = vunpack.c.l.b16 %v1862
    %v2860 = vunpack.c.l.b16 %v1863
    %v2861 = vunpack.c.l.b16 %v1864
    %v2862 = vunpack.c.l.b16 %v1865
    %v2863 = vunpack.c.l.b16 %v1866
    %v2864 = vunpack.c.l.b16 %v1867
    %v2865 = vunpack.c.l.b16 %v1868
    %v2866 = vunpack.c.l.b16 %v1869
    %v2867 = vunpack.c.l.b16 %v1870
    %v2868 = vunpack.c.l.b16 %v1871
    %v2869 = vunpack.c.l.b16 %v1872
    %v2870 = vunpack.c.l.b16 %v1873
    %v2871 = vunpack.c.l.b16 %v1874
    %v2872 = vunpack.c.l.b16 %v1875
    %v2873 = vunpack.c.l.b16 %v1876
    %v2874 = vunpack.c.l.b16 %v1877
    %v2875 = vunpack.c.l.b16 %v1878
    %v2876 = vunpack.c.l.b16 %v1879
    %v2877 = vunpack.c.l.b16 %v1880
    %v2878 = vunpack.c.l.b16 %v1881
    %v2879 = vunpack.c.l.b16 %v1882
    %v2880 = vunpack.c.l.b16 %v1883
    %v2881 = vunpack.c.l.b16 %v1884
    %v2882 = vunpack.c.l.b16 %v1885
    %v2883 = vunpack.c.l.b16 %v1886
    %v2884 = vunpack.c.l.b16 %v1887
    %v2885 = vunpack.c.l.b16 %v1888
    %v2886 = vunpack.c.l.b16 %v1889
    %v2887 = vunpack.c.l.b16 %v1890
    %v2888 = vunpack.c.l.b16 %v1891
    %v2889 = vunpack.c.l.b16 %v1892
    %v2890 = vunpack.c.l.b16 %v1893
    %v2891 = vunpack.c.l.b16 %v1894
    %v2892 = vunpack.c.l.b16 %v1895
    %v2893 = vunpack.c.l.b16 %v1896
    %v2894 = vunpack.c.l.b16 %v1897
    %v2895 = vunpack.c.l.b16 %v1898
    %v2896 = vunpack.c.l.b16 %v1899
    %v2897 = vunpack.c.l.b16 %v1900
    %v2898 = vunpack.c.l.b16 %v1901
    %v2899 = vunpack.c.l.b16 %v1902
    %v2900 = vunpack.c.l.b16 %v1903
    %v2901 = vunpack.c.l.b16 %v1904
    %v2902 = vunpack.c.l.b16 %v1905
    %v2903 = vunpack.c.l.b16 %v1906
    %v2904 = vunpack.c.l.b16 %v1907
    %v2905 = vunpack.c.l.b16 %v1908
    %v2906 = vunpack.c.l.b16 %v1909
    %v2907 = vunpack.c.l.b16 %v1910
    %v2908 = vunpack.c.l.b16 %v1911
    %v2909 = vunpack.c.l.b16 %v1912
    %v2910 = vunpack.c.l.b16 %v1913
    %v2911 = vunpack.c.l.b16 %v1914
    %v2912 = vunpack.c.l.b16 %v1915
    %v2913 = vunpack.c.l.b16 %v1916
    %v2914 = vunpack.c.l.b16 %v1917
    %v2915 = vunpack.c.l.b16 %v1918
    %v2916 = vunpack.c.l.b16 %v1919
    %v2917 = vunpack.c.l.b16 %v1920
    %v2918 = vunpack.c.l.b16 %v1921
    %v2919 = vunpack.c.l.b16 %v1922
    %v2920 = vunpack.c.l.b16 %v1923
    %v2921 = vunpack.c.l.b16 %v1924
    %v2922 = vunpack.c.l.b16 %v1925
    %v2923 = vunpack.c.l.b16 %v1926
    %v2924 = vunpack.c.l.b16 %v1927
    %v2925 = vunpack.c.l.b16 %v1928
    %v2926 = vunpack.c.l.b16 %v1929
    %v2927 = vunpack.c.l.b16 %v1930
    %v2928 = vunpack.c.l.b16 %v1931
    %v2929 = vunpack.c.l.b16 %v1932
    %v2930 = vunpack.c.l.b16 %v1933
    %v2931 = vunpack.c.l.b16 %v1934
    %v2932 = vunpack.c.l.b16 %v1935
    %v2933 = vunpack.c.l.b16 %v1936
    %v2934 = vunpack.c.l.b16 %v1937
    %v2935 = vunpack.c.l.b16 %v1938
    %v2936 = vunpack.c.l.b16 %v1939
    %v2937 = vunpack.c.l.b16 %v1940
    %v2938 = vunpack.c.l.b16 %v1941
    %v2939 = vunpack.c.l.b16 %v1942
    %v2940 = vunpack.c.l.b16 %v1943
    %v2941 = vunpack.c.l.b16 %v1944
    %v2942 = vunpack.c.l.b16 %v1945
    %v2943 = vunpack.c.l.b16 %v1946
    %v2944 = vunpack.c.l.b16 %v1947
    %v2945 = vunpack.c.l.b16 %v1948
    %v2946 = vunpack.c.l.b16 %v1949
    %v2947 = vunpack.c.l.b16 %v1950
    %v2948 = vunpack.c.l.b16 %v1951
    %v2949 = vunpack.c.l.b16 %v1952
    %v2950 = vunpack.c.l.b16 %v1953
    %v2951 = vunpack.c.l.b16 %v1954
    %v2952 = vunpack.c.l.b16 %v1955
    %v2953 = vunpack.c.l.b16 %v1956
    %v2954 = vunpack.c.l.b16 %v1957
    %v2955 = vunpack.c.l.b16 %v1958
    %v2956 = vunpack.c.l.b16 %v1959
    %v2957 = vunpack.c.l.b16 %v1960
    %v2958 = vunpack.c.l.b16 %v1961
    %v2959 = vunpack.c.l.b16 %v1962
    %v2960 = vunpack.c.l.b16 %v1963
    %v2961 = vunpack.c.l.b16 %v1964
    %v2962 = vunpack.c.l.b16 %v1965
    %v2963 = vunpack.c.l.b16 %v1966
    %v2964 = vunpack.c.l.b16 %v1967
    %v2965 = vunpack.c.l.b16 %v1968
    %v2966 = vunpack.c.l.b16 %v1969
    %v2967 = vunpack.c.l.b16 %v1970
    %v2968 = vunpack.c.l.b16 %v1971
    %v2969 = vunpack.c.l.b16 %v1972
    %v2970 = vunpack.c.l.b16 %v1973
    %v2971 = vunpack.c.l.b16 %v1974
    %v2972 = vunpack.c.l.b16 %v1975
    %v2973 = vunpack.c.l.b16 %v1976
    %v2974 = vunpack.c.l.b16 %v1977
    %v2975 = vunpack.c.l.b16 %v1978
    %v2976 = vunpack.c.l.b16 %v1979
    %v2977 = vunpack.c.l.b16 %v1980
    %v2978 = vunpack.c.l.b16 %v1981
    %v2979 = vunpack.c.l.b16 %v1982
    %v2980 = vunpack.c.l.b16 %v1983
    %v2981 = vunpack.c.l.b16 %v1984
    %v2982 = vunpack.c.l.b16 %v1985
    %v2983 = vunpack.c.l.b16 %v1986
    %v2984 = vunpack.c.l.b16 %v1987
    %v2985 = vunpack.c.l.b16 %v1988
    %v2986 = vunpack.c.l.b16 %v1989
    %v2987 = vunpack.c.l.b16 %v1990
    %v2988 = vunpack.c.l.b16 %v1991
    %v2989 = vunpack.c.l.b16 %v1992
    %v2990 = vunpack.c.l.b16 %v1993
    %v2991 = vunpack.c.l.b16 %v1994
    %v2992 = vunpack.c.l.b16 %v1995
    %v2993 = vunpack.c.l.b16 %v1996
    %v2994 = vunpack.c.l.b16 %v1997
    %v2995 = vunpack.c.l.b16 %v1998
    %v2996 = vunpack.c.l.b16 %v1999
    %v2997 = vunpack.c.l.b16 %v2000
    %v2998 = vunpack.c.l.b16 %v2001
    %v2999 = vunpack.c.l.b16 %v2002
    %v3000 = vunpack.c.l.b16 %v2003
    %v3001 = vunpack.c.l.b16 %v2004
    %v3002 = vunpack.c.l.b16 %v2005
    %v3003 = vunpack.c.l.b16 %v2006
    %v3004 = vunpack.c.l.b16 %v2007
    %v3005 = vunpack.c.l.b16 %v2008
    %v3006 = vunpack.c.l.b16 %v2009
    %v3007 = vunpack.c.l.b16 %v2010
    %v3008 = vunpack.c.l.b16 %v2011
    %v3009 = vunpack.c.l.b16 %v2012
    %v3010 = vunpack.c.l.b16 %v2013
    %v3011 = vunpack.c.l.b16 %v2014
    %v3012 = vunpack.c.l.b16 %v2015
    %v3013 = vunpack.c.l.b16 %v2016
    %v3014 = vunpack.c.l.b16 %v2017
    %v3015 = vunpack.c.l.b16 %v2018
    %v3016 = vunpack.c.l.b16 %v2019
    %v3017 = vunpack.c.l.b16 %v2020
    %v3018 = vunpack.c.l.b16 %v2021
    %v3019 = vunpack.c.l.b16 %v2022
    %v3020 = vunpack.c.l.b16 %v2023
    %v3021 = vunpack.c.l.b16 %v2024
    %v3022 = vunpack.c.l.b16 %v2025
    %v3023 = vunpack.c.l.b16 %v2026
    %v3024 = vunpack.c.l.b16 %v2027
    %v3025 = vunpack.c.l.b16 %v2028
    %v3026 = vunpack.c.l.b16 %v2029
    %v3027 = vunpack.c.l.b16 %v2030
    %v3028 = vunpack.c.l.b16 %v2031
    %v3029 = vunpack.c.l.b16 %v2032
    %v3030 = vunpack.c.l.b16 %v2033
    %v3031 = vunpack.c.l.b16 %v2034
    %v3032 = vunpack.c.l.b16 %v2035
    %v3033 = vunpack.c.l.b16 %v2036
    %v3034 = vunpack.c.l.b16 %v2037
    %v3035 = vunpack.c.l.b16 %v2038
    %v3036 = vunpack.c.l.b16 %v2039
    %v3037 = vunpack.c.l.b16 %v2040
    %v3038 = vunpack.c.l.b16 %v2041
    %v3039 = vunpack.c.l.b16 %v2042
    %v3040 = vunpack.c.l.b16 %v2043
    %v3041 = vunpack.c.l.b16 %v2044
    %v3042 = vunpack.c.l.b16 %v2045
    %v3043 = vunpack.c.l.b16 %v2046
    %v3044 = vunpack.c.l.b16 %v2047
    %v3045 = vunpack.c.l.b16 %v2048
    %v3046 = vunpack.c.l.b16 %v2049
    %v3047 = vunpack.c.l.b16 %v2050
    %v3048 = vunpack.c.l.b16 %v2051
    %v3049 = vunpack.c.l.b16 %v2052
    %v3050 = vunpack.c.l.b16 %v2053
    %v3051 = vunpack.c.l.b16 %v2054
    %v3052 = vunpack.c.l.b16 %v2055
    %v3053 = vunpack.c.l.b16 %v2056
    %v3054 = vunpack.c.l.b16 %v2057
    %v3055 = vunpack.c.l.b16 %v2058
    %v3056 = vunpack.c.l.b16 %v2059
    %v3057 = vunpack.c.l.b16 %v2060
    %v3058 = vunpack.c.l.b16 %v2061
    %v3059 = vunpack.c.l.b16 %v2062
    %v3060 = vunpack.c.l.b16 %v2063
    %v3061 = vunpack.c.l.b16 %v2064
    %v3062 = vunpack.c.l.b16 %v2065
    %v3063 = vunpack.c.l.b16 %v2066
    %v3064 = vunpack.c.l.b16 %v2067
    %v3065 = vunpack.c.l.b16 %v2068
    %v3066 = vunpack.c.l.b16 %v2069
    %v3067 = vunpack.c.l.b16 %v2070
    %v3068 = vunpack.c.l.b16 %v2071
    %v3069 = vunpack.c.l.b16 %v2072
    %v3070 = vunpack.c.l.b16 %v2073
    %v3071 = vunpack.c.l.b16 %v2074
    %v3072 = vunpack.c.l.b16 %v2075
    %v3073 = vunpack.c.l.b16 %v2076
    %v3074 = vunpack.c.l.b16 %v2077
    %v3075 = vunpack.c.l.b16 %v2078
    %v3076 = vunpack.c.l.b16 %v2079
    %v3077 = vunpack.c.l.b16 %v2080
    %v3078 = vunpack.c.l.b16 %v2081
    %v3079 = vunpack.c.l.b16 %v2082
    %v3080 = vunpack.c.l.b16 %v2083
    %v3081 = vunpack.c.l.b16 %v2084
    %v3082 = vunpack.c.l.b16 %v2085
    %v3083 = vunpack.c.l.b16 %v2086
    %v3084 = vunpack.c.l.b16 %v2087
    %v3085 = vunpack.c.l.b16 %v2088
    %v3086 = vunpack.c.l.b16 %v2089
    %v3087 = vunpack.c.l.b16 %v2090
    %v3088 = vunpack.c.l.b16 %v2091
    %v3089 = vunpack.c.l.b16 %v2092
    %v3090 = vunpack.c.l.b16 %v2093
    %v3091 = vunpack.c.l.b16 %v2094
    %v3092 = vunpack.c.l.b16 %v2095
    %v3093 = vunpack.c.l.b16 %v2096
    %v3094 = vunpack.c.l.b16 %v2097
    %v3095 = vunpack.c.l.b16 %v2098
    %v3096 = vunpack.c.l.b16 %v2099
    %v3097 = vunpack.c.l.b16 %v2100
    %v3098 = vunpack.c.l.b16 %v2101
    %v3099 = vunpack.c.l.b16 %v2102
    %v3100 = vunpack.c.l.b16 %v2103
    %v3101 = vunpack.c.l.b16 %v2104
    %v3102 = vunpack.c.l.b16 %v2105
    %v3103 = vunpack.c.l.b16 %v2106
    %v3104 = vunpack.c.l.b16 %v2107
    %v3105 = vunpack.c.l.b16 %v2108
    %v3106 = vunpack.c.l.b16 %v2109
    %v3107 = vunpack.c.l.b16 %v2110
    %v3108 = vunpack.c.l.b16 %v2111
    %v3109 = vunpack.c.l.b16 %v2112
    %v3110 = vunpack.c.l.b16 %v2113
    %v3111 = vunpack.c.l.b16 %v2114
    %v3112 = vunpack.c.l.b16 %v2115
    %v3113 = vunpack.c.l.b16 %v2116
    %v3114 = vunpack.c.l.b16 %v2117
    %v3115 = vunpack.c.l.b16 %v2118
    %v3116 = vunpack.c.l.b16 %v2119
    %v3117 = vunpack.c.l.b16 %v2120
    %v3118 = vunpack.c.l.b16 %v2121
    %v3119 = vunpack.c.l.b16 %v2122
    %v3120 = vunpack.c.l.b16 %v2123
    %v3121 = vunpack.c.l.b16 %v2124
    %v3122 = vunpack.c.l.b16 %v2125
    %v3123 = vunpack.c.l.b16 %v2126
    %v3124 = vunpack.c.l.b16 %v2127
    %v3125 = vunpack.c.l.b16 %v2128
    %v3126 = vunpack.c.l.b16 %v2129
    %v3127 = vunpack.c.l.b16 %v2130
    %v3128 = vunpack.c.l.b16 %v2131
    %v3129 = vunpack.c.l.b16 %v2132
    %v3130 = vunpack.c.l.b16 %v2133
    %v3131 = vunpack.c.l.b16 %v2134
    %v3132 = vunpack.c.l.b16 %v2135
    %v3133 = vunpack.c.l.b16 %v2136
    %v3134 = vunpack.c.l.b16 %v2137
    %v3135 = vunpack.c.l.b16 %v2138
    %v3136 = vunpack.c.l.b16 %v2139
    %v3137 = vunpack.c.l.b16 %v2140
    %v3138 = vunpack.c.l.b16 %v2141
    %v3139 = vunpack.c.l.b16 %v2142
    %v3140 = vunpack.c.l.b16 %v2143
    %v3141 = vunpack.c.l.b16 %v2144
    %v3142 = vunpack.c.l.b16 %v2145
    %v3143 = vunpack.c.l.b16 %v2146
    %v3144 = vunpack.c.l.b16 %v2147
    %v3145 = vunpack.c.l.b16 %v2148
    %v3146 = vunpack.c.l.b16 %v2149
    %v3147 = vunpack.c.l.b16 %v2150
    %v3148 = vunpack.c.l.b16 %v2151
    %v3149 = vunpack.c.l.b16 %v2152
    %v3150 = vunpack.c.l.b16 %v2153
    %v3151 = vunpack.c.l.b16 %v2154
    %v3152 = vunpack.c.l.b16 %v2155
    %v3153 = vunpack.c.l.b16 %v2156
    %v3154 = vunpack.c.l.b16 %v2157
    %v3155 = vunpack.c.l.b16 %v2158
    %v3156 = vunpack.c.l.b16 %v2159
    %v3157 = vunpack.c.l.b16 %v2160
    %v3158 = vunpack.c.l.b16 %v2161
    %v3159 = vunpack.c.l.b16 %v2162
    %v3160 = vunpack.c.l.b16 %v2163
    %v3161 = vunpack.c.l.b16 %v2164
    %v3162 = vunpack.c.l.b16 %v2165
    %v3163 = vunpack.c.l.b16 %v2166
    %v3164 = vunpack.c.l.b16 %v2167
    %v3165 = vunpack.c.l.b16 %v2168
    %v3166 = vunpack.c.l.b16 %v2169
    %v3167 = vunpack.c.l.b16 %v2170
    %v3168 = vunpack.c.l.b16 %v2171
    %v3169 = vunpack.c.l.b16 %v2172
    %v3170 = vunpack.c.l.b16 %v2173
    %v3171 = vunpack.c.l.b16 %v2174
    %v3172 = vunpack.c.l.b16 %v2175
    %v3173 = vunpack.c.l.b16 %v2176
    %v3174 = vunpack.c.l.b16 %v2177
    %v3175 = vunpack.c.l.b16 %v2178
    %v3176 = vunpack.c.l.b16 %v2179
    %v3177 = vunpack.c.l.b16 %v2180
    %v3178 = vunpack.c.l.b16 %v2181
    %v3179 = vunpack.c.l.b16 %v2182
    %v3180 = vunpack.c.l.b16 %v2183
    %v3181 = vunpack.c.l.b16 %v2184
    %v3182 = vunpack.c.l.b16 %v2185
    %v3183 = vunpack.c.l.b16 %v2186
    %v3184 = vunpack.c.l.b16 %v2187
    %v3185 = vunpack.c.l.b16 %v2188
    %v3186 = vunpack.c.l.b16 %v2189
    %v3187 = vunpack.c.l.b16 %v2190
    %v3188 = vunpack.c.l.b16 %v2191
    %v3189 = vunpack.c.l.b16 %v2192
    %v3190 = vunpack.c.l.b16 %v2193
    %v3191 = vunpack.c.l.b16 %v2194
    %v3192 = vunpack.c.l.b16 %v2195
    %v3193 = vunpack.c.l.b16 %v2196
    %v3194 = vunpack.c.l.b16 %v2197
    %v3195 = vunpack.c.l.b16 %v2198
    %v3196 = vunpack.c.l.b16 %v2199
    %v3197 = vunpack.c.l.b16 %v2200
    %v3198 = vunpack.c.l.b16 %v2201
    %v3199 = vunpack.c.l.b16 %v2202
    %v3200 = vunpack.c.l.b16 %v2203
    %v3201 = vunpack.c.l.b16 %v2204
    %v3202 = vunpack.c.l.b16 %v2205
    %v3203 = vunpack.c.l.b16 %v2206
    %v3204 = vunpack.c.l.b16 %v2207
    %v3205 = vunpack.c.l.b16 %v2208
    %v3206 = vunpack.c.l.b16 %v2209
    %v3207 = vunpack.c.l.b16 %v2210
    %v3208 = vunpack.c.l.b16 %v2211
    %v3209 = vunpack.c.l.b16 %v2212
    %v3210 = vunpack.c.l.b16 %v2213
    %v3211 = vunpack.c.l.b16 %v2214
    %v3212 = vunpack.c.l.b16 %v2215
    %v3213 = vunpack.c.l.b16 %v2216
    %v3214 = vpack.c.b16 %v2815, %v2814
    %v3215 = vpack.c.b16 %v2817, %v2816
    %v3216 = vpack.c.b16 %v2819, %v2818
    %v3217 = vpack.c.b16 %v2821, %v2820
    %v3218 = vpack.c.b16 %v2823, %v2822
    %v3219 = vpack.c.b16 %v2825, %v2824
    %v3220 = vpack.c.b16 %v2827, %v2826
    %v3221 = vpack.c.b16 %v2829, %v2828
    %v3222 = vpack.c.b16 %v2831, %v2830
    %v3223 = vpack.c.b16 %v2833, %v2832
    %v3224 = vpack.c.b16 %v2835, %v2834
    %v3225 = vpack.c.b16 %v2837, %v2836
    %v3226 = vpack.c.b16 %v2839, %v2838
    %v3227 = vpack.c.b16 %v2841, %v2840
    %v3228 = vpack.c.b16 %v2843, %v2842
    %v3229 = vpack.c.b16 %v2845, %v2844
    %v3230 = vpack.c.b16 %v2847, %v2846
    %v3231 = vpack.c.b16 %v2849, %v2848
    %v3232 = vpack.c.b16 %v2851, %v2850
    %v3233 = vpack.c.b16 %v2853, %v2852
    %v3234 = vpack.c.b16 %v2855, %v2854
    %v3235 = vpack.c.b16 %v2857, %v2856
    %v3236 = vpack.c.b16 %v2859, %v2858
    %v3237 = vpack.c.b16 %v2861, %v2860
    %v3238 = vpack.c.b16 %v2863, %v2862
    %v3239 = vpack.c.b16 %v2865, %v2864
    %v3240 = vpack.c.b16 %v2867, %v2866
    %v3241 = vpack.c.b16 %v2869, %v2868
    %v3242 = vpack.c.b16 %v2871, %v2870
    %v3243 = vpack.c.b16 %v2873, %v2872
    %v3244 = vpack.c.b16 %v2875, %v2874
    %v3245 = vpack.c.b16 %v2877, %v2876
    %v3246 = vpack.c.b16 %v2879, %v2878
    %v3247 = vpack.c.b16 %v2881, %v2880
    %v3248 = vpack.c.b16 %v2883, %v2882
    %v3249 = vpack.c.b16 %v2885, %v2884
    %v3250 = vpack.c.b16 %v2887, %v2886
    %v3251 = vpack.c.b16 %v2889, %v2888
    %v3252 = vpack.c.b16 %v2891, %v2890
    %v3253 = vpack.c.b16 %v2893, %v2892
    %v3254 = vpack.c.b16 %v2895, %v2894
    %v3255 = vpack.c.b16 %v2897, %v2896
    %v3256 = vpack.c.b16 %v2899, %v2898
    %v3257 = vpack.c.b16 %v2901, %v2900
    %v3258 = vpack.c.b16 %v2903, %v2902
    %v3259 = vpack.c.b16 %v2905, %v2904
    %v3260 = vpack.c.b16 %v2907, %v2906
    %v3261 = vpack.c.b16 %v2909, %v2908
    %v3262 = vpack.c.b16 %v2911, %v2910
    %v3263 = vpack.c.b16 %v2913, %v2912
    %v3264 = vpack.c.b16 %v2915, %v2914
    %v3265 = vpack.c.b16 %v2917, %v2916
    %v3266 = vpack.c.b16 %v2919, %v2918
    %v3267 = vpack.c.b16 %v2921, %v2920
    %v3268 = vpack.c.b16 %v2923, %v2922
    %v3269 = vpack.c.b16 %v2925, %v2924
    %v3270 = vpack.c.b16 %v2927, %v2926
    %v3271 = vpack.c.b16 %v2929, %v2928
    %v3272 = vpack.c.b16 %v2931, %v2930
    %v3273 = vpack.c.b16 %v2933, %v2932
    %v3274 = vpack.c.b16 %v2935, %v2934
    %v3275 = vpack.c.b16 %v2937, %v2936
    %v3276 = vpack.c.b16 %v2939, %v2938
    %v3277 = vpack.c.b16 %v2941, %v2940
    %v3278 = vpack.c.b16 %v2943, %v2942
    %v3279 = vpack.c.b16 %v2945, %v2944
    %v3280 = vpack.c.b16 %v2947, %v2946
    %v3281 = vpack.c.b16 %v2949, %v2948
    %v3282 = vpack.c.b16 %v2951, %v2950
    %v3283 = vpack.c.b16 %v2953, %v2952
    %v3284 = vpack.c.b16 %v2955, %v2954
    %v3285 = vpack.c.b16 %v2957, %v2956
    %v3286 = vpack.c.b16 %v2959, %v2958
    %v3287 = vpack.c.b16 %v2961, %v2960
    %v3288 = vpack.c.b16 %v2963, %v2962
    %v3289 = vpack.c.b16 %v2965, %v2964
    %v3290 = vpack.c.b16 %v2967, %v2966
    %v3291 = vpack.c.b16 %v2969, %v2968
    %v3292 = vpack.c.b16 %v2971, %v2970
    %v3293 = vpack.c.b16 %v2973, %v2972
    %v3294 = vpack.c.b16 %v2975, %v2974
    %v3295 = vpack.c.b16 %v2977, %v2976
    %v3296 = vpack.c.b16 %v2979, %v2978
    %v3297 = vpack.c.b16 %v2981, %v2980
    %v3298 = vpack.c.b16 %v2983, %v2982
    %v3299 = vpack.c.b16 %v2985, %v2984
    %v3300 = vpack.c.b16 %v2987, %v2986
    %v3301 = vpack.c.b16 %v2989, %v2988
    %v3302 = vpack.c.b16 %v2991, %v2990
    %v3303 = vpack.c.b16 %v2993, %v2992
    %v3304 = vpack.c.b16 %v2995, %v2994
    %v3305 = vpack.c.b16 %v2997, %v2996
    %v3306 = vpack.c.b16 %v2999, %v2998
    %v3307 = vpack.c.b16 %v3001, %v3000
    %v3308 = vpack.c.b16 %v3003, %v3002
    %v3309 = vpack.c.b16 %v3005, %v3004
    %v3310 = vpack.c.b16 %v3007, %v3006
    %v3311 = vpack.c.b16 %v3009, %v3008
    %v3312 = vpack.c.b16 %v3011, %v3010
    %v3313 = vpack.c.b16 %v3013, %v3012
    %v3314 = vpack.c.b16 %v3015, %v3014
    %v3315 = vpack.c.b16 %v3017, %v3016
    %v3316 = vpack.c.b16 %v3019, %v3018
    %v3317 = vpack.c.b16 %v3021, %v3020
    %v3318 = vpack.c.b16 %v3023, %v3022
    %v3319 = vpack.c.b16 %v3025, %v3024
    %v3320 = vpack.c.b16 %v3027, %v3026
    %v3321 = vpack.c.b16 %v3029, %v3028
    %v3322 = vpack.c.b16 %v3031, %v3030
    %v3323 = vpack.c.b16 %v3033, %v3032
    %v3324 = vpack.c.b16 %v3035, %v3034
    %v3325 = vpack.c.b16 %v3037, %v3036
    %v3326 = vpack.c.b16 %v3039, %v3038
    %v3327 = vpack.c.b16 %v3041, %v3040
    %v3328 = vpack.c.b16 %v3043, %v3042
    %v3329 = vpack.c.b16 %v3045, %v3044
    %v3330 = vpack.c.b16 %v3047, %v3046
    %v3331 = vpack.c.b16 %v3049, %v3048
    %v3332 = vpack.c.b16 %v3051, %v3050
    %v3333 = vpack.c.b16 %v3053, %v3052
    %v3334 = vpack.c.b16 %v3055, %v3054
    %v3335 = vpack.c.b16 %v3057, %v3056
    %v3336 = vpack.c.b16 %v3059, %v3058
    %v3337 = vpack.c.b16 %v3061, %v3060
    %v3338 = vpack.c.b16 %v3063, %v3062
    %v3339 = vpack.c.b16 %v3065, %v3064
    %v3340 = vpack.c.b16 %v3067, %v3066
    %v3341 = vpack.c.b16 %v3069, %v3068
    %v3342 = vpack.c.b16 %v3071, %v3070
    %v3343 = vpack.c.b16 %v3073, %v3072
    %v3344 = vpack.c.b16 %v3075, %v3074
    %v3345 = vpack.c.b16 %v3077, %v3076
    %v3346 = vpack.c.b16 %v3079, %v3078
    %v3347 = vpack.c.b16 %v3081, %v3080
    %v3348 = vpack.c.b16 %v3083, %v3082
    %v3349 = vpack.c.b16 %v3085, %v3084
    %v3350 = vpack.c.b16 %v3087, %v3086
    %v3351 = vpack.c.b16 %v3089, %v3088
    %v3352 = vpack.c.b16 %v3091, %v3090
    %v3353 = vpack.c.b16 %v3093, %v3092
    %v3354 = vpack.c.b16 %v3095, %v3094
    %v3355 = vpack.c.b16 %v3097, %v3096
    %v3356 = vpack.c.b16 %v3099, %v3098
    %v3357 = vpack.c.b16 %v3101, %v3100
    %v3358 = vpack.c.b16 %v3103, %v3102
    %v3359 = vpack.c.b16 %v3105, %v3104
    %v3360 = vpack.c.b16 %v3107, %v3106
    %v3361 = vpack.c.b16 %v3109, %v3108
    %v3362 = vpack.c.b16 %v3111, %v3110
    %v3363 = vpack.c.b16 %v3113, %v3112
    %v3364 = vpack.c.b16 %v3115, %v3114
    %v3365 = vpack.c.b16 %v3117, %v3116
    %v3366 = vpack.c.b16 %v3119, %v3118
    %v3367 = vpack.c.b16 %v3121, %v3120
    %v3368 = vpack.c.b16 %v3123, %v3122
    %v3369 = vpack.c.b16 %v3125, %v3124
    %v3370 = vpack.c.b16 %v3127, %v3126
    %v3371 = vpack.c.b16 %v3129, %v3128
    %v3372 = vpack.c.b16 %v3131, %v3130
    %v3373 = vpack.c.b16 %v3133, %v3132
    %v3374 = vpack.c.b16 %v3135, %v3134
    %v3375 = vpack.c.b16 %v3137, %v3136
    %v3376 = vpack.c.b16 %v3139, %v3138
    %v3377 = vpack.c.b16 %v3141, %v3140
    %v3378 = vpack.c.b16 %v3143, %v3142
    %v3379 = vpack.c.b16 %v3145, %v3144
    %v3380 = vpack.c.b16 %v3147, %v3146
    %v3381 = vpack.c.b16 %v3149, %v3148
    %v3382 = vpack.c.b16 %v3151, %v3150
    %v3383 = vpack.c.b16 %v3153, %v3152
    %v3384 = vpack.c.b16 %v3155, %v3154
    %v3385 = vpack.c.b16 %v3157, %v3156
    %v3386 = vpack.c.b16 %v3159, %v3158
    %v3387 = vpack.c.b16 %v3161, %v3160
    %v3388 = vpack.c.b16 %v3163, %v3162
    %v3389 = vpack.c.b16 %v3165, %v3164
    %v3390 = vpack.c.b16 %v3167, %v3166
    %v3391 = vpack.c.b16 %v3169, %v3168
    %v3392 = vpack.c.b16 %v3171, %v3170
    %v3393 = vpack.c.b16 %v3173, %v3172
    %v3394 = vpack.c.b16 %v3175, %v3174
    %v3395 = vpack.c.b16 %v3177, %v3176
    %v3396 = vpack.c.b16 %v3179, %v3178
    %v3397 = vpack.c.b16 %v3181, %v3180
    %v3398 = vpack.c.b16 %v3183, %v3182
    %v3399 = vpack.c.b16 %v3185, %v3184
    %v3400 = vpack.c.b16 %v3187, %v3186
    %v3401 = vpack.c.b16 %v3189, %v3188
    %v3402 = vpack.c.b16 %v3191, %v3190
    %v3403 = vpack.c.b16 %v3193, %v3192
    %v3404 = vpack.c.b16 %v3195, %v3194
    %v3405 = vpack.c.b16 %v3197, %v3196
    %v3406 = vpack.c.b16 %v3199, %v3198
    %v3407 = vpack.c.b16 %v3201, %v3200
    %v3408 = vpack.c.b16 %v3203, %v3202
    %v3409 = vpack.c.b16 %v3205, %v3204
    %v3410 = vpack.c.b16 %v3207, %v3206
    %v3411 = vpack.c.b16 %v3209, %v3208
    %v3412 = vpack.c.b16 %v3211, %v3210
    %v3413 = vpack.c.b16 %v3213, %v3212
    %3614 = vmatprep.subr.bf16.mxu0 0
    %3615 = vmatpush1.bf16.msra.mxu0 %v3221
    %3616 = vmatprep.subr.bf16.mxu0 0
    %3617 = vmatpush1.bf16.msra.mxu0 %v3220
    %3618 = vmatprep.subr.bf16.mxu0 0
    %3619 = vmatpush1.bf16.msra.mxu0 %v3219
    %3620 = vmatprep.subr.bf16.mxu0 0
    %3621 = vmatpush1.bf16.msra.mxu0 %v3218
    %3622 = vmatprep.subr.bf16.mxu0 0
    %3623 = vmatpush1.bf16.msra.mxu0 %v3217
    %3624 = vmatprep.subr.bf16.mxu0 0
    %3625 = vmatpush1.bf16.msra.mxu0 %v3216
    %3626 = vmatprep.subr.bf16.mxu0 0
    %3627 = vmatpush1.bf16.msra.mxu0 %v3215
    %3628 = vmatprep.subr.bf16.mxu0 0
    %3629 = vmatpush1.bf16.msra.mxu0 %v3214
    %3630 = vmatprep.subr.bf16.mxu0 0
    %3631 = vmatpush2.bf16.msra.mxu0 %v3229
    %3632 = vmatprep.subr.bf16.mxu0 0
    %3633 = vmatpush2.bf16.msra.mxu0 %v3228
    %3634 = vmatprep.subr.bf16.mxu0 0
    %3635 = vmatpush2.bf16.msra.mxu0 %v3227
    %3636 = vmatprep.subr.bf16.mxu0 0
    %3637 = vmatpush2.bf16.msra.mxu0 %v3226
    %3638 = vmatprep.subr.bf16.mxu0 0
    %3639 = vmatpush2.bf16.msra.mxu0 %v3225
    %3640 = vmatprep.subr.bf16.mxu0 0
    %3641 = vmatpush2.bf16.msra.mxu0 %v3224
    %3642 = vmatprep.subr.bf16.mxu0 0
    %3643 = vmatpush2.bf16.msra.mxu0 %v3223
    %3644 = vmatprep.subr.bf16.mxu0 0
    %3645 = vmatpush2.bf16.msra.mxu0 %v3222
    %3646 = vmatprep.mubr.bf16.mxu0 %v2265
    %3647 = vmatmul.mubr.bf16.gmra.mxu0 %v2251
    %v3648 = vpop.f32.mrf.mxu0
    %v3649 = vadd.f32 %v2222, %v3648
    %v3650 = vpop.f32.mrf.mxu0
    %v3651 = vpop.f32.mrf.mxu0
    %v3652 = vpop.f32.mrf.mxu0
    %3653 = vdwg.mxu0
    %3654 = vmatprep.subr.bf16.mxu0 0
    %3655 = vmatpush1.bf16.msra.mxu0 %v3237
    %3656 = vmatprep.subr.bf16.mxu0 0
    %3657 = vmatpush1.bf16.msra.mxu0 %v3236
    %3658 = vmatprep.subr.bf16.mxu0 0
    %3659 = vmatpush1.bf16.msra.mxu0 %v3235
    %3660 = vmatprep.subr.bf16.mxu0 0
    %3661 = vmatpush1.bf16.msra.mxu0 %v3234
    %3662 = vmatprep.subr.bf16.mxu0 0
    %3663 = vmatpush1.bf16.msra.mxu0 %v3233
    %3664 = vmatprep.subr.bf16.mxu0 0
    %3665 = vmatpush1.bf16.msra.mxu0 %v3232
    %3666 = vmatprep.subr.bf16.mxu0 0
    %3667 = vmatpush1.bf16.msra.mxu0 %v3231
    %3668 = vmatprep.subr.bf16.mxu0 0
    %3669 = vmatpush1.bf16.msra.mxu0 %v3230
    %3670 = vmatprep.subr.bf16.mxu0 0
    %3671 = vmatpush2.bf16.msra.mxu0 %v3245
    %3672 = vmatprep.subr.bf16.mxu0 0
    %3673 = vmatpush2.bf16.msra.mxu0 %v3244
    %3674 = vmatprep.subr.bf16.mxu0 0
    %3675 = vmatpush2.bf16.msra.mxu0 %v3243
    %3676 = vmatprep.subr.bf16.mxu0 0
    %3677 = vmatpush2.bf16.msra.mxu0 %v3242
    %3678 = vmatprep.subr.bf16.mxu0 0
    %3679 = vmatpush2.bf16.msra.mxu0 %v3241
    %3680 = vmatprep.subr.bf16.mxu0 0
    %3681 = vmatpush2.bf16.msra.mxu0 %v3240
    %3682 = vmatprep.subr.bf16.mxu0 0
    %3683 = vmatpush2.bf16.msra.mxu0 %v3239
    %3684 = vmatprep.subr.bf16.mxu0 0
    %3685 = vmatpush2.bf16.msra.mxu0 %v3238
    %3686 = vmatprep.mubr.bf16.mxu0 %v2275
    %3687 = vmatmul.mubr.bf16.gmra.mxu0 %v2273
    %v3688 = vpop.f32.mrf.mxu0
    %v3689 = vadd.f32 %v3649, %v3688
    %v3690 = vpop.f32.mrf.mxu0
    %v3691 = vpop.f32.mrf.mxu0
    %v3692 = vpop.f32.mrf.mxu0
    %3693 = vdwg.mxu0
    %3694 = vmatprep.subr.bf16.mxu0 0
    %3695 = vmatpush1.bf16.msra.mxu0 %v3253
    %3696 = vmatprep.subr.bf16.mxu0 0
    %3697 = vmatpush1.bf16.msra.mxu0 %v3252
    %3698 = vmatprep.subr.bf16.mxu0 0
    %3699 = vmatpush1.bf16.msra.mxu0 %v3251
    %3700 = vmatprep.subr.bf16.mxu0 0
    %3701 = vmatpush1.bf16.msra.mxu0 %v3250
    %3702 = vmatprep.subr.bf16.mxu0 0
    %3703 = vmatpush1.bf16.msra.mxu0 %v3249
    %3704 = vmatprep.subr.bf16.mxu0 0
    %3705 = vmatpush1.bf16.msra.mxu0 %v3248
    %3706 = vmatprep.subr.bf16.mxu0 0
    %3707 = vmatpush1.bf16.msra.mxu0 %v3247
    %3708 = vmatprep.subr.bf16.mxu0 0
    %3709 = vmatpush1.bf16.msra.mxu0 %v3246
    %3710 = vmatprep.subr.bf16.mxu0 0
    %3711 = vmatpush2.bf16.msra.mxu0 %v3261
    %3712 = vmatprep.subr.bf16.mxu0 0
    %3713 = vmatpush2.bf16.msra.mxu0 %v3260
    %3714 = vmatprep.subr.bf16.mxu0 0
    %3715 = vmatpush2.bf16.msra.mxu0 %v3259
    %3716 = vmatprep.subr.bf16.mxu0 0
    %3717 = vmatpush2.bf16.msra.mxu0 %v3258
    %3718 = vmatprep.subr.bf16.mxu0 0
    %3719 = vmatpush2.bf16.msra.mxu0 %v3257
    %3720 = vmatprep.subr.bf16.mxu0 0
    %3721 = vmatpush2.bf16.msra.mxu0 %v3256
    %3722 = vmatprep.subr.bf16.mxu0 0
    %3723 = vmatpush2.bf16.msra.mxu0 %v3255
    %3724 = vmatprep.subr.bf16.mxu0 0
    %3725 = vmatpush2.bf16.msra.mxu0 %v3254
    %3726 = vmatprep.mubr.bf16.mxu0 %v2272
    %3727 = vmatmul.mubr.bf16.gmra.mxu0 %v2258
    %v3728 = vpop.f32.mrf.mxu0
    %v3729 = vadd.f32 %v3689, %v3728
    %v3730 = vpop.f32.mrf.mxu0
    %v3731 = vpop.f32.mrf.mxu0
    %v3732 = vpop.f32.mrf.mxu0
    %3733 = vdwg.mxu0
    %3734 = vmatprep.subr.bf16.mxu0 0
    %3735 = vmatpush1.bf16.msra.mxu0 %v3269
    %3736 = vmatprep.subr.bf16.mxu0 0
    %3737 = vmatpush1.bf16.msra.mxu0 %v3268
    %3738 = vmatprep.subr.bf16.mxu0 0
    %3739 = vmatpush1.bf16.msra.mxu0 %v3267
    %3740 = vmatprep.subr.bf16.mxu0 0
    %3741 = vmatpush1.bf16.msra.mxu0 %v3266
    %3742 = vmatprep.subr.bf16.mxu0 0
    %3743 = vmatpush1.bf16.msra.mxu0 %v3265
    %3744 = vmatprep.subr.bf16.mxu0 0
    %3745 = vmatpush1.bf16.msra.mxu0 %v3264
    %3746 = vmatprep.subr.bf16.mxu0 0
    %3747 = vmatpush1.bf16.msra.mxu0 %v3263
    %3748 = vmatprep.subr.bf16.mxu0 0
    %3749 = vmatpush1.bf16.msra.mxu0 %v3262
    %3750 = vmatprep.subr.bf16.mxu0 0
    %3751 = vmatpush2.bf16.msra.mxu0 %v3277
    %3752 = vmatprep.subr.bf16.mxu0 0
    %3753 = vmatpush2.bf16.msra.mxu0 %v3276
    %3754 = vmatprep.subr.bf16.mxu0 0
    %3755 = vmatpush2.bf16.msra.mxu0 %v3275
    %3756 = vmatprep.subr.bf16.mxu0 0
    %3757 = vmatpush2.bf16.msra.mxu0 %v3274
    %3758 = vmatprep.subr.bf16.mxu0 0
    %3759 = vmatpush2.bf16.msra.mxu0 %v3273
    %3760 = vmatprep.subr.bf16.mxu0 0
    %3761 = vmatpush2.bf16.msra.mxu0 %v3272
    %3762 = vmatprep.subr.bf16.mxu0 0
    %3763 = vmatpush2.bf16.msra.mxu0 %v3271
    %3764 = vmatprep.subr.bf16.mxu0 0
    %3765 = vmatpush2.bf16.msra.mxu0 %v3270
    %3766 = vmatprep.mubr.bf16.mxu0 %v2276
    %3767 = vmatmul.mubr.bf16.gmra.mxu0 %v2274
    %v3768 = vpop.f32.mrf.mxu0
    %v3769 = vadd.f32 %v3729, %v3768
    %v3770 = vpop.f32.mrf.mxu0
    %v3771 = vpop.f32.mrf.mxu0
    %v3772 = vpop.f32.mrf.mxu0
    %3773 = vdwg.mxu0
    %3774 = vmatprep.subr.bf16.mxu0 0
    %3775 = vmatpush1.bf16.msra.mxu0 %v3285
    %3776 = vmatprep.subr.bf16.mxu0 0
    %3777 = vmatpush1.bf16.msra.mxu0 %v3284
    %3778 = vmatprep.subr.bf16.mxu0 0
    %3779 = vmatpush1.bf16.msra.mxu0 %v3283
    %3780 = vmatprep.subr.bf16.mxu0 0
    %3781 = vmatpush1.bf16.msra.mxu0 %v3282
    %3782 = vmatprep.subr.bf16.mxu0 0
    %3783 = vmatpush1.bf16.msra.mxu0 %v3281
    %3784 = vmatprep.subr.bf16.mxu0 0
    %3785 = vmatpush1.bf16.msra.mxu0 %v3280
    %3786 = vmatprep.subr.bf16.mxu0 0
    %3787 = vmatpush1.bf16.msra.mxu0 %v3279
    %3788 = vmatprep.subr.bf16.mxu0 0
    %3789 = vmatpush1.bf16.msra.mxu0 %v3278
    %3790 = vmatprep.subr.bf16.mxu0 0
    %3791 = vmatpush2.bf16.msra.mxu0 %v3293
    %3792 = vmatprep.subr.bf16.mxu0 0
    %3793 = vmatpush2.bf16.msra.mxu0 %v3292
    %3794 = vmatprep.subr.bf16.mxu0 0
    %3795 = vmatpush2.bf16.msra.mxu0 %v3291
    %3796 = vmatprep.subr.bf16.mxu0 0
    %3797 = vmatpush2.bf16.msra.mxu0 %v3290
    %3798 = vmatprep.subr.bf16.mxu0 0
    %3799 = vmatpush2.bf16.msra.mxu0 %v3289
    %3800 = vmatprep.subr.bf16.mxu0 0
    %3801 = vmatpush2.bf16.msra.mxu0 %v3288
    %3802 = vmatprep.subr.bf16.mxu0 0
    %3803 = vmatpush2.bf16.msra.mxu0 %v3287
    %3804 = vmatprep.subr.bf16.mxu0 0
    %3805 = vmatpush2.bf16.msra.mxu0 %v3286
    %3806 = vmatprep.mubr.bf16.mxu0 %v2314
    %3807 = vmatmul.mubr.bf16.gmra.mxu0 %v2300
    %v3808 = vpop.f32.mrf.mxu0
    %v3809 = vadd.f32 %v3769, %v3808
    %v3810 = vpop.f32.mrf.mxu0
    %v3811 = vpop.f32.mrf.mxu0
    %v3812 = vpop.f32.mrf.mxu0
    %3813 = vdwg.mxu0
    %3814 = vmatprep.subr.bf16.mxu0 0
    %3815 = vmatpush1.bf16.msra.mxu0 %v3301
    %3816 = vmatprep.subr.bf16.mxu0 0
    %3817 = vmatpush1.bf16.msra.mxu0 %v3300
    %3818 = vmatprep.subr.bf16.mxu0 0
    %3819 = vmatpush1.bf16.msra.mxu0 %v3299
    %3820 = vmatprep.subr.bf16.mxu0 0
    %3821 = vmatpush1.bf16.msra.mxu0 %v3298
    %3822 = vmatprep.subr.bf16.mxu0 0
    %3823 = vmatpush1.bf16.msra.mxu0 %v3297
    %3824 = vmatprep.subr.bf16.mxu0 0
    %3825 = vmatpush1.bf16.msra.mxu0 %v3296
    %3826 = vmatprep.subr.bf16.mxu0 0
    %3827 = vmatpush1.bf16.msra.mxu0 %v3295
    %3828 = vmatprep.subr.bf16.mxu0 0
    %3829 = vmatpush1.bf16.msra.mxu0 %v3294
    %3830 = vmatprep.subr.bf16.mxu0 0
    %3831 = vmatpush2.bf16.msra.mxu0 %v3309
    %3832 = vmatprep.subr.bf16.mxu0 0
    %3833 = vmatpush2.bf16.msra.mxu0 %v3308
    %3834 = vmatprep.subr.bf16.mxu0 0
    %3835 = vmatpush2.bf16.msra.mxu0 %v3307
    %3836 = vmatprep.subr.bf16.mxu0 0
    %3837 = vmatpush2.bf16.msra.mxu0 %v3306
    %3838 = vmatprep.subr.bf16.mxu0 0
    %3839 = vmatpush2.bf16.msra.mxu0 %v3305
    %3840 = vmatprep.subr.bf16.mxu0 0
    %3841 = vmatpush2.bf16.msra.mxu0 %v3304
    %3842 = vmatprep.subr.bf16.mxu0 0
    %3843 = vmatpush2.bf16.msra.mxu0 %v3303
    %3844 = vmatprep.subr.bf16.mxu0 0
    %3845 = vmatpush2.bf16.msra.mxu0 %v3302
    %3846 = vmatprep.mubr.bf16.mxu0 %v2324
    %3847 = vmatmul.mubr.bf16.gmra.mxu0 %v2322
    %v3848 = vpop.f32.mrf.mxu0
    %v3849 = vadd.f32 %v3809, %v3848
    %v3850 = vpop.f32.mrf.mxu0
    %v3851 = vpop.f32.mrf.mxu0
    %v3852 = vpop.f32.mrf.mxu0
    %3853 = vdwg.mxu0
    %3854 = vmatprep.subr.bf16.mxu0 0
    %3855 = vmatpush1.bf16.msra.mxu0 %v3317
    %3856 = vmatprep.subr.bf16.mxu0 0
    %3857 = vmatpush1.bf16.msra.mxu0 %v3316
    %3858 = vmatprep.subr.bf16.mxu0 0
    %3859 = vmatpush1.bf16.msra.mxu0 %v3315
    %3860 = vmatprep.subr.bf16.mxu0 0
    %3861 = vmatpush1.bf16.msra.mxu0 %v3314
    %3862 = vmatprep.subr.bf16.mxu0 0
    %3863 = vmatpush1.bf16.msra.mxu0 %v3313
    %3864 = vmatprep.subr.bf16.mxu0 0
    %3865 = vmatpush1.bf16.msra.mxu0 %v3312
    %3866 = vmatprep.subr.bf16.mxu0 0
    %3867 = vmatpush1.bf16.msra.mxu0 %v3311
    %3868 = vmatprep.subr.bf16.mxu0 0
    %3869 = vmatpush1.bf16.msra.mxu0 %v3310
    %3870 = vmatprep.subr.bf16.mxu0 0
    %3871 = vmatpush2.bf16.msra.mxu0 %v3325
    %3872 = vmatprep.subr.bf16.mxu0 0
    %3873 = vmatpush2.bf16.msra.mxu0 %v3324
    %3874 = vmatprep.subr.bf16.mxu0 0
    %3875 = vmatpush2.bf16.msra.mxu0 %v3323
    %3876 = vmatprep.subr.bf16.mxu0 0
    %3877 = vmatpush2.bf16.msra.mxu0 %v3322
    %3878 = vmatprep.subr.bf16.mxu0 0
    %3879 = vmatpush2.bf16.msra.mxu0 %v3321
    %3880 = vmatprep.subr.bf16.mxu0 0
    %3881 = vmatpush2.bf16.msra.mxu0 %v3320
    %3882 = vmatprep.subr.bf16.mxu0 0
    %3883 = vmatpush2.bf16.msra.mxu0 %v3319
    %3884 = vmatprep.subr.bf16.mxu0 0
    %3885 = vmatpush2.bf16.msra.mxu0 %v3318
    %3886 = vmatprep.mubr.bf16.mxu0 %v2321
    %3887 = vmatmul.mubr.bf16.gmra.mxu0 %v2307
    %v3888 = vpop.f32.mrf.mxu0
    %v3889 = vadd.f32 %v3849, %v3888
    %v3890 = vpop.f32.mrf.mxu0
    %v3891 = vpop.f32.mrf.mxu0
    %v3892 = vpop.f32.mrf.mxu0
    %3893 = vdwg.mxu0
    %3894 = vmatprep.subr.bf16.mxu0 0
    %3895 = vmatpush1.bf16.msra.mxu0 %v3333
    %3896 = vmatprep.subr.bf16.mxu0 0
    %3897 = vmatpush1.bf16.msra.mxu0 %v3332
    %3898 = vmatprep.subr.bf16.mxu0 0
    %3899 = vmatpush1.bf16.msra.mxu0 %v3331
    %3900 = vmatprep.subr.bf16.mxu0 0
    %3901 = vmatpush1.bf16.msra.mxu0 %v3330
    %3902 = vmatprep.subr.bf16.mxu0 0
    %3903 = vmatpush1.bf16.msra.mxu0 %v3329
    %3904 = vmatprep.subr.bf16.mxu0 0
    %3905 = vmatpush1.bf16.msra.mxu0 %v3328
    %3906 = vmatprep.subr.bf16.mxu0 0
    %3907 = vmatpush1.bf16.msra.mxu0 %v3327
    %3908 = vmatprep.subr.bf16.mxu0 0
    %3909 = vmatpush1.bf16.msra.mxu0 %v3326
    %3910 = vmatprep.subr.bf16.mxu0 0
    %3911 = vmatpush2.bf16.msra.mxu0 %v3341
    %3912 = vmatprep.subr.bf16.mxu0 0
    %3913 = vmatpush2.bf16.msra.mxu0 %v3340
    %3914 = vmatprep.subr.bf16.mxu0 0
    %3915 = vmatpush2.bf16.msra.mxu0 %v3339
    %3916 = vmatprep.subr.bf16.mxu0 0
    %3917 = vmatpush2.bf16.msra.mxu0 %v3338
    %3918 = vmatprep.subr.bf16.mxu0 0
    %3919 = vmatpush2.bf16.msra.mxu0 %v3337
    %3920 = vmatprep.subr.bf16.mxu0 0
    %3921 = vmatpush2.bf16.msra.mxu0 %v3336
    %3922 = vmatprep.subr.bf16.mxu0 0
    %3923 = vmatpush2.bf16.msra.mxu0 %v3335
    %3924 = vmatprep.subr.bf16.mxu0 0
    %3925 = vmatpush2.bf16.msra.mxu0 %v3334
    %3926 = vmatprep.mubr.bf16.mxu0 %v2325
    %3927 = vmatmul.mubr.bf16.gmra.mxu0 %v2323
    %v3928 = vpop.f32.mrf.mxu0
    %v3929 = vadd.f32 %v3889, %v3928
    %v3930 = vpop.f32.mrf.mxu0
    %v3931 = vpop.f32.mrf.mxu0
    %v3932 = vpop.f32.mrf.mxu0
    %3933 = vdwg.mxu0
    %3934 = vmatprep.subr.bf16.mxu0 0
    %3935 = vmatpush1.bf16.msra.mxu0 %v3349
    %3936 = vmatprep.subr.bf16.mxu0 0
    %3937 = vmatpush1.bf16.msra.mxu0 %v3348
    %3938 = vmatprep.subr.bf16.mxu0 0
    %3939 = vmatpush1.bf16.msra.mxu0 %v3347
    %3940 = vmatprep.subr.bf16.mxu0 0
    %3941 = vmatpush1.bf16.msra.mxu0 %v3346
    %3942 = vmatprep.subr.bf16.mxu0 0
    %3943 = vmatpush1.bf16.msra.mxu0 %v3345
    %3944 = vmatprep.subr.bf16.mxu0 0
    %3945 = vmatpush1.bf16.msra.mxu0 %v3344
    %3946 = vmatprep.subr.bf16.mxu0 0
    %3947 = vmatpush1.bf16.msra.mxu0 %v3343
    %3948 = vmatprep.subr.bf16.mxu0 0
    %3949 = vmatpush1.bf16.msra.mxu0 %v3342
    %3950 = vmatprep.subr.bf16.mxu0 0
    %3951 = vmatpush2.bf16.msra.mxu0 %v3357
    %3952 = vmatprep.subr.bf16.mxu0 0
    %3953 = vmatpush2.bf16.msra.mxu0 %v3356
    %3954 = vmatprep.subr.bf16.mxu0 0
    %3955 = vmatpush2.bf16.msra.mxu0 %v3355
    %3956 = vmatprep.subr.bf16.mxu0 0
    %3957 = vmatpush2.bf16.msra.mxu0 %v3354
    %3958 = vmatprep.subr.bf16.mxu0 0
    %3959 = vmatpush2.bf16.msra.mxu0 %v3353
    %3960 = vmatprep.subr.bf16.mxu0 0
    %3961 = vmatpush2.bf16.msra.mxu0 %v3352
    %3962 = vmatprep.subr.bf16.mxu0 0
    %3963 = vmatpush2.bf16.msra.mxu0 %v3351
    %3964 = vmatprep.subr.bf16.mxu0 0
    %3965 = vmatpush2.bf16.msra.mxu0 %v3350
    %3966 = vmatprep.mubr.bf16.mxu0 %v2363
    %3967 = vmatmul.mubr.bf16.gmra.mxu0 %v2349
    %v3968 = vpop.f32.mrf.mxu0
    %v3969 = vadd.f32 %v3929, %v3968
    %v3970 = vpop.f32.mrf.mxu0
    %v3971 = vpop.f32.mrf.mxu0
    %v3972 = vpop.f32.mrf.mxu0
    %3973 = vdwg.mxu0
    %3974 = vmatprep.subr.bf16.mxu0 0
    %3975 = vmatpush1.bf16.msra.mxu0 %v3365
    %3976 = vmatprep.subr.bf16.mxu0 0
    %3977 = vmatpush1.bf16.msra.mxu0 %v3364
    %3978 = vmatprep.subr.bf16.mxu0 0
    %3979 = vmatpush1.bf16.msra.mxu0 %v3363
    %3980 = vmatprep.subr.bf16.mxu0 0
    %3981 = vmatpush1.bf16.msra.mxu0 %v3362
    %3982 = vmatprep.subr.bf16.mxu0 0
    %3983 = vmatpush1.bf16.msra.mxu0 %v3361
    %3984 = vmatprep.subr.bf16.mxu0 0
    %3985 = vmatpush1.bf16.msra.mxu0 %v3360
    %3986 = vmatprep.subr.bf16.mxu0 0
    %3987 = vmatpush1.bf16.msra.mxu0 %v3359
    %3988 = vmatprep.subr.bf16.mxu0 0
    %3989 = vmatpush1.bf16.msra.mxu0 %v3358
    %3990 = vmatprep.subr.bf16.mxu0 0
    %3991 = vmatpush2.bf16.msra.mxu0 %v3373
    %3992 = vmatprep.subr.bf16.mxu0 0
    %3993 = vmatpush2.bf16.msra.mxu0 %v3372
    %3994 = vmatprep.subr.bf16.mxu0 0
    %3995 = vmatpush2.bf16.msra.mxu0 %v3371
    %3996 = vmatprep.subr.bf16.mxu0 0
    %3997 = vmatpush2.bf16.msra.mxu0 %v3370
    %3998 = vmatprep.subr.bf16.mxu0 0
    %3999 = vmatpush2.bf16.msra.mxu0 %v3369
    %4000 = vmatprep.subr.bf16.mxu0 0
    %4001 = vmatpush2.bf16.msra.mxu0 %v3368
    %4002 = vmatprep.subr.bf16.mxu0 0
    %4003 = vmatpush2.bf16.msra.mxu0 %v3367
    %4004 = vmatprep.subr.bf16.mxu0 0
    %4005 = vmatpush2.bf16.msra.mxu0 %v3366
    %4006 = vmatprep.mubr.bf16.mxu0 %v2373
    %4007 = vmatmul.mubr.bf16.gmra.mxu0 %v2371
    %v4008 = vpop.f32.mrf.mxu0
    %v4009 = vadd.f32 %v3969, %v4008
    %v4010 = vpop.f32.mrf.mxu0
    %v4011 = vpop.f32.mrf.mxu0
    %v4012 = vpop.f32.mrf.mxu0
    %4013 = vdwg.mxu0
    %4014 = vmatprep.subr.bf16.mxu0 0
    %4015 = vmatpush1.bf16.msra.mxu0 %v3381
    %4016 = vmatprep.subr.bf16.mxu0 0
    %4017 = vmatpush1.bf16.msra.mxu0 %v3380
    %4018 = vmatprep.subr.bf16.mxu0 0
    %4019 = vmatpush1.bf16.msra.mxu0 %v3379
    %4020 = vmatprep.subr.bf16.mxu0 0
    %4021 = vmatpush1.bf16.msra.mxu0 %v3378
    %4022 = vmatprep.subr.bf16.mxu0 0
    %4023 = vmatpush1.bf16.msra.mxu0 %v3377
    %4024 = vmatprep.subr.bf16.mxu0 0
    %4025 = vmatpush1.bf16.msra.mxu0 %v3376
    %4026 = vmatprep.subr.bf16.mxu0 0
    %4027 = vmatpush1.bf16.msra.mxu0 %v3375
    %4028 = vmatprep.subr.bf16.mxu0 0
    %4029 = vmatpush1.bf16.msra.mxu0 %v3374
    %4030 = vmatprep.subr.bf16.mxu0 0
    %4031 = vmatpush2.bf16.msra.mxu0 %v3389
    %4032 = vmatprep.subr.bf16.mxu0 0
    %4033 = vmatpush2.bf16.msra.mxu0 %v3388
    %4034 = vmatprep.subr.bf16.mxu0 0
    %4035 = vmatpush2.bf16.msra.mxu0 %v3387
    %4036 = vmatprep.subr.bf16.mxu0 0
    %4037 = vmatpush2.bf16.msra.mxu0 %v3386
    %4038 = vmatprep.subr.bf16.mxu0 0
    %4039 = vmatpush2.bf16.msra.mxu0 %v3385
    %4040 = vmatprep.subr.bf16.mxu0 0
    %4041 = vmatpush2.bf16.msra.mxu0 %v3384
    %4042 = vmatprep.subr.bf16.mxu0 0
    %4043 = vmatpush2.bf16.msra.mxu0 %v3383
    %4044 = vmatprep.subr.bf16.mxu0 0
    %4045 = vmatpush2.bf16.msra.mxu0 %v3382
    %4046 = vmatprep.mubr.bf16.mxu0 %v2370
    %4047 = vmatmul.mubr.bf16.gmra.mxu0 %v2356
    %v4048 = vpop.f32.mrf.mxu0
    %v4049 = vadd.f32 %v4009, %v4048
    %v4050 = vpop.f32.mrf.mxu0
    %v4051 = vpop.f32.mrf.mxu0
    %v4052 = vpop.f32.mrf.mxu0
    %4053 = vdwg.mxu0
    %4054 = vmatprep.subr.bf16.mxu0 0
    %4055 = vmatpush1.bf16.msra.mxu0 %v3397
    %4056 = vmatprep.subr.bf16.mxu0 0
    %4057 = vmatpush1.bf16.msra.mxu0 %v3396
    %4058 = vmatprep.subr.bf16.mxu0 0
    %4059 = vmatpush1.bf16.msra.mxu0 %v3395
    %4060 = vmatprep.subr.bf16.mxu0 0
    %4061 = vmatpush1.bf16.msra.mxu0 %v3394
    %4062 = vmatprep.subr.bf16.mxu0 0
    %4063 = vmatpush1.bf16.msra.mxu0 %v3393
    %4064 = vmatprep.subr.bf16.mxu0 0
    %4065 = vmatpush1.bf16.msra.mxu0 %v3392
    %4066 = vmatprep.subr.bf16.mxu0 0
    %4067 = vmatpush1.bf16.msra.mxu0 %v3391
    %4068 = vmatprep.subr.bf16.mxu0 0
    %4069 = vmatpush1.bf16.msra.mxu0 %v3390
    %4070 = vmatprep.subr.bf16.mxu0 0
    %4071 = vmatpush2.bf16.msra.mxu0 %v3405
    %4072 = vmatprep.subr.bf16.mxu0 0
    %4073 = vmatpush2.bf16.msra.mxu0 %v3404
    %4074 = vmatprep.subr.bf16.mxu0 0
    %4075 = vmatpush2.bf16.msra.mxu0 %v3403
    %4076 = vmatprep.subr.bf16.mxu0 0
    %4077 = vmatpush2.bf16.msra.mxu0 %v3402
    %4078 = vmatprep.subr.bf16.mxu0 0
    %4079 = vmatpush2.bf16.msra.mxu0 %v3401
    %4080 = vmatprep.subr.bf16.mxu0 0
    %4081 = vmatpush2.bf16.msra.mxu0 %v3400
    %4082 = vmatprep.subr.bf16.mxu0 0
    %4083 = vmatpush2.bf16.msra.mxu0 %v3399
    %4084 = vmatprep.subr.bf16.mxu0 0
    %4085 = vmatpush2.bf16.msra.mxu0 %v3398
    %4086 = vmatprep.mubr.bf16.mxu0 %v2374
    %4087 = vmatmul.mubr.bf16.gmra.mxu0 %v2372
    %v4088 = vpop.f32.mrf.mxu0
    %v4089 = vadd.f32 %v4049, %v4088
    %v4090 = vpop.f32.mrf.mxu0
    %v4091 = vpop.f32.mrf.mxu0
    %v4092 = vpop.f32.mrf.mxu0
    %4093 = vdwg.mxu0
    %4094 = vmatprep.subr.bf16.mxu0 0
    %4095 = vmatpush1.bf16.msra.mxu0 %v3413
    %4096 = vmatprep.subr.bf16.mxu0 0
    %4097 = vmatpush1.bf16.msra.mxu0 %v3412
    %4098 = vmatprep.subr.bf16.mxu0 0
    %4099 = vmatpush1.bf16.msra.mxu0 %v3411
    %4100 = vmatprep.subr.bf16.mxu0 0
    %4101 = vmatpush1.bf16.msra.mxu0 %v3410
    %4102 = vmatprep.subr.bf16.mxu0 0
    %4103 = vmatpush1.bf16.msra.mxu0 %v3409
    %4104 = vmatprep.subr.bf16.mxu0 0
    %4105 = vmatpush1.bf16.msra.mxu0 %v3408
    %4106 = vmatprep.subr.bf16.mxu0 0
    %4107 = vmatpush1.bf16.msra.mxu0 %v3407
    %4108 = vmatprep.subr.bf16.mxu0 0
    %4109 = vmatpush1.bf16.msra.mxu0 %v3406
    %4110 = vmatprep.subr.bf16.mxu0 0
    %4111 = vmatpush2.bf16.msra.mxu0 0
    %4112 = vmatprep.subr.bf16.mxu0 0
    %4113 = vmatpush2.bf16.msra.mxu0 0
    %4114 = vmatprep.subr.bf16.mxu0 0
    %4115 = vmatpush2.bf16.msra.mxu0 0
    %4116 = vmatprep.subr.bf16.mxu0 0
    %4117 = vmatpush2.bf16.msra.mxu0 0
    %4118 = vmatprep.subr.bf16.mxu0 0
    %4119 = vmatpush2.bf16.msra.mxu0 0
    %4120 = vmatprep.subr.bf16.mxu0 0
    %4121 = vmatpush2.bf16.msra.mxu0 0
    %4122 = vmatprep.subr.bf16.mxu0 0
    %4123 = vmatpush2.bf16.msra.mxu0 0
    %4124 = vmatprep.subr.bf16.mxu0 0
    %4125 = vmatpush2.bf16.msra.mxu0 0
    %4126 = vmatprep.mubr.bf16.mxu0 0
    %4127 = vmatmul.mubr.bf16.gmra.mxu0 %v2388
    %v4128 = vpop.f32.mrf.mxu0
    %v4129 = vadd.f32 %v4089, %v4128
    %v4130 = vpop.f32.mrf.mxu0
    %v4131 = vpop.f32.mrf.mxu0
    %v4132 = vpop.f32.mrf.mxu0
    %4133 = vdwg.mxu0
    %v4134 = vmax.f32 %v4129, 0.0
    %v4135 = vpack.c.bf16 %v4134, %v4134
    %v4136 = vld [vmem:[%s8] sm:$0xf]
    %v4137 = vld [vmem:[%s8 + $0x4] sm:$0xf]
    %v4138 = vld [vmem:[%s8 + $0x8] sm:$0xf]
    %v4139 = vld [vmem:[%s8 + $0xc] sm:$0xf]
    %v4140 = vld [vmem:[%s8 + $0x10] sm:$0xf]
    %v4141 = vld [vmem:[%s8 + $0x14] sm:$0xf]
    %v4142 = vld [vmem:[%s8 + $0x18] sm:$0xf]
    %v4143 = vld [vmem:[%s8 + $0x1c] sm:$0xf]
    %v4144 = vld [vmem:[%s8 + $0x20] sm:$0xf]
    %v4145 = vld [vmem:[%s8 + $0x24] sm:$0xf]
    %v4146 = vld [vmem:[%s8 + $0x28] sm:$0xf]
    %v4147 = vld [vmem:[%s8 + $0x2c] sm:$0xf]
    %v4148 = vld [vmem:[%s8 + $0x30] sm:$0xf]
    %v4149 = vld [vmem:[%s8 + $0x34] sm:$0xf]
    %v4150 = vld [vmem:[%s8 + $0x38] sm:$0xf]
    %v4151 = vld [vmem:[%s8 + $0x3c] sm:$0xf]
    %v4152 = vld [vmem:[%s9] sm:$0x1]
    %v4154 = vlaneseq
    %v4155 = vshrl.u32 %v4154, 7
    %v4156 = vsub.s32 0, %v4155
    %v4157 = vrot.slane %v4152, %v4156
    %v4175 = vunpack.c.l.b16 %v4136
    %v4176 = vunpack.c.l.b16 %v4137
    %v4177 = vunpack.c.l.b16 %v4138
    %v4178 = vunpack.c.l.b16 %v4139
    %v4179 = vunpack.c.l.b16 %v4140
    %v4180 = vunpack.c.l.b16 %v4141
    %v4181 = vunpack.c.l.b16 %v4142
    %v4182 = vunpack.c.l.b16 %v4143
    %v4183 = vunpack.c.l.b16 %v4144
    %v4184 = vunpack.c.l.b16 %v4145
    %v4185 = vunpack.c.l.b16 %v4146
    %v4186 = vunpack.c.l.b16 %v4147
    %v4187 = vunpack.c.l.b16 %v4148
    %v4188 = vunpack.c.l.b16 %v4149
    %v4189 = vunpack.c.l.b16 %v4150
    %v4190 = vunpack.c.l.b16 %v4151
    %v4191 = vpack.c.b16 %v4176, %v4175
    %v4192 = vpack.c.b16 %v4178, %v4177
    %v4193 = vpack.c.b16 %v4180, %v4179
    %v4194 = vpack.c.b16 %v4182, %v4181
    %v4195 = vpack.c.b16 %v4184, %v4183
    %v4196 = vpack.c.b16 %v4186, %v4185
    %v4197 = vpack.c.b16 %v4188, %v4187
    %v4198 = vpack.c.b16 %v4190, %v4189
    %4207 = vmatprep.subr.bf16.mxu0 0
    %4208 = vmatpush1.bf16.msra.mxu0 %v4198
    %4209 = vmatprep.subr.bf16.mxu0 0
    %4210 = vmatpush1.bf16.msra.mxu0 %v4197
    %4211 = vmatprep.subr.bf16.mxu0 0
    %4212 = vmatpush1.bf16.msra.mxu0 %v4196
    %4213 = vmatprep.subr.bf16.mxu0 0
    %4214 = vmatpush1.bf16.msra.mxu0 %v4195
    %4215 = vmatprep.subr.bf16.mxu0 0
    %4216 = vmatpush1.bf16.msra.mxu0 %v4194
    %4217 = vmatprep.subr.bf16.mxu0 0
    %4218 = vmatpush1.bf16.msra.mxu0 %v4193
    %4219 = vmatprep.subr.bf16.mxu0 0
    %4220 = vmatpush1.bf16.msra.mxu0 %v4192
    %4221 = vmatprep.subr.bf16.mxu0 0
    %4222 = vmatpush1.bf16.msra.mxu0 %v4191
    %4223 = vmatprep.subr.bf16.mxu0 0
    %4224 = vmatpush2.bf16.msra.mxu0 0
    %4225 = vmatprep.subr.bf16.mxu0 0
    %4226 = vmatpush2.bf16.msra.mxu0 0
    %4227 = vmatprep.subr.bf16.mxu0 0
    %4228 = vmatpush2.bf16.msra.mxu0 0
    %4229 = vmatprep.subr.bf16.mxu0 0
    %4230 = vmatpush2.bf16.msra.mxu0 0
    %4231 = vmatprep.subr.bf16.mxu0 0
    %4232 = vmatpush2.bf16.msra.mxu0 0
    %4233 = vmatprep.subr.bf16.mxu0 0
    %4234 = vmatpush2.bf16.msra.mxu0 0
    %4235 = vmatprep.subr.bf16.mxu0 0
    %4236 = vmatpush2.bf16.msra.mxu0 0
    %4237 = vmatprep.subr.bf16.mxu0 0
    %4238 = vmatpush2.bf16.msra.mxu0 0
    %4239 = vmatprep.mubr.bf16.mxu0 0
    %4240 = vmatmul.mubr.bf16.gmra.mxu0 %v4135
    %v4241 = vpop.f32.mrf.mxu0
    %v4242 = vadd.f32 %v4157, %v4241
    %v4243 = vpop.f32.mrf.mxu0
    %v4244 = vpop.f32.mrf.mxu0
    %v4245 = vpop.f32.mrf.mxu0
    %4246 = vdwg.mxu0
    %v4247 = vmax.f32 %v4242, 0.0
    %4248 = vst [vmem:[#allocation2] sm:$0x3] %v4247
    // Predicated region
    $region42: #{net_forward.11} parent=1 // pred_check
      _
    $region43: #{net_forward.11} parent=1 // pred_check_branch
      %4250 = sbr.rel (0) target = $region45
    $region44: #{net_forward.11} parent=1 // pred_region
      %s4252 = ssub.s32 32, 32
      %4253 = vsyncadd [#allocation3], %s4252
      %s4255 = sshll.u32 [#allocation2], 4
      %s4256 = int_to_ptr.vmem [resolvable:$true] %s4255
      %4258 = dma.vmem_to_hbm [thread:$0]  %s4256, 32, %s10, [#allocation3]
    $region45: #{net_forward.11} parent=1 // pred_fallthru
      _
    // Predicated region
    $region46: #{net_forward.11} parent=1 // pred_check
      _
    $region47: #{net_forward.11} parent=1 // pred_check_branch
      %4260 = sbr.rel (0) target = $region49
    $region48: #{net_forward.11} parent=1 // pred_region
      %4261 = dma.done [#allocation3], 32
    $region49: #{net_forward.11} parent=1 // pred_fallthru
      _
    %4262 = vsyncpa [#allocation3], 1

</llo_original>
